<compile_context>
chip_gen: v6e
topology: v6e:2x2x1
jax: 0.10.0
libtpu: 0.0.40
codegen_flags: <defaults>
</compile_context>

<pallas_src>
import functools

import jax
import jax.numpy as jnp
from jax.experimental import pallas as pl
from jax.experimental.pallas import tpu as pltpu


def _round_up(n, m):
    return ((n + m - 1) // m) * m


def _round8(n):
    return _round_up(n, 8)


# ------------------------------ fused kernel ------------------------------- #

def _fused_kernel(patches_ref, flat_ref, id_ref, h_ref,
                  w1_ref, b1_ref, w2_ref, b2_ref, w3_ref, b3_ref,
                  wf1_ref, bf1_ref, wf2a_ref, wf2b_ref, bf2_ref,
                  wih_ref, whh_ref, bih_ref, bhh_ref,
                  wf3a_ref, wf3b_ref, bf3_ref, wf4_ref, bf4_ref,
                  out_ref,
                  a1_ref, a2_ref, a3_ref,
                  *, B, W_in, Ho3, Wo3, n2w, n3w, row_blk, H):
    """Whole SeeIdAgent forward; every ref is a whole-array VMEM block."""
    f32 = jnp.float32
    bf16 = jnp.bfloat16

    # ---- conv1: one im2col GEMM over every flattened row (bias + ReLU). ----
    a1 = jnp.dot(patches_ref[...], w1_ref[...], preferred_element_type=f32)
    a1_ref[...] = jnp.maximum(a1 + b1_ref[...], 0.0).astype(a1_ref.dtype)

    # ---- conv2 / conv3: 3 dh taps; dw folded into K via lane-concat of the ----
    # ---- three shifted slabs.  Row-chunked (multiples of 8) for vregs.     ----
    def conv_layer(src_ref, w_ref, b_ref, dst_ref, n_rows, row_chunk=104):
        cout = w_ref.shape[-1]
        for r0 in range(0, n_rows, row_chunk):
            nr = min(row_chunk, n_rows - r0)
            acc = jnp.zeros((nr, cout), f32)
            for dh in range(3):
                base = r0 + dh * W_in
                lhs = jnp.concatenate(
                    [src_ref[base + dw: base + dw + nr, :] for dw in range(3)],
                    axis=-1)
                acc = acc + jnp.dot(lhs, w_ref[dh], preferred_element_type=f32)
            dst_ref[r0:r0 + nr, :] = jnp.maximum(acc + b_ref[...],
                                                 0.0).astype(dst_ref.dtype)

    conv_layer(a1_ref, w2_ref, b2_ref, a2_ref, n2w)
    conv_layer(a2_ref, w3_ref, b3_ref, a3_ref, n3w)

    # ---- fc1: 25 accumulating (B, C3) @ (C3, 256) matmuls (weight-push bound). ----
    # ---- The B batch rows per pixel come from ONE strided load per pixel.      ----
    nfc1 = wf1_ref.shape[-1]
    acc1 = jnp.zeros((B, nfc1), f32)
    for ph in range(Ho3):
        for pw in range(Wo3):
            r = ph * W_in + pw
            lhs = a3_ref[pl.ds(r, B, stride=row_blk), :].astype(bf16)
            acc1 = acc1 + jnp.dot(lhs, wf1_ref[ph * Wo3 + pw],
                                  preferred_element_type=f32)
    obs = jnp.maximum(acc1 + bf1_ref[...], 0.0)

    # ---- fc2: torch's cat([obs, flat]) folded into a split matmul, + ReLU. ----
    obs = jnp.maximum(
        jnp.dot(obs.astype(bf16), wf2a_ref[...], preferred_element_type=f32)
        + jnp.dot(flat_ref[...], wf2b_ref[...], preferred_element_type=f32)
        + bf2_ref[...], 0.0)

    # ---- GRUCell with packed (r|z|n) gates: one matmul per side (tiny, f32). ----
    h_in = h_ref[...]
    gi = jnp.dot(obs, wih_ref[...], preferred_element_type=f32) + bih_ref[...]
    gh = jnp.dot(h_in, whh_ref[...], preferred_element_type=f32) + bhh_ref[...]
    r_g = jax.nn.sigmoid(gi[:, 0:H] + gh[:, 0:H])
    z_g = jax.nn.sigmoid(gi[:, H:2 * H] + gh[:, H:2 * H])
    n_g = jnp.tanh(gi[:, 2 * H:3 * H] + r_g * gh[:, 2 * H:3 * H])
    h_new = (1.0 - z_g) * n_g + z_g * h_in

    # ---- fc3 (split concat) + ReLU, fc4 (output pre-padded lane-dense). ----
    x3 = jnp.maximum(
        jnp.dot(h_new, wf3a_ref[...], preferred_element_type=f32)
        + jnp.dot(id_ref[...], wf3b_ref[...], preferred_element_type=f32)
        + bf3_ref[...], 0.0)
    q_pad = jnp.dot(x3, wf4_ref[...], preferred_element_type=f32) + bf4_ref[...]

    # Single lane-dense packed store: [q (zero-padded) | h_new].
    out_ref[...] = jnp.concatenate([q_pad, h_new], axis=-1).astype(out_ref.dtype)


# --------------------------- one-time weight prep --------------------------- #

def prepare_params(params, board_hw):
    """Re-layout all PyTorch-layout weights ONCE (outside the per-step forward)."""
    Hb, Wb = board_hw
    bf16 = jnp.bfloat16

    def taps(w, cpad=None):
        # (O, C, 3, 3) -> (3, 3, Cpad, O)
        O, C, kh, kw = w.shape
        t = jnp.transpose(w, (2, 3, 1, 0))
        if cpad is not None and cpad > C:
            t = jnp.pad(t, ((0, 0), (0, 0), (0, cpad - C), (0, 0)))
        return t

    # conv1 -> im2col weight (9*cin_pad, 64); row index = (dh*3+dw)*cin_pad + c.
    c_in = params['conv1_w'].shape[1]
    cin_pad = _round8(c_in)
    t1 = taps(params['conv1_w'], cin_pad)
    w1 = t1.reshape(9 * cin_pad, t1.shape[-1]).astype(bf16)

    # conv2 / conv3 -> dw folded into K: (3, 3*C, O); row index = dw*C + c.
    def dwfold(w):
        t = taps(w)
        kh, kw, C, O = t.shape
        return t.reshape(kh, kw * C, O).astype(bf16)

    # fc1: torch flatten order is (c, h, w); regroup into per-pixel (p = h*Wo3 + w)
    # (C3, 256) matrices.
    nfc1 = params['fc1_w'].shape[0]
    C3 = params['conv3_w'].shape[0]
    Ho3, Wo3 = Hb - 6, Wb - 6
    wf1 = (params['fc1_w'].reshape(nfc1, C3, Ho3, Wo3)
           .transpose(2, 3, 1, 0).reshape(Ho3 * Wo3, C3, nfc1).astype(bf16))

    H = params['gru_w_hh'].shape[1]
    fc2_w = params['fc2_w']
    flat_dim = fc2_w.shape[1] - nfc1
    flat_pad = _round8(flat_dim)
    wf2b = jnp.pad(fc2_w[:, nfc1:].T, ((0, flat_pad - flat_dim), (0, 0)))

    fc3_w = params['fc3_w']
    id_dim = fc3_w.shape[1] - H
    id_pad = _round8(id_dim)
    wf3b = jnp.pad(fc3_w[:, H:].T, ((0, id_pad - id_dim), (0, 0)))

    # fc4: pad the output width so [q | h_new] packs into one lane-dense block.
    nq = params['fc4_w'].shape[0]
    q_cols = _round_up(H + nq, 128) - H
    wf4 = jnp.pad(params['fc4_w'].T, ((0, 0), (0, q_cols - nq)))
    bf4 = jnp.pad(params['fc4_b'].reshape(1, -1), ((0, 0), (0, q_cols - nq)))

    return {
        'w1': w1, 'b1': params['conv1_b'].reshape(1, -1),
        'w2': dwfold(params['conv2_w']), 'b2': params['conv2_b'].reshape(1, -1),
        'w3': dwfold(params['conv3_w']), 'b3': params['conv3_b'].reshape(1, -1),
        'wf1': wf1, 'bf1': params['fc1_b'].reshape(1, -1),
        'wf2a': fc2_w[:, :nfc1].T.astype(bf16), 'wf2b': wf2b,
        'bf2': params['fc2_b'].reshape(1, -1),
        'wih': params['gru_w_ih'].T, 'whh': params['gru_w_hh'].T,
        'bih': params['gru_b_ih'].reshape(1, -1),
        'bhh': params['gru_b_hh'].reshape(1, -1),
        'wf3a': fc3_w[:, :H].T, 'wf3b': wf3b,
        'bf3': params['fc3_b'].reshape(1, -1),
        'wf4': wf4, 'bf4': bf4,
    }


# ------------------------------ fused forward ------------------------------- #

@functools.partial(jax.jit, static_argnums=(3, 4))
def see_id_agent_forward(prepped, inputs, hidden_state, rnn_hidden_dim, n_actions):
    board = inputs['board_inputs']                     # (B, C, Hb, Wb) NCHW
    B, C, Hb, Wb = board.shape
    row_blk = _round8(Hb * Wb)
    cin_pad = prepped['w1'].shape[0] // 9

    # Static geometry of the flattened (row = i*Wb + j, per-batch stride row_blk) layout.
    Ho2, Wo2 = Hb - 4, Wb - 4
    Ho3, Wo3 = Hb - 6, Wb - 6
    max_off = 2 * Wb + 2                               # largest 3x3 tap row offset
    n3w = _round8((B - 1) * row_blk + (Ho3 - 1) * Wb + Wo3)      # conv3 rows written
    n2w = _round8(max((B - 1) * row_blk + (Ho2 - 1) * Wb + Wo2,  # conv2 rows written
                      n3w + max_off))
    # Producer write extents must cover every consumer read (VMEM OOB is unchecked).
    assert prepped['wf1'].shape[0] == Ho3 * Wo3, "board size vs fc1 weight mismatch"
    assert n2w + max_off <= B * row_blk                                 # conv2 reads a1
    assert n3w + max_off <= n2w                                         # conv3 reads a2
    assert (B - 1) * row_blk + (Ho3 - 1) * Wb + (Wo3 - 1) < n3w         # fc1 reads a3

    # im2col patches for conv1, built on the tiny raw input; bf16 matmul operands.
    x = jnp.transpose(board, (0, 2, 3, 1)).reshape(B, Hb * Wb, C)
    x = jnp.pad(x, ((0, 0), (0, row_blk + max_off - Hb * Wb), (0, cin_pad - C)))
    offs = [dh * Wb + dw for dh in range(3) for dw in range(3)]
    patches = jnp.concatenate([x[:, o:o + row_blk, :] for o in offs], axis=-1)
    patches = patches.reshape(B * row_blk, 9 * cin_pad).astype(jnp.bfloat16)

    flat = inputs['flat_inputs']
    flat = jnp.pad(flat, ((0, 0), (0, prepped['wf2b'].shape[0] - flat.shape[1])))
    idv = inputs['id_inputs']
    idv = jnp.pad(idv, ((0, 0), (0, prepped['wf3b'].shape[0] - idv.shape[1])))
    h_in = hidden_state.reshape(-1, rnn_hidden_dim).astype(jnp.float32)

    c1 = prepped['w1'].shape[-1]
    c2 = prepped['w2'].shape[-1]
    c3 = prepped['w3'].shape[-1]
    out_w = prepped['wf4'].shape[-1] + rnn_hidden_dim  # lane-dense packed [q | h]

    kernel = functools.partial(
        _fused_kernel, B=B, W_in=Wb, Ho3=Ho3, Wo3=Wo3,
        n2w=n2w, n3w=n3w, row_blk=row_blk, H=rnn_hidden_dim)
    out = pl.pallas_call(
        kernel,
        out_shape=jax.ShapeDtypeStruct((B, out_w), jnp.float32),
        scratch_shapes=[pltpu.VMEM((B * row_blk, c1), jnp.bfloat16),   # a1 (conv1 out)
                        pltpu.VMEM((B * row_blk, c2), jnp.bfloat16),   # a2 (conv2 out)
                        pltpu.VMEM((B * row_blk, c3), jnp.float32)],   # a3 (conv3 out)
        compiler_params=pltpu.CompilerParams(vmem_limit_bytes=32 * 1024 * 1024),
    )(patches, flat, idv, h_in,
      prepped['w1'], prepped['b1'], prepped['w2'], prepped['b2'],
      prepped['w3'], prepped['b3'],
      prepped['wf1'], prepped['bf1'],
      prepped['wf2a'], prepped['wf2b'], prepped['bf2'],
      prepped['wih'], prepped['whh'], prepped['bih'], prepped['bhh'],
      prepped['wf3a'], prepped['wf3b'], prepped['bf3'],
      prepped['wf4'], prepped['bf4'])

    q = out[:, :n_actions]
    h = out[:, out_w - rnn_hidden_dim:]
    return q, h


# --------------------------- pure-JAX reference ----------------------------- #

def forward_ref(params, inputs, hidden_state, rnn_hidden_dim):
    def conv(x, w, b):
        out = jax.lax.conv_general_dilated(
            x, w, (1, 1), 'VALID', dimension_numbers=('NCHW', 'OIHW', 'NCHW'))
        return jax.nn.relu(out + b[None, :, None, None])

    x = conv(inputs['board_inputs'], params['conv1_w'], params['conv1_b'])
    x = conv(x, params['conv2_w'], params['conv2_b'])
    x = conv(x, params['conv3_w'], params['conv3_b'])
    x = x.reshape(x.shape[0], -1)
    obs = jax.nn.relu(x @ params['fc1_w'].T + params['fc1_b'])
    obs = jnp.concatenate([obs, inputs['flat_inputs']], axis=1)
    obs = jax.nn.relu(obs @ params['fc2_w'].T + params['fc2_b'])
    h_in = hidden_state.reshape(-1, rnn_hidden_dim)
    gi = obs @ params['gru_w_ih'].T + params['gru_b_ih']
    gh = h_in @ params['gru_w_hh'].T + params['gru_b_hh']
    i_r, i_z, i_n = jnp.split(gi, 3, axis=1)
    h_r, h_z, h_n = jnp.split(gh, 3, axis=1)
    r = jax.nn.sigmoid(i_r + h_r)
    z = jax.nn.sigmoid(i_z + h_z)
    n = jnp.tanh(i_n + r * h_n)
    h = (1.0 - z) * n + z * h_in
    xc = jnp.concatenate([h, inputs['id_inputs']], axis=1)
    xc = jax.nn.relu(xc @ params['fc3_w'].T + params['fc3_b'])
    q = xc @ params['fc4_w'].T + params['fc4_b']
    return q, h


# ---------------------------------- main ------------------------------------ #

def _uniform(key, shape, fan_in):
    bound = 1.0 / float(fan_in) ** 0.5
    return jax.random.uniform(key, shape, jnp.float32, -bound, bound)


if __name__ == "__main__":
    B = 2
    board_shape = (4, 11, 11)     # 11x11 -> 3x (VALID 3x3) -> 5x5, matches fc1 = 128*5*5
    flat_shape = 8
    id_shape = 4
    rnn_hidden_dim = 32

    keys = jax.random.split(jax.random.PRNGKey(0), 22)
    ki = iter(keys)
    params = {
        'conv1_w': _uniform(next(ki), (64, board_shape[0], 3, 3), board_shape[0] * 9),
        'conv1_b': _uniform(next(ki), (64,), board_shape[0] * 9),
        'conv2_w': _uniform(next(ki), (128, 64, 3, 3), 64 * 9),
        'conv2_b': _uniform(next(ki), (128,), 64 * 9),
        'conv3_w': _uniform(next(ki), (128, 128, 3, 3), 128 * 9),
        'conv3_b': _uniform(next(ki), (128,), 128 * 9),
        'fc1_w': _uniform(next(ki), (256, 128 * 5 * 5), 128 * 5 * 5),
        'fc1_b': _uniform(next(ki), (256,), 128 * 5 * 5),
        'fc2_w': _uniform(next(ki), (rnn_hidden_dim, 256 + flat_shape), 256 + flat_shape),
        'fc2_b': _uniform(next(ki), (rnn_hidden_dim,), 256 + flat_shape),
        'gru_w_ih': _uniform(next(ki), (3 * rnn_hidden_dim, rnn_hidden_dim), rnn_hidden_dim),
        'gru_w_hh': _uniform(next(ki), (3 * rnn_hidden_dim, rnn_hidden_dim), rnn_hidden_dim),
        'gru_b_ih': _uniform(next(ki), (3 * rnn_hidden_dim,), rnn_hidden_dim),
        'gru_b_hh': _uniform(next(ki), (3 * rnn_hidden_dim,), rnn_hidden_dim),
        'fc3_w': _uniform(next(ki), (16, rnn_hidden_dim + id_shape), rnn_hidden_dim + id_shape),
        'fc3_b': _uniform(next(ki), (16,), rnn_hidden_dim + id_shape),
        'fc4_w': _uniform(next(ki), (6, 16), 16),
        'fc4_b': _uniform(next(ki), (6,), 16),
    }
    inputs = {
        'board_inputs': jax.random.normal(next(ki), (B,) + board_shape, jnp.float32),
        'flat_inputs': jax.random.normal(next(ki), (B, flat_shape), jnp.float32),
        'id_inputs': jax.random.normal(next(ki), (B, id_shape), jnp.float32),
    }
    hidden_state = jnp.zeros((B, rnn_hidden_dim), jnp.float32)  # init_hidden()
    n_actions = params['fc4_w'].shape[0]

    prepped = prepare_params(params, board_shape[1:])           # one-time weight prep

    q, h = see_id_agent_forward(prepped, inputs, hidden_state, rnn_hidden_dim, n_actions)
    q = jax.block_until_ready(q)
    h = jax.block_until_ready(h)

    q_ref, h_ref = forward_ref(params, inputs, hidden_state, rnn_hidden_dim)
    assert q.shape == (B, n_actions) and h.shape == (B, rnn_hidden_dim)
    # bf16 matmul operands (f32 accumulation) in the conv/fc1 chain -> slightly
    # relaxed tolerance vs the all-f32 reference.
    assert jnp.allclose(q, q_ref, atol=2e-2, rtol=2e-2)
    assert jnp.allclose(h, h_ref, atol=2e-2, rtol=2e-2)
    print("KERNEL_OK")
</pallas_src>

<mosaic_0001>
module attributes {stable_mosaic.version = 11 : i64} {
  func.func @_fused_kernel(%arg0: memref<256x72xbf16, #tpu.memory_space<vmem>>, %arg1: memref<2x8xf32, #tpu.memory_space<vmem>>, %arg2: memref<2x8xf32, #tpu.memory_space<vmem>>, %arg3: memref<2x32xf32, #tpu.memory_space<vmem>>, %arg4: memref<72x64xbf16, #tpu.memory_space<vmem>>, %arg5: memref<1x64xf32, #tpu.memory_space<vmem>>, %arg6: memref<3x192x128xbf16, #tpu.memory_space<vmem>>, %arg7: memref<1x128xf32, #tpu.memory_space<vmem>>, %arg8: memref<3x384x128xbf16, #tpu.memory_space<vmem>>, %arg9: memref<1x128xf32, #tpu.memory_space<vmem>>, %arg10: memref<25x128x256xbf16, #tpu.memory_space<vmem>>, %arg11: memref<1x256xf32, #tpu.memory_space<vmem>>, %arg12: memref<256x32xbf16, #tpu.memory_space<vmem>>, %arg13: memref<8x32xf32, #tpu.memory_space<vmem>>, %arg14: memref<1x32xf32, #tpu.memory_space<vmem>>, %arg15: memref<32x96xf32, #tpu.memory_space<vmem>>, %arg16: memref<32x96xf32, #tpu.memory_space<vmem>>, %arg17: memref<1x96xf32, #tpu.memory_space<vmem>>, %arg18: memref<1x96xf32, #tpu.memory_space<vmem>>, %arg19: memref<32x16xf32, #tpu.memory_space<vmem>>, %arg20: memref<8x16xf32, #tpu.memory_space<vmem>>, %arg21: memref<1x16xf32, #tpu.memory_space<vmem>>, %arg22: memref<16x96xf32, #tpu.memory_space<vmem>>, %arg23: memref<1x96xf32, #tpu.memory_space<vmem>>, %arg24: memref<2x128xf32, #tpu.memory_space<vmem>>, %arg25: memref<256x64xbf16, #tpu.memory_space<vmem>>, %arg26: memref<256x128xbf16, #tpu.memory_space<vmem>>, %arg27: memref<256x128xf32, #tpu.memory_space<vmem>>) attributes {dimension_semantics = [], scalar_prefetch = 0 : i64, scratch_operands = 3 : i64, tpu.core_type = #tpu.core_type<tc>} {
    %c0 = arith.constant 0 : index
    %c0_0 = arith.constant 0 : index
    %0 = vector.load %arg0[%c0, %c0_0] : memref<256x72xbf16, #tpu.memory_space<vmem>>, vector<256x72xbf16>
    %c0_1 = arith.constant 0 : index
    %c0_2 = arith.constant 0 : index
    %1 = vector.load %arg4[%c0_1, %c0_2] : memref<72x64xbf16, #tpu.memory_space<vmem>>, vector<72x64xbf16>
    %cst = arith.constant dense<0.000000e+00> : vector<256x64xf32>
    %2 = tpu.matmul %0, %1, %cst {dimension_numbers = #tpu.dot_dimension_numbers<[1], [0], [0], [1], [0, 0, 1, 1], [], []>} : vector<256x72xbf16>, vector<72x64xbf16>, vector<256x64xf32> -> vector<256x64xf32>
    %c0_3 = arith.constant 0 : index
    %c0_4 = arith.constant 0 : index
    %3 = vector.load %arg5[%c0_3, %c0_4] : memref<1x64xf32, #tpu.memory_space<vmem>>, vector<1x64xf32>
    %4 = vector.broadcast %3 : vector<1x64xf32> to vector<256x64xf32>
    %5 = arith.addf %2, %4 : vector<256x64xf32>
    %cst_5 = arith.constant 0.000000e+00 : f32
    %6 = vector.broadcast %cst_5 : f32 to vector<256x64xf32>
    %7 = arith.maximumf %5, %6 : vector<256x64xf32>
    %8 = arith.truncf %7 : vector<256x64xf32> to vector<256x64xbf16>
    %c0_6 = arith.constant 0 : index
    %c0_7 = arith.constant 0 : index
    %9 = vector.load %arg25[%c0_6, %c0_7] : memref<256x64xbf16, #tpu.memory_space<vmem>>, vector<256x64xbf16>
    tpu.vector_store %arg25[%c0_6, %c0_7], %8 {strides = array<i32>} : memref<256x64xbf16, #tpu.memory_space<vmem>>, vector<256x64xbf16>,
    %cst_8 = arith.constant 0.000000e+00 : f32
    %10 = vector.broadcast %cst_8 : f32 to vector<104x128xf32>
    %c0_9 = arith.constant 0 : index
    %c0_10 = arith.constant 0 : index
    %11 = vector.load %arg25[%c0_9, %c0_10] : memref<256x64xbf16, #tpu.memory_space<vmem>>, vector<104x64xbf16>
    %c1 = arith.constant 1 : index
    %c0_11 = arith.constant 0 : index
    %12 = vector.load %arg25[%c1, %c0_11] : memref<256x64xbf16, #tpu.memory_space<vmem>>, vector<104x64xbf16>
    %c2 = arith.constant 2 : index
    %c0_12 = arith.constant 0 : index
    %13 = vector.load %arg25[%c2, %c0_12] : memref<256x64xbf16, #tpu.memory_space<vmem>>, vector<104x64xbf16>
    %14 = tpu.concatenate %11, %12, %13 in 1 : vector<104x64xbf16>, vector<104x64xbf16>, vector<104x64xbf16> -> vector<104x192xbf16>
    %c0_13 = arith.constant 0 : index
    %c0_14 = arith.constant 0 : index
    %c0_15 = arith.constant 0 : index
    %15 = vector.load %arg6[%c0_13, %c0_14, %c0_15] : memref<3x192x128xbf16, #tpu.memory_space<vmem>>, vector<1x192x128xbf16>
    %16 = vector.shape_cast %15 : vector<1x192x128xbf16> to vector<192x128xbf16>
    %cst_16 = arith.constant dense<0.000000e+00> : vector<104x128xf32>
    %17 = tpu.matmul %14, %16, %cst_16 {dimension_numbers = #tpu.dot_dimension_numbers<[1], [0], [0], [1], [0, 0, 1, 1], [], []>} : vector<104x192xbf16>, vector<192x128xbf16>, vector<104x128xf32> -> vector<104x128xf32>
    %18 = arith.addf %10, %17 : vector<104x128xf32>
    %c11 = arith.constant 11 : index
    %c0_17 = arith.constant 0 : index
    %19 = vector.load %arg25[%c11, %c0_17] : memref<256x64xbf16, #tpu.memory_space<vmem>>, vector<104x64xbf16>
    %c12 = arith.constant 12 : index
    %c0_18 = arith.constant 0 : index
    %20 = vector.load %arg25[%c12, %c0_18] : memref<256x64xbf16, #tpu.memory_space<vmem>>, vector<104x64xbf16>
    %c13 = arith.constant 13 : index
    %c0_19 = arith.constant 0 : index
    %21 = vector.load %arg25[%c13, %c0_19] : memref<256x64xbf16, #tpu.memory_space<vmem>>, vector<104x64xbf16>
    %22 = tpu.concatenate %19, %20, %21 in 1 : vector<104x64xbf16>, vector<104x64xbf16>, vector<104x64xbf16> -> vector<104x192xbf16>
    %c1_20 = arith.constant 1 : index
    %c0_21 = arith.constant 0 : index
    %c0_22 = arith.constant 0 : index
    %23 = vector.load %arg6[%c1_20, %c0_21, %c0_22] : memref<3x192x128xbf16, #tpu.memory_space<vmem>>, vector<1x192x128xbf16>
    %24 = vector.shape_cast %23 : vector<1x192x128xbf16> to vector<192x128xbf16>
    %cst_23 = arith.constant dense<0.000000e+00> : vector<104x128xf32>
    %25 = tpu.matmul %22, %24, %cst_23 {dimension_numbers = #tpu.dot_dimension_numbers<[1], [0], [0], [1], [0, 0, 1, 1], [], []>} : vector<104x192xbf16>, vector<192x128xbf16>, vector<104x128xf32> -> vector<104x128xf32>
    %26 = arith.addf %18, %25 : vector<104x128xf32>
    %c22 = arith.constant 22 : index
    %c0_24 = arith.constant 0 : index
    %27 = vector.load %arg25[%c22, %c0_24] : memref<256x64xbf16, #tpu.memory_space<vmem>>, vector<104x64xbf16>
    %c23 = arith.constant 23 : index
    %c0_25 = arith.constant 0 : index
    %28 = vector.load %arg25[%c23, %c0_25] : memref<256x64xbf16, #tpu.memory_space<vmem>>, vector<104x64xbf16>
    %c24 = arith.constant 24 : index
    %c0_26 = arith.constant 0 : index
    %29 = vector.load %arg25[%c24, %c0_26] : memref<256x64xbf16, #tpu.memory_space<vmem>>, vector<104x64xbf16>
    %30 = tpu.concatenate %27, %28, %29 in 1 : vector<104x64xbf16>, vector<104x64xbf16>, vector<104x64xbf16> -> vector<104x192xbf16>
    %c2_27 = arith.constant 2 : index
    %c0_28 = arith.constant 0 : index
    %c0_29 = arith.constant 0 : index
    %31 = vector.load %arg6[%c2_27, %c0_28, %c0_29] : memref<3x192x128xbf16, #tpu.memory_space<vmem>>, vector<1x192x128xbf16>
    %32 = vector.shape_cast %31 : vector<1x192x128xbf16> to vector<192x128xbf16>
    %cst_30 = arith.constant dense<0.000000e+00> : vector<104x128xf32>
    %33 = tpu.matmul %30, %32, %cst_30 {dimension_numbers = #tpu.dot_dimension_numbers<[1], [0], [0], [1], [0, 0, 1, 1], [], []>} : vector<104x192xbf16>, vector<192x128xbf16>, vector<104x128xf32> -> vector<104x128xf32>
    %34 = arith.addf %26, %33 : vector<104x128xf32>
    %c0_31 = arith.constant 0 : index
    %c0_32 = arith.constant 0 : index
    %35 = vector.load %arg7[%c0_31, %c0_32] : memref<1x128xf32, #tpu.memory_space<vmem>>, vector<1x128xf32>
    %36 = vector.broadcast %35 : vector<1x128xf32> to vector<104x128xf32>
    %37 = arith.addf %34, %36 : vector<104x128xf32>
    %cst_33 = arith.constant 0.000000e+00 : f32
    %38 = vector.broadcast %cst_33 : f32 to vector<104x128xf32>
    %39 = arith.maximumf %37, %38 : vector<104x128xf32>
    %40 = arith.truncf %39 : vector<104x128xf32> to vector<104x128xbf16>
    %c0_34 = arith.constant 0 : index
    %c0_35 = arith.constant 0 : index
    %41 = vector.load %arg26[%c0_34, %c0_35] : memref<256x128xbf16, #tpu.memory_space<vmem>>, vector<104x128xbf16>
    tpu.vector_store %arg26[%c0_34, %c0_35], %40 {strides = array<i32>} : memref<256x128xbf16, #tpu.memory_space<vmem>>, vector<104x128xbf16>,
    %cst_36 = arith.constant 0.000000e+00 : f32
    %42 = vector.broadcast %cst_36 : f32 to vector<104x128xf32>
    %c104 = arith.constant 104 : index
    %c0_37 = arith.constant 0 : index
    %43 = vector.load %arg25[%c104, %c0_37] : memref<256x64xbf16, #tpu.memory_space<vmem>>, vector<104x64xbf16>
    %c105 = arith.constant 105 : index
    %c0_38 = arith.constant 0 : index
    %44 = vector.load %arg25[%c105, %c0_38] : memref<256x64xbf16, #tpu.memory_space<vmem>>, vector<104x64xbf16>
    %c106 = arith.constant 106 : index
    %c0_39 = arith.constant 0 : index
    %45 = vector.load %arg25[%c106, %c0_39] : memref<256x64xbf16, #tpu.memory_space<vmem>>, vector<104x64xbf16>
    %46 = tpu.concatenate %43, %44, %45 in 1 : vector<104x64xbf16>, vector<104x64xbf16>, vector<104x64xbf16> -> vector<104x192xbf16>
    %c0_40 = arith.constant 0 : index
    %c0_41 = arith.constant 0 : index
    %c0_42 = arith.constant 0 : index
    %47 = vector.load %arg6[%c0_40, %c0_41, %c0_42] : memref<3x192x128xbf16, #tpu.memory_space<vmem>>, vector<1x192x128xbf16>
    %48 = vector.shape_cast %47 : vector<1x192x128xbf16> to vector<192x128xbf16>
    %cst_43 = arith.constant dense<0.000000e+00> : vector<104x128xf32>
    %49 = tpu.matmul %46, %48, %cst_43 {dimension_numbers = #tpu.dot_dimension_numbers<[1], [0], [0], [1], [0, 0, 1, 1], [], []>} : vector<104x192xbf16>, vector<192x128xbf16>, vector<104x128xf32> -> vector<104x128xf32>
    %50 = arith.addf %42, %49 : vector<104x128xf32>
    %c115 = arith.constant 115 : index
    %c0_44 = arith.constant 0 : index
    %51 = vector.load %arg25[%c115, %c0_44] : memref<256x64xbf16, #tpu.memory_space<vmem>>, vector<104x64xbf16>
    %c116 = arith.constant 116 : index
    %c0_45 = arith.constant 0 : index
    %52 = vector.load %arg25[%c116, %c0_45] : memref<256x64xbf16, #tpu.memory_space<vmem>>, vector<104x64xbf16>
    %c117 = arith.constant 117 : index
    %c0_46 = arith.constant 0 : index
    %53 = vector.load %arg25[%c117, %c0_46] : memref<256x64xbf16, #tpu.memory_space<vmem>>, vector<104x64xbf16>
    %54 = tpu.concatenate %51, %52, %53 in 1 : vector<104x64xbf16>, vector<104x64xbf16>, vector<104x64xbf16> -> vector<104x192xbf16>
    %c1_47 = arith.constant 1 : index
    %c0_48 = arith.constant 0 : index
    %c0_49 = arith.constant 0 : index
    %55 = vector.load %arg6[%c1_47, %c0_48, %c0_49] : memref<3x192x128xbf16, #tpu.memory_space<vmem>>, vector<1x192x128xbf16>
    %56 = vector.shape_cast %55 : vector<1x192x128xbf16> to vector<192x128xbf16>
    %cst_50 = arith.constant dense<0.000000e+00> : vector<104x128xf32>
    %57 = tpu.matmul %54, %56, %cst_50 {dimension_numbers = #tpu.dot_dimension_numbers<[1], [0], [0], [1], [0, 0, 1, 1], [], []>} : vector<104x192xbf16>, vector<192x128xbf16>, vector<104x128xf32> -> vector<104x128xf32>
    %58 = arith.addf %50, %57 : vector<104x128xf32>
    %c126 = arith.constant 126 : index
    %c0_51 = arith.constant 0 : index
    %59 = vector.load %arg25[%c126, %c0_51] : memref<256x64xbf16, #tpu.memory_space<vmem>>, vector<104x64xbf16>
    %c127 = arith.constant 127 : index
    %c0_52 = arith.constant 0 : index
    %60 = vector.load %arg25[%c127, %c0_52] : memref<256x64xbf16, #tpu.memory_space<vmem>>, vector<104x64xbf16>
    %c128 = arith.constant 128 : index
    %c0_53 = arith.constant 0 : index
    %61 = vector.load %arg25[%c128, %c0_53] : memref<256x64xbf16, #tpu.memory_space<vmem>>, vector<104x64xbf16>
    %62 = tpu.concatenate %59, %60, %61 in 1 : vector<104x64xbf16>, vector<104x64xbf16>, vector<104x64xbf16> -> vector<104x192xbf16>
    %c2_54 = arith.constant 2 : index
    %c0_55 = arith.constant 0 : index
    %c0_56 = arith.constant 0 : index
    %63 = vector.load %arg6[%c2_54, %c0_55, %c0_56] : memref<3x192x128xbf16, #tpu.memory_space<vmem>>, vector<1x192x128xbf16>
    %64 = vector.shape_cast %63 : vector<1x192x128xbf16> to vector<192x128xbf16>
    %cst_57 = arith.constant dense<0.000000e+00> : vector<104x128xf32>
    %65 = tpu.matmul %62, %64, %cst_57 {dimension_numbers = #tpu.dot_dimension_numbers<[1], [0], [0], [1], [0, 0, 1, 1], [], []>} : vector<104x192xbf16>, vector<192x128xbf16>, vector<104x128xf32> -> vector<104x128xf32>
    %66 = arith.addf %58, %65 : vector<104x128xf32>
    %c0_58 = arith.constant 0 : index
    %c0_59 = arith.constant 0 : index
    %67 = vector.load %arg7[%c0_58, %c0_59] : memref<1x128xf32, #tpu.memory_space<vmem>>, vector<1x128xf32>
    %68 = vector.broadcast %67 : vector<1x128xf32> to vector<104x128xf32>
    %69 = arith.addf %66, %68 : vector<104x128xf32>
    %cst_60 = arith.constant 0.000000e+00 : f32
    %70 = vector.broadcast %cst_60 : f32 to vector<104x128xf32>
    %71 = arith.maximumf %69, %70 : vector<104x128xf32>
    %72 = arith.truncf %71 : vector<104x128xf32> to vector<104x128xbf16>
    %c104_61 = arith.constant 104 : index
    %c0_62 = arith.constant 0 : index
    %73 = vector.load %arg26[%c104_61, %c0_62] : memref<256x128xbf16, #tpu.memory_space<vmem>>, vector<104x128xbf16>
    tpu.vector_store %arg26[%c104_61, %c0_62], %72 {strides = array<i32>} : memref<256x128xbf16, #tpu.memory_space<vmem>>, vector<104x128xbf16>,
    %cst_63 = arith.constant 0.000000e+00 : f32
    %74 = vector.broadcast %cst_63 : f32 to vector<104x128xf32>
    %c0_64 = arith.constant 0 : index
    %c0_65 = arith.constant 0 : index
    %75 = vector.load %arg26[%c0_64, %c0_65] : memref<256x128xbf16, #tpu.memory_space<vmem>>, vector<104x128xbf16>
    %c1_66 = arith.constant 1 : index
    %c0_67 = arith.constant 0 : index
    %76 = vector.load %arg26[%c1_66, %c0_67] : memref<256x128xbf16, #tpu.memory_space<vmem>>, vector<104x128xbf16>
    %c2_68 = arith.constant 2 : index
    %c0_69 = arith.constant 0 : index
    %77 = vector.load %arg26[%c2_68, %c0_69] : memref<256x128xbf16, #tpu.memory_space<vmem>>, vector<104x128xbf16>
    %78 = tpu.concatenate %75, %76, %77 in 1 : vector<104x128xbf16>, vector<104x128xbf16>, vector<104x128xbf16> -> vector<104x384xbf16>
    %c0_70 = arith.constant 0 : index
    %c0_71 = arith.constant 0 : index
    %c0_72 = arith.constant 0 : index
    %79 = vector.load %arg8[%c0_70, %c0_71, %c0_72] : memref<3x384x128xbf16, #tpu.memory_space<vmem>>, vector<1x384x128xbf16>
    %80 = vector.shape_cast %79 : vector<1x384x128xbf16> to vector<384x128xbf16>
    %cst_73 = arith.constant dense<0.000000e+00> : vector<104x128xf32>
    %81 = tpu.matmul %78, %80, %cst_73 {dimension_numbers = #tpu.dot_dimension_numbers<[1], [0], [0], [1], [0, 0, 1, 1], [], []>} : vector<104x384xbf16>, vector<384x128xbf16>, vector<104x128xf32> -> vector<104x128xf32>
    %82 = arith.addf %74, %81 : vector<104x128xf32>
    %c11_74 = arith.constant 11 : index
    %c0_75 = arith.constant 0 : index
    %83 = vector.load %arg26[%c11_74, %c0_75] : memref<256x128xbf16, #tpu.memory_space<vmem>>, vector<104x128xbf16>
    %c12_76 = arith.constant 12 : index
    %c0_77 = arith.constant 0 : index
    %84 = vector.load %arg26[%c12_76, %c0_77] : memref<256x128xbf16, #tpu.memory_space<vmem>>, vector<104x128xbf16>
    %c13_78 = arith.constant 13 : index
    %c0_79 = arith.constant 0 : index
    %85 = vector.load %arg26[%c13_78, %c0_79] : memref<256x128xbf16, #tpu.memory_space<vmem>>, vector<104x128xbf16>
    %86 = tpu.concatenate %83, %84, %85 in 1 : vector<104x128xbf16>, vector<104x128xbf16>, vector<104x128xbf16> -> vector<104x384xbf16>
    %c1_80 = arith.constant 1 : index
    %c0_81 = arith.constant 0 : index
    %c0_82 = arith.constant 0 : index
    %87 = vector.load %arg8[%c1_80, %c0_81, %c0_82] : memref<3x384x128xbf16, #tpu.memory_space<vmem>>, vector<1x384x128xbf16>
    %88 = vector.shape_cast %87 : vector<1x384x128xbf16> to vector<384x128xbf16>
    %cst_83 = arith.constant dense<0.000000e+00> : vector<104x128xf32>
    %89 = tpu.matmul %86, %88, %cst_83 {dimension_numbers = #tpu.dot_dimension_numbers<[1], [0], [0], [1], [0, 0, 1, 1], [], []>} : vector<104x384xbf16>, vector<384x128xbf16>, vector<104x128xf32> -> vector<104x128xf32>
    %90 = arith.addf %82, %89 : vector<104x128xf32>
    %c22_84 = arith.constant 22 : index
    %c0_85 = arith.constant 0 : index
    %91 = vector.load %arg26[%c22_84, %c0_85] : memref<256x128xbf16, #tpu.memory_space<vmem>>, vector<104x128xbf16>
    %c23_86 = arith.constant 23 : index
    %c0_87 = arith.constant 0 : index
    %92 = vector.load %arg26[%c23_86, %c0_87] : memref<256x128xbf16, #tpu.memory_space<vmem>>, vector<104x128xbf16>
    %c24_88 = arith.constant 24 : index
    %c0_89 = arith.constant 0 : index
    %93 = vector.load %arg26[%c24_88, %c0_89] : memref<256x128xbf16, #tpu.memory_space<vmem>>, vector<104x128xbf16>
    %94 = tpu.concatenate %91, %92, %93 in 1 : vector<104x128xbf16>, vector<104x128xbf16>, vector<104x128xbf16> -> vector<104x384xbf16>
    %c2_90 = arith.constant 2 : index
    %c0_91 = arith.constant 0 : index
    %c0_92 = arith.constant 0 : index
    %95 = vector.load %arg8[%c2_90, %c0_91, %c0_92] : memref<3x384x128xbf16, #tpu.memory_space<vmem>>, vector<1x384x128xbf16>
    %96 = vector.shape_cast %95 : vector<1x384x128xbf16> to vector<384x128xbf16>
    %cst_93 = arith.constant dense<0.000000e+00> : vector<104x128xf32>
    %97 = tpu.matmul %94, %96, %cst_93 {dimension_numbers = #tpu.dot_dimension_numbers<[1], [0], [0], [1], [0, 0, 1, 1], [], []>} : vector<104x384xbf16>, vector<384x128xbf16>, vector<104x128xf32> -> vector<104x128xf32>
    %98 = arith.addf %90, %97 : vector<104x128xf32>
    %c0_94 = arith.constant 0 : index
    %c0_95 = arith.constant 0 : index
    %99 = vector.load %arg9[%c0_94, %c0_95] : memref<1x128xf32, #tpu.memory_space<vmem>>, vector<1x128xf32>
    %100 = vector.broadcast %99 : vector<1x128xf32> to vector<104x128xf32>
    %101 = arith.addf %98, %100 : vector<104x128xf32>
    %cst_96 = arith.constant 0.000000e+00 : f32
    %102 = vector.broadcast %cst_96 : f32 to vector<104x128xf32>
    %103 = arith.maximumf %101, %102 : vector<104x128xf32>
    %c0_97 = arith.constant 0 : index
    %c0_98 = arith.constant 0 : index
    %104 = vector.load %arg27[%c0_97, %c0_98] : memref<256x128xf32, #tpu.memory_space<vmem>>, vector<104x128xf32>
    tpu.vector_store %arg27[%c0_97, %c0_98], %103 {strides = array<i32>} : memref<256x128xf32, #tpu.memory_space<vmem>>, vector<104x128xf32>,
    %cst_99 = arith.constant 0.000000e+00 : f32
    %105 = vector.broadcast %cst_99 : f32 to vector<80x128xf32>
    %c104_100 = arith.constant 104 : index
    %c0_101 = arith.constant 0 : index
    %106 = vector.load %arg26[%c104_100, %c0_101] : memref<256x128xbf16, #tpu.memory_space<vmem>>, vector<80x128xbf16>
    %c105_102 = arith.constant 105 : index
    %c0_103 = arith.constant 0 : index
    %107 = vector.load %arg26[%c105_102, %c0_103] : memref<256x128xbf16, #tpu.memory_space<vmem>>, vector<80x128xbf16>
    %c106_104 = arith.constant 106 : index
    %c0_105 = arith.constant 0 : index
    %108 = vector.load %arg26[%c106_104, %c0_105] : memref<256x128xbf16, #tpu.memory_space<vmem>>, vector<80x128xbf16>
    %109 = tpu.concatenate %106, %107, %108 in 1 : vector<80x128xbf16>, vector<80x128xbf16>, vector<80x128xbf16> -> vector<80x384xbf16>
    %c0_106 = arith.constant 0 : index
    %c0_107 = arith.constant 0 : index
    %c0_108 = arith.constant 0 : index
    %110 = vector.load %arg8[%c0_106, %c0_107, %c0_108] : memref<3x384x128xbf16, #tpu.memory_space<vmem>>, vector<1x384x128xbf16>
    %111 = vector.shape_cast %110 : vector<1x384x128xbf16> to vector<384x128xbf16>
    %cst_109 = arith.constant dense<0.000000e+00> : vector<80x128xf32>
    %112 = tpu.matmul %109, %111, %cst_109 {dimension_numbers = #tpu.dot_dimension_numbers<[1], [0], [0], [1], [0, 0, 1, 1], [], []>} : vector<80x384xbf16>, vector<384x128xbf16>, vector<80x128xf32> -> vector<80x128xf32>
    %113 = arith.addf %105, %112 : vector<80x128xf32>
    %c115_110 = arith.constant 115 : index
    %c0_111 = arith.constant 0 : index
    %114 = vector.load %arg26[%c115_110, %c0_111] : memref<256x128xbf16, #tpu.memory_space<vmem>>, vector<80x128xbf16>
    %c116_112 = arith.constant 116 : index
    %c0_113 = arith.constant 0 : index
    %115 = vector.load %arg26[%c116_112, %c0_113] : memref<256x128xbf16, #tpu.memory_space<vmem>>, vector<80x128xbf16>
    %c117_114 = arith.constant 117 : index
    %c0_115 = arith.constant 0 : index
    %116 = vector.load %arg26[%c117_114, %c0_115] : memref<256x128xbf16, #tpu.memory_space<vmem>>, vector<80x128xbf16>
    %117 = tpu.concatenate %114, %115, %116 in 1 : vector<80x128xbf16>, vector<80x128xbf16>, vector<80x128xbf16> -> vector<80x384xbf16>
    %c1_116 = arith.constant 1 : index
    %c0_117 = arith.constant 0 : index
    %c0_118 = arith.constant 0 : index
    %118 = vector.load %arg8[%c1_116, %c0_117, %c0_118] : memref<3x384x128xbf16, #tpu.memory_space<vmem>>, vector<1x384x128xbf16>
    %119 = vector.shape_cast %118 : vector<1x384x128xbf16> to vector<384x128xbf16>
    %cst_119 = arith.constant dense<0.000000e+00> : vector<80x128xf32>
    %120 = tpu.matmul %117, %119, %cst_119 {dimension_numbers = #tpu.dot_dimension_numbers<[1], [0], [0], [1], [0, 0, 1, 1], [], []>} : vector<80x384xbf16>, vector<384x128xbf16>, vector<80x128xf32> -> vector<80x128xf32>
    %121 = arith.addf %113, %120 : vector<80x128xf32>
    %c126_120 = arith.constant 126 : index
    %c0_121 = arith.constant 0 : index
    %122 = vector.load %arg26[%c126_120, %c0_121] : memref<256x128xbf16, #tpu.memory_space<vmem>>, vector<80x128xbf16>
    %c127_122 = arith.constant 127 : index
    %c0_123 = arith.constant 0 : index
    %123 = vector.load %arg26[%c127_122, %c0_123] : memref<256x128xbf16, #tpu.memory_space<vmem>>, vector<80x128xbf16>
    %c128_124 = arith.constant 128 : index
    %c0_125 = arith.constant 0 : index
    %124 = vector.load %arg26[%c128_124, %c0_125] : memref<256x128xbf16, #tpu.memory_space<vmem>>, vector<80x128xbf16>
    %125 = tpu.concatenate %122, %123, %124 in 1 : vector<80x128xbf16>, vector<80x128xbf16>, vector<80x128xbf16> -> vector<80x384xbf16>
    %c2_126 = arith.constant 2 : index
    %c0_127 = arith.constant 0 : index
    %c0_128 = arith.constant 0 : index
    %126 = vector.load %arg8[%c2_126, %c0_127, %c0_128] : memref<3x384x128xbf16, #tpu.memory_space<vmem>>, vector<1x384x128xbf16>
    %127 = vector.shape_cast %126 : vector<1x384x128xbf16> to vector<384x128xbf16>
    %cst_129 = arith.constant dense<0.000000e+00> : vector<80x128xf32>
    %128 = tpu.matmul %125, %127, %cst_129 {dimension_numbers = #tpu.dot_dimension_numbers<[1], [0], [0], [1], [0, 0, 1, 1], [], []>} : vector<80x384xbf16>, vector<384x128xbf16>, vector<80x128xf32> -> vector<80x128xf32>
    %129 = arith.addf %121, %128 : vector<80x128xf32>
    %c0_130 = arith.constant 0 : index
    %c0_131 = arith.constant 0 : index
    %130 = vector.load %arg9[%c0_130, %c0_131] : memref<1x128xf32, #tpu.memory_space<vmem>>, vector<1x128xf32>
    %131 = vector.broadcast %130 : vector<1x128xf32> to vector<80x128xf32>
    %132 = arith.addf %129, %131 : vector<80x128xf32>
    %cst_132 = arith.constant 0.000000e+00 : f32
    %133 = vector.broadcast %cst_132 : f32 to vector<80x128xf32>
    %134 = arith.maximumf %132, %133 : vector<80x128xf32>
    %c104_133 = arith.constant 104 : index
    %c0_134 = arith.constant 0 : index
    %135 = vector.load %arg27[%c104_133, %c0_134] : memref<256x128xf32, #tpu.memory_space<vmem>>, vector<80x128xf32>
    tpu.vector_store %arg27[%c104_133, %c0_134], %134 {strides = array<i32>} : memref<256x128xf32, #tpu.memory_space<vmem>>, vector<80x128xf32>,
    %cst_135 = arith.constant 0.000000e+00 : f32
    %136 = vector.broadcast %cst_135 : f32 to vector<2x256xf32>
    %c0_136 = arith.constant 0 : index
    %c0_137 = arith.constant 0 : index
    %137 = tpu.strided_load %arg27[%c0_136, %c0_137] {strides = array<i32: 128, 1>} : memref<256x128xf32, #tpu.memory_space<vmem>>, vector<2x128xf32>
    %138 = arith.truncf %137 : vector<2x128xf32> to vector<2x128xbf16>
    %c0_138 = arith.constant 0 : index
    %c0_139 = arith.constant 0 : index
    %c0_140 = arith.constant 0 : index
    %139 = vector.load %arg10[%c0_138, %c0_139, %c0_140] : memref<25x128x256xbf16, #tpu.memory_space<vmem>>, vector<1x128x256xbf16>
    %140 = vector.shape_cast %139 : vector<1x128x256xbf16> to vector<128x256xbf16>
    %cst_141 = arith.constant dense<0.000000e+00> : vector<2x256xf32>
    %141 = tpu.matmul %138, %140, %cst_141 {dimension_numbers = #tpu.dot_dimension_numbers<[1], [0], [0], [1], [0, 0, 1, 1], [], []>} : vector<2x128xbf16>, vector<128x256xbf16>, vector<2x256xf32> -> vector<2x256xf32>
    %142 = arith.addf %136, %141 : vector<2x256xf32>
    %c1_142 = arith.constant 1 : index
    %c0_143 = arith.constant 0 : index
    %143 = tpu.strided_load %arg27[%c1_142, %c0_143] {strides = array<i32: 128, 1>} : memref<256x128xf32, #tpu.memory_space<vmem>>, vector<2x128xf32>
    %144 = arith.truncf %143 : vector<2x128xf32> to vector<2x128xbf16>
    %c1_144 = arith.constant 1 : index
    %c0_145 = arith.constant 0 : index
    %c0_146 = arith.constant 0 : index
    %145 = vector.load %arg10[%c1_144, %c0_145, %c0_146] : memref<25x128x256xbf16, #tpu.memory_space<vmem>>, vector<1x128x256xbf16>
    %146 = vector.shape_cast %145 : vector<1x128x256xbf16> to vector<128x256xbf16>
    %cst_147 = arith.constant dense<0.000000e+00> : vector<2x256xf32>
    %147 = tpu.matmul %144, %146, %cst_147 {dimension_numbers = #tpu.dot_dimension_numbers<[1], [0], [0], [1], [0, 0, 1, 1], [], []>} : vector<2x128xbf16>, vector<128x256xbf16>, vector<2x256xf32> -> vector<2x256xf32>
    %148 = arith.addf %142, %147 : vector<2x256xf32>
    %c2_148 = arith.constant 2 : index
    %c0_149 = arith.constant 0 : index
    %149 = tpu.strided_load %arg27[%c2_148, %c0_149] {strides = array<i32: 128, 1>} : memref<256x128xf32, #tpu.memory_space<vmem>>, vector<2x128xf32>
    %150 = arith.truncf %149 : vector<2x128xf32> to vector<2x128xbf16>
    %c2_150 = arith.constant 2 : index
    %c0_151 = arith.constant 0 : index
    %c0_152 = arith.constant 0 : index
    %151 = vector.load %arg10[%c2_150, %c0_151, %c0_152] : memref<25x128x256xbf16, #tpu.memory_space<vmem>>, vector<1x128x256xbf16>
    %152 = vector.shape_cast %151 : vector<1x128x256xbf16> to vector<128x256xbf16>
    %cst_153 = arith.constant dense<0.000000e+00> : vector<2x256xf32>
    %153 = tpu.matmul %150, %152, %cst_153 {dimension_numbers = #tpu.dot_dimension_numbers<[1], [0], [0], [1], [0, 0, 1, 1], [], []>} : vector<2x128xbf16>, vector<128x256xbf16>, vector<2x256xf32> -> vector<2x256xf32>
    %154 = arith.addf %148, %153 : vector<2x256xf32>
    %c3 = arith.constant 3 : index
    %c0_154 = arith.constant 0 : index
    %155 = tpu.strided_load %arg27[%c3, %c0_154] {strides = array<i32: 128, 1>} : memref<256x128xf32, #tpu.memory_space<vmem>>, vector<2x128xf32>
    %156 = arith.truncf %155 : vector<2x128xf32> to vector<2x128xbf16>
    %c3_155 = arith.constant 3 : index
    %c0_156 = arith.constant 0 : index
    %c0_157 = arith.constant 0 : index
    %157 = vector.load %arg10[%c3_155, %c0_156, %c0_157] : memref<25x128x256xbf16, #tpu.memory_space<vmem>>, vector<1x128x256xbf16>
    %158 = vector.shape_cast %157 : vector<1x128x256xbf16> to vector<128x256xbf16>
    %cst_158 = arith.constant dense<0.000000e+00> : vector<2x256xf32>
    %159 = tpu.matmul %156, %158, %cst_158 {dimension_numbers = #tpu.dot_dimension_numbers<[1], [0], [0], [1], [0, 0, 1, 1], [], []>} : vector<2x128xbf16>, vector<128x256xbf16>, vector<2x256xf32> -> vector<2x256xf32>
    %160 = arith.addf %154, %159 : vector<2x256xf32>
    %c4 = arith.constant 4 : index
    %c0_159 = arith.constant 0 : index
    %161 = tpu.strided_load %arg27[%c4, %c0_159] {strides = array<i32: 128, 1>} : memref<256x128xf32, #tpu.memory_space<vmem>>, vector<2x128xf32>
    %162 = arith.truncf %161 : vector<2x128xf32> to vector<2x128xbf16>
    %c4_160 = arith.constant 4 : index
    %c0_161 = arith.constant 0 : index
    %c0_162 = arith.constant 0 : index
    %163 = vector.load %arg10[%c4_160, %c0_161, %c0_162] : memref<25x128x256xbf16, #tpu.memory_space<vmem>>, vector<1x128x256xbf16>
    %164 = vector.shape_cast %163 : vector<1x128x256xbf16> to vector<128x256xbf16>
    %cst_163 = arith.constant dense<0.000000e+00> : vector<2x256xf32>
    %165 = tpu.matmul %162, %164, %cst_163 {dimension_numbers = #tpu.dot_dimension_numbers<[1], [0], [0], [1], [0, 0, 1, 1], [], []>} : vector<2x128xbf16>, vector<128x256xbf16>, vector<2x256xf32> -> vector<2x256xf32>
    %166 = arith.addf %160, %165 : vector<2x256xf32>
    %c11_164 = arith.constant 11 : index
    %c0_165 = arith.constant 0 : index
    %167 = tpu.strided_load %arg27[%c11_164, %c0_165] {strides = array<i32: 128, 1>} : memref<256x128xf32, #tpu.memory_space<vmem>>, vector<2x128xf32>
    %168 = arith.truncf %167 : vector<2x128xf32> to vector<2x128xbf16>
    %c5 = arith.constant 5 : index
    %c0_166 = arith.constant 0 : index
    %c0_167 = arith.constant 0 : index
    %169 = vector.load %arg10[%c5, %c0_166, %c0_167] : memref<25x128x256xbf16, #tpu.memory_space<vmem>>, vector<1x128x256xbf16>
    %170 = vector.shape_cast %169 : vector<1x128x256xbf16> to vector<128x256xbf16>
    %cst_168 = arith.constant dense<0.000000e+00> : vector<2x256xf32>
    %171 = tpu.matmul %168, %170, %cst_168 {dimension_numbers = #tpu.dot_dimension_numbers<[1], [0], [0], [1], [0, 0, 1, 1], [], []>} : vector<2x128xbf16>, vector<128x256xbf16>, vector<2x256xf32> -> vector<2x256xf32>
    %172 = arith.addf %166, %171 : vector<2x256xf32>
    %c12_169 = arith.constant 12 : index
    %c0_170 = arith.constant 0 : index
    %173 = tpu.strided_load %arg27[%c12_169, %c0_170] {strides = array<i32: 128, 1>} : memref<256x128xf32, #tpu.memory_space<vmem>>, vector<2x128xf32>
    %174 = arith.truncf %173 : vector<2x128xf32> to vector<2x128xbf16>
    %c6 = arith.constant 6 : index
    %c0_171 = arith.constant 0 : index
    %c0_172 = arith.constant 0 : index
    %175 = vector.load %arg10[%c6, %c0_171, %c0_172] : memref<25x128x256xbf16, #tpu.memory_space<vmem>>, vector<1x128x256xbf16>
    %176 = vector.shape_cast %175 : vector<1x128x256xbf16> to vector<128x256xbf16>
    %cst_173 = arith.constant dense<0.000000e+00> : vector<2x256xf32>
    %177 = tpu.matmul %174, %176, %cst_173 {dimension_numbers = #tpu.dot_dimension_numbers<[1], [0], [0], [1], [0, 0, 1, 1], [], []>} : vector<2x128xbf16>, vector<128x256xbf16>, vector<2x256xf32> -> vector<2x256xf32>
    %178 = arith.addf %172, %177 : vector<2x256xf32>
    %c13_174 = arith.constant 13 : index
    %c0_175 = arith.constant 0 : index
    %179 = tpu.strided_load %arg27[%c13_174, %c0_175] {strides = array<i32: 128, 1>} : memref<256x128xf32, #tpu.memory_space<vmem>>, vector<2x128xf32>
    %180 = arith.truncf %179 : vector<2x128xf32> to vector<2x128xbf16>
    %c7 = arith.constant 7 : index
    %c0_176 = arith.constant 0 : index
    %c0_177 = arith.constant 0 : index
    %181 = vector.load %arg10[%c7, %c0_176, %c0_177] : memref<25x128x256xbf16, #tpu.memory_space<vmem>>, vector<1x128x256xbf16>
    %182 = vector.shape_cast %181 : vector<1x128x256xbf16> to vector<128x256xbf16>
    %cst_178 = arith.constant dense<0.000000e+00> : vector<2x256xf32>
    %183 = tpu.matmul %180, %182, %cst_178 {dimension_numbers = #tpu.dot_dimension_numbers<[1], [0], [0], [1], [0, 0, 1, 1], [], []>} : vector<2x128xbf16>, vector<128x256xbf16>, vector<2x256xf32> -> vector<2x256xf32>
    %184 = arith.addf %178, %183 : vector<2x256xf32>
    %c14 = arith.constant 14 : index
    %c0_179 = arith.constant 0 : index
    %185 = tpu.strided_load %arg27[%c14, %c0_179] {strides = array<i32: 128, 1>} : memref<256x128xf32, #tpu.memory_space<vmem>>, vector<2x128xf32>
    %186 = arith.truncf %185 : vector<2x128xf32> to vector<2x128xbf16>
    %c8 = arith.constant 8 : index
    %c0_180 = arith.constant 0 : index
    %c0_181 = arith.constant 0 : index
    %187 = vector.load %arg10[%c8, %c0_180, %c0_181] : memref<25x128x256xbf16, #tpu.memory_space<vmem>>, vector<1x128x256xbf16>
    %188 = vector.shape_cast %187 : vector<1x128x256xbf16> to vector<128x256xbf16>
    %cst_182 = arith.constant dense<0.000000e+00> : vector<2x256xf32>
    %189 = tpu.matmul %186, %188, %cst_182 {dimension_numbers = #tpu.dot_dimension_numbers<[1], [0], [0], [1], [0, 0, 1, 1], [], []>} : vector<2x128xbf16>, vector<128x256xbf16>, vector<2x256xf32> -> vector<2x256xf32>
    %190 = arith.addf %184, %189 : vector<2x256xf32>
    %c15 = arith.constant 15 : index
    %c0_183 = arith.constant 0 : index
    %191 = tpu.strided_load %arg27[%c15, %c0_183] {strides = array<i32: 128, 1>} : memref<256x128xf32, #tpu.memory_space<vmem>>, vector<2x128xf32>
    %192 = arith.truncf %191 : vector<2x128xf32> to vector<2x128xbf16>
    %c9 = arith.constant 9 : index
    %c0_184 = arith.constant 0 : index
    %c0_185 = arith.constant 0 : index
    %193 = vector.load %arg10[%c9, %c0_184, %c0_185] : memref<25x128x256xbf16, #tpu.memory_space<vmem>>, vector<1x128x256xbf16>
    %194 = vector.shape_cast %193 : vector<1x128x256xbf16> to vector<128x256xbf16>
    %cst_186 = arith.constant dense<0.000000e+00> : vector<2x256xf32>
    %195 = tpu.matmul %192, %194, %cst_186 {dimension_numbers = #tpu.dot_dimension_numbers<[1], [0], [0], [1], [0, 0, 1, 1], [], []>} : vector<2x128xbf16>, vector<128x256xbf16>, vector<2x256xf32> -> vector<2x256xf32>
    %196 = arith.addf %190, %195 : vector<2x256xf32>
    %c22_187 = arith.constant 22 : index
    %c0_188 = arith.constant 0 : index
    %197 = tpu.strided_load %arg27[%c22_187, %c0_188] {strides = array<i32: 128, 1>} : memref<256x128xf32, #tpu.memory_space<vmem>>, vector<2x128xf32>
    %198 = arith.truncf %197 : vector<2x128xf32> to vector<2x128xbf16>
    %c10 = arith.constant 10 : index
    %c0_189 = arith.constant 0 : index
    %c0_190 = arith.constant 0 : index
    %199 = vector.load %arg10[%c10, %c0_189, %c0_190] : memref<25x128x256xbf16, #tpu.memory_space<vmem>>, vector<1x128x256xbf16>
    %200 = vector.shape_cast %199 : vector<1x128x256xbf16> to vector<128x256xbf16>
    %cst_191 = arith.constant dense<0.000000e+00> : vector<2x256xf32>
    %201 = tpu.matmul %198, %200, %cst_191 {dimension_numbers = #tpu.dot_dimension_numbers<[1], [0], [0], [1], [0, 0, 1, 1], [], []>} : vector<2x128xbf16>, vector<128x256xbf16>, vector<2x256xf32> -> vector<2x256xf32>
    %202 = arith.addf %196, %201 : vector<2x256xf32>
    %c23_192 = arith.constant 23 : index
    %c0_193 = arith.constant 0 : index
    %203 = tpu.strided_load %arg27[%c23_192, %c0_193] {strides = array<i32: 128, 1>} : memref<256x128xf32, #tpu.memory_space<vmem>>, vector<2x128xf32>
    %204 = arith.truncf %203 : vector<2x128xf32> to vector<2x128xbf16>
    %c11_194 = arith.constant 11 : index
    %c0_195 = arith.constant 0 : index
    %c0_196 = arith.constant 0 : index
    %205 = vector.load %arg10[%c11_194, %c0_195, %c0_196] : memref<25x128x256xbf16, #tpu.memory_space<vmem>>, vector<1x128x256xbf16>
    %206 = vector.shape_cast %205 : vector<1x128x256xbf16> to vector<128x256xbf16>
    %cst_197 = arith.constant dense<0.000000e+00> : vector<2x256xf32>
    %207 = tpu.matmul %204, %206, %cst_197 {dimension_numbers = #tpu.dot_dimension_numbers<[1], [0], [0], [1], [0, 0, 1, 1], [], []>} : vector<2x128xbf16>, vector<128x256xbf16>, vector<2x256xf32> -> vector<2x256xf32>
    %208 = arith.addf %202, %207 : vector<2x256xf32>
    %c24_198 = arith.constant 24 : index
    %c0_199 = arith.constant 0 : index
    %209 = tpu.strided_load %arg27[%c24_198, %c0_199] {strides = array<i32: 128, 1>} : memref<256x128xf32, #tpu.memory_space<vmem>>, vector<2x128xf32>
    %210 = arith.truncf %209 : vector<2x128xf32> to vector<2x128xbf16>
    %c12_200 = arith.constant 12 : index
    %c0_201 = arith.constant 0 : index
    %c0_202 = arith.constant 0 : index
    %211 = vector.load %arg10[%c12_200, %c0_201, %c0_202] : memref<25x128x256xbf16, #tpu.memory_space<vmem>>, vector<1x128x256xbf16>
    %212 = vector.shape_cast %211 : vector<1x128x256xbf16> to vector<128x256xbf16>
    %cst_203 = arith.constant dense<0.000000e+00> : vector<2x256xf32>
    %213 = tpu.matmul %210, %212, %cst_203 {dimension_numbers = #tpu.dot_dimension_numbers<[1], [0], [0], [1], [0, 0, 1, 1], [], []>} : vector<2x128xbf16>, vector<128x256xbf16>, vector<2x256xf32> -> vector<2x256xf32>
    %214 = arith.addf %208, %213 : vector<2x256xf32>
    %c25 = arith.constant 25 : index
    %c0_204 = arith.constant 0 : index
    %215 = tpu.strided_load %arg27[%c25, %c0_204] {strides = array<i32: 128, 1>} : memref<256x128xf32, #tpu.memory_space<vmem>>, vector<2x128xf32>
    %216 = arith.truncf %215 : vector<2x128xf32> to vector<2x128xbf16>
    %c13_205 = arith.constant 13 : index
    %c0_206 = arith.constant 0 : index
    %c0_207 = arith.constant 0 : index
    %217 = vector.load %arg10[%c13_205, %c0_206, %c0_207] : memref<25x128x256xbf16, #tpu.memory_space<vmem>>, vector<1x128x256xbf16>
    %218 = vector.shape_cast %217 : vector<1x128x256xbf16> to vector<128x256xbf16>
    %cst_208 = arith.constant dense<0.000000e+00> : vector<2x256xf32>
    %219 = tpu.matmul %216, %218, %cst_208 {dimension_numbers = #tpu.dot_dimension_numbers<[1], [0], [0], [1], [0, 0, 1, 1], [], []>} : vector<2x128xbf16>, vector<128x256xbf16>, vector<2x256xf32> -> vector<2x256xf32>
    %220 = arith.addf %214, %219 : vector<2x256xf32>
    %c26 = arith.constant 26 : index
    %c0_209 = arith.constant 0 : index
    %221 = tpu.strided_load %arg27[%c26, %c0_209] {strides = array<i32: 128, 1>} : memref<256x128xf32, #tpu.memory_space<vmem>>, vector<2x128xf32>
    %222 = arith.truncf %221 : vector<2x128xf32> to vector<2x128xbf16>
    %c14_210 = arith.constant 14 : index
    %c0_211 = arith.constant 0 : index
    %c0_212 = arith.constant 0 : index
    %223 = vector.load %arg10[%c14_210, %c0_211, %c0_212] : memref<25x128x256xbf16, #tpu.memory_space<vmem>>, vector<1x128x256xbf16>
    %224 = vector.shape_cast %223 : vector<1x128x256xbf16> to vector<128x256xbf16>
    %cst_213 = arith.constant dense<0.000000e+00> : vector<2x256xf32>
    %225 = tpu.matmul %222, %224, %cst_213 {dimension_numbers = #tpu.dot_dimension_numbers<[1], [0], [0], [1], [0, 0, 1, 1], [], []>} : vector<2x128xbf16>, vector<128x256xbf16>, vector<2x256xf32> -> vector<2x256xf32>
    %226 = arith.addf %220, %225 : vector<2x256xf32>
    %c33 = arith.constant 33 : index
    %c0_214 = arith.constant 0 : index
    %227 = tpu.strided_load %arg27[%c33, %c0_214] {strides = array<i32: 128, 1>} : memref<256x128xf32, #tpu.memory_space<vmem>>, vector<2x128xf32>
    %228 = arith.truncf %227 : vector<2x128xf32> to vector<2x128xbf16>
    %c15_215 = arith.constant 15 : index
    %c0_216 = arith.constant 0 : index
    %c0_217 = arith.constant 0 : index
    %229 = vector.load %arg10[%c15_215, %c0_216, %c0_217] : memref<25x128x256xbf16, #tpu.memory_space<vmem>>, vector<1x128x256xbf16>
    %230 = vector.shape_cast %229 : vector<1x128x256xbf16> to vector<128x256xbf16>
    %cst_218 = arith.constant dense<0.000000e+00> : vector<2x256xf32>
    %231 = tpu.matmul %228, %230, %cst_218 {dimension_numbers = #tpu.dot_dimension_numbers<[1], [0], [0], [1], [0, 0, 1, 1], [], []>} : vector<2x128xbf16>, vector<128x256xbf16>, vector<2x256xf32> -> vector<2x256xf32>
    %232 = arith.addf %226, %231 : vector<2x256xf32>
    %c34 = arith.constant 34 : index
    %c0_219 = arith.constant 0 : index
    %233 = tpu.strided_load %arg27[%c34, %c0_219] {strides = array<i32: 128, 1>} : memref<256x128xf32, #tpu.memory_space<vmem>>, vector<2x128xf32>
    %234 = arith.truncf %233 : vector<2x128xf32> to vector<2x128xbf16>
    %c16 = arith.constant 16 : index
    %c0_220 = arith.constant 0 : index
    %c0_221 = arith.constant 0 : index
    %235 = vector.load %arg10[%c16, %c0_220, %c0_221] : memref<25x128x256xbf16, #tpu.memory_space<vmem>>, vector<1x128x256xbf16>
    %236 = vector.shape_cast %235 : vector<1x128x256xbf16> to vector<128x256xbf16>
    %cst_222 = arith.constant dense<0.000000e+00> : vector<2x256xf32>
    %237 = tpu.matmul %234, %236, %cst_222 {dimension_numbers = #tpu.dot_dimension_numbers<[1], [0], [0], [1], [0, 0, 1, 1], [], []>} : vector<2x128xbf16>, vector<128x256xbf16>, vector<2x256xf32> -> vector<2x256xf32>
    %238 = arith.addf %232, %237 : vector<2x256xf32>
    %c35 = arith.constant 35 : index
    %c0_223 = arith.constant 0 : index
    %239 = tpu.strided_load %arg27[%c35, %c0_223] {strides = array<i32: 128, 1>} : memref<256x128xf32, #tpu.memory_space<vmem>>, vector<2x128xf32>
    %240 = arith.truncf %239 : vector<2x128xf32> to vector<2x128xbf16>
    %c17 = arith.constant 17 : index
    %c0_224 = arith.constant 0 : index
    %c0_225 = arith.constant 0 : index
    %241 = vector.load %arg10[%c17, %c0_224, %c0_225] : memref<25x128x256xbf16, #tpu.memory_space<vmem>>, vector<1x128x256xbf16>
    %242 = vector.shape_cast %241 : vector<1x128x256xbf16> to vector<128x256xbf16>
    %cst_226 = arith.constant dense<0.000000e+00> : vector<2x256xf32>
    %243 = tpu.matmul %240, %242, %cst_226 {dimension_numbers = #tpu.dot_dimension_numbers<[1], [0], [0], [1], [0, 0, 1, 1], [], []>} : vector<2x128xbf16>, vector<128x256xbf16>, vector<2x256xf32> -> vector<2x256xf32>
    %244 = arith.addf %238, %243 : vector<2x256xf32>
    %c36 = arith.constant 36 : index
    %c0_227 = arith.constant 0 : index
    %245 = tpu.strided_load %arg27[%c36, %c0_227] {strides = array<i32: 128, 1>} : memref<256x128xf32, #tpu.memory_space<vmem>>, vector<2x128xf32>
    %246 = arith.truncf %245 : vector<2x128xf32> to vector<2x128xbf16>
    %c18 = arith.constant 18 : index
    %c0_228 = arith.constant 0 : index
    %c0_229 = arith.constant 0 : index
    %247 = vector.load %arg10[%c18, %c0_228, %c0_229] : memref<25x128x256xbf16, #tpu.memory_space<vmem>>, vector<1x128x256xbf16>
    %248 = vector.shape_cast %247 : vector<1x128x256xbf16> to vector<128x256xbf16>
    %cst_230 = arith.constant dense<0.000000e+00> : vector<2x256xf32>
    %249 = tpu.matmul %246, %248, %cst_230 {dimension_numbers = #tpu.dot_dimension_numbers<[1], [0], [0], [1], [0, 0, 1, 1], [], []>} : vector<2x128xbf16>, vector<128x256xbf16>, vector<2x256xf32> -> vector<2x256xf32>
    %250 = arith.addf %244, %249 : vector<2x256xf32>
    %c37 = arith.constant 37 : index
    %c0_231 = arith.constant 0 : index
    %251 = tpu.strided_load %arg27[%c37, %c0_231] {strides = array<i32: 128, 1>} : memref<256x128xf32, #tpu.memory_space<vmem>>, vector<2x128xf32>
    %252 = arith.truncf %251 : vector<2x128xf32> to vector<2x128xbf16>
    %c19 = arith.constant 19 : index
    %c0_232 = arith.constant 0 : index
    %c0_233 = arith.constant 0 : index
    %253 = vector.load %arg10[%c19, %c0_232, %c0_233] : memref<25x128x256xbf16, #tpu.memory_space<vmem>>, vector<1x128x256xbf16>
    %254 = vector.shape_cast %253 : vector<1x128x256xbf16> to vector<128x256xbf16>
    %cst_234 = arith.constant dense<0.000000e+00> : vector<2x256xf32>
    %255 = tpu.matmul %252, %254, %cst_234 {dimension_numbers = #tpu.dot_dimension_numbers<[1], [0], [0], [1], [0, 0, 1, 1], [], []>} : vector<2x128xbf16>, vector<128x256xbf16>, vector<2x256xf32> -> vector<2x256xf32>
    %256 = arith.addf %250, %255 : vector<2x256xf32>
    %c44 = arith.constant 44 : index
    %c0_235 = arith.constant 0 : index
    %257 = tpu.strided_load %arg27[%c44, %c0_235] {strides = array<i32: 128, 1>} : memref<256x128xf32, #tpu.memory_space<vmem>>, vector<2x128xf32>
    %258 = arith.truncf %257 : vector<2x128xf32> to vector<2x128xbf16>
    %c20 = arith.constant 20 : index
    %c0_236 = arith.constant 0 : index
    %c0_237 = arith.constant 0 : index
    %259 = vector.load %arg10[%c20, %c0_236, %c0_237] : memref<25x128x256xbf16, #tpu.memory_space<vmem>>, vector<1x128x256xbf16>
    %260 = vector.shape_cast %259 : vector<1x128x256xbf16> to vector<128x256xbf16>
    %cst_238 = arith.constant dense<0.000000e+00> : vector<2x256xf32>
    %261 = tpu.matmul %258, %260, %cst_238 {dimension_numbers = #tpu.dot_dimension_numbers<[1], [0], [0], [1], [0, 0, 1, 1], [], []>} : vector<2x128xbf16>, vector<128x256xbf16>, vector<2x256xf32> -> vector<2x256xf32>
    %262 = arith.addf %256, %261 : vector<2x256xf32>
    %c45 = arith.constant 45 : index
    %c0_239 = arith.constant 0 : index
    %263 = tpu.strided_load %arg27[%c45, %c0_239] {strides = array<i32: 128, 1>} : memref<256x128xf32, #tpu.memory_space<vmem>>, vector<2x128xf32>
    %264 = arith.truncf %263 : vector<2x128xf32> to vector<2x128xbf16>
    %c21 = arith.constant 21 : index
    %c0_240 = arith.constant 0 : index
    %c0_241 = arith.constant 0 : index
    %265 = vector.load %arg10[%c21, %c0_240, %c0_241] : memref<25x128x256xbf16, #tpu.memory_space<vmem>>, vector<1x128x256xbf16>
    %266 = vector.shape_cast %265 : vector<1x128x256xbf16> to vector<128x256xbf16>
    %cst_242 = arith.constant dense<0.000000e+00> : vector<2x256xf32>
    %267 = tpu.matmul %264, %266, %cst_242 {dimension_numbers = #tpu.dot_dimension_numbers<[1], [0], [0], [1], [0, 0, 1, 1], [], []>} : vector<2x128xbf16>, vector<128x256xbf16>, vector<2x256xf32> -> vector<2x256xf32>
    %268 = arith.addf %262, %267 : vector<2x256xf32>
    %c46 = arith.constant 46 : index
    %c0_243 = arith.constant 0 : index
    %269 = tpu.strided_load %arg27[%c46, %c0_243] {strides = array<i32: 128, 1>} : memref<256x128xf32, #tpu.memory_space<vmem>>, vector<2x128xf32>
    %270 = arith.truncf %269 : vector<2x128xf32> to vector<2x128xbf16>
    %c22_244 = arith.constant 22 : index
    %c0_245 = arith.constant 0 : index
    %c0_246 = arith.constant 0 : index
    %271 = vector.load %arg10[%c22_244, %c0_245, %c0_246] : memref<25x128x256xbf16, #tpu.memory_space<vmem>>, vector<1x128x256xbf16>
    %272 = vector.shape_cast %271 : vector<1x128x256xbf16> to vector<128x256xbf16>
    %cst_247 = arith.constant dense<0.000000e+00> : vector<2x256xf32>
    %273 = tpu.matmul %270, %272, %cst_247 {dimension_numbers = #tpu.dot_dimension_numbers<[1], [0], [0], [1], [0, 0, 1, 1], [], []>} : vector<2x128xbf16>, vector<128x256xbf16>, vector<2x256xf32> -> vector<2x256xf32>
    %274 = arith.addf %268, %273 : vector<2x256xf32>
    %c47 = arith.constant 47 : index
    %c0_248 = arith.constant 0 : index
    %275 = tpu.strided_load %arg27[%c47, %c0_248] {strides = array<i32: 128, 1>} : memref<256x128xf32, #tpu.memory_space<vmem>>, vector<2x128xf32>
    %276 = arith.truncf %275 : vector<2x128xf32> to vector<2x128xbf16>
    %c23_249 = arith.constant 23 : index
    %c0_250 = arith.constant 0 : index
    %c0_251 = arith.constant 0 : index
    %277 = vector.load %arg10[%c23_249, %c0_250, %c0_251] : memref<25x128x256xbf16, #tpu.memory_space<vmem>>, vector<1x128x256xbf16>
    %278 = vector.shape_cast %277 : vector<1x128x256xbf16> to vector<128x256xbf16>
    %cst_252 = arith.constant dense<0.000000e+00> : vector<2x256xf32>
    %279 = tpu.matmul %276, %278, %cst_252 {dimension_numbers = #tpu.dot_dimension_numbers<[1], [0], [0], [1], [0, 0, 1, 1], [], []>} : vector<2x128xbf16>, vector<128x256xbf16>, vector<2x256xf32> -> vector<2x256xf32>
    %280 = arith.addf %274, %279 : vector<2x256xf32>
    %c48 = arith.constant 48 : index
    %c0_253 = arith.constant 0 : index
    %281 = tpu.strided_load %arg27[%c48, %c0_253] {strides = array<i32: 128, 1>} : memref<256x128xf32, #tpu.memory_space<vmem>>, vector<2x128xf32>
    %282 = arith.truncf %281 : vector<2x128xf32> to vector<2x128xbf16>
    %c24_254 = arith.constant 24 : index
    %c0_255 = arith.constant 0 : index
    %c0_256 = arith.constant 0 : index
    %283 = vector.load %arg10[%c24_254, %c0_255, %c0_256] : memref<25x128x256xbf16, #tpu.memory_space<vmem>>, vector<1x128x256xbf16>
    %284 = vector.shape_cast %283 : vector<1x128x256xbf16> to vector<128x256xbf16>
    %cst_257 = arith.constant dense<0.000000e+00> : vector<2x256xf32>
    %285 = tpu.matmul %282, %284, %cst_257 {dimension_numbers = #tpu.dot_dimension_numbers<[1], [0], [0], [1], [0, 0, 1, 1], [], []>} : vector<2x128xbf16>, vector<128x256xbf16>, vector<2x256xf32> -> vector<2x256xf32>
    %286 = arith.addf %280, %285 : vector<2x256xf32>
    %c0_258 = arith.constant 0 : index
    %c0_259 = arith.constant 0 : index
    %287 = vector.load %arg11[%c0_258, %c0_259] : memref<1x256xf32, #tpu.memory_space<vmem>>, vector<1x256xf32>
    %288 = vector.broadcast %287 : vector<1x256xf32> to vector<2x256xf32>
    %289 = arith.addf %286, %288 : vector<2x256xf32>
    %cst_260 = arith.constant 0.000000e+00 : f32
    %290 = vector.broadcast %cst_260 : f32 to vector<2x256xf32>
    %291 = arith.maximumf %289, %290 : vector<2x256xf32>
    %292 = arith.truncf %291 : vector<2x256xf32> to vector<2x256xbf16>
    %c0_261 = arith.constant 0 : index
    %c0_262 = arith.constant 0 : index
    %293 = vector.load %arg12[%c0_261, %c0_262] : memref<256x32xbf16, #tpu.memory_space<vmem>>, vector<256x32xbf16>
    %cst_263 = arith.constant dense<0.000000e+00> : vector<2x32xf32>
    %294 = tpu.matmul %292, %293, %cst_263 {dimension_numbers = #tpu.dot_dimension_numbers<[1], [0], [0], [1], [0, 0, 1, 1], [], []>} : vector<2x256xbf16>, vector<256x32xbf16>, vector<2x32xf32> -> vector<2x32xf32>
    %c0_264 = arith.constant 0 : index
    %c0_265 = arith.constant 0 : index
    %295 = vector.load %arg1[%c0_264, %c0_265] : memref<2x8xf32, #tpu.memory_space<vmem>>, vector<2x8xf32>
    %c0_266 = arith.constant 0 : index
    %c0_267 = arith.constant 0 : index
    %296 = vector.load %arg13[%c0_266, %c0_267] : memref<8x32xf32, #tpu.memory_space<vmem>>, vector<8x32xf32>
    %cst_268 = arith.constant dense<0.000000e+00> : vector<2x32xf32>
    %297 = tpu.matmul %295, %296, %cst_268 {dimension_numbers = #tpu.dot_dimension_numbers<[1], [0], [0], [1], [0, 0, 1, 1], [], []>} : vector<2x8xf32>, vector<8x32xf32>, vector<2x32xf32> -> vector<2x32xf32>
    %298 = arith.addf %294, %297 : vector<2x32xf32>
    %c0_269 = arith.constant 0 : index
    %c0_270 = arith.constant 0 : index
    %299 = vector.load %arg14[%c0_269, %c0_270] : memref<1x32xf32, #tpu.memory_space<vmem>>, vector<1x32xf32>
    %300 = vector.broadcast %299 : vector<1x32xf32> to vector<2x32xf32>
    %301 = arith.addf %298, %300 : vector<2x32xf32>
    %cst_271 = arith.constant 0.000000e+00 : f32
    %302 = vector.broadcast %cst_271 : f32 to vector<2x32xf32>
    %303 = arith.maximumf %301, %302 : vector<2x32xf32>
    %c0_272 = arith.constant 0 : index
    %c0_273 = arith.constant 0 : index
    %304 = vector.load %arg3[%c0_272, %c0_273] : memref<2x32xf32, #tpu.memory_space<vmem>>, vector<2x32xf32>
    %c0_274 = arith.constant 0 : index
    %c0_275 = arith.constant 0 : index
    %305 = vector.load %arg15[%c0_274, %c0_275] : memref<32x96xf32, #tpu.memory_space<vmem>>, vector<32x96xf32>
    %cst_276 = arith.constant dense<0.000000e+00> : vector<2x96xf32>
    %306 = tpu.matmul %303, %305, %cst_276 {dimension_numbers = #tpu.dot_dimension_numbers<[1], [0], [0], [1], [0, 0, 1, 1], [], []>} : vector<2x32xf32>, vector<32x96xf32>, vector<2x96xf32> -> vector<2x96xf32>
    %c0_277 = arith.constant 0 : index
    %c0_278 = arith.constant 0 : index
    %307 = vector.load %arg17[%c0_277, %c0_278] : memref<1x96xf32, #tpu.memory_space<vmem>>, vector<1x96xf32>
    %308 = vector.broadcast %307 : vector<1x96xf32> to vector<2x96xf32>
    %309 = arith.addf %306, %308 : vector<2x96xf32>
    %c0_279 = arith.constant 0 : index
    %c0_280 = arith.constant 0 : index
    %310 = vector.load %arg16[%c0_279, %c0_280] : memref<32x96xf32, #tpu.memory_space<vmem>>, vector<32x96xf32>
    %cst_281 = arith.constant dense<0.000000e+00> : vector<2x96xf32>
    %311 = tpu.matmul %304, %310, %cst_281 {dimension_numbers = #tpu.dot_dimension_numbers<[1], [0], [0], [1], [0, 0, 1, 1], [], []>} : vector<2x32xf32>, vector<32x96xf32>, vector<2x96xf32> -> vector<2x96xf32>
    %c0_282 = arith.constant 0 : index
    %c0_283 = arith.constant 0 : index
    %312 = vector.load %arg18[%c0_282, %c0_283] : memref<1x96xf32, #tpu.memory_space<vmem>>, vector<1x96xf32>
    %313 = vector.broadcast %312 : vector<1x96xf32> to vector<2x96xf32>
    %314 = arith.addf %311, %313 : vector<2x96xf32>
    %315 = vector.extract_strided_slice %309 {offsets = [0, 0], sizes = [2, 32], strides = [1, 1]} : vector<2x96xf32> to vector<2x32xf32>
    %316 = vector.extract_strided_slice %314 {offsets = [0, 0], sizes = [2, 32], strides = [1, 1]} : vector<2x96xf32> to vector<2x32xf32>
    %317 = arith.addf %315, %316 : vector<2x32xf32>
    %318 = arith.negf %317 : vector<2x32xf32>
    %319 = math.exp %318 : vector<2x32xf32>
    %cst_284 = arith.constant 1.000000e+00 : f32
    %320 = vector.broadcast %cst_284 : f32 to vector<2x32xf32>
    %321 = arith.addf %320, %319 : vector<2x32xf32>
    %322 = arith.divf %320, %321 : vector<2x32xf32>
    %323 = vector.extract_strided_slice %309 {offsets = [0, 32], sizes = [2, 32], strides = [1, 1]} : vector<2x96xf32> to vector<2x32xf32>
    %324 = vector.extract_strided_slice %314 {offsets = [0, 32], sizes = [2, 32], strides = [1, 1]} : vector<2x96xf32> to vector<2x32xf32>
    %325 = arith.addf %323, %324 : vector<2x32xf32>
    %326 = arith.negf %325 : vector<2x32xf32>
    %327 = math.exp %326 : vector<2x32xf32>
    %cst_285 = arith.constant 1.000000e+00 : f32
    %328 = vector.broadcast %cst_285 : f32 to vector<2x32xf32>
    %329 = arith.addf %328, %327 : vector<2x32xf32>
    %330 = arith.divf %328, %329 : vector<2x32xf32>
    %331 = vector.extract_strided_slice %309 {offsets = [0, 64], sizes = [2, 32], strides = [1, 1]} : vector<2x96xf32> to vector<2x32xf32>
    %332 = vector.extract_strided_slice %314 {offsets = [0, 64], sizes = [2, 32], strides = [1, 1]} : vector<2x96xf32> to vector<2x32xf32>
    %333 = arith.mulf %322, %332 : vector<2x32xf32>
    %334 = arith.addf %331, %333 : vector<2x32xf32>
    %335 = math.tanh %334 : vector<2x32xf32>
    %cst_286 = arith.constant 1.000000e+00 : f32
    %336 = vector.broadcast %cst_286 : f32 to vector<2x32xf32>
    %337 = arith.subf %336, %330 : vector<2x32xf32>
    %338 = arith.mulf %337, %335 : vector<2x32xf32>
    %339 = arith.mulf %330, %304 : vector<2x32xf32>
    %340 = arith.addf %338, %339 : vector<2x32xf32>
    %c0_287 = arith.constant 0 : index
    %c0_288 = arith.constant 0 : index
    %341 = vector.load %arg19[%c0_287, %c0_288] : memref<32x16xf32, #tpu.memory_space<vmem>>, vector<32x16xf32>
    %cst_289 = arith.constant dense<0.000000e+00> : vector<2x16xf32>
    %342 = tpu.matmul %340, %341, %cst_289 {dimension_numbers = #tpu.dot_dimension_numbers<[1], [0], [0], [1], [0, 0, 1, 1], [], []>} : vector<2x32xf32>, vector<32x16xf32>, vector<2x16xf32> -> vector<2x16xf32>
    %c0_290 = arith.constant 0 : index
    %c0_291 = arith.constant 0 : index
    %343 = vector.load %arg2[%c0_290, %c0_291] : memref<2x8xf32, #tpu.memory_space<vmem>>, vector<2x8xf32>
    %c0_292 = arith.constant 0 : index
    %c0_293 = arith.constant 0 : index
    %344 = vector.load %arg20[%c0_292, %c0_293] : memref<8x16xf32, #tpu.memory_space<vmem>>, vector<8x16xf32>
    %cst_294 = arith.constant dense<0.000000e+00> : vector<2x16xf32>
    %345 = tpu.matmul %343, %344, %cst_294 {dimension_numbers = #tpu.dot_dimension_numbers<[1], [0], [0], [1], [0, 0, 1, 1], [], []>} : vector<2x8xf32>, vector<8x16xf32>, vector<2x16xf32> -> vector<2x16xf32>
    %346 = arith.addf %342, %345 : vector<2x16xf32>
    %c0_295 = arith.constant 0 : index
    %c0_296 = arith.constant 0 : index
    %347 = vector.load %arg21[%c0_295, %c0_296] : memref<1x16xf32, #tpu.memory_space<vmem>>, vector<1x16xf32>
    %348 = vector.broadcast %347 : vector<1x16xf32> to vector<2x16xf32>
    %349 = arith.addf %346, %348 : vector<2x16xf32>
    %cst_297 = arith.constant 0.000000e+00 : f32
    %350 = vector.broadcast %cst_297 : f32 to vector<2x16xf32>
    %351 = arith.maximumf %349, %350 : vector<2x16xf32>
    %c0_298 = arith.constant 0 : index
    %c0_299 = arith.constant 0 : index
    %352 = vector.load %arg22[%c0_298, %c0_299] : memref<16x96xf32, #tpu.memory_space<vmem>>, vector<16x96xf32>
    %cst_300 = arith.constant dense<0.000000e+00> : vector<2x96xf32>
    %353 = tpu.matmul %351, %352, %cst_300 {dimension_numbers = #tpu.dot_dimension_numbers<[1], [0], [0], [1], [0, 0, 1, 1], [], []>} : vector<2x16xf32>, vector<16x96xf32>, vector<2x96xf32> -> vector<2x96xf32>
    %c0_301 = arith.constant 0 : index
    %c0_302 = arith.constant 0 : index
    %354 = vector.load %arg23[%c0_301, %c0_302] : memref<1x96xf32, #tpu.memory_space<vmem>>, vector<1x96xf32>
    %355 = vector.broadcast %354 : vector<1x96xf32> to vector<2x96xf32>
    %356 = arith.addf %353, %355 : vector<2x96xf32>
    %357 = tpu.concatenate %356, %340 in 1 : vector<2x96xf32>, vector<2x32xf32> -> vector<2x128xf32>
    %c0_303 = arith.constant 0 : index
    %c0_304 = arith.constant 0 : index
    %358 = vector.load %arg24[%c0_303, %c0_304] : memref<2x128xf32, #tpu.memory_space<vmem>>, vector<2x128xf32>
    tpu.vector_store %arg24[%c0_303, %c0_304], %357 {strides = array<i32>} : memref<2x128xf32, #tpu.memory_space<vmem>>, vector<2x128xf32>,
    return
  }
}

</mosaic_0001>

<llo_original>
// kernel: see_id_agent_forward.1
$region0: #{see_id_agent_forward.1}
  #allocation0 [shape = 'u32[]', space=smem, size = 0x4, offset = 0x4, fixed_abs, tag = 'smem constant byte address 0x4 - core index']
  #allocation1 [shape = 'u32[144,128]{1,0:T(1,128)}', space=vmem, size = 0x12000, scoped, tag = 'internal scratch']
  #allocation2 [shape = 'bf16[256,64]{1,0:T(8,128)(2,1)}', space=vmem, size = 0x10000, scoped, tag = 'scratch operand']
  #allocation3 [shape = 'bf16[256,128]{1,0:T(8,128)(2,1)}', space=vmem, size = 0x10000, scoped, tag = 'scratch operand']
  #allocation4 [shape = 'f32[256,128]{1,0:T(8,128)}', space=vmem, size = 0x20000, scoped, tag = 'scratch operand']
  %s0 = inlined_call_operand.vmem [shape: bf16[256,72], index: 0, kind: input, shape index: {}]
  %s1 = inlined_call_operand.hbm [shape: f32[2,8], index: 1, kind: input, shape index: {}]
  %s2 = inlined_call_operand.vmem [shape: f32[2,8], index: 2, kind: input, shape index: {}]
  %s3 = inlined_call_operand.hbm [shape: f32[2,32], index: 3, kind: input, shape index: {}]
  %s4 = inlined_call_operand.vmem [shape: bf16[72,64], index: 4, kind: input, shape index: {}]
  %s5 = inlined_call_operand.hbm [shape: f32[1,64], index: 5, kind: input, shape index: {}]
  %s6 = inlined_call_operand.hbm [shape: bf16[3,192,128], index: 6, kind: input, shape index: {}]
  %s7 = inlined_call_operand.hbm [shape: f32[1,128], index: 7, kind: input, shape index: {}]
  %s8 = inlined_call_operand.hbm [shape: bf16[3,384,128], index: 8, kind: input, shape index: {}]
  %s9 = inlined_call_operand.hbm [shape: f32[1,128], index: 9, kind: input, shape index: {}]
  %s10 = inlined_call_operand.hbm [shape: bf16[25,128,256], index: 10, kind: input, shape index: {}]
  %s11 = inlined_call_operand.hbm [shape: f32[1,256], index: 11, kind: input, shape index: {}]
  %s12 = inlined_call_operand.vmem [shape: bf16[256,32], index: 12, kind: input, shape index: {}]
  %s13 = inlined_call_operand.hbm [shape: f32[8,32], index: 13, kind: input, shape index: {}]
  %s14 = inlined_call_operand.hbm [shape: f32[1,32], index: 14, kind: input, shape index: {}]
  %s15 = inlined_call_operand.hbm [shape: f32[32,96], index: 15, kind: input, shape index: {}]
  %s16 = inlined_call_operand.hbm [shape: f32[32,96], index: 16, kind: input, shape index: {}]
  %s17 = inlined_call_operand.hbm [shape: f32[1,96], index: 17, kind: input, shape index: {}]
  %s18 = inlined_call_operand.hbm [shape: f32[1,96], index: 18, kind: input, shape index: {}]
  %s19 = inlined_call_operand.vmem [shape: f32[32,16], index: 19, kind: input, shape index: {}]
  %s20 = inlined_call_operand.hbm [shape: f32[8,16], index: 20, kind: input, shape index: {}]
  %s21 = inlined_call_operand.hbm [shape: f32[1,16], index: 21, kind: input, shape index: {}]
  %s22 = inlined_call_operand.hbm [shape: f32[16,96], index: 22, kind: input, shape index: {}]
  %s23 = inlined_call_operand.hbm [shape: f32[1,96], index: 23, kind: input, shape index: {}]
  %s24 = inlined_call_operand.vmem [shape: f32[2,128], index: 24, kind: output, shape index: {}]
  %s25 = sld [smem:[#allocation0]]
  $region182: #{see_id_agent_forward.1} parent=0
    _
  %s27 = ssub.s32 1, %s25
  %s28 = scalar_select 0, %s27, %s25
  $region1: #{see_id_agent_forward.1} parent=0
    #allocation5 [shape = 'u8[1024]{0}', space=vmem, size = 0x400, scoped, tag = 'input window, operand 1, single buffered']
    #allocation6 [shape = 's32[1]{0}', space=sflag, size = 0x4, scoped, tag = 'scoped memory for see_id_agent_forward.1']
    #allocation7 [shape = 'u8[1024]{0}', space=vmem, size = 0x400, scoped, tag = 'input window, operand 3, single buffered']
    #allocation8 [shape = 's32[1]{0}', space=sflag, size = 0x4, scoped, tag = 'scoped memory for see_id_agent_forward.1']
    #allocation9 [shape = 'u8[512]{0}', space=vmem, size = 0x400, scoped, tag = 'input window, operand 5, single buffered']
    #allocation10 [shape = 'u8[147456]{0}', space=vmem, size = 0x24000, scoped, tag = 'input window, operand 6, single buffered']
    #allocation11 [shape = 's32[1]{0}', space=sflag, size = 0x4, scoped, tag = 'scoped memory for see_id_agent_forward.1']
    #allocation12 [shape = 'u8[512]{0}', space=vmem, size = 0x400, scoped, tag = 'input window, operand 7, single buffered']
    #allocation13 [shape = 'u8[294912]{0}', space=vmem, size = 0x48000, scoped, tag = 'input window, operand 8, single buffered']
    #allocation14 [shape = 's32[1]{0}', space=sflag, size = 0x4, scoped, tag = 'scoped memory for see_id_agent_forward.1']
    #allocation15 [shape = 'u8[512]{0}', space=vmem, size = 0x400, scoped, tag = 'input window, operand 9, single buffered']
    #allocation16 [shape = 'u8[1638400]{0}', space=vmem, size = 0x190000, scoped, tag = 'input window, operand 10, single buffered']
    #allocation17 [shape = 's32[1]{0}', space=sflag, size = 0x4, scoped, tag = 'scoped memory for see_id_agent_forward.1']
    #allocation18 [shape = 'u8[1024]{0}', space=vmem, size = 0x400, scoped, tag = 'input window, operand 11, single buffered']
    #allocation19 [shape = 'u8[4096]{0}', space=vmem, size = 0x1000, scoped, tag = 'input window, operand 13, single buffered']
    #allocation20 [shape = 's32[1]{0}', space=sflag, size = 0x4, scoped, tag = 'scoped memory for see_id_agent_forward.1']
    #allocation21 [shape = 'u8[512]{0}', space=vmem, size = 0x400, scoped, tag = 'input window, operand 14, single buffered']
    #allocation22 [shape = 'u8[16384]{0}', space=vmem, size = 0x4000, scoped, tag = 'input window, operand 15, single buffered']
    #allocation23 [shape = 's32[1]{0}', space=sflag, size = 0x4, scoped, tag = 'scoped memory for see_id_agent_forward.1']
    #allocation24 [shape = 'u8[16384]{0}', space=vmem, size = 0x4000, scoped, tag = 'input window, operand 16, single buffered']
    #allocation25 [shape = 'u8[512]{0}', space=vmem, size = 0x400, scoped, tag = 'input window, operand 17, single buffered']
    #allocation26 [shape = 's32[1]{0}', space=sflag, size = 0x4, scoped, tag = 'scoped memory for see_id_agent_forward.1']
    #allocation27 [shape = 'u8[512]{0}', space=vmem, size = 0x400, scoped, tag = 'input window, operand 18, single buffered']
    #allocation28 [shape = 'u8[4096]{0}', space=vmem, size = 0x1000, scoped, tag = 'input window, operand 20, single buffered']
    #allocation29 [shape = 's32[1]{0}', space=sflag, size = 0x4, scoped, tag = 'scoped memory for see_id_agent_forward.1']
    #allocation30 [shape = 'u8[512]{0}', space=vmem, size = 0x400, scoped, tag = 'input window, operand 21, single buffered']
    #allocation31 [shape = 'u8[8192]{0}', space=vmem, size = 0x2000, scoped, tag = 'input window, operand 22, single buffered']
    #allocation32 [shape = 's32[1]{0}', space=sflag, size = 0x4, scoped, tag = 'scoped memory for see_id_agent_forward.1']
    #allocation33 [shape = 'u8[512]{0}', space=vmem, size = 0x400, scoped, tag = 'input window, operand 23, single buffered']
    %29 = vsyncpa [#allocation6], 0
    %30 = vsyncpa [#allocation8], 0
    %31 = vsyncpa [#allocation11], 0
    %32 = vsyncpa [#allocation14], 0
    %33 = vsyncpa [#allocation17], 0
    %34 = vsyncpa [#allocation20], 0
    %35 = vsyncpa [#allocation23], 0
    %36 = vsyncpa [#allocation26], 0
    %37 = vsyncpa [#allocation29], 0
    %38 = vsyncpa [#allocation32], 0
    // Predicated region
    $region2: #{see_id_agent_forward.1} parent=1 // pred_check
      _
    $region3: #{see_id_agent_forward.1} parent=1 // pred_check_branch
      %40 = sbr.rel (0) target = $region5
    $region4: #{see_id_agent_forward.1} parent=1 // pred_region
      _
    $region5: #{see_id_agent_forward.1} parent=1 // pred_fallthru
      _
    // Predicated region
    $region6: #{see_id_agent_forward.1} parent=1 // pred_check
      _
    $region7: #{see_id_agent_forward.1} parent=1 // pred_check_branch
      %42 = sbr.rel (0) target = $region9
    $region8: #{see_id_agent_forward.1} parent=1 // pred_region
      %s44 = ssub.s32 32, 32
      %45 = vsyncadd [#allocation6], %s44
      %s47 = sshll.u32 [#allocation5], 4
      %s48 = int_to_ptr.vmem [resolvable:$true] %s47
      %50 = dma.hbm_to_vmem [thread:$0]  %s1, 32, %s48, [#allocation6]
    $region9: #{see_id_agent_forward.1} parent=1 // pred_fallthru
      _
    // Predicated region
    $region10: #{see_id_agent_forward.1} parent=1 // pred_check
      _
    $region11: #{see_id_agent_forward.1} parent=1 // pred_check_branch
      %52 = sbr.rel (0) target = $region13
    $region12: #{see_id_agent_forward.1} parent=1 // pred_region
      _
    $region13: #{see_id_agent_forward.1} parent=1 // pred_fallthru
      _
    // Predicated region
    $region14: #{see_id_agent_forward.1} parent=1 // pred_check
      _
    $region15: #{see_id_agent_forward.1} parent=1 // pred_check_branch
      %54 = sbr.rel (0) target = $region17
    $region16: #{see_id_agent_forward.1} parent=1 // pred_region
      %s56 = ssub.s32 32, 32
      %57 = vsyncadd [#allocation8], %s56
      %s59 = sshll.u32 [#allocation7], 4
      %s60 = int_to_ptr.vmem [resolvable:$true] %s59
      %62 = dma.hbm_to_vmem [thread:$0]  %s3, 32, %s60, [#allocation8]
    $region17: #{see_id_agent_forward.1} parent=1 // pred_fallthru
      _
    // Predicated region
    $region18: #{see_id_agent_forward.1} parent=1 // pred_check
      _
    $region19: #{see_id_agent_forward.1} parent=1 // pred_check_branch
      %64 = sbr.rel (0) target = $region21
    $region20: #{see_id_agent_forward.1} parent=1 // pred_region
      _
    $region21: #{see_id_agent_forward.1} parent=1 // pred_fallthru
      _
    // Predicated region
    $region22: #{see_id_agent_forward.1} parent=1 // pred_check
      _
    $region23: #{see_id_agent_forward.1} parent=1 // pred_check_branch
      %66 = sbr.rel (0) target = $region25
    $region24: #{see_id_agent_forward.1} parent=1 // pred_region
      %s68 = ssub.s32 16, 16
      %69 = vsyncadd [#allocation8], %s68
      %s71 = sshll.u32 [#allocation9], 4
      %s72 = int_to_ptr.vmem [resolvable:$true] %s71
      %74 = dma.hbm_to_vmem [thread:$0]  %s5, 16, %s72, [#allocation8]
    $region25: #{see_id_agent_forward.1} parent=1 // pred_fallthru
      _
    // Predicated region
    $region26: #{see_id_agent_forward.1} parent=1 // pred_check
      _
    $region27: #{see_id_agent_forward.1} parent=1 // pred_check_branch
      %76 = sbr.rel (0) target = $region29
    $region28: #{see_id_agent_forward.1} parent=1 // pred_region
      %s78 = ssub.s32 4608, 4608
      %79 = vsyncadd [#allocation11], %s78
      %s80 = sshll.u32 [#allocation10], 4
      %s81 = int_to_ptr.vmem [resolvable:$true] %s80
      %86 = dma.hbm_to_vmem [thread:$0]  %s6, 4608, %s81, [#allocation11], 64, 64, 4
    $region29: #{see_id_agent_forward.1} parent=1 // pred_fallthru
      _
    // Predicated region
    $region30: #{see_id_agent_forward.1} parent=1 // pred_check
      _
    $region31: #{see_id_agent_forward.1} parent=1 // pred_check_branch
      %88 = sbr.rel (0) target = $region33
    $region32: #{see_id_agent_forward.1} parent=1 // pred_region
      %s90 = ssub.s32 16, 16
      %91 = vsyncadd [#allocation11], %s90
      %s93 = sshll.u32 [#allocation12], 4
      %s94 = int_to_ptr.vmem [resolvable:$true] %s93
      %96 = dma.hbm_to_vmem [thread:$0]  %s7, 16, %s94, [#allocation11]
    $region33: #{see_id_agent_forward.1} parent=1 // pred_fallthru
      _
    // Predicated region
    $region34: #{see_id_agent_forward.1} parent=1 // pred_check
      _
    $region35: #{see_id_agent_forward.1} parent=1 // pred_check_branch
      %98 = sbr.rel (0) target = $region37
    $region36: #{see_id_agent_forward.1} parent=1 // pred_region
      %s100 = ssub.s32 9216, 9216
      %101 = vsyncadd [#allocation14], %s100
      %s102 = sshll.u32 [#allocation13], 4
      %s103 = int_to_ptr.vmem [resolvable:$true] %s102
      %108 = dma.hbm_to_vmem [thread:$0]  %s8, 9216, %s103, [#allocation14], 64, 64, 4
    $region37: #{see_id_agent_forward.1} parent=1 // pred_fallthru
      _
    // Predicated region
    $region38: #{see_id_agent_forward.1} parent=1 // pred_check
      _
    $region39: #{see_id_agent_forward.1} parent=1 // pred_check_branch
      %110 = sbr.rel (0) target = $region41
    $region40: #{see_id_agent_forward.1} parent=1 // pred_region
      %s112 = ssub.s32 16, 16
      %113 = vsyncadd [#allocation14], %s112
      %s115 = sshll.u32 [#allocation15], 4
      %s116 = int_to_ptr.vmem [resolvable:$true] %s115
      %118 = dma.hbm_to_vmem [thread:$0]  %s9, 16, %s116, [#allocation14]
    $region41: #{see_id_agent_forward.1} parent=1 // pred_fallthru
      _
    // Predicated region
    $region42: #{see_id_agent_forward.1} parent=1 // pred_check
      _
    $region43: #{see_id_agent_forward.1} parent=1 // pred_check_branch
      %120 = sbr.rel (0) target = $region45
    $region44: #{see_id_agent_forward.1} parent=1 // pred_region
      %s122 = ssub.s32 51200, 51200
      %123 = vsyncadd [#allocation17], %s122
      %s124 = sshll.u32 [#allocation16], 4
      %s125 = int_to_ptr.vmem [resolvable:$true] %s124
      %130 = dma.hbm_to_vmem [thread:$0]  %s10, 51200, %s125, [#allocation17], 128, 128, 8
    $region45: #{see_id_agent_forward.1} parent=1 // pred_fallthru
      _
    // Predicated region
    $region46: #{see_id_agent_forward.1} parent=1 // pred_check
      _
    $region47: #{see_id_agent_forward.1} parent=1 // pred_check_branch
      %132 = sbr.rel (0) target = $region49
    $region48: #{see_id_agent_forward.1} parent=1 // pred_region
      %s134 = ssub.s32 32, 32
      %135 = vsyncadd [#allocation17], %s134
      %s137 = sshll.u32 [#allocation18], 4
      %s138 = int_to_ptr.vmem [resolvable:$true] %s137
      %140 = dma.hbm_to_vmem [thread:$0]  %s11, 32, %s138, [#allocation17]
    $region49: #{see_id_agent_forward.1} parent=1 // pred_fallthru
      _
    // Predicated region
    $region50: #{see_id_agent_forward.1} parent=1 // pred_check
      _
    $region51: #{see_id_agent_forward.1} parent=1 // pred_check_branch
      %142 = sbr.rel (0) target = $region53
    $region52: #{see_id_agent_forward.1} parent=1 // pred_region
      _
    $region53: #{see_id_agent_forward.1} parent=1 // pred_fallthru
      _
    // Predicated region
    $region54: #{see_id_agent_forward.1} parent=1 // pred_check
      _
    $region55: #{see_id_agent_forward.1} parent=1 // pred_check_branch
      %144 = sbr.rel (0) target = $region57
    $region56: #{see_id_agent_forward.1} parent=1 // pred_region
      %s146 = ssub.s32 128, 128
      %147 = vsyncadd [#allocation20], %s146
      %s149 = sshll.u32 [#allocation19], 4
      %s150 = int_to_ptr.vmem [resolvable:$true] %s149
      %152 = dma.hbm_to_vmem [thread:$0]  %s13, 128, %s150, [#allocation20]
    $region57: #{see_id_agent_forward.1} parent=1 // pred_fallthru
      _
    // Predicated region
    $region58: #{see_id_agent_forward.1} parent=1 // pred_check
      _
    $region59: #{see_id_agent_forward.1} parent=1 // pred_check_branch
      %154 = sbr.rel (0) target = $region61
    $region60: #{see_id_agent_forward.1} parent=1 // pred_region
      %s156 = ssub.s32 16, 16
      %157 = vsyncadd [#allocation20], %s156
      %s159 = sshll.u32 [#allocation21], 4
      %s160 = int_to_ptr.vmem [resolvable:$true] %s159
      %162 = dma.hbm_to_vmem [thread:$0]  %s14, 16, %s160, [#allocation20]
    $region61: #{see_id_agent_forward.1} parent=1 // pred_fallthru
      _
    // Predicated region
    $region62: #{see_id_agent_forward.1} parent=1 // pred_check
      _
    $region63: #{see_id_agent_forward.1} parent=1 // pred_check_branch
      %164 = sbr.rel (0) target = $region65
    $region64: #{see_id_agent_forward.1} parent=1 // pred_region
      %s166 = ssub.s32 512, 512
      %167 = vsyncadd [#allocation23], %s166
      %s168 = sshll.u32 [#allocation22], 4
      %s169 = int_to_ptr.vmem [resolvable:$true] %s168
      %174 = dma.hbm_to_vmem [thread:$0]  %s15, 512, %s169, [#allocation23], 128, 128, 8
    $region65: #{see_id_agent_forward.1} parent=1 // pred_fallthru
      _
    // Predicated region
    $region66: #{see_id_agent_forward.1} parent=1 // pred_check
      _
    $region67: #{see_id_agent_forward.1} parent=1 // pred_check_branch
      %176 = sbr.rel (0) target = $region69
    $region68: #{see_id_agent_forward.1} parent=1 // pred_region
      %s178 = ssub.s32 512, 512
      %179 = vsyncadd [#allocation23], %s178
      %s180 = sshll.u32 [#allocation24], 4
      %s181 = int_to_ptr.vmem [resolvable:$true] %s180
      %186 = dma.hbm_to_vmem [thread:$0]  %s16, 512, %s181, [#allocation23], 128, 128, 8
    $region69: #{see_id_agent_forward.1} parent=1 // pred_fallthru
      _
    // Predicated region
    $region70: #{see_id_agent_forward.1} parent=1 // pred_check
      _
    $region71: #{see_id_agent_forward.1} parent=1 // pred_check_branch
      %188 = sbr.rel (0) target = $region73
    $region72: #{see_id_agent_forward.1} parent=1 // pred_region
      %s190 = ssub.s32 16, 16
      %191 = vsyncadd [#allocation26], %s190
      %s193 = sshll.u32 [#allocation25], 4
      %s194 = int_to_ptr.vmem [resolvable:$true] %s193
      %196 = dma.hbm_to_vmem [thread:$0]  %s17, 16, %s194, [#allocation26]
    $region73: #{see_id_agent_forward.1} parent=1 // pred_fallthru
      _
    // Predicated region
    $region74: #{see_id_agent_forward.1} parent=1 // pred_check
      _
    $region75: #{see_id_agent_forward.1} parent=1 // pred_check_branch
      %198 = sbr.rel (0) target = $region77
    $region76: #{see_id_agent_forward.1} parent=1 // pred_region
      %s200 = ssub.s32 16, 16
      %201 = vsyncadd [#allocation26], %s200
      %s203 = sshll.u32 [#allocation27], 4
      %s204 = int_to_ptr.vmem [resolvable:$true] %s203
      %206 = dma.hbm_to_vmem [thread:$0]  %s18, 16, %s204, [#allocation26]
    $region77: #{see_id_agent_forward.1} parent=1 // pred_fallthru
      _
    // Predicated region
    $region78: #{see_id_agent_forward.1} parent=1 // pred_check
      _
    $region79: #{see_id_agent_forward.1} parent=1 // pred_check_branch
      %208 = sbr.rel (0) target = $region81
    $region80: #{see_id_agent_forward.1} parent=1 // pred_region
      _
    $region81: #{see_id_agent_forward.1} parent=1 // pred_fallthru
      _
    // Predicated region
    $region82: #{see_id_agent_forward.1} parent=1 // pred_check
      _
    $region83: #{see_id_agent_forward.1} parent=1 // pred_check_branch
      %210 = sbr.rel (0) target = $region85
    $region84: #{see_id_agent_forward.1} parent=1 // pred_region
      %s212 = ssub.s32 128, 128
      %213 = vsyncadd [#allocation29], %s212
      %s215 = sshll.u32 [#allocation28], 4
      %s216 = int_to_ptr.vmem [resolvable:$true] %s215
      %218 = dma.hbm_to_vmem [thread:$0]  %s20, 128, %s216, [#allocation29]
    $region85: #{see_id_agent_forward.1} parent=1 // pred_fallthru
      _
    // Predicated region
    $region86: #{see_id_agent_forward.1} parent=1 // pred_check
      _
    $region87: #{see_id_agent_forward.1} parent=1 // pred_check_branch
      %220 = sbr.rel (0) target = $region89
    $region88: #{see_id_agent_forward.1} parent=1 // pred_region
      %s222 = ssub.s32 16, 16
      %223 = vsyncadd [#allocation29], %s222
      %s225 = sshll.u32 [#allocation30], 4
      %s226 = int_to_ptr.vmem [resolvable:$true] %s225
      %228 = dma.hbm_to_vmem [thread:$0]  %s21, 16, %s226, [#allocation29]
    $region89: #{see_id_agent_forward.1} parent=1 // pred_fallthru
      _
    // Predicated region
    $region90: #{see_id_agent_forward.1} parent=1 // pred_check
      _
    $region91: #{see_id_agent_forward.1} parent=1 // pred_check_branch
      %230 = sbr.rel (0) target = $region93
    $region92: #{see_id_agent_forward.1} parent=1 // pred_region
      %s232 = ssub.s32 256, 256
      %233 = vsyncadd [#allocation32], %s232
      %s234 = sshll.u32 [#allocation31], 4
      %s235 = int_to_ptr.vmem [resolvable:$true] %s234
      %240 = dma.hbm_to_vmem [thread:$0]  %s22, 256, %s235, [#allocation32], 128, 128, 8
    $region93: #{see_id_agent_forward.1} parent=1 // pred_fallthru
      _
    // Predicated region
    $region94: #{see_id_agent_forward.1} parent=1 // pred_check
      _
    $region95: #{see_id_agent_forward.1} parent=1 // pred_check_branch
      %242 = sbr.rel (0) target = $region97
    $region96: #{see_id_agent_forward.1} parent=1 // pred_region
      %s244 = ssub.s32 16, 16
      %245 = vsyncadd [#allocation32], %s244
      %s247 = sshll.u32 [#allocation33], 4
      %s248 = int_to_ptr.vmem [resolvable:$true] %s247
      %250 = dma.hbm_to_vmem [thread:$0]  %s23, 16, %s248, [#allocation32]
    $region97: #{see_id_agent_forward.1} parent=1 // pred_fallthru
      _
    // Predicated region
    $region98: #{see_id_agent_forward.1} parent=1 // pred_check
      _
    $region99: #{see_id_agent_forward.1} parent=1 // pred_check_branch
      %252 = sbr.rel (0) target = $region101
    $region100: #{see_id_agent_forward.1} parent=1 // pred_region
      %253 = dma.done [#allocation6], 32
    $region101: #{see_id_agent_forward.1} parent=1 // pred_fallthru
      _
    // Predicated region
    $region102: #{see_id_agent_forward.1} parent=1 // pred_check
      _
    $region103: #{see_id_agent_forward.1} parent=1 // pred_check_branch
      %255 = sbr.rel (0) target = $region105
    $region104: #{see_id_agent_forward.1} parent=1 // pred_region
      %256 = dma.done [#allocation8], 32
    $region105: #{see_id_agent_forward.1} parent=1 // pred_fallthru
      _
    // Predicated region
    $region106: #{see_id_agent_forward.1} parent=1 // pred_check
      _
    $region107: #{see_id_agent_forward.1} parent=1 // pred_check_branch
      %258 = sbr.rel (0) target = $region109
    $region108: #{see_id_agent_forward.1} parent=1 // pred_region
      %259 = dma.done [#allocation8], 16
    $region109: #{see_id_agent_forward.1} parent=1 // pred_fallthru
      _
    // Predicated region
    $region110: #{see_id_agent_forward.1} parent=1 // pred_check
      _
    $region111: #{see_id_agent_forward.1} parent=1 // pred_check_branch
      %261 = sbr.rel (0) target = $region113
    $region112: #{see_id_agent_forward.1} parent=1 // pred_region
      %262 = dma.done [#allocation11], 4608
    $region113: #{see_id_agent_forward.1} parent=1 // pred_fallthru
      _
    // Predicated region
    $region114: #{see_id_agent_forward.1} parent=1 // pred_check
      _
    $region115: #{see_id_agent_forward.1} parent=1 // pred_check_branch
      %264 = sbr.rel (0) target = $region117
    $region116: #{see_id_agent_forward.1} parent=1 // pred_region
      %265 = dma.done [#allocation11], 16
    $region117: #{see_id_agent_forward.1} parent=1 // pred_fallthru
      _
    // Predicated region
    $region118: #{see_id_agent_forward.1} parent=1 // pred_check
      _
    $region119: #{see_id_agent_forward.1} parent=1 // pred_check_branch
      %267 = sbr.rel (0) target = $region121
    $region120: #{see_id_agent_forward.1} parent=1 // pred_region
      %268 = dma.done [#allocation14], 9216
    $region121: #{see_id_agent_forward.1} parent=1 // pred_fallthru
      _
    // Predicated region
    $region122: #{see_id_agent_forward.1} parent=1 // pred_check
      _
    $region123: #{see_id_agent_forward.1} parent=1 // pred_check_branch
      %270 = sbr.rel (0) target = $region125
    $region124: #{see_id_agent_forward.1} parent=1 // pred_region
      %271 = dma.done [#allocation14], 16
    $region125: #{see_id_agent_forward.1} parent=1 // pred_fallthru
      _
    // Predicated region
    $region126: #{see_id_agent_forward.1} parent=1 // pred_check
      _
    $region127: #{see_id_agent_forward.1} parent=1 // pred_check_branch
      %273 = sbr.rel (0) target = $region129
    $region128: #{see_id_agent_forward.1} parent=1 // pred_region
      %274 = dma.done [#allocation17], 51200
    $region129: #{see_id_agent_forward.1} parent=1 // pred_fallthru
      _
    // Predicated region
    $region130: #{see_id_agent_forward.1} parent=1 // pred_check
      _
    $region131: #{see_id_agent_forward.1} parent=1 // pred_check_branch
      %276 = sbr.rel (0) target = $region133
    $region132: #{see_id_agent_forward.1} parent=1 // pred_region
      %277 = dma.done [#allocation17], 32
    $region133: #{see_id_agent_forward.1} parent=1 // pred_fallthru
      _
    // Predicated region
    $region134: #{see_id_agent_forward.1} parent=1 // pred_check
      _
    $region135: #{see_id_agent_forward.1} parent=1 // pred_check_branch
      %279 = sbr.rel (0) target = $region137
    $region136: #{see_id_agent_forward.1} parent=1 // pred_region
      %280 = dma.done [#allocation20], 128
    $region137: #{see_id_agent_forward.1} parent=1 // pred_fallthru
      _
    // Predicated region
    $region138: #{see_id_agent_forward.1} parent=1 // pred_check
      _
    $region139: #{see_id_agent_forward.1} parent=1 // pred_check_branch
      %282 = sbr.rel (0) target = $region141
    $region140: #{see_id_agent_forward.1} parent=1 // pred_region
      %283 = dma.done [#allocation20], 16
    $region141: #{see_id_agent_forward.1} parent=1 // pred_fallthru
      _
    // Predicated region
    $region142: #{see_id_agent_forward.1} parent=1 // pred_check
      _
    $region143: #{see_id_agent_forward.1} parent=1 // pred_check_branch
      %285 = sbr.rel (0) target = $region145
    $region144: #{see_id_agent_forward.1} parent=1 // pred_region
      %286 = dma.done [#allocation23], 512
    $region145: #{see_id_agent_forward.1} parent=1 // pred_fallthru
      _
    // Predicated region
    $region146: #{see_id_agent_forward.1} parent=1 // pred_check
      _
    $region147: #{see_id_agent_forward.1} parent=1 // pred_check_branch
      %288 = sbr.rel (0) target = $region149
    $region148: #{see_id_agent_forward.1} parent=1 // pred_region
      %289 = dma.done [#allocation23], 512
    $region149: #{see_id_agent_forward.1} parent=1 // pred_fallthru
      _
    // Predicated region
    $region150: #{see_id_agent_forward.1} parent=1 // pred_check
      _
    $region151: #{see_id_agent_forward.1} parent=1 // pred_check_branch
      %291 = sbr.rel (0) target = $region153
    $region152: #{see_id_agent_forward.1} parent=1 // pred_region
      %292 = dma.done [#allocation26], 16
    $region153: #{see_id_agent_forward.1} parent=1 // pred_fallthru
      _
    // Predicated region
    $region154: #{see_id_agent_forward.1} parent=1 // pred_check
      _
    $region155: #{see_id_agent_forward.1} parent=1 // pred_check_branch
      %294 = sbr.rel (0) target = $region157
    $region156: #{see_id_agent_forward.1} parent=1 // pred_region
      %295 = dma.done [#allocation26], 16
    $region157: #{see_id_agent_forward.1} parent=1 // pred_fallthru
      _
    // Predicated region
    $region158: #{see_id_agent_forward.1} parent=1 // pred_check
      _
    $region159: #{see_id_agent_forward.1} parent=1 // pred_check_branch
      %297 = sbr.rel (0) target = $region161
    $region160: #{see_id_agent_forward.1} parent=1 // pred_region
      %298 = dma.done [#allocation29], 128
    $region161: #{see_id_agent_forward.1} parent=1 // pred_fallthru
      _
    // Predicated region
    $region162: #{see_id_agent_forward.1} parent=1 // pred_check
      _
    $region163: #{see_id_agent_forward.1} parent=1 // pred_check_branch
      %300 = sbr.rel (0) target = $region165
    $region164: #{see_id_agent_forward.1} parent=1 // pred_region
      %301 = dma.done [#allocation29], 16
    $region165: #{see_id_agent_forward.1} parent=1 // pred_fallthru
      _
    // Predicated region
    $region166: #{see_id_agent_forward.1} parent=1 // pred_check
      _
    $region167: #{see_id_agent_forward.1} parent=1 // pred_check_branch
      %303 = sbr.rel (0) target = $region169
    $region168: #{see_id_agent_forward.1} parent=1 // pred_region
      %304 = dma.done [#allocation32], 256
    $region169: #{see_id_agent_forward.1} parent=1 // pred_fallthru
      _
    // Predicated region
    $region170: #{see_id_agent_forward.1} parent=1 // pred_check
      _
    $region171: #{see_id_agent_forward.1} parent=1 // pred_check_branch
      %306 = sbr.rel (0) target = $region173
    $region172: #{see_id_agent_forward.1} parent=1 // pred_region
      %307 = dma.done [#allocation32], 16
    $region173: #{see_id_agent_forward.1} parent=1 // pred_fallthru
      _
    %v309 = vld [vmem:[%s0] sm:$0xf]
    %v310 = vld [vmem:[%s0 + $0x4] sm:$0xf]
    %v311 = vld [vmem:[%s0 + $0x8] sm:$0xf]
    %v312 = vld [vmem:[%s0 + $0xc] sm:$0xf]
    %v313 = vld [vmem:[%s0 + $0x10] sm:$0xf]
    %v314 = vld [vmem:[%s0 + $0x14] sm:$0xf]
    %v315 = vld [vmem:[%s0 + $0x18] sm:$0xf]
    %v316 = vld [vmem:[%s0 + $0x1c] sm:$0xf]
    %v317 = vld [vmem:[%s0 + $0x20] sm:$0xf]
    %v318 = vld [vmem:[%s0 + $0x24] sm:$0xf]
    %v319 = vld [vmem:[%s0 + $0x28] sm:$0xf]
    %v320 = vld [vmem:[%s0 + $0x2c] sm:$0xf]
    %v321 = vld [vmem:[%s0 + $0x30] sm:$0xf]
    %v322 = vld [vmem:[%s0 + $0x34] sm:$0xf]
    %v323 = vld [vmem:[%s0 + $0x38] sm:$0xf]
    %v324 = vld [vmem:[%s0 + $0x3c] sm:$0xf]
    %v325 = vld [vmem:[%s0 + $0x40] sm:$0xf]
    %v326 = vld [vmem:[%s0 + $0x44] sm:$0xf]
    %v327 = vld [vmem:[%s0 + $0x48] sm:$0xf]
    %v328 = vld [vmem:[%s0 + $0x4c] sm:$0xf]
    %v329 = vld [vmem:[%s0 + $0x50] sm:$0xf]
    %v330 = vld [vmem:[%s0 + $0x54] sm:$0xf]
    %v331 = vld [vmem:[%s0 + $0x58] sm:$0xf]
    %v332 = vld [vmem:[%s0 + $0x5c] sm:$0xf]
    %v333 = vld [vmem:[%s0 + $0x60] sm:$0xf]
    %v334 = vld [vmem:[%s0 + $0x64] sm:$0xf]
    %v335 = vld [vmem:[%s0 + $0x68] sm:$0xf]
    %v336 = vld [vmem:[%s0 + $0x6c] sm:$0xf]
    %v337 = vld [vmem:[%s0 + $0x70] sm:$0xf]
    %v338 = vld [vmem:[%s0 + $0x74] sm:$0xf]
    %v339 = vld [vmem:[%s0 + $0x78] sm:$0xf]
    %v340 = vld [vmem:[%s0 + $0x7c] sm:$0xf]
    %v341 = vld [vmem:[%s4] sm:$0xf]
    %v342 = vld [vmem:[%s4 + $0x4] sm:$0xf]
    %v343 = vld [vmem:[%s4 + $0x8] sm:$0xf]
    %v344 = vld [vmem:[%s4 + $0xc] sm:$0xf]
    %v345 = vld [vmem:[%s4 + $0x10] sm:$0xf]
    %v346 = vld [vmem:[%s4 + $0x14] sm:$0xf]
    %v347 = vld [vmem:[%s4 + $0x18] sm:$0xf]
    %v348 = vld [vmem:[%s4 + $0x1c] sm:$0xf]
    %v349 = vld [vmem:[%s4 + $0x20] sm:$0xf]
    %v350 = vld [vmem:[#allocation9] sm:$0x1]
    %v352 = vlaneseq
    %v353 = vshrl.u32 %v352, 7
    %v354 = vsub.s32 0, %v353
    %v355 = vrot.slane %v350, %v354
    %v389 = vunpack.c.l.b16 %v309
    %v390 = vunpack.c.l.b16 %v310
    %v391 = vunpack.c.l.b16 %v311
    %v392 = vunpack.c.l.b16 %v312
    %v393 = vunpack.c.l.b16 %v313
    %v394 = vunpack.c.l.b16 %v314
    %v395 = vunpack.c.l.b16 %v315
    %v396 = vunpack.c.l.b16 %v316
    %v397 = vunpack.c.l.b16 %v317
    %v398 = vunpack.c.l.b16 %v318
    %v399 = vunpack.c.l.b16 %v319
    %v400 = vunpack.c.l.b16 %v320
    %v401 = vunpack.c.l.b16 %v321
    %v402 = vunpack.c.l.b16 %v322
    %v403 = vunpack.c.l.b16 %v323
    %v404 = vunpack.c.l.b16 %v324
    %v405 = vunpack.c.l.b16 %v325
    %v406 = vunpack.c.l.b16 %v326
    %v407 = vunpack.c.l.b16 %v327
    %v408 = vunpack.c.l.b16 %v328
    %v409 = vunpack.c.l.b16 %v329
    %v410 = vunpack.c.l.b16 %v330
    %v411 = vunpack.c.l.b16 %v331
    %v412 = vunpack.c.l.b16 %v332
    %v413 = vunpack.c.l.b16 %v333
    %v414 = vunpack.c.l.b16 %v334
    %v415 = vunpack.c.l.b16 %v335
    %v416 = vunpack.c.l.b16 %v336
    %v417 = vunpack.c.l.b16 %v337
    %v418 = vunpack.c.l.b16 %v338
    %v419 = vunpack.c.l.b16 %v339
    %v420 = vunpack.c.l.b16 %v340
    %v421 = vpack.c.b16 %v390, %v389
    %v422 = vpack.c.b16 %v392, %v391
    %v423 = vpack.c.b16 %v394, %v393
    %v424 = vpack.c.b16 %v396, %v395
    %v425 = vpack.c.b16 %v398, %v397
    %v426 = vpack.c.b16 %v400, %v399
    %v427 = vpack.c.b16 %v402, %v401
    %v428 = vpack.c.b16 %v404, %v403
    %v429 = vpack.c.b16 %v406, %v405
    %v430 = vpack.c.b16 %v408, %v407
    %v431 = vpack.c.b16 %v410, %v409
    %v432 = vpack.c.b16 %v412, %v411
    %v433 = vpack.c.b16 %v414, %v413
    %v434 = vpack.c.b16 %v416, %v415
    %v435 = vpack.c.b16 %v418, %v417
    %v436 = vpack.c.b16 %v420, %v419
    %v446 = vunpack.c.l.b16 %v341
    %v447 = vunpack.c.l.b16 %v342
    %v448 = vunpack.c.l.b16 %v343
    %v449 = vunpack.c.l.b16 %v344
    %v450 = vunpack.c.l.b16 %v345
    %v451 = vunpack.c.l.b16 %v346
    %v452 = vunpack.c.l.b16 %v347
    %v453 = vunpack.c.l.b16 %v348
    %v454 = vunpack.c.l.b16 %v349
    %v455 = vpack.c.b16 %v447, %v446
    %v456 = vpack.c.b16 %v449, %v448
    %v457 = vpack.c.b16 %v451, %v450
    %v458 = vpack.c.b16 %v453, %v452
    %v459 = vpack.c.b16 %v454, %v454
    %vm464 = vcmask 588800
    %v466 = vsel %vm464, %v421, 0
    %v469 = vsel %vm464, %v422, 0
    %v472 = vsel %vm464, %v423, 0
    %v475 = vsel %vm464, %v424, 0
    %v478 = vsel %vm464, %v425, 0
    %v481 = vsel %vm464, %v426, 0
    %v484 = vsel %vm464, %v427, 0
    %v487 = vsel %vm464, %v428, 0
    %v490 = vsel %vm464, %v429, 0
    %v493 = vsel %vm464, %v430, 0
    %v496 = vsel %vm464, %v431, 0
    %v499 = vsel %vm464, %v432, 0
    %v502 = vsel %vm464, %v433, 0
    %v505 = vsel %vm464, %v434, 0
    %v508 = vsel %vm464, %v435, 0
    %v511 = vsel %vm464, %v436, 0
    %vm513 = vcmask 1043456
    %v515 = vsel %vm513, %v459, 0
    %517 = vmatprep.subr.bf16.mxu0 0
    %518 = vmatpush1.bf16.msra.mxu0 0
    %519 = vmatprep.subr.bf16.mxu0 0
    %520 = vmatpush1.bf16.msra.mxu0 0
    %521 = vmatprep.subr.bf16.mxu0 0
    %522 = vmatpush1.bf16.msra.mxu0 0
    %523 = vmatprep.subr.bf16.mxu0 0
    %524 = vmatpush1.bf16.msra.mxu0 %v515
    %525 = vmatprep.subr.bf16.mxu0 0
    %526 = vmatpush1.bf16.msra.mxu0 %v458
    %527 = vmatprep.subr.bf16.mxu0 0
    %528 = vmatpush1.bf16.msra.mxu0 %v457
    %529 = vmatprep.subr.bf16.mxu0 0
    %530 = vmatpush1.bf16.msra.mxu0 %v456
    %531 = vmatprep.subr.bf16.mxu0 0
    %532 = vmatpush1.bf16.msra.mxu0 %v455
    %533 = vmatprep.subr.bf16.mxu0 0
    %534 = vmatpush2.bf16.msra.mxu0 0
    %535 = vmatprep.subr.bf16.mxu0 0
    %536 = vmatpush2.bf16.msra.mxu0 0
    %537 = vmatprep.subr.bf16.mxu0 0
    %538 = vmatpush2.bf16.msra.mxu0 0
    %539 = vmatprep.subr.bf16.mxu0 0
    %540 = vmatpush2.bf16.msra.mxu0 0
    %541 = vmatprep.subr.bf16.mxu0 0
    %542 = vmatpush2.bf16.msra.mxu0 0
    %543 = vmatprep.subr.bf16.mxu0 0
    %544 = vmatpush2.bf16.msra.mxu0 0
    %545 = vmatprep.subr.bf16.mxu0 0
    %546 = vmatpush2.bf16.msra.mxu0 0
    %547 = vmatprep.subr.bf16.mxu0 0
    %548 = vmatpush2.bf16.msra.mxu0 0
    %549 = vmatprep.mubr.bf16.mxu0 0
    %550 = vmatmul.mubr.bf16.gmra.mxu0 %v466
    %v551 = vpop.f32.mrf.mxu0
    %v552 = vadd.f32 %v355, %v551
    %v553 = vpop.f32.mrf.mxu0
    %v554 = vpop.f32.mrf.mxu0
    %v555 = vadd.f32 %v355, %v554
    %v556 = vpop.f32.mrf.mxu0
    %557 = vmatprep.mubr.bf16.mxu0 0
    %558 = vmatmul.mubr.bf16.gmra.mxu0 %v469
    %v559 = vpop.f32.mrf.mxu0
    %v560 = vadd.f32 %v355, %v559
    %v561 = vpop.f32.mrf.mxu0
    %v562 = vpop.f32.mrf.mxu0
    %v563 = vadd.f32 %v355, %v562
    %v564 = vpop.f32.mrf.mxu0
    %565 = vmatprep.mubr.bf16.mxu0 0
    %566 = vmatmul.mubr.bf16.gmra.mxu0 %v472
    %v567 = vpop.f32.mrf.mxu0
    %v568 = vadd.f32 %v355, %v567
    %v569 = vpop.f32.mrf.mxu0
    %v570 = vpop.f32.mrf.mxu0
    %v571 = vadd.f32 %v355, %v570
    %v572 = vpop.f32.mrf.mxu0
    %573 = vmatprep.mubr.bf16.mxu0 0
    %574 = vmatmul.mubr.bf16.gmra.mxu0 %v475
    %v575 = vpop.f32.mrf.mxu0
    %v576 = vadd.f32 %v355, %v575
    %v577 = vpop.f32.mrf.mxu0
    %v578 = vpop.f32.mrf.mxu0
    %v579 = vadd.f32 %v355, %v578
    %v580 = vpop.f32.mrf.mxu0
    %581 = vmatprep.mubr.bf16.mxu0 0
    %582 = vmatmul.mubr.bf16.gmra.mxu0 %v478
    %v583 = vpop.f32.mrf.mxu0
    %v584 = vadd.f32 %v355, %v583
    %v585 = vpop.f32.mrf.mxu0
    %v586 = vpop.f32.mrf.mxu0
    %v587 = vadd.f32 %v355, %v586
    %v588 = vpop.f32.mrf.mxu0
    %589 = vmatprep.mubr.bf16.mxu0 0
    %590 = vmatmul.mubr.bf16.gmra.mxu0 %v481
    %v591 = vpop.f32.mrf.mxu0
    %v592 = vadd.f32 %v355, %v591
    %v593 = vpop.f32.mrf.mxu0
    %v594 = vpop.f32.mrf.mxu0
    %v595 = vadd.f32 %v355, %v594
    %v596 = vpop.f32.mrf.mxu0
    %597 = vmatprep.mubr.bf16.mxu0 0
    %598 = vmatmul.mubr.bf16.gmra.mxu0 %v484
    %v599 = vpop.f32.mrf.mxu0
    %v600 = vadd.f32 %v355, %v599
    %v601 = vpop.f32.mrf.mxu0
    %v602 = vpop.f32.mrf.mxu0
    %v603 = vadd.f32 %v355, %v602
    %v604 = vpop.f32.mrf.mxu0
    %605 = vmatprep.mubr.bf16.mxu0 0
    %606 = vmatmul.mubr.bf16.gmra.mxu0 %v487
    %v607 = vpop.f32.mrf.mxu0
    %v608 = vadd.f32 %v355, %v607
    %v609 = vpop.f32.mrf.mxu0
    %v610 = vpop.f32.mrf.mxu0
    %v611 = vadd.f32 %v355, %v610
    %v612 = vpop.f32.mrf.mxu0
    %613 = vmatprep.mubr.bf16.mxu0 0
    %614 = vmatmul.mubr.bf16.gmra.mxu0 %v490
    %v615 = vpop.f32.mrf.mxu0
    %v616 = vadd.f32 %v355, %v615
    %v617 = vpop.f32.mrf.mxu0
    %v618 = vpop.f32.mrf.mxu0
    %v619 = vadd.f32 %v355, %v618
    %v620 = vpop.f32.mrf.mxu0
    %621 = vmatprep.mubr.bf16.mxu0 0
    %622 = vmatmul.mubr.bf16.gmra.mxu0 %v493
    %v623 = vpop.f32.mrf.mxu0
    %v624 = vadd.f32 %v355, %v623
    %v625 = vpop.f32.mrf.mxu0
    %v626 = vpop.f32.mrf.mxu0
    %v627 = vadd.f32 %v355, %v626
    %v628 = vpop.f32.mrf.mxu0
    %629 = vmatprep.mubr.bf16.mxu0 0
    %630 = vmatmul.mubr.bf16.gmra.mxu0 %v496
    %v631 = vpop.f32.mrf.mxu0
    %v632 = vadd.f32 %v355, %v631
    %v633 = vpop.f32.mrf.mxu0
    %v634 = vpop.f32.mrf.mxu0
    %v635 = vadd.f32 %v355, %v634
    %v636 = vpop.f32.mrf.mxu0
    %637 = vmatprep.mubr.bf16.mxu0 0
    %638 = vmatmul.mubr.bf16.gmra.mxu0 %v499
    %v639 = vpop.f32.mrf.mxu0
    %v640 = vadd.f32 %v355, %v639
    %v641 = vpop.f32.mrf.mxu0
    %v642 = vpop.f32.mrf.mxu0
    %v643 = vadd.f32 %v355, %v642
    %v644 = vpop.f32.mrf.mxu0
    %645 = vmatprep.mubr.bf16.mxu0 0
    %646 = vmatmul.mubr.bf16.gmra.mxu0 %v502
    %v647 = vpop.f32.mrf.mxu0
    %v648 = vadd.f32 %v355, %v647
    %v649 = vpop.f32.mrf.mxu0
    %v650 = vpop.f32.mrf.mxu0
    %v651 = vadd.f32 %v355, %v650
    %v652 = vpop.f32.mrf.mxu0
    %653 = vmatprep.mubr.bf16.mxu0 0
    %654 = vmatmul.mubr.bf16.gmra.mxu0 %v505
    %v655 = vpop.f32.mrf.mxu0
    %v656 = vadd.f32 %v355, %v655
    %v657 = vpop.f32.mrf.mxu0
    %v658 = vpop.f32.mrf.mxu0
    %v659 = vadd.f32 %v355, %v658
    %v660 = vpop.f32.mrf.mxu0
    %661 = vmatprep.mubr.bf16.mxu0 0
    %662 = vmatmul.mubr.bf16.gmra.mxu0 %v508
    %v663 = vpop.f32.mrf.mxu0
    %v664 = vadd.f32 %v355, %v663
    %v665 = vpop.f32.mrf.mxu0
    %v666 = vpop.f32.mrf.mxu0
    %v667 = vadd.f32 %v355, %v666
    %v668 = vpop.f32.mrf.mxu0
    %669 = vmatprep.mubr.bf16.mxu0 0
    %670 = vmatmul.mubr.bf16.gmra.mxu0 %v511
    %v671 = vpop.f32.mrf.mxu0
    %v672 = vadd.f32 %v355, %v671
    %v673 = vpop.f32.mrf.mxu0
    %v674 = vpop.f32.mrf.mxu0
    %v675 = vadd.f32 %v355, %v674
    %v676 = vpop.f32.mrf.mxu0
    %677 = vdwg.mxu0
    %v678 = vmax.f32 %v552, 0.0
    %v679 = vmax.f32 %v555, 0.0
    %v680 = vmax.f32 %v560, 0.0
    %v681 = vmax.f32 %v563, 0.0
    %v682 = vmax.f32 %v568, 0.0
    %v683 = vmax.f32 %v571, 0.0
    %v684 = vmax.f32 %v576, 0.0
    %v685 = vmax.f32 %v579, 0.0
    %v686 = vmax.f32 %v584, 0.0
    %v687 = vmax.f32 %v587, 0.0
    %v688 = vmax.f32 %v592, 0.0
    %v689 = vmax.f32 %v595, 0.0
    %v690 = vmax.f32 %v600, 0.0
    %v691 = vmax.f32 %v603, 0.0
    %v692 = vmax.f32 %v608, 0.0
    %v693 = vmax.f32 %v611, 0.0
    %v694 = vmax.f32 %v616, 0.0
    %v695 = vmax.f32 %v619, 0.0
    %v696 = vmax.f32 %v624, 0.0
    %v697 = vmax.f32 %v627, 0.0
    %v698 = vmax.f32 %v632, 0.0
    %v699 = vmax.f32 %v635, 0.0
    %v700 = vmax.f32 %v640, 0.0
    %v701 = vmax.f32 %v643, 0.0
    %v702 = vmax.f32 %v648, 0.0
    %v703 = vmax.f32 %v651, 0.0
    %v704 = vmax.f32 %v656, 0.0
    %v705 = vmax.f32 %v659, 0.0
    %v706 = vmax.f32 %v664, 0.0
    %v707 = vmax.f32 %v667, 0.0
    %v708 = vmax.f32 %v672, 0.0
    %v709 = vmax.f32 %v675, 0.0
    %v710 = vpack.c.bf16 %v679, %v678
    %v711 = vpack.c.bf16 %v681, %v680
    %v712 = vpack.c.bf16 %v683, %v682
    %v713 = vpack.c.bf16 %v685, %v684
    %v714 = vpack.c.bf16 %v687, %v686
    %v715 = vpack.c.bf16 %v689, %v688
    %v716 = vpack.c.bf16 %v691, %v690
    %v717 = vpack.c.bf16 %v693, %v692
    %v718 = vpack.c.bf16 %v695, %v694
    %v719 = vpack.c.bf16 %v697, %v696
    %v720 = vpack.c.bf16 %v699, %v698
    %v721 = vpack.c.bf16 %v701, %v700
    %v722 = vpack.c.bf16 %v703, %v702
    %v723 = vpack.c.bf16 %v705, %v704
    %v724 = vpack.c.bf16 %v707, %v706
    %v725 = vpack.c.bf16 %v709, %v708
    %v742 = vunpack.c.l.b16 %v710
    %v743 = vunpack.c.h.b16 %v710
    %v744 = vunpack.c.l.b16 %v711
    %v745 = vunpack.c.h.b16 %v711
    %v746 = vunpack.c.l.b16 %v712
    %v747 = vunpack.c.h.b16 %v712
    %v748 = vunpack.c.l.b16 %v713
    %v749 = vunpack.c.h.b16 %v713
    %v750 = vunpack.c.l.b16 %v714
    %v751 = vunpack.c.h.b16 %v714
    %v752 = vunpack.c.l.b16 %v715
    %v753 = vunpack.c.h.b16 %v715
    %v754 = vunpack.c.l.b16 %v716
    %v755 = vunpack.c.h.b16 %v716
    %v756 = vunpack.c.l.b16 %v717
    %v757 = vunpack.c.h.b16 %v717
    %v758 = vunpack.c.l.b16 %v718
    %v759 = vunpack.c.h.b16 %v718
    %v760 = vunpack.c.l.b16 %v719
    %v761 = vunpack.c.h.b16 %v719
    %v762 = vunpack.c.l.b16 %v720
    %v763 = vunpack.c.h.b16 %v720
    %v764 = vunpack.c.l.b16 %v721
    %v765 = vunpack.c.h.b16 %v721
    %v766 = vunpack.c.l.b16 %v722
    %v767 = vunpack.c.h.b16 %v722
    %v768 = vunpack.c.l.b16 %v723
    %v769 = vunpack.c.h.b16 %v723
    %v770 = vunpack.c.l.b16 %v724
    %v771 = vunpack.c.h.b16 %v724
    %v772 = vunpack.c.l.b16 %v725
    %v773 = vunpack.c.h.b16 %v725
    %v774 = vpack.c.b16 %v742, %v742
    %v775 = vpack.c.b16 %v743, %v743
    %v776 = vpack.c.b16 %v744, %v744
    %v777 = vpack.c.b16 %v745, %v745
    %v778 = vpack.c.b16 %v746, %v746
    %v779 = vpack.c.b16 %v747, %v747
    %v780 = vpack.c.b16 %v748, %v748
    %v781 = vpack.c.b16 %v749, %v749
    %v782 = vpack.c.b16 %v750, %v750
    %v783 = vpack.c.b16 %v751, %v751
    %v784 = vpack.c.b16 %v752, %v752
    %v785 = vpack.c.b16 %v753, %v753
    %v786 = vpack.c.b16 %v754, %v754
    %v787 = vpack.c.b16 %v755, %v755
    %v788 = vpack.c.b16 %v756, %v756
    %v789 = vpack.c.b16 %v757, %v757
    %v790 = vpack.c.b16 %v758, %v758
    %v791 = vpack.c.b16 %v759, %v759
    %v792 = vpack.c.b16 %v760, %v760
    %v793 = vpack.c.b16 %v761, %v761
    %v794 = vpack.c.b16 %v762, %v762
    %v795 = vpack.c.b16 %v763, %v763
    %v796 = vpack.c.b16 %v764, %v764
    %v797 = vpack.c.b16 %v765, %v765
    %v798 = vpack.c.b16 %v766, %v766
    %v799 = vpack.c.b16 %v767, %v767
    %v800 = vpack.c.b16 %v768, %v768
    %v801 = vpack.c.b16 %v769, %v769
    %v802 = vpack.c.b16 %v770, %v770
    %v803 = vpack.c.b16 %v771, %v771
    %v804 = vpack.c.b16 %v772, %v772
    %v805 = vpack.c.b16 %v773, %v773
    %vm838 = vcmask 519168
    %839 = vst.msk [vmem:[#allocation2] sm:$0xf] %vm838, %v774
    %840 = vst.msk [vmem:[#allocation2 + $0x4] sm:$0xf] %vm838, %v775
    %841 = vst.msk [vmem:[#allocation2 + $0x8] sm:$0xf] %vm838, %v776
    %842 = vst.msk [vmem:[#allocation2 + $0xc] sm:$0xf] %vm838, %v777
    %843 = vst.msk [vmem:[#allocation2 + $0x10] sm:$0xf] %vm838, %v778
    %844 = vst.msk [vmem:[#allocation2 + $0x14] sm:$0xf] %vm838, %v779
    %845 = vst.msk [vmem:[#allocation2 + $0x18] sm:$0xf] %vm838, %v780
    %846 = vst.msk [vmem:[#allocation2 + $0x1c] sm:$0xf] %vm838, %v781
    %847 = vst.msk [vmem:[#allocation2 + $0x20] sm:$0xf] %vm838, %v782
    %848 = vst.msk [vmem:[#allocation2 + $0x24] sm:$0xf] %vm838, %v783
    %849 = vst.msk [vmem:[#allocation2 + $0x28] sm:$0xf] %vm838, %v784
    %850 = vst.msk [vmem:[#allocation2 + $0x2c] sm:$0xf] %vm838, %v785
    %851 = vst.msk [vmem:[#allocation2 + $0x30] sm:$0xf] %vm838, %v786
    %852 = vst.msk [vmem:[#allocation2 + $0x34] sm:$0xf] %vm838, %v787
    %853 = vst.msk [vmem:[#allocation2 + $0x38] sm:$0xf] %vm838, %v788
    %854 = vst.msk [vmem:[#allocation2 + $0x3c] sm:$0xf] %vm838, %v789
    %855 = vst.msk [vmem:[#allocation2 + $0x40] sm:$0xf] %vm838, %v790
    %856 = vst.msk [vmem:[#allocation2 + $0x44] sm:$0xf] %vm838, %v791
    %857 = vst.msk [vmem:[#allocation2 + $0x48] sm:$0xf] %vm838, %v792
    %858 = vst.msk [vmem:[#allocation2 + $0x4c] sm:$0xf] %vm838, %v793
    %859 = vst.msk [vmem:[#allocation2 + $0x50] sm:$0xf] %vm838, %v794
    %860 = vst.msk [vmem:[#allocation2 + $0x54] sm:$0xf] %vm838, %v795
    %861 = vst.msk [vmem:[#allocation2 + $0x58] sm:$0xf] %vm838, %v796
    %862 = vst.msk [vmem:[#allocation2 + $0x5c] sm:$0xf] %vm838, %v797
    %863 = vst.msk [vmem:[#allocation2 + $0x60] sm:$0xf] %vm838, %v798
    %864 = vst.msk [vmem:[#allocation2 + $0x64] sm:$0xf] %vm838, %v799
    %865 = vst.msk [vmem:[#allocation2 + $0x68] sm:$0xf] %vm838, %v800
    %866 = vst.msk [vmem:[#allocation2 + $0x6c] sm:$0xf] %vm838, %v801
    %867 = vst.msk [vmem:[#allocation2 + $0x70] sm:$0xf] %vm838, %v802
    %868 = vst.msk [vmem:[#allocation2 + $0x74] sm:$0xf] %vm838, %v803
    %869 = vst.msk [vmem:[#allocation2 + $0x78] sm:$0xf] %vm838, %v804
    %870 = vst.msk [vmem:[#allocation2 + $0x7c] sm:$0xf] %vm838, %v805
    %v871 = vld [vmem:[#allocation2] sm:$0xf]
    %v872 = vld [vmem:[#allocation2 + $0x4] sm:$0xf]
    %v873 = vld [vmem:[#allocation2 + $0x8] sm:$0xf]
    %v874 = vld [vmem:[#allocation2 + $0xc] sm:$0xf]
    %v875 = vld [vmem:[#allocation2 + $0x10] sm:$0xf]
    %v876 = vld [vmem:[#allocation2 + $0x14] sm:$0xf]
    %v877 = vld [vmem:[#allocation2 + $0x18] sm:$0xf]
    %v878 = vld [vmem:[#allocation2 + $0x1c] sm:$0xf]
    %v879 = vld [vmem:[#allocation2 + $0x20] sm:$0xf]
    %v880 = vld [vmem:[#allocation2 + $0x24] sm:$0xf]
    %v881 = vld [vmem:[#allocation2 + $0x28] sm:$0xf]
    %v882 = vld [vmem:[#allocation2 + $0x2c] sm:$0xf]
    %v883 = vld [vmem:[#allocation2 + $0x30] sm:$0xf]
    %v884 = vld [vmem:[#allocation2 + $0x34] sm:$0x1]
    %v885 = vld [vmem:[#allocation2] sm:$0xe]
    %v899 = vunpack.c.l.b16 %v871
    %v900 = vunpack.c.l.b16 %v872
    %v901 = vunpack.c.l.b16 %v873
    %v902 = vunpack.c.l.b16 %v874
    %v903 = vunpack.c.l.b16 %v875
    %v904 = vunpack.c.l.b16 %v876
    %v905 = vunpack.c.l.b16 %v877
    %v906 = vunpack.c.l.b16 %v878
    %v907 = vunpack.c.l.b16 %v879
    %v908 = vunpack.c.l.b16 %v880
    %v909 = vunpack.c.l.b16 %v881
    %v910 = vunpack.c.l.b16 %v882
    %v911 = vunpack.c.l.b16 %v883
    %v912 = vpack.c.b16 %v900, %v899
    %v913 = vpack.c.b16 %v902, %v901
    %v914 = vpack.c.b16 %v904, %v903
    %v915 = vpack.c.b16 %v906, %v905
    %v916 = vpack.c.b16 %v908, %v907
    %v917 = vpack.c.b16 %v910, %v909
    %v918 = vpack.c.b16 %v911, %v911
    %v920 = vunpack.c.l.b16 %v884
    %v921 = vpack.c.b16 %v920, %v911
    %vm922 = vsmask.f32 7424
    %v924 = vshrl.u32 %v912, 16
    %v926 = vshll.u32 %v912, 16
    %v928 = vrot.slane %v926, 1
    %v929 = vor.u32 %v924, %v928
    %v931 = vshll.u32 %v913, 16
    %v933 = vrot.slane %v931, 1
    %v934 = vsel %vm922, %v929, %v933
    %v935 = vshrl.u32 %v913, 16
    %v937 = vor.u32 %v935, %v933
    %v939 = vshll.u32 %v914, 16
    %v941 = vrot.slane %v939, 1
    %v942 = vsel %vm922, %v937, %v941
    %v943 = vshrl.u32 %v914, 16
    %v945 = vor.u32 %v943, %v941
    %v947 = vshll.u32 %v915, 16
    %v949 = vrot.slane %v947, 1
    %v950 = vsel %vm922, %v945, %v949
    %v951 = vshrl.u32 %v915, 16
    %v953 = vor.u32 %v951, %v949
    %v955 = vshll.u32 %v916, 16
    %v957 = vrot.slane %v955, 1
    %v958 = vsel %vm922, %v953, %v957
    %v959 = vshrl.u32 %v916, 16
    %v961 = vor.u32 %v959, %v957
    %v963 = vshll.u32 %v917, 16
    %v965 = vrot.slane %v963, 1
    %v966 = vsel %vm922, %v961, %v965
    %v967 = vshrl.u32 %v917, 16
    %v969 = vor.u32 %v967, %v965
    %v971 = vshll.u32 %v921, 16
    %v973 = vrot.slane %v971, 1
    %v974 = vsel %vm922, %v969, %v973
    %v975 = vshrl.u32 %v921, 16
    %v977 = vor.u32 %v975, %v973
    %978 = vrot.lane.b32.xlu0 %v934, 64
    %v979 = vpop.permute.xlu0 %978
    %980 = vrot.lane.b32.xlu0 %v942, 64
    %v981 = vpop.permute.xlu0 %980
    %982 = vrot.lane.b32.xlu0 %v950, 64
    %v983 = vpop.permute.xlu0 %982
    %984 = vrot.lane.b32.xlu0 %v958, 64
    %v985 = vpop.permute.xlu0 %984
    %986 = vrot.lane.b32.xlu0 %v966, 64
    %v987 = vpop.permute.xlu0 %986
    %988 = vrot.lane.b32.xlu0 %v974, 64
    %v989 = vpop.permute.xlu0 %988
    %990 = vrot.lane.b32.xlu0 %v977, 64
    %v991 = vpop.permute.xlu0 %990
    %v993 = vunpack.c.l.b16 %v885
    %v994 = vpack.c.b16 %v900, %v993
    %vm995 = vcmask 1046528
    %v996 = vrot.slane %v994, 1
    %v997 = vrot.slane %v913, 1
    %v998 = vsel %vm995, %v996, %v997
    %v999 = vrot.slane %v914, 1
    %v1000 = vsel %vm995, %v997, %v999
    %v1001 = vrot.slane %v915, 1
    %v1002 = vsel %vm995, %v999, %v1001
    %v1003 = vrot.slane %v916, 1
    %v1004 = vsel %vm995, %v1001, %v1003
    %v1005 = vrot.slane %v917, 1
    %v1006 = vsel %vm995, %v1003, %v1005
    %v1007 = vrot.slane %v921, 1
    %v1008 = vsel %vm995, %v1005, %v1007
    %vm1009 = vcmask 523264
    %v1011 = vsel %vm1009, %v912, %v979
    %v1014 = vsel %vm1009, %v913, %v981
    %v1017 = vsel %vm1009, %v914, %v983
    %v1020 = vsel %vm1009, %v915, %v985
    %v1023 = vsel %vm1009, %v916, %v987
    %v1026 = vsel %vm1009, %v917, %v989
    %v1030 = vsel %vm1009, %v918, %v991
    %v1032 = vld [vmem:[#allocation10] sm:$0xf]
    %v1033 = vld [vmem:[#allocation10 + $0x4] sm:$0xf]
    %v1034 = vld [vmem:[#allocation10 + $0x8] sm:$0xf]
    %v1035 = vld [vmem:[#allocation10 + $0xc] sm:$0xf]
    %v1036 = vld [vmem:[#allocation10 + $0x10] sm:$0xf]
    %v1037 = vld [vmem:[#allocation10 + $0x14] sm:$0xf]
    %v1038 = vld [vmem:[#allocation10 + $0x18] sm:$0xf]
    %v1039 = vld [vmem:[#allocation10 + $0x1c] sm:$0xf]
    %v1040 = vld [vmem:[#allocation10 + $0x20] sm:$0xf]
    %v1041 = vld [vmem:[#allocation10 + $0x24] sm:$0xf]
    %v1042 = vld [vmem:[#allocation10 + $0x28] sm:$0xf]
    %v1043 = vld [vmem:[#allocation10 + $0x2c] sm:$0xf]
    %v1044 = vld [vmem:[#allocation10 + $0x30] sm:$0xf]
    %v1045 = vld [vmem:[#allocation10 + $0x34] sm:$0xf]
    %v1046 = vld [vmem:[#allocation10 + $0x38] sm:$0xf]
    %v1047 = vld [vmem:[#allocation10 + $0x3c] sm:$0xf]
    %v1048 = vld [vmem:[#allocation10 + $0x40] sm:$0xf]
    %v1049 = vld [vmem:[#allocation10 + $0x44] sm:$0xf]
    %v1050 = vld [vmem:[#allocation10 + $0x48] sm:$0xf]
    %v1051 = vld [vmem:[#allocation10 + $0x4c] sm:$0xf]
    %v1052 = vld [vmem:[#allocation10 + $0x50] sm:$0xf]
    %v1053 = vld [vmem:[#allocation10 + $0x54] sm:$0xf]
    %v1054 = vld [vmem:[#allocation10 + $0x58] sm:$0xf]
    %v1055 = vld [vmem:[#allocation10 + $0x5c] sm:$0xf]
    %v1056 = vld [vmem:[#allocation2 + $0x4] sm:$0xe]
    %v1057 = vld [vmem:[#allocation2 + $0x34] sm:$0xf]
    %v1058 = vld [vmem:[#allocation2 + $0x38] sm:$0x3]
    %v1059 = vld [vmem:[#allocation2 + $0x4] sm:$0xc]
    %v1060 = vld [vmem:[#allocation2 + $0x38] sm:$0x7]
    %v1064 = vunpack.c.l.b16 %v1056
    %v1065 = vunpack.c.l.b16 %v1057
    %v1066 = vunpack.c.l.b16 %v1058
    %v1067 = vpack.c.b16 %v901, %v1064
    %v1068 = vpack.c.b16 %v903, %v902
    %v1069 = vpack.c.b16 %v905, %v904
    %v1070 = vpack.c.b16 %v907, %v906
    %v1071 = vpack.c.b16 %v909, %v908
    %v1072 = vpack.c.b16 %v911, %v910
    %v1073 = vpack.c.b16 %v1066, %v1065
    %v1075 = vunpack.c.l.b16 %v1059
    %v1076 = vpack.c.b16 %v901, %v1075
    %v1078 = vshrl.u32 %v1076, 16
    %v1080 = vshll.u32 %v1076, 16
    %v1082 = vrot.slane %v1080, 1
    %v1083 = vor.u32 %v1078, %v1082
    %v1085 = vshll.u32 %v1068, 16
    %v1087 = vrot.slane %v1085, 1
    %v1088 = vsel %vm922, %v1083, %v1087
    %v1089 = vshrl.u32 %v1068, 16
    %v1091 = vor.u32 %v1089, %v1087
    %v1093 = vshll.u32 %v1069, 16
    %v1095 = vrot.slane %v1093, 1
    %v1096 = vsel %vm922, %v1091, %v1095
    %v1097 = vshrl.u32 %v1069, 16
    %v1099 = vor.u32 %v1097, %v1095
    %v1101 = vshll.u32 %v1070, 16
    %v1103 = vrot.slane %v1101, 1
    %v1104 = vsel %vm922, %v1099, %v1103
    %v1105 = vshrl.u32 %v1070, 16
    %v1107 = vor.u32 %v1105, %v1103
    %v1109 = vshll.u32 %v1071, 16
    %v1111 = vrot.slane %v1109, 1
    %v1112 = vsel %vm922, %v1107, %v1111
    %v1113 = vshrl.u32 %v1071, 16
    %v1115 = vor.u32 %v1113, %v1111
    %v1117 = vshll.u32 %v1072, 16
    %v1119 = vrot.slane %v1117, 1
    %v1120 = vsel %vm922, %v1115, %v1119
    %v1121 = vshrl.u32 %v1072, 16
    %v1123 = vor.u32 %v1121, %v1119
    %v1125 = vshll.u32 %v1073, 16
    %v1127 = vrot.slane %v1125, 1
    %v1128 = vsel %vm922, %v1123, %v1127
    %v1129 = vshrl.u32 %v1073, 16
    %v1131 = vor.u32 %v1129, %v1127
    %1132 = vrot.lane.b32.xlu0 %v1088, 64
    %v1133 = vpop.permute.xlu0 %1132
    %1134 = vrot.lane.b32.xlu0 %v1096, 64
    %v1135 = vpop.permute.xlu0 %1134
    %1136 = vrot.lane.b32.xlu0 %v1104, 64
    %v1137 = vpop.permute.xlu0 %1136
    %1138 = vrot.lane.b32.xlu0 %v1112, 64
    %v1139 = vpop.permute.xlu0 %1138
    %1140 = vrot.lane.b32.xlu0 %v1120, 64
    %v1141 = vpop.permute.xlu0 %1140
    %1142 = vrot.lane.b32.xlu0 %v1128, 64
    %v1143 = vpop.permute.xlu0 %1142
    %1144 = vrot.lane.b32.xlu0 %v1131, 64
    %v1145 = vpop.permute.xlu0 %1144
    %v1147 = vunpack.c.l.b16 %v1060
    %v1148 = vpack.c.b16 %v1147, %v1065
    %v1149 = vrot.slane %v1076, 1
    %v1150 = vrot.slane %v1068, 1
    %v1151 = vsel %vm995, %v1149, %v1150
    %v1152 = vrot.slane %v1069, 1
    %v1153 = vsel %vm995, %v1150, %v1152
    %v1154 = vrot.slane %v1070, 1
    %v1155 = vsel %vm995, %v1152, %v1154
    %v1156 = vrot.slane %v1071, 1
    %v1157 = vsel %vm995, %v1154, %v1156
    %v1158 = vrot.slane %v1072, 1
    %v1159 = vsel %vm995, %v1156, %v1158
    %v1160 = vrot.slane %v1148, 1
    %v1161 = vsel %vm995, %v1158, %v1160
    %v1164 = vsel %vm1009, %v1067, %v1133
    %v1166 = vsel %vm1009, %v1068, %v1135
    %v1168 = vsel %vm1009, %v1069, %v1137
    %v1170 = vsel %vm1009, %v1070, %v1139
    %v1172 = vsel %vm1009, %v1071, %v1141
    %v1174 = vsel %vm1009, %v1072, %v1143
    %v1176 = vsel %vm1009, %v1073, %v1145
    %s1177 = scalar_lea.vmem [#allocation10], 96
    %v1178 = vld [vmem:[%s1177] sm:$0xf]
    %v1179 = vld [vmem:[%s1177 + $0x4] sm:$0xf]
    %v1180 = vld [vmem:[%s1177 + $0x8] sm:$0xf]
    %v1181 = vld [vmem:[%s1177 + $0xc] sm:$0xf]
    %v1182 = vld [vmem:[%s1177 + $0x10] sm:$0xf]
    %v1183 = vld [vmem:[%s1177 + $0x14] sm:$0xf]
    %v1184 = vld [vmem:[%s1177 + $0x18] sm:$0xf]
    %v1185 = vld [vmem:[%s1177 + $0x1c] sm:$0xf]
    %v1186 = vld [vmem:[%s1177 + $0x20] sm:$0xf]
    %v1187 = vld [vmem:[%s1177 + $0x24] sm:$0xf]
    %v1188 = vld [vmem:[%s1177 + $0x28] sm:$0xf]
    %v1189 = vld [vmem:[%s1177 + $0x2c] sm:$0xf]
    %v1190 = vld [vmem:[%s1177 + $0x30] sm:$0xf]
    %v1191 = vld [vmem:[%s1177 + $0x34] sm:$0xf]
    %v1192 = vld [vmem:[%s1177 + $0x38] sm:$0xf]
    %v1193 = vld [vmem:[%s1177 + $0x3c] sm:$0xf]
    %v1194 = vld [vmem:[%s1177 + $0x40] sm:$0xf]
    %v1195 = vld [vmem:[%s1177 + $0x44] sm:$0xf]
    %v1196 = vld [vmem:[%s1177 + $0x48] sm:$0xf]
    %v1197 = vld [vmem:[%s1177 + $0x4c] sm:$0xf]
    %v1198 = vld [vmem:[%s1177 + $0x50] sm:$0xf]
    %v1199 = vld [vmem:[%s1177 + $0x54] sm:$0xf]
    %v1200 = vld [vmem:[%s1177 + $0x58] sm:$0xf]
    %v1201 = vld [vmem:[%s1177 + $0x5c] sm:$0xf]
    %vm1202 = vsmask.f32 6400
    %v1203 = vshrl.u32 %v1164, 16
    %v1205 = vrot.slane %v1203, 1
    %v1206 = vshll.u32 %v1164, 16
    %v1208 = vrot.slane %v1206, 2
    %v1209 = vor.u32 %v1205, %v1208
    %v1210 = vshrl.u32 %v1166, 16
    %v1212 = vrot.slane %v1210, 1
    %v1213 = vshll.u32 %v1166, 16
    %v1215 = vrot.slane %v1213, 2
    %v1216 = vor.u32 %v1212, %v1215
    %v1217 = vsel %vm1202, %v1209, %v1216
    %v1219 = vshrl.u32 %v1151, 16
    %v1221 = vrot.slane %v1219, 1
    %v1222 = vshll.u32 %v1151, 16
    %v1224 = vrot.slane %v1222, 2
    %v1225 = vor.u32 %v1221, %v1224
    %v1227 = vshrl.u32 %v1153, 16
    %v1229 = vrot.slane %v1227, 1
    %v1230 = vshll.u32 %v1153, 16
    %v1232 = vrot.slane %v1230, 2
    %v1233 = vor.u32 %v1229, %v1232
    %v1234 = vsel %vm1202, %v1225, %v1233
    %v1235 = vshrl.u32 %v1168, 16
    %v1237 = vrot.slane %v1235, 1
    %v1238 = vshll.u32 %v1168, 16
    %v1240 = vrot.slane %v1238, 2
    %v1241 = vor.u32 %v1237, %v1240
    %v1242 = vsel %vm1202, %v1216, %v1241
    %v1244 = vshrl.u32 %v1155, 16
    %v1246 = vrot.slane %v1244, 1
    %v1247 = vshll.u32 %v1155, 16
    %v1249 = vrot.slane %v1247, 2
    %v1250 = vor.u32 %v1246, %v1249
    %v1251 = vsel %vm1202, %v1233, %v1250
    %v1252 = vshrl.u32 %v1170, 16
    %v1254 = vrot.slane %v1252, 1
    %v1255 = vshll.u32 %v1170, 16
    %v1257 = vrot.slane %v1255, 2
    %v1258 = vor.u32 %v1254, %v1257
    %v1259 = vsel %vm1202, %v1241, %v1258
    %v1261 = vshrl.u32 %v1157, 16
    %v1263 = vrot.slane %v1261, 1
    %v1264 = vshll.u32 %v1157, 16
    %v1266 = vrot.slane %v1264, 2
    %v1267 = vor.u32 %v1263, %v1266
    %v1268 = vsel %vm1202, %v1250, %v1267
    %v1269 = vshrl.u32 %v1172, 16
    %v1271 = vrot.slane %v1269, 1
    %v1272 = vshll.u32 %v1172, 16
    %v1274 = vrot.slane %v1272, 2
    %v1275 = vor.u32 %v1271, %v1274
    %v1276 = vsel %vm1202, %v1258, %v1275
    %v1278 = vshrl.u32 %v1159, 16
    %v1280 = vrot.slane %v1278, 1
    %v1281 = vshll.u32 %v1159, 16
    %v1283 = vrot.slane %v1281, 2
    %v1284 = vor.u32 %v1280, %v1283
    %v1285 = vsel %vm1202, %v1267, %v1284
    %v1286 = vshrl.u32 %v1174, 16
    %v1288 = vrot.slane %v1286, 1
    %v1289 = vshll.u32 %v1174, 16
    %v1291 = vrot.slane %v1289, 2
    %v1292 = vor.u32 %v1288, %v1291
    %v1293 = vsel %vm1202, %v1275, %v1292
    %v1295 = vshrl.u32 %v1161, 16
    %v1297 = vrot.slane %v1295, 1
    %v1298 = vshll.u32 %v1161, 16
    %v1300 = vrot.slane %v1298, 2
    %v1301 = vor.u32 %v1297, %v1300
    %v1302 = vsel %vm1202, %v1284, %v1301
    %v1303 = vshrl.u32 %v1176, 16
    %v1305 = vrot.slane %v1303, 1
    %v1306 = vshll.u32 %v1176, 16
    %v1308 = vrot.slane %v1306, 2
    %v1309 = vor.u32 %v1305, %v1308
    %v1310 = vsel %vm1202, %v1292, %v1309
    %v1312 = vshrl.u32 %v1160, 16
    %v1314 = vrot.slane %v1312, 1
    %v1315 = vshll.u32 %v1160, 16
    %v1317 = vrot.slane %v1315, 2
    %v1318 = vor.u32 %v1314, %v1317
    %v1319 = vsel %vm1202, %v1301, %v1318
    %v1351 = vunpack.c.l.b16 %v1178
    %v1352 = vunpack.c.l.b16 %v1179
    %v1353 = vunpack.c.l.b16 %v1180
    %v1354 = vunpack.c.l.b16 %v1181
    %v1355 = vunpack.c.l.b16 %v1182
    %v1356 = vunpack.c.l.b16 %v1183
    %v1357 = vunpack.c.l.b16 %v1184
    %v1358 = vunpack.c.l.b16 %v1185
    %v1359 = vunpack.c.l.b16 %v1186
    %v1360 = vunpack.c.l.b16 %v1187
    %v1361 = vunpack.c.l.b16 %v1188
    %v1362 = vunpack.c.l.b16 %v1189
    %v1363 = vunpack.c.l.b16 %v1190
    %v1364 = vunpack.c.l.b16 %v1191
    %v1365 = vunpack.c.l.b16 %v1192
    %v1366 = vunpack.c.l.b16 %v1193
    %v1367 = vunpack.c.l.b16 %v1194
    %v1368 = vunpack.c.l.b16 %v1195
    %v1369 = vunpack.c.l.b16 %v1196
    %v1370 = vunpack.c.l.b16 %v1197
    %v1371 = vunpack.c.l.b16 %v1198
    %v1372 = vunpack.c.l.b16 %v1199
    %v1373 = vunpack.c.l.b16 %v1200
    %v1374 = vunpack.c.l.b16 %v1201
    %v1375 = vpack.c.b16 %v1352, %v1351
    %v1376 = vpack.c.b16 %v1354, %v1353
    %v1377 = vpack.c.b16 %v1356, %v1355
    %v1378 = vpack.c.b16 %v1358, %v1357
    %v1379 = vpack.c.b16 %v1360, %v1359
    %v1380 = vpack.c.b16 %v1362, %v1361
    %v1381 = vpack.c.b16 %v1364, %v1363
    %v1382 = vpack.c.b16 %v1366, %v1365
    %v1383 = vpack.c.b16 %v1368, %v1367
    %v1384 = vpack.c.b16 %v1370, %v1369
    %v1385 = vpack.c.b16 %v1372, %v1371
    %v1386 = vpack.c.b16 %v1374, %v1373
    %v1400 = vsel %vm1009, %v1234, 0
    %v1403 = vsel %vm1009, %v1251, 0
    %v1406 = vsel %vm1009, %v1268, 0
    %v1409 = vsel %vm1009, %v1285, 0
    %v1412 = vsel %vm1009, %v1302, 0
    %v1415 = vsel %vm1009, %v1319, 0
    %v1418 = vsel %vm1009, %v1318, 0
    %1420 = vmatprep.subr.bf16.mxu0 0
    %1421 = vmatpush1.bf16.msra.mxu0 %v1382
    %1422 = vmatprep.subr.bf16.mxu0 0
    %1423 = vmatpush1.bf16.msra.mxu0 %v1381
    %1424 = vmatprep.subr.bf16.mxu0 0
    %1425 = vmatpush1.bf16.msra.mxu0 %v1380
    %1426 = vmatprep.subr.bf16.mxu0 0
    %1427 = vmatpush1.bf16.msra.mxu0 %v1379
    %1428 = vmatprep.subr.bf16.mxu0 0
    %1429 = vmatpush1.bf16.msra.mxu0 %v1378
    %1430 = vmatprep.subr.bf16.mxu0 0
    %1431 = vmatpush1.bf16.msra.mxu0 %v1377
    %1432 = vmatprep.subr.bf16.mxu0 0
    %1433 = vmatpush1.bf16.msra.mxu0 %v1376
    %1434 = vmatprep.subr.bf16.mxu0 0
    %1435 = vmatpush1.bf16.msra.mxu0 %v1375
    %1436 = vmatprep.subr.bf16.mxu0 0
    %1437 = vmatpush2.bf16.msra.mxu0 0
    %1438 = vmatprep.subr.bf16.mxu0 0
    %1439 = vmatpush2.bf16.msra.mxu0 0
    %1440 = vmatprep.subr.bf16.mxu0 0
    %1441 = vmatpush2.bf16.msra.mxu0 0
    %1442 = vmatprep.subr.bf16.mxu0 0
    %1443 = vmatpush2.bf16.msra.mxu0 0
    %1444 = vmatprep.subr.bf16.mxu0 0
    %1445 = vmatpush2.bf16.msra.mxu0 %v1386
    %1446 = vmatprep.subr.bf16.mxu0 0
    %1447 = vmatpush2.bf16.msra.mxu0 %v1385
    %1448 = vmatprep.subr.bf16.mxu0 0
    %1449 = vmatpush2.bf16.msra.mxu0 %v1384
    %1450 = vmatprep.subr.bf16.mxu0 0
    %1451 = vmatpush2.bf16.msra.mxu0 %v1383
    %1452 = vmatprep.mubr.bf16.mxu0 %v1400
    %1453 = vmatmul.mubr.bf16.gmra.mxu0 %v1217
    %v1454 = vpop.f32.mrf.mxu0
    %v1455 = vadd.f32 0.0, %v1454
    %v1456 = vpop.f32.mrf.mxu0
    %v1457 = vpop.f32.mrf.mxu0
    %v1458 = vadd.f32 0.0, %v1457
    %v1459 = vpop.f32.mrf.mxu0
    %1460 = vmatprep.mubr.bf16.mxu0 %v1403
    %1461 = vmatmul.mubr.bf16.gmra.mxu0 %v1242
    %v1462 = vpop.f32.mrf.mxu0
    %v1463 = vadd.f32 0.0, %v1462
    %v1464 = vpop.f32.mrf.mxu0
    %v1465 = vpop.f32.mrf.mxu0
    %v1466 = vadd.f32 0.0, %v1465
    %v1467 = vpop.f32.mrf.mxu0
    %1468 = vmatprep.mubr.bf16.mxu0 %v1406
    %1469 = vmatmul.mubr.bf16.gmra.mxu0 %v1259
    %v1470 = vpop.f32.mrf.mxu0
    %v1471 = vadd.f32 0.0, %v1470
    %v1472 = vpop.f32.mrf.mxu0
    %v1473 = vpop.f32.mrf.mxu0
    %v1474 = vadd.f32 0.0, %v1473
    %v1475 = vpop.f32.mrf.mxu0
    %1476 = vmatprep.mubr.bf16.mxu0 %v1409
    %1477 = vmatmul.mubr.bf16.gmra.mxu0 %v1276
    %v1478 = vpop.f32.mrf.mxu0
    %v1479 = vadd.f32 0.0, %v1478
    %v1480 = vpop.f32.mrf.mxu0
    %v1481 = vpop.f32.mrf.mxu0
    %v1482 = vadd.f32 0.0, %v1481
    %v1483 = vpop.f32.mrf.mxu0
    %1484 = vmatprep.mubr.bf16.mxu0 %v1412
    %1485 = vmatmul.mubr.bf16.gmra.mxu0 %v1293
    %v1486 = vpop.f32.mrf.mxu0
    %v1487 = vadd.f32 0.0, %v1486
    %v1488 = vpop.f32.mrf.mxu0
    %v1489 = vpop.f32.mrf.mxu0
    %v1490 = vadd.f32 0.0, %v1489
    %v1491 = vpop.f32.mrf.mxu0
    %1492 = vmatprep.mubr.bf16.mxu0 %v1415
    %1493 = vmatmul.mubr.bf16.gmra.mxu0 %v1310
    %v1494 = vpop.f32.mrf.mxu0
    %v1495 = vadd.f32 0.0, %v1494
    %v1496 = vpop.f32.mrf.mxu0
    %v1497 = vpop.f32.mrf.mxu0
    %v1498 = vadd.f32 0.0, %v1497
    %v1499 = vpop.f32.mrf.mxu0
    %1500 = vmatprep.mubr.bf16.mxu0 %v1418
    %1501 = vmatmul.mubr.bf16.gmra.mxu0 %v1309
    %v1502 = vpop.f32.mrf.mxu0
    %v1503 = vadd.f32 0.0, %v1502
    %v1504 = vpop.f32.mrf.mxu0
    %v1505 = vpop.f32.mrf.mxu0
    %v1506 = vpop.f32.mrf.mxu0
    %1507 = vdwg.mxu0
    %v1532 = vunpack.c.l.b16 %v1032
    %v1533 = vunpack.c.l.b16 %v1033
    %v1534 = vunpack.c.l.b16 %v1034
    %v1535 = vunpack.c.l.b16 %v1035
    %v1536 = vunpack.c.l.b16 %v1036
    %v1537 = vunpack.c.l.b16 %v1037
    %v1538 = vunpack.c.l.b16 %v1038
    %v1539 = vunpack.c.l.b16 %v1039
    %v1540 = vunpack.c.l.b16 %v1040
    %v1541 = vunpack.c.l.b16 %v1041
    %v1542 = vunpack.c.l.b16 %v1042
    %v1543 = vunpack.c.l.b16 %v1043
    %v1544 = vunpack.c.l.b16 %v1044
    %v1545 = vunpack.c.l.b16 %v1045
    %v1546 = vunpack.c.l.b16 %v1046
    %v1547 = vunpack.c.l.b16 %v1047
    %v1548 = vunpack.c.l.b16 %v1048
    %v1549 = vunpack.c.l.b16 %v1049
    %v1550 = vunpack.c.l.b16 %v1050
    %v1551 = vunpack.c.l.b16 %v1051
    %v1552 = vunpack.c.l.b16 %v1052
    %v1553 = vunpack.c.l.b16 %v1053
    %v1554 = vunpack.c.l.b16 %v1054
    %v1555 = vunpack.c.l.b16 %v1055
    %v1556 = vpack.c.b16 %v1533, %v1532
    %v1557 = vpack.c.b16 %v1535, %v1534
    %v1558 = vpack.c.b16 %v1537, %v1536
    %v1559 = vpack.c.b16 %v1539, %v1538
    %v1560 = vpack.c.b16 %v1541, %v1540
    %v1561 = vpack.c.b16 %v1543, %v1542
    %v1562 = vpack.c.b16 %v1545, %v1544
    %v1563 = vpack.c.b16 %v1547, %v1546
    %v1564 = vpack.c.b16 %v1549, %v1548
    %v1565 = vpack.c.b16 %v1551, %v1550
    %v1566 = vpack.c.b16 %v1553, %v1552
    %v1567 = vpack.c.b16 %v1555, %v1554
    %v1581 = vsel %vm1009, %v998, 0
    %v1584 = vsel %vm1009, %v1000, 0
    %v1587 = vsel %vm1009, %v1002, 0
    %v1590 = vsel %vm1009, %v1004, 0
    %v1593 = vsel %vm1009, %v1006, 0
    %v1596 = vsel %vm1009, %v1008, 0
    %v1599 = vsel %vm1009, %v1007, 0
    %1601 = vmatprep.subr.bf16.mxu0 0
    %1602 = vmatpush1.bf16.msra.mxu0 %v1563
    %1603 = vmatprep.subr.bf16.mxu0 0
    %1604 = vmatpush1.bf16.msra.mxu0 %v1562
    %1605 = vmatprep.subr.bf16.mxu0 0
    %1606 = vmatpush1.bf16.msra.mxu0 %v1561
    %1607 = vmatprep.subr.bf16.mxu0 0
    %1608 = vmatpush1.bf16.msra.mxu0 %v1560
    %1609 = vmatprep.subr.bf16.mxu0 0
    %1610 = vmatpush1.bf16.msra.mxu0 %v1559
    %1611 = vmatprep.subr.bf16.mxu0 0
    %1612 = vmatpush1.bf16.msra.mxu0 %v1558
    %1613 = vmatprep.subr.bf16.mxu0 0
    %1614 = vmatpush1.bf16.msra.mxu0 %v1557
    %1615 = vmatprep.subr.bf16.mxu0 0
    %1616 = vmatpush1.bf16.msra.mxu0 %v1556
    %1617 = vmatprep.subr.bf16.mxu0 0
    %1618 = vmatpush2.bf16.msra.mxu0 0
    %1619 = vmatprep.subr.bf16.mxu0 0
    %1620 = vmatpush2.bf16.msra.mxu0 0
    %1621 = vmatprep.subr.bf16.mxu0 0
    %1622 = vmatpush2.bf16.msra.mxu0 0
    %1623 = vmatprep.subr.bf16.mxu0 0
    %1624 = vmatpush2.bf16.msra.mxu0 0
    %1625 = vmatprep.subr.bf16.mxu0 0
    %1626 = vmatpush2.bf16.msra.mxu0 %v1567
    %1627 = vmatprep.subr.bf16.mxu0 0
    %1628 = vmatpush2.bf16.msra.mxu0 %v1566
    %1629 = vmatprep.subr.bf16.mxu0 0
    %1630 = vmatpush2.bf16.msra.mxu0 %v1565
    %1631 = vmatprep.subr.bf16.mxu0 0
    %1632 = vmatpush2.bf16.msra.mxu0 %v1564
    %1633 = vmatprep.mubr.bf16.mxu0 %v1581
    %1634 = vmatmul.mubr.bf16.gmra.mxu0 %v1011
    %v1635 = vpop.f32.mrf.mxu0
    %v1636 = vadd.f32 %v1455, %v1635
    %v1637 = vpop.f32.mrf.mxu0
    %v1638 = vpop.f32.mrf.mxu0
    %v1639 = vadd.f32 %v1458, %v1638
    %v1640 = vpop.f32.mrf.mxu0
    %1641 = vmatprep.mubr.bf16.mxu0 %v1584
    %1642 = vmatmul.mubr.bf16.gmra.mxu0 %v1014
    %v1643 = vpop.f32.mrf.mxu0
    %v1644 = vadd.f32 %v1463, %v1643
    %v1645 = vpop.f32.mrf.mxu0
    %v1646 = vpop.f32.mrf.mxu0
    %v1647 = vadd.f32 %v1466, %v1646
    %v1648 = vpop.f32.mrf.mxu0
    %1649 = vmatprep.mubr.bf16.mxu0 %v1587
    %1650 = vmatmul.mubr.bf16.gmra.mxu0 %v1017
    %v1651 = vpop.f32.mrf.mxu0
    %v1652 = vadd.f32 %v1471, %v1651
    %v1653 = vpop.f32.mrf.mxu0
    %v1654 = vpop.f32.mrf.mxu0
    %v1655 = vadd.f32 %v1474, %v1654
    %v1656 = vpop.f32.mrf.mxu0
    %1657 = vmatprep.mubr.bf16.mxu0 %v1590
    %1658 = vmatmul.mubr.bf16.gmra.mxu0 %v1020
    %v1659 = vpop.f32.mrf.mxu0
    %v1660 = vadd.f32 %v1479, %v1659
    %v1661 = vpop.f32.mrf.mxu0
    %v1662 = vpop.f32.mrf.mxu0
    %v1663 = vadd.f32 %v1482, %v1662
    %v1664 = vpop.f32.mrf.mxu0
    %1665 = vmatprep.mubr.bf16.mxu0 %v1593
    %1666 = vmatmul.mubr.bf16.gmra.mxu0 %v1023
    %v1667 = vpop.f32.mrf.mxu0
    %v1668 = vadd.f32 %v1487, %v1667
    %v1669 = vpop.f32.mrf.mxu0
    %v1670 = vpop.f32.mrf.mxu0
    %v1671 = vadd.f32 %v1490, %v1670
    %v1672 = vpop.f32.mrf.mxu0
    %1673 = vmatprep.mubr.bf16.mxu0 %v1596
    %1674 = vmatmul.mubr.bf16.gmra.mxu0 %v1026
    %v1675 = vpop.f32.mrf.mxu0
    %v1676 = vadd.f32 %v1495, %v1675
    %v1677 = vpop.f32.mrf.mxu0
    %v1678 = vpop.f32.mrf.mxu0
    %v1679 = vadd.f32 %v1498, %v1678
    %v1680 = vpop.f32.mrf.mxu0
    %1681 = vmatprep.mubr.bf16.mxu0 %v1599
    %1682 = vmatmul.mubr.bf16.gmra.mxu0 %v1030
    %v1683 = vpop.f32.mrf.mxu0
    %v1684 = vadd.f32 %v1503, %v1683
    %v1685 = vpop.f32.mrf.mxu0
    %v1686 = vpop.f32.mrf.mxu0
    %v1687 = vpop.f32.mrf.mxu0
    %1688 = vdwg.mxu0
    %v1689 = vld [vmem:[#allocation2 + $0x8] sm:$0x8]
    %v1690 = vld [vmem:[#allocation2 + $0xc] sm:$0xf]
    %v1691 = vld [vmem:[#allocation2 + $0x10] sm:$0xf]
    %v1692 = vld [vmem:[#allocation2 + $0x14] sm:$0xf]
    %v1693 = vld [vmem:[#allocation2 + $0x18] sm:$0xf]
    %v1694 = vld [vmem:[#allocation2 + $0x1c] sm:$0xf]
    %v1695 = vld [vmem:[#allocation2 + $0x20] sm:$0xf]
    %v1696 = vld [vmem:[#allocation2 + $0x24] sm:$0xf]
    %v1697 = vld [vmem:[#allocation2 + $0x28] sm:$0xf]
    %v1698 = vld [vmem:[#allocation2 + $0x2c] sm:$0xf]
    %v1699 = vld [vmem:[#allocation2 + $0x30] sm:$0xf]
    %v1700 = vld [vmem:[#allocation2 + $0x34] sm:$0xf]
    %v1701 = vld [vmem:[#allocation2 + $0x38] sm:$0xf]
    %v1702 = vld [vmem:[#allocation2 + $0x3c] sm:$0x7]
    %v1703 = vld [vmem:[#allocation2 + $0x3c] sm:$0xf]
    %v1718 = vunpack.c.l.b16 %v1689
    %v1719 = vunpack.c.l.b16 %v1690
    %v1720 = vunpack.c.l.b16 %v1691
    %v1721 = vunpack.c.l.b16 %v1692
    %v1722 = vunpack.c.l.b16 %v1693
    %v1723 = vunpack.c.l.b16 %v1694
    %v1724 = vunpack.c.l.b16 %v1695
    %v1725 = vunpack.c.l.b16 %v1696
    %v1726 = vunpack.c.l.b16 %v1697
    %v1727 = vunpack.c.l.b16 %v1698
    %v1728 = vunpack.c.l.b16 %v1699
    %v1729 = vunpack.c.l.b16 %v1700
    %v1730 = vunpack.c.l.b16 %v1701
    %v1731 = vunpack.c.l.b16 %v1702
    %v1732 = vpack.c.b16 %v1719, %v1718
    %v1733 = vpack.c.b16 %v1721, %v1720
    %v1734 = vpack.c.b16 %v1723, %v1722
    %v1735 = vpack.c.b16 %v1725, %v1724
    %v1736 = vpack.c.b16 %v1727, %v1726
    %v1737 = vpack.c.b16 %v1729, %v1728
    %v1738 = vpack.c.b16 %v1731, %v1730
    %v1740 = vunpack.c.l.b16 %v1703
    %v1741 = vpack.c.b16 %v1740, %v1730
    %v1743 = vshrl.u32 %v1732, 16
    %v1745 = vshll.u32 %v1732, 16
    %v1747 = vrot.slane %v1745, 1
    %v1748 = vor.u32 %v1743, %v1747
    %v1750 = vshll.u32 %v1733, 16
    %v1752 = vrot.slane %v1750, 1
    %v1753 = vsel %vm922, %v1748, %v1752
    %v1754 = vshrl.u32 %v1733, 16
    %v1756 = vor.u32 %v1754, %v1752
    %v1758 = vshll.u32 %v1734, 16
    %v1760 = vrot.slane %v1758, 1
    %v1761 = vsel %vm922, %v1756, %v1760
    %v1762 = vshrl.u32 %v1734, 16
    %v1764 = vor.u32 %v1762, %v1760
    %v1766 = vshll.u32 %v1735, 16
    %v1768 = vrot.slane %v1766, 1
    %v1769 = vsel %vm922, %v1764, %v1768
    %v1770 = vshrl.u32 %v1735, 16
    %v1772 = vor.u32 %v1770, %v1768
    %v1774 = vshll.u32 %v1736, 16
    %v1776 = vrot.slane %v1774, 1
    %v1777 = vsel %vm922, %v1772, %v1776
    %v1778 = vshrl.u32 %v1736, 16
    %v1780 = vor.u32 %v1778, %v1776
    %v1782 = vshll.u32 %v1737, 16
    %v1784 = vrot.slane %v1782, 1
    %v1785 = vsel %vm922, %v1780, %v1784
    %v1786 = vshrl.u32 %v1737, 16
    %v1788 = vor.u32 %v1786, %v1784
    %v1790 = vshll.u32 %v1741, 16
    %v1792 = vrot.slane %v1790, 1
    %v1793 = vsel %vm922, %v1788, %v1792
    %v1794 = vshrl.u32 %v1741, 16
    %v1796 = vor.u32 %v1794, %v1792
    %1797 = vrot.lane.b32.xlu0 %v1753, 64
    %v1798 = vpop.permute.xlu0 %1797
    %1799 = vrot.lane.b32.xlu0 %v1761, 64
    %v1800 = vpop.permute.xlu0 %1799
    %1801 = vrot.lane.b32.xlu0 %v1769, 64
    %v1802 = vpop.permute.xlu0 %1801
    %1803 = vrot.lane.b32.xlu0 %v1777, 64
    %v1804 = vpop.permute.xlu0 %1803
    %1805 = vrot.lane.b32.xlu0 %v1785, 64
    %v1806 = vpop.permute.xlu0 %1805
    %1807 = vrot.lane.b32.xlu0 %v1793, 64
    %v1808 = vpop.permute.xlu0 %1807
    %1809 = vrot.lane.b32.xlu0 %v1796, 64
    %v1810 = vpop.permute.xlu0 %1809
    %v1811 = vpack.c.b16 %v1720, %v1719
    %v1812 = vpack.c.b16 %v1722, %v1721
    %v1813 = vpack.c.b16 %v1724, %v1723
    %v1814 = vpack.c.b16 %v1726, %v1725
    %v1815 = vpack.c.b16 %v1728, %v1727
    %v1816 = vpack.c.b16 %v1730, %v1729
    %v1817 = vpack.c.b16 %v1740, %v1740
    %vm1818 = vcmask 1042432
    %v1819 = vrot.slane %v1811, 5
    %v1820 = vrot.slane %v1812, 5
    %v1821 = vsel %vm1818, %v1819, %v1820
    %v1822 = vrot.slane %v1813, 5
    %v1823 = vsel %vm1818, %v1820, %v1822
    %v1824 = vrot.slane %v1814, 5
    %v1825 = vsel %vm1818, %v1822, %v1824
    %v1826 = vrot.slane %v1815, 5
    %v1827 = vsel %vm1818, %v1824, %v1826
    %v1828 = vrot.slane %v1816, 5
    %v1829 = vsel %vm1818, %v1826, %v1828
    %v1830 = vrot.slane %v1817, 5
    %v1831 = vsel %vm1818, %v1828, %v1830
    %v1833 = vsel %vm1009, %v1732, %v1798
    %v1835 = vsel %vm1009, %v1733, %v1800
    %v1837 = vsel %vm1009, %v1734, %v1802
    %v1839 = vsel %vm1009, %v1735, %v1804
    %v1841 = vsel %vm1009, %v1736, %v1806
    %v1843 = vsel %vm1009, %v1737, %v1808
    %v1846 = vsel %vm1009, %v1738, %v1810
    %s1847 = scalar_lea.vmem [#allocation10], 192
    %v1848 = vld [vmem:[%s1847] sm:$0xf]
    %v1849 = vld [vmem:[%s1847 + $0x4] sm:$0xf]
    %v1850 = vld [vmem:[%s1847 + $0x8] sm:$0xf]
    %v1851 = vld [vmem:[%s1847 + $0xc] sm:$0xf]
    %v1852 = vld [vmem:[%s1847 + $0x10] sm:$0xf]
    %v1853 = vld [vmem:[%s1847 + $0x14] sm:$0xf]
    %v1854 = vld [vmem:[%s1847 + $0x18] sm:$0xf]
    %v1855 = vld [vmem:[%s1847 + $0x1c] sm:$0xf]
    %v1856 = vld [vmem:[%s1847 + $0x20] sm:$0xf]
    %v1857 = vld [vmem:[%s1847 + $0x24] sm:$0xf]
    %v1858 = vld [vmem:[%s1847 + $0x28] sm:$0xf]
    %v1859 = vld [vmem:[%s1847 + $0x2c] sm:$0xf]
    %v1860 = vld [vmem:[%s1847 + $0x30] sm:$0xf]
    %v1861 = vld [vmem:[%s1847 + $0x34] sm:$0xf]
    %v1862 = vld [vmem:[%s1847 + $0x38] sm:$0xf]
    %v1863 = vld [vmem:[%s1847 + $0x3c] sm:$0xf]
    %v1864 = vld [vmem:[%s1847 + $0x40] sm:$0xf]
    %v1865 = vld [vmem:[%s1847 + $0x44] sm:$0xf]
    %v1866 = vld [vmem:[%s1847 + $0x48] sm:$0xf]
    %v1867 = vld [vmem:[%s1847 + $0x4c] sm:$0xf]
    %v1868 = vld [vmem:[%s1847 + $0x50] sm:$0xf]
    %v1869 = vld [vmem:[%s1847 + $0x54] sm:$0xf]
    %v1870 = vld [vmem:[%s1847 + $0x58] sm:$0xf]
    %v1871 = vld [vmem:[%s1847 + $0x5c] sm:$0xf]
    %vm1879 = vcmask 1044480
    %v1880 = vrot.slane %v1833, 3
    %v1881 = vrot.slane %v1835, 3
    %v1882 = vsel %vm1879, %v1880, %v1881
    %v1883 = vrot.slane %v1819, 3
    %v1884 = vrot.slane %v1821, 3
    %v1885 = vsel %vm1879, %v1883, %v1884
    %v1886 = vrot.slane %v1837, 3
    %v1887 = vsel %vm1879, %v1881, %v1886
    %v1888 = vrot.slane %v1823, 3
    %v1889 = vsel %vm1879, %v1884, %v1888
    %v1890 = vrot.slane %v1839, 3
    %v1891 = vsel %vm1879, %v1886, %v1890
    %v1892 = vrot.slane %v1825, 3
    %v1893 = vsel %vm1879, %v1888, %v1892
    %v1894 = vrot.slane %v1841, 3
    %v1895 = vsel %vm1879, %v1890, %v1894
    %v1896 = vrot.slane %v1827, 3
    %v1897 = vsel %vm1879, %v1892, %v1896
    %v1898 = vrot.slane %v1843, 3
    %v1899 = vsel %vm1879, %v1894, %v1898
    %v1900 = vrot.slane %v1829, 3
    %v1901 = vsel %vm1879, %v1896, %v1900
    %v1902 = vrot.slane %v1846, 3
    %v1903 = vsel %vm1879, %v1898, %v1902
    %v1904 = vrot.slane %v1831, 3
    %v1905 = vsel %vm1879, %v1900, %v1904
    %v1937 = vunpack.c.l.b16 %v1848
    %v1938 = vunpack.c.l.b16 %v1849
    %v1939 = vunpack.c.l.b16 %v1850
    %v1940 = vunpack.c.l.b16 %v1851
    %v1941 = vunpack.c.l.b16 %v1852
    %v1942 = vunpack.c.l.b16 %v1853
    %v1943 = vunpack.c.l.b16 %v1854
    %v1944 = vunpack.c.l.b16 %v1855
    %v1945 = vunpack.c.l.b16 %v1856
    %v1946 = vunpack.c.l.b16 %v1857
    %v1947 = vunpack.c.l.b16 %v1858
    %v1948 = vunpack.c.l.b16 %v1859
    %v1949 = vunpack.c.l.b16 %v1860
    %v1950 = vunpack.c.l.b16 %v1861
    %v1951 = vunpack.c.l.b16 %v1862
    %v1952 = vunpack.c.l.b16 %v1863
    %v1953 = vunpack.c.l.b16 %v1864
    %v1954 = vunpack.c.l.b16 %v1865
    %v1955 = vunpack.c.l.b16 %v1866
    %v1956 = vunpack.c.l.b16 %v1867
    %v1957 = vunpack.c.l.b16 %v1868
    %v1958 = vunpack.c.l.b16 %v1869
    %v1959 = vunpack.c.l.b16 %v1870
    %v1960 = vunpack.c.l.b16 %v1871
    %v1961 = vpack.c.b16 %v1938, %v1937
    %v1962 = vpack.c.b16 %v1940, %v1939
    %v1963 = vpack.c.b16 %v1942, %v1941
    %v1964 = vpack.c.b16 %v1944, %v1943
    %v1965 = vpack.c.b16 %v1946, %v1945
    %v1966 = vpack.c.b16 %v1948, %v1947
    %v1967 = vpack.c.b16 %v1950, %v1949
    %v1968 = vpack.c.b16 %v1952, %v1951
    %v1969 = vpack.c.b16 %v1954, %v1953
    %v1970 = vpack.c.b16 %v1956, %v1955
    %v1971 = vpack.c.b16 %v1958, %v1957
    %v1972 = vpack.c.b16 %v1960, %v1959
    %v1986 = vsel %vm1009, %v1885, 0
    %v1989 = vsel %vm1009, %v1889, 0
    %v1992 = vsel %vm1009, %v1893, 0
    %v1995 = vsel %vm1009, %v1897, 0
    %v1998 = vsel %vm1009, %v1901, 0
    %v2001 = vsel %vm1009, %v1905, 0
    %v2004 = vsel %vm1009, %v1904, 0
    %2006 = vmatprep.subr.bf16.mxu0 0
    %2007 = vmatpush1.bf16.msra.mxu0 %v1968
    %2008 = vmatprep.subr.bf16.mxu0 0
    %2009 = vmatpush1.bf16.msra.mxu0 %v1967
    %2010 = vmatprep.subr.bf16.mxu0 0
    %2011 = vmatpush1.bf16.msra.mxu0 %v1966
    %2012 = vmatprep.subr.bf16.mxu0 0
    %2013 = vmatpush1.bf16.msra.mxu0 %v1965
    %2014 = vmatprep.subr.bf16.mxu0 0
    %2015 = vmatpush1.bf16.msra.mxu0 %v1964
    %2016 = vmatprep.subr.bf16.mxu0 0
    %2017 = vmatpush1.bf16.msra.mxu0 %v1963
    %2018 = vmatprep.subr.bf16.mxu0 0
    %2019 = vmatpush1.bf16.msra.mxu0 %v1962
    %2020 = vmatprep.subr.bf16.mxu0 0
    %2021 = vmatpush1.bf16.msra.mxu0 %v1961
    %2022 = vmatprep.subr.bf16.mxu0 0
    %2023 = vmatpush2.bf16.msra.mxu0 0
    %2024 = vmatprep.subr.bf16.mxu0 0
    %2025 = vmatpush2.bf16.msra.mxu0 0
    %2026 = vmatprep.subr.bf16.mxu0 0
    %2027 = vmatpush2.bf16.msra.mxu0 0
    %2028 = vmatprep.subr.bf16.mxu0 0
    %2029 = vmatpush2.bf16.msra.mxu0 0
    %2030 = vmatprep.subr.bf16.mxu0 0
    %2031 = vmatpush2.bf16.msra.mxu0 %v1972
    %2032 = vmatprep.subr.bf16.mxu0 0
    %2033 = vmatpush2.bf16.msra.mxu0 %v1971
    %2034 = vmatprep.subr.bf16.mxu0 0
    %2035 = vmatpush2.bf16.msra.mxu0 %v1970
    %2036 = vmatprep.subr.bf16.mxu0 0
    %2037 = vmatpush2.bf16.msra.mxu0 %v1969
    %2038 = vmatprep.mubr.bf16.mxu0 %v1986
    %2039 = vmatmul.mubr.bf16.gmra.mxu0 %v1882
    %v2040 = vpop.f32.mrf.mxu0
    %v2041 = vadd.f32 0.0, %v2040
    %v2042 = vpop.f32.mrf.mxu0
    %v2043 = vpop.f32.mrf.mxu0
    %v2044 = vadd.f32 0.0, %v2043
    %v2045 = vpop.f32.mrf.mxu0
    %2046 = vmatprep.mubr.bf16.mxu0 %v1989
    %2047 = vmatmul.mubr.bf16.gmra.mxu0 %v1887
    %v2048 = vpop.f32.mrf.mxu0
    %v2049 = vadd.f32 0.0, %v2048
    %v2050 = vpop.f32.mrf.mxu0
    %v2051 = vpop.f32.mrf.mxu0
    %v2052 = vadd.f32 0.0, %v2051
    %v2053 = vpop.f32.mrf.mxu0
    %2054 = vmatprep.mubr.bf16.mxu0 %v1992
    %2055 = vmatmul.mubr.bf16.gmra.mxu0 %v1891
    %v2056 = vpop.f32.mrf.mxu0
    %v2057 = vadd.f32 0.0, %v2056
    %v2058 = vpop.f32.mrf.mxu0
    %v2059 = vpop.f32.mrf.mxu0
    %v2060 = vadd.f32 0.0, %v2059
    %v2061 = vpop.f32.mrf.mxu0
    %2062 = vmatprep.mubr.bf16.mxu0 %v1995
    %2063 = vmatmul.mubr.bf16.gmra.mxu0 %v1895
    %v2064 = vpop.f32.mrf.mxu0
    %v2065 = vadd.f32 0.0, %v2064
    %v2066 = vpop.f32.mrf.mxu0
    %v2067 = vpop.f32.mrf.mxu0
    %v2068 = vadd.f32 0.0, %v2067
    %v2069 = vpop.f32.mrf.mxu0
    %2070 = vmatprep.mubr.bf16.mxu0 %v1998
    %2071 = vmatmul.mubr.bf16.gmra.mxu0 %v1899
    %v2072 = vpop.f32.mrf.mxu0
    %v2073 = vadd.f32 0.0, %v2072
    %v2074 = vpop.f32.mrf.mxu0
    %v2075 = vpop.f32.mrf.mxu0
    %v2076 = vadd.f32 0.0, %v2075
    %v2077 = vpop.f32.mrf.mxu0
    %2078 = vmatprep.mubr.bf16.mxu0 %v2001
    %2079 = vmatmul.mubr.bf16.gmra.mxu0 %v1903
    %v2080 = vpop.f32.mrf.mxu0
    %v2081 = vadd.f32 0.0, %v2080
    %v2082 = vpop.f32.mrf.mxu0
    %v2083 = vpop.f32.mrf.mxu0
    %v2084 = vadd.f32 0.0, %v2083
    %v2085 = vpop.f32.mrf.mxu0
    %2086 = vmatprep.mubr.bf16.mxu0 %v2004
    %2087 = vmatmul.mubr.bf16.gmra.mxu0 %v1902
    %v2088 = vpop.f32.mrf.mxu0
    %v2089 = vadd.f32 0.0, %v2088
    %v2090 = vpop.f32.mrf.mxu0
    %v2091 = vpop.f32.mrf.mxu0
    %v2092 = vpop.f32.mrf.mxu0
    %2093 = vdwg.mxu0
    %v2094 = vadd.f32 %v1636, %v2041
    %v2095 = vadd.f32 %v1639, %v2044
    %v2096 = vadd.f32 %v1644, %v2049
    %v2097 = vadd.f32 %v1647, %v2052
    %v2098 = vadd.f32 %v1652, %v2057
    %v2099 = vadd.f32 %v1655, %v2060
    %v2100 = vadd.f32 %v1660, %v2065
    %v2101 = vadd.f32 %v1663, %v2068
    %v2102 = vadd.f32 %v1668, %v2073
    %v2103 = vadd.f32 %v1671, %v2076
    %v2104 = vadd.f32 %v1676, %v2081
    %v2105 = vadd.f32 %v1679, %v2084
    %v2106 = vadd.f32 %v1684, %v2089
    %v2107 = vld [vmem:[#allocation12] sm:$0x1]
    %v2109 = vlaneseq
    %v2110 = vshrl.u32 %v2109, 7
    %v2111 = vsub.s32 0, %v2110
    %v2112 = vrot.slane %v2107, %v2111
    %v2114 = vadd.f32 %v2094, %v2112
    %v2115 = vadd.f32 %v2095, %v2112
    %v2116 = vadd.f32 %v2096, %v2112
    %v2117 = vadd.f32 %v2097, %v2112
    %v2118 = vadd.f32 %v2098, %v2112
    %v2119 = vadd.f32 %v2099, %v2112
    %v2120 = vadd.f32 %v2100, %v2112
    %v2121 = vadd.f32 %v2101, %v2112
    %v2122 = vadd.f32 %v2102, %v2112
    %v2123 = vadd.f32 %v2103, %v2112
    %v2124 = vadd.f32 %v2104, %v2112
    %v2125 = vadd.f32 %v2105, %v2112
    %v2126 = vadd.f32 %v2106, %v2112
    %v2127 = vmax.f32 %v2114, 0.0
    %v2128 = vmax.f32 %v2115, 0.0
    %v2129 = vmax.f32 %v2116, 0.0
    %v2130 = vmax.f32 %v2117, 0.0
    %v2131 = vmax.f32 %v2118, 0.0
    %v2132 = vmax.f32 %v2119, 0.0
    %v2133 = vmax.f32 %v2120, 0.0
    %v2134 = vmax.f32 %v2121, 0.0
    %v2135 = vmax.f32 %v2122, 0.0
    %v2136 = vmax.f32 %v2123, 0.0
    %v2137 = vmax.f32 %v2124, 0.0
    %v2138 = vmax.f32 %v2125, 0.0
    %v2139 = vmax.f32 %v2126, 0.0
    %v2140 = vpack.c.bf16 %v2128, %v2127
    %v2141 = vpack.c.bf16 %v2130, %v2129
    %v2142 = vpack.c.bf16 %v2132, %v2131
    %v2143 = vpack.c.bf16 %v2134, %v2133
    %v2144 = vpack.c.bf16 %v2136, %v2135
    %v2145 = vpack.c.bf16 %v2138, %v2137
    %v2146 = vpack.c.bf16 %v2139, %v2139
    %v2154 = vunpack.c.l.b16 %v2140
    %v2155 = vunpack.c.h.b16 %v2140
    %v2156 = vunpack.c.l.b16 %v2141
    %v2157 = vunpack.c.h.b16 %v2141
    %v2158 = vunpack.c.l.b16 %v2142
    %v2159 = vunpack.c.h.b16 %v2142
    %v2160 = vunpack.c.l.b16 %v2143
    %v2161 = vunpack.c.h.b16 %v2143
    %v2162 = vunpack.c.l.b16 %v2144
    %v2163 = vunpack.c.h.b16 %v2144
    %v2164 = vunpack.c.l.b16 %v2145
    %v2165 = vunpack.c.h.b16 %v2145
    %v2166 = vunpack.c.l.b16 %v2146
    %v2167 = vpack.c.b16 %v2154, %v2154
    %v2168 = vpack.c.b16 %v2155, %v2155
    %v2169 = vpack.c.b16 %v2156, %v2156
    %v2170 = vpack.c.b16 %v2157, %v2157
    %v2171 = vpack.c.b16 %v2158, %v2158
    %v2172 = vpack.c.b16 %v2159, %v2159
    %v2173 = vpack.c.b16 %v2160, %v2160
    %v2174 = vpack.c.b16 %v2161, %v2161
    %v2175 = vpack.c.b16 %v2162, %v2162
    %v2176 = vpack.c.b16 %v2163, %v2163
    %v2177 = vpack.c.b16 %v2164, %v2164
    %v2178 = vpack.c.b16 %v2165, %v2165
    %v2179 = vpack.c.b16 %v2166, %v2166
    %2193 = vst [vmem:[#allocation3] sm:$0xf] %v2167
    %2194 = vst [vmem:[#allocation3 + $0x4] sm:$0xf] %v2168
    %2195 = vst [vmem:[#allocation3 + $0x8] sm:$0xf] %v2169
    %2196 = vst [vmem:[#allocation3 + $0xc] sm:$0xf] %v2170
    %2197 = vst [vmem:[#allocation3 + $0x10] sm:$0xf] %v2171
    %2198 = vst [vmem:[#allocation3 + $0x14] sm:$0xf] %v2172
    %2199 = vst [vmem:[#allocation3 + $0x18] sm:$0xf] %v2173
    %2200 = vst [vmem:[#allocation3 + $0x1c] sm:$0xf] %v2174
    %2201 = vst [vmem:[#allocation3 + $0x20] sm:$0xf] %v2175
    %2202 = vst [vmem:[#allocation3 + $0x24] sm:$0xf] %v2176
    %2203 = vst [vmem:[#allocation3 + $0x28] sm:$0xf] %v2177
    %2204 = vst [vmem:[#allocation3 + $0x2c] sm:$0xf] %v2178
    %2205 = vst [vmem:[#allocation3 + $0x30] sm:$0xf] %v2179
    %v2206 = vld [vmem:[#allocation2 + $0x34] sm:$0xf]
    %v2207 = vld [vmem:[#allocation2 + $0x38] sm:$0xf]
    %v2208 = vld [vmem:[#allocation2 + $0x3c] sm:$0xf]
    %v2209 = vld [vmem:[#allocation2 + $0x40] sm:$0xf]
    %v2210 = vld [vmem:[#allocation2 + $0x44] sm:$0xf]
    %v2211 = vld [vmem:[#allocation2 + $0x48] sm:$0xf]
    %v2212 = vld [vmem:[#allocation2 + $0x4c] sm:$0xf]
    %v2213 = vld [vmem:[#allocation2 + $0x50] sm:$0xf]
    %v2214 = vld [vmem:[#allocation2 + $0x54] sm:$0xf]
    %v2215 = vld [vmem:[#allocation2 + $0x58] sm:$0xf]
    %v2216 = vld [vmem:[#allocation2 + $0x5c] sm:$0xf]
    %v2217 = vld [vmem:[#allocation2 + $0x60] sm:$0xf]
    %v2218 = vld [vmem:[#allocation2 + $0x64] sm:$0xf]
    %v2219 = vld [vmem:[#allocation2 + $0x68] sm:$0x1]
    %v2220 = vld [vmem:[#allocation2 + $0x34] sm:$0xe]
    %v2234 = vunpack.c.l.b16 %v2206
    %v2235 = vunpack.c.l.b16 %v2207
    %v2236 = vunpack.c.l.b16 %v2208
    %v2237 = vunpack.c.l.b16 %v2209
    %v2238 = vunpack.c.l.b16 %v2210
    %v2239 = vunpack.c.l.b16 %v2211
    %v2240 = vunpack.c.l.b16 %v2212
    %v2241 = vunpack.c.l.b16 %v2213
    %v2242 = vunpack.c.l.b16 %v2214
    %v2243 = vunpack.c.l.b16 %v2215
    %v2244 = vunpack.c.l.b16 %v2216
    %v2245 = vunpack.c.l.b16 %v2217
    %v2246 = vunpack.c.l.b16 %v2218
    %v2247 = vpack.c.b16 %v2235, %v2234
    %v2248 = vpack.c.b16 %v2237, %v2236
    %v2249 = vpack.c.b16 %v2239, %v2238
    %v2250 = vpack.c.b16 %v2241, %v2240
    %v2251 = vpack.c.b16 %v2243, %v2242
    %v2252 = vpack.c.b16 %v2245, %v2244
    %v2253 = vpack.c.b16 %v2246, %v2246
    %v2255 = vunpack.c.l.b16 %v2219
    %v2256 = vpack.c.b16 %v2255, %v2246
    %v2258 = vshrl.u32 %v2247, 16
    %v2260 = vshll.u32 %v2247, 16
    %v2262 = vrot.slane %v2260, 1
    %v2263 = vor.u32 %v2258, %v2262
    %v2265 = vshll.u32 %v2248, 16
    %v2267 = vrot.slane %v2265, 1
    %v2268 = vsel %vm922, %v2263, %v2267
    %v2269 = vshrl.u32 %v2248, 16
    %v2271 = vor.u32 %v2269, %v2267
    %v2273 = vshll.u32 %v2249, 16
    %v2275 = vrot.slane %v2273, 1
    %v2276 = vsel %vm922, %v2271, %v2275
    %v2277 = vshrl.u32 %v2249, 16
    %v2279 = vor.u32 %v2277, %v2275
    %v2281 = vshll.u32 %v2250, 16
    %v2283 = vrot.slane %v2281, 1
    %v2284 = vsel %vm922, %v2279, %v2283
    %v2285 = vshrl.u32 %v2250, 16
    %v2287 = vor.u32 %v2285, %v2283
    %v2289 = vshll.u32 %v2251, 16
    %v2291 = vrot.slane %v2289, 1
    %v2292 = vsel %vm922, %v2287, %v2291
    %v2293 = vshrl.u32 %v2251, 16
    %v2295 = vor.u32 %v2293, %v2291
    %v2297 = vshll.u32 %v2252, 16
    %v2299 = vrot.slane %v2297, 1
    %v2300 = vsel %vm922, %v2295, %v2299
    %v2301 = vshrl.u32 %v2252, 16
    %v2303 = vor.u32 %v2301, %v2299
    %v2305 = vshll.u32 %v2256, 16
    %v2307 = vrot.slane %v2305, 1
    %v2308 = vsel %vm922, %v2303, %v2307
    %v2309 = vshrl.u32 %v2256, 16
    %v2311 = vor.u32 %v2309, %v2307
    %2312 = vrot.lane.b32.xlu0 %v2268, 64
    %v2313 = vpop.permute.xlu0 %2312
    %2314 = vrot.lane.b32.xlu0 %v2276, 64
    %v2315 = vpop.permute.xlu0 %2314
    %2316 = vrot.lane.b32.xlu0 %v2284, 64
    %v2317 = vpop.permute.xlu0 %2316
    %2318 = vrot.lane.b32.xlu0 %v2292, 64
    %v2319 = vpop.permute.xlu0 %2318
    %2320 = vrot.lane.b32.xlu0 %v2300, 64
    %v2321 = vpop.permute.xlu0 %2320
    %2322 = vrot.lane.b32.xlu0 %v2308, 64
    %v2323 = vpop.permute.xlu0 %2322
    %2324 = vrot.lane.b32.xlu0 %v2311, 64
    %v2325 = vpop.permute.xlu0 %2324
    %v2327 = vunpack.c.l.b16 %v2220
    %v2328 = vpack.c.b16 %v2235, %v2327
    %v2329 = vrot.slane %v2328, 1
    %v2330 = vrot.slane %v2248, 1
    %v2331 = vsel %vm995, %v2329, %v2330
    %v2332 = vrot.slane %v2249, 1
    %v2333 = vsel %vm995, %v2330, %v2332
    %v2334 = vrot.slane %v2250, 1
    %v2335 = vsel %vm995, %v2332, %v2334
    %v2336 = vrot.slane %v2251, 1
    %v2337 = vsel %vm995, %v2334, %v2336
    %v2338 = vrot.slane %v2252, 1
    %v2339 = vsel %vm995, %v2336, %v2338
    %v2340 = vrot.slane %v2256, 1
    %v2341 = vsel %vm995, %v2338, %v2340
    %v2343 = vsel %vm1009, %v2247, %v2313
    %v2346 = vsel %vm1009, %v2248, %v2315
    %v2349 = vsel %vm1009, %v2249, %v2317
    %v2352 = vsel %vm1009, %v2250, %v2319
    %v2355 = vsel %vm1009, %v2251, %v2321
    %v2358 = vsel %vm1009, %v2252, %v2323
    %v2362 = vsel %vm1009, %v2253, %v2325
    %v2364 = vld [vmem:[#allocation10] sm:$0xf]
    %v2365 = vld [vmem:[#allocation10 + $0x4] sm:$0xf]
    %v2366 = vld [vmem:[#allocation10 + $0x8] sm:$0xf]
    %v2367 = vld [vmem:[#allocation10 + $0xc] sm:$0xf]
    %v2368 = vld [vmem:[#allocation10 + $0x10] sm:$0xf]
    %v2369 = vld [vmem:[#allocation10 + $0x14] sm:$0xf]
    %v2370 = vld [vmem:[#allocation10 + $0x18] sm:$0xf]
    %v2371 = vld [vmem:[#allocation10 + $0x1c] sm:$0xf]
    %v2372 = vld [vmem:[#allocation10 + $0x20] sm:$0xf]
    %v2373 = vld [vmem:[#allocation10 + $0x24] sm:$0xf]
    %v2374 = vld [vmem:[#allocation10 + $0x28] sm:$0xf]
    %v2375 = vld [vmem:[#allocation10 + $0x2c] sm:$0xf]
    %v2376 = vld [vmem:[#allocation10 + $0x30] sm:$0xf]
    %v2377 = vld [vmem:[#allocation10 + $0x34] sm:$0xf]
    %v2378 = vld [vmem:[#allocation10 + $0x38] sm:$0xf]
    %v2379 = vld [vmem:[#allocation10 + $0x3c] sm:$0xf]
    %v2380 = vld [vmem:[#allocation10 + $0x40] sm:$0xf]
    %v2381 = vld [vmem:[#allocation10 + $0x44] sm:$0xf]
    %v2382 = vld [vmem:[#allocation10 + $0x48] sm:$0xf]
    %v2383 = vld [vmem:[#allocation10 + $0x4c] sm:$0xf]
    %v2384 = vld [vmem:[#allocation10 + $0x50] sm:$0xf]
    %v2385 = vld [vmem:[#allocation10 + $0x54] sm:$0xf]
    %v2386 = vld [vmem:[#allocation10 + $0x58] sm:$0xf]
    %v2387 = vld [vmem:[#allocation10 + $0x5c] sm:$0xf]
    %v2388 = vld [vmem:[#allocation2 + $0x38] sm:$0xe]
    %v2389 = vld [vmem:[#allocation2 + $0x68] sm:$0xf]
    %v2390 = vld [vmem:[#allocation2 + $0x6c] sm:$0x3]
    %v2391 = vld [vmem:[#allocation2 + $0x38] sm:$0xc]
    %v2392 = vld [vmem:[#allocation2 + $0x6c] sm:$0x7]
    %v2396 = vunpack.c.l.b16 %v2388
    %v2397 = vunpack.c.l.b16 %v2389
    %v2398 = vunpack.c.l.b16 %v2390
    %v2399 = vpack.c.b16 %v2236, %v2396
    %v2400 = vpack.c.b16 %v2238, %v2237
    %v2401 = vpack.c.b16 %v2240, %v2239
    %v2402 = vpack.c.b16 %v2242, %v2241
    %v2403 = vpack.c.b16 %v2244, %v2243
    %v2404 = vpack.c.b16 %v2246, %v2245
    %v2405 = vpack.c.b16 %v2398, %v2397
    %v2407 = vunpack.c.l.b16 %v2391
    %v2408 = vpack.c.b16 %v2236, %v2407
    %v2410 = vshrl.u32 %v2408, 16
    %v2412 = vshll.u32 %v2408, 16
    %v2414 = vrot.slane %v2412, 1
    %v2415 = vor.u32 %v2410, %v2414
    %v2417 = vshll.u32 %v2400, 16
    %v2419 = vrot.slane %v2417, 1
    %v2420 = vsel %vm922, %v2415, %v2419
    %v2421 = vshrl.u32 %v2400, 16
    %v2423 = vor.u32 %v2421, %v2419
    %v2425 = vshll.u32 %v2401, 16
    %v2427 = vrot.slane %v2425, 1
    %v2428 = vsel %vm922, %v2423, %v2427
    %v2429 = vshrl.u32 %v2401, 16
    %v2431 = vor.u32 %v2429, %v2427
    %v2433 = vshll.u32 %v2402, 16
    %v2435 = vrot.slane %v2433, 1
    %v2436 = vsel %vm922, %v2431, %v2435
    %v2437 = vshrl.u32 %v2402, 16
    %v2439 = vor.u32 %v2437, %v2435
    %v2441 = vshll.u32 %v2403, 16
    %v2443 = vrot.slane %v2441, 1
    %v2444 = vsel %vm922, %v2439, %v2443
    %v2445 = vshrl.u32 %v2403, 16
    %v2447 = vor.u32 %v2445, %v2443
    %v2449 = vshll.u32 %v2404, 16
    %v2451 = vrot.slane %v2449, 1
    %v2452 = vsel %vm922, %v2447, %v2451
    %v2453 = vshrl.u32 %v2404, 16
    %v2455 = vor.u32 %v2453, %v2451
    %v2457 = vshll.u32 %v2405, 16
    %v2459 = vrot.slane %v2457, 1
    %v2460 = vsel %vm922, %v2455, %v2459
    %v2461 = vshrl.u32 %v2405, 16
    %v2463 = vor.u32 %v2461, %v2459
    %2464 = vrot.lane.b32.xlu0 %v2420, 64
    %v2465 = vpop.permute.xlu0 %2464
    %2466 = vrot.lane.b32.xlu0 %v2428, 64
    %v2467 = vpop.permute.xlu0 %2466
    %2468 = vrot.lane.b32.xlu0 %v2436, 64
    %v2469 = vpop.permute.xlu0 %2468
    %2470 = vrot.lane.b32.xlu0 %v2444, 64
    %v2471 = vpop.permute.xlu0 %2470
    %2472 = vrot.lane.b32.xlu0 %v2452, 64
    %v2473 = vpop.permute.xlu0 %2472
    %2474 = vrot.lane.b32.xlu0 %v2460, 64
    %v2475 = vpop.permute.xlu0 %2474
    %2476 = vrot.lane.b32.xlu0 %v2463, 64
    %v2477 = vpop.permute.xlu0 %2476
    %v2479 = vunpack.c.l.b16 %v2392
    %v2480 = vpack.c.b16 %v2479, %v2397
    %v2481 = vrot.slane %v2408, 1
    %v2482 = vrot.slane %v2400, 1
    %v2483 = vsel %vm995, %v2481, %v2482
    %v2484 = vrot.slane %v2401, 1
    %v2485 = vsel %vm995, %v2482, %v2484
    %v2486 = vrot.slane %v2402, 1
    %v2487 = vsel %vm995, %v2484, %v2486
    %v2488 = vrot.slane %v2403, 1
    %v2489 = vsel %vm995, %v2486, %v2488
    %v2490 = vrot.slane %v2404, 1
    %v2491 = vsel %vm995, %v2488, %v2490
    %v2492 = vrot.slane %v2480, 1
    %v2493 = vsel %vm995, %v2490, %v2492
    %v2496 = vsel %vm1009, %v2399, %v2465
    %v2498 = vsel %vm1009, %v2400, %v2467
    %v2500 = vsel %vm1009, %v2401, %v2469
    %v2502 = vsel %vm1009, %v2402, %v2471
    %v2504 = vsel %vm1009, %v2403, %v2473
    %v2506 = vsel %vm1009, %v2404, %v2475
    %v2508 = vsel %vm1009, %v2405, %v2477
    %v2509 = vld [vmem:[%s1177] sm:$0xf]
    %v2510 = vld [vmem:[%s1177 + $0x4] sm:$0xf]
    %v2511 = vld [vmem:[%s1177 + $0x8] sm:$0xf]
    %v2512 = vld [vmem:[%s1177 + $0xc] sm:$0xf]
    %v2513 = vld [vmem:[%s1177 + $0x10] sm:$0xf]
    %v2514 = vld [vmem:[%s1177 + $0x14] sm:$0xf]
    %v2515 = vld [vmem:[%s1177 + $0x18] sm:$0xf]
    %v2516 = vld [vmem:[%s1177 + $0x1c] sm:$0xf]
    %v2517 = vld [vmem:[%s1177 + $0x20] sm:$0xf]
    %v2518 = vld [vmem:[%s1177 + $0x24] sm:$0xf]
    %v2519 = vld [vmem:[%s1177 + $0x28] sm:$0xf]
    %v2520 = vld [vmem:[%s1177 + $0x2c] sm:$0xf]
    %v2521 = vld [vmem:[%s1177 + $0x30] sm:$0xf]
    %v2522 = vld [vmem:[%s1177 + $0x34] sm:$0xf]
    %v2523 = vld [vmem:[%s1177 + $0x38] sm:$0xf]
    %v2524 = vld [vmem:[%s1177 + $0x3c] sm:$0xf]
    %v2525 = vld [vmem:[%s1177 + $0x40] sm:$0xf]
    %v2526 = vld [vmem:[%s1177 + $0x44] sm:$0xf]
    %v2527 = vld [vmem:[%s1177 + $0x48] sm:$0xf]
    %v2528 = vld [vmem:[%s1177 + $0x4c] sm:$0xf]
    %v2529 = vld [vmem:[%s1177 + $0x50] sm:$0xf]
    %v2530 = vld [vmem:[%s1177 + $0x54] sm:$0xf]
    %v2531 = vld [vmem:[%s1177 + $0x58] sm:$0xf]
    %v2532 = vld [vmem:[%s1177 + $0x5c] sm:$0xf]
    %v2533 = vshrl.u32 %v2496, 16
    %v2535 = vrot.slane %v2533, 1
    %v2536 = vshll.u32 %v2496, 16
    %v2538 = vrot.slane %v2536, 2
    %v2539 = vor.u32 %v2535, %v2538
    %v2540 = vshrl.u32 %v2498, 16
    %v2542 = vrot.slane %v2540, 1
    %v2543 = vshll.u32 %v2498, 16
    %v2545 = vrot.slane %v2543, 2
    %v2546 = vor.u32 %v2542, %v2545
    %v2547 = vsel %vm1202, %v2539, %v2546
    %v2549 = vshrl.u32 %v2483, 16
    %v2551 = vrot.slane %v2549, 1
    %v2552 = vshll.u32 %v2483, 16
    %v2554 = vrot.slane %v2552, 2
    %v2555 = vor.u32 %v2551, %v2554
    %v2557 = vshrl.u32 %v2485, 16
    %v2559 = vrot.slane %v2557, 1
    %v2560 = vshll.u32 %v2485, 16
    %v2562 = vrot.slane %v2560, 2
    %v2563 = vor.u32 %v2559, %v2562
    %v2564 = vsel %vm1202, %v2555, %v2563
    %v2565 = vshrl.u32 %v2500, 16
    %v2567 = vrot.slane %v2565, 1
    %v2568 = vshll.u32 %v2500, 16
    %v2570 = vrot.slane %v2568, 2
    %v2571 = vor.u32 %v2567, %v2570
    %v2572 = vsel %vm1202, %v2546, %v2571
    %v2574 = vshrl.u32 %v2487, 16
    %v2576 = vrot.slane %v2574, 1
    %v2577 = vshll.u32 %v2487, 16
    %v2579 = vrot.slane %v2577, 2
    %v2580 = vor.u32 %v2576, %v2579
    %v2581 = vsel %vm1202, %v2563, %v2580
    %v2582 = vshrl.u32 %v2502, 16
    %v2584 = vrot.slane %v2582, 1
    %v2585 = vshll.u32 %v2502, 16
    %v2587 = vrot.slane %v2585, 2
    %v2588 = vor.u32 %v2584, %v2587
    %v2589 = vsel %vm1202, %v2571, %v2588
    %v2591 = vshrl.u32 %v2489, 16
    %v2593 = vrot.slane %v2591, 1
    %v2594 = vshll.u32 %v2489, 16
    %v2596 = vrot.slane %v2594, 2
    %v2597 = vor.u32 %v2593, %v2596
    %v2598 = vsel %vm1202, %v2580, %v2597
    %v2599 = vshrl.u32 %v2504, 16
    %v2601 = vrot.slane %v2599, 1
    %v2602 = vshll.u32 %v2504, 16
    %v2604 = vrot.slane %v2602, 2
    %v2605 = vor.u32 %v2601, %v2604
    %v2606 = vsel %vm1202, %v2588, %v2605
    %v2608 = vshrl.u32 %v2491, 16
    %v2610 = vrot.slane %v2608, 1
    %v2611 = vshll.u32 %v2491, 16
    %v2613 = vrot.slane %v2611, 2
    %v2614 = vor.u32 %v2610, %v2613
    %v2615 = vsel %vm1202, %v2597, %v2614
    %v2616 = vshrl.u32 %v2506, 16
    %v2618 = vrot.slane %v2616, 1
    %v2619 = vshll.u32 %v2506, 16
    %v2621 = vrot.slane %v2619, 2
    %v2622 = vor.u32 %v2618, %v2621
    %v2623 = vsel %vm1202, %v2605, %v2622
    %v2625 = vshrl.u32 %v2493, 16
    %v2627 = vrot.slane %v2625, 1
    %v2628 = vshll.u32 %v2493, 16
    %v2630 = vrot.slane %v2628, 2
    %v2631 = vor.u32 %v2627, %v2630
    %v2632 = vsel %vm1202, %v2614, %v2631
    %v2633 = vshrl.u32 %v2508, 16
    %v2635 = vrot.slane %v2633, 1
    %v2636 = vshll.u32 %v2508, 16
    %v2638 = vrot.slane %v2636, 2
    %v2639 = vor.u32 %v2635, %v2638
    %v2640 = vsel %vm1202, %v2622, %v2639
    %v2642 = vshrl.u32 %v2492, 16
    %v2644 = vrot.slane %v2642, 1
    %v2645 = vshll.u32 %v2492, 16
    %v2647 = vrot.slane %v2645, 2
    %v2648 = vor.u32 %v2644, %v2647
    %v2649 = vsel %vm1202, %v2631, %v2648
    %v2681 = vunpack.c.l.b16 %v2509
    %v2682 = vunpack.c.l.b16 %v2510
    %v2683 = vunpack.c.l.b16 %v2511
    %v2684 = vunpack.c.l.b16 %v2512
    %v2685 = vunpack.c.l.b16 %v2513
    %v2686 = vunpack.c.l.b16 %v2514
    %v2687 = vunpack.c.l.b16 %v2515
    %v2688 = vunpack.c.l.b16 %v2516
    %v2689 = vunpack.c.l.b16 %v2517
    %v2690 = vunpack.c.l.b16 %v2518
    %v2691 = vunpack.c.l.b16 %v2519
    %v2692 = vunpack.c.l.b16 %v2520
    %v2693 = vunpack.c.l.b16 %v2521
    %v2694 = vunpack.c.l.b16 %v2522
    %v2695 = vunpack.c.l.b16 %v2523
    %v2696 = vunpack.c.l.b16 %v2524
    %v2697 = vunpack.c.l.b16 %v2525
    %v2698 = vunpack.c.l.b16 %v2526
    %v2699 = vunpack.c.l.b16 %v2527
    %v2700 = vunpack.c.l.b16 %v2528
    %v2701 = vunpack.c.l.b16 %v2529
    %v2702 = vunpack.c.l.b16 %v2530
    %v2703 = vunpack.c.l.b16 %v2531
    %v2704 = vunpack.c.l.b16 %v2532
    %v2705 = vpack.c.b16 %v2682, %v2681
    %v2706 = vpack.c.b16 %v2684, %v2683
    %v2707 = vpack.c.b16 %v2686, %v2685
    %v2708 = vpack.c.b16 %v2688, %v2687
    %v2709 = vpack.c.b16 %v2690, %v2689
    %v2710 = vpack.c.b16 %v2692, %v2691
    %v2711 = vpack.c.b16 %v2694, %v2693
    %v2712 = vpack.c.b16 %v2696, %v2695
    %v2713 = vpack.c.b16 %v2698, %v2697
    %v2714 = vpack.c.b16 %v2700, %v2699
    %v2715 = vpack.c.b16 %v2702, %v2701
    %v2716 = vpack.c.b16 %v2704, %v2703
    %v2730 = vsel %vm1009, %v2564, 0
    %v2733 = vsel %vm1009, %v2581, 0
    %v2736 = vsel %vm1009, %v2598, 0
    %v2739 = vsel %vm1009, %v2615, 0
    %v2742 = vsel %vm1009, %v2632, 0
    %v2745 = vsel %vm1009, %v2649, 0
    %v2748 = vsel %vm1009, %v2648, 0
    %2750 = vmatprep.subr.bf16.mxu0 0
    %2751 = vmatpush1.bf16.msra.mxu0 %v2712
    %2752 = vmatprep.subr.bf16.mxu0 0
    %2753 = vmatpush1.bf16.msra.mxu0 %v2711
    %2754 = vmatprep.subr.bf16.mxu0 0
    %2755 = vmatpush1.bf16.msra.mxu0 %v2710
    %2756 = vmatprep.subr.bf16.mxu0 0
    %2757 = vmatpush1.bf16.msra.mxu0 %v2709
    %2758 = vmatprep.subr.bf16.mxu0 0
    %2759 = vmatpush1.bf16.msra.mxu0 %v2708
    %2760 = vmatprep.subr.bf16.mxu0 0
    %2761 = vmatpush1.bf16.msra.mxu0 %v2707
    %2762 = vmatprep.subr.bf16.mxu0 0
    %2763 = vmatpush1.bf16.msra.mxu0 %v2706
    %2764 = vmatprep.subr.bf16.mxu0 0
    %2765 = vmatpush1.bf16.msra.mxu0 %v2705
    %2766 = vmatprep.subr.bf16.mxu0 0
    %2767 = vmatpush2.bf16.msra.mxu0 0
    %2768 = vmatprep.subr.bf16.mxu0 0
    %2769 = vmatpush2.bf16.msra.mxu0 0
    %2770 = vmatprep.subr.bf16.mxu0 0
    %2771 = vmatpush2.bf16.msra.mxu0 0
    %2772 = vmatprep.subr.bf16.mxu0 0
    %2773 = vmatpush2.bf16.msra.mxu0 0
    %2774 = vmatprep.subr.bf16.mxu0 0
    %2775 = vmatpush2.bf16.msra.mxu0 %v2716
    %2776 = vmatprep.subr.bf16.mxu0 0
    %2777 = vmatpush2.bf16.msra.mxu0 %v2715
    %2778 = vmatprep.subr.bf16.mxu0 0
    %2779 = vmatpush2.bf16.msra.mxu0 %v2714
    %2780 = vmatprep.subr.bf16.mxu0 0
    %2781 = vmatpush2.bf16.msra.mxu0 %v2713
    %2782 = vmatprep.mubr.bf16.mxu0 %v2730
    %2783 = vmatmul.mubr.bf16.gmra.mxu0 %v2547
    %v2784 = vpop.f32.mrf.mxu0
    %v2785 = vadd.f32 0.0, %v2784
    %v2786 = vpop.f32.mrf.mxu0
    %v2787 = vpop.f32.mrf.mxu0
    %v2788 = vadd.f32 0.0, %v2787
    %v2789 = vpop.f32.mrf.mxu0
    %2790 = vmatprep.mubr.bf16.mxu0 %v2733
    %2791 = vmatmul.mubr.bf16.gmra.mxu0 %v2572
    %v2792 = vpop.f32.mrf.mxu0
    %v2793 = vadd.f32 0.0, %v2792
    %v2794 = vpop.f32.mrf.mxu0
    %v2795 = vpop.f32.mrf.mxu0
    %v2796 = vadd.f32 0.0, %v2795
    %v2797 = vpop.f32.mrf.mxu0
    %2798 = vmatprep.mubr.bf16.mxu0 %v2736
    %2799 = vmatmul.mubr.bf16.gmra.mxu0 %v2589
    %v2800 = vpop.f32.mrf.mxu0
    %v2801 = vadd.f32 0.0, %v2800
    %v2802 = vpop.f32.mrf.mxu0
    %v2803 = vpop.f32.mrf.mxu0
    %v2804 = vadd.f32 0.0, %v2803
    %v2805 = vpop.f32.mrf.mxu0
    %2806 = vmatprep.mubr.bf16.mxu0 %v2739
    %2807 = vmatmul.mubr.bf16.gmra.mxu0 %v2606
    %v2808 = vpop.f32.mrf.mxu0
    %v2809 = vadd.f32 0.0, %v2808
    %v2810 = vpop.f32.mrf.mxu0
    %v2811 = vpop.f32.mrf.mxu0
    %v2812 = vadd.f32 0.0, %v2811
    %v2813 = vpop.f32.mrf.mxu0
    %2814 = vmatprep.mubr.bf16.mxu0 %v2742
    %2815 = vmatmul.mubr.bf16.gmra.mxu0 %v2623
    %v2816 = vpop.f32.mrf.mxu0
    %v2817 = vadd.f32 0.0, %v2816
    %v2818 = vpop.f32.mrf.mxu0
    %v2819 = vpop.f32.mrf.mxu0
    %v2820 = vadd.f32 0.0, %v2819
    %v2821 = vpop.f32.mrf.mxu0
    %2822 = vmatprep.mubr.bf16.mxu0 %v2745
    %2823 = vmatmul.mubr.bf16.gmra.mxu0 %v2640
    %v2824 = vpop.f32.mrf.mxu0
    %v2825 = vadd.f32 0.0, %v2824
    %v2826 = vpop.f32.mrf.mxu0
    %v2827 = vpop.f32.mrf.mxu0
    %v2828 = vadd.f32 0.0, %v2827
    %v2829 = vpop.f32.mrf.mxu0
    %2830 = vmatprep.mubr.bf16.mxu0 %v2748
    %2831 = vmatmul.mubr.bf16.gmra.mxu0 %v2639
    %v2832 = vpop.f32.mrf.mxu0
    %v2833 = vadd.f32 0.0, %v2832
    %v2834 = vpop.f32.mrf.mxu0
    %v2835 = vpop.f32.mrf.mxu0
    %v2836 = vpop.f32.mrf.mxu0
    %2837 = vdwg.mxu0
    %v2862 = vunpack.c.l.b16 %v2364
    %v2863 = vunpack.c.l.b16 %v2365
    %v2864 = vunpack.c.l.b16 %v2366
    %v2865 = vunpack.c.l.b16 %v2367
    %v2866 = vunpack.c.l.b16 %v2368
    %v2867 = vunpack.c.l.b16 %v2369
    %v2868 = vunpack.c.l.b16 %v2370
    %v2869 = vunpack.c.l.b16 %v2371
    %v2870 = vunpack.c.l.b16 %v2372
    %v2871 = vunpack.c.l.b16 %v2373
    %v2872 = vunpack.c.l.b16 %v2374
    %v2873 = vunpack.c.l.b16 %v2375
    %v2874 = vunpack.c.l.b16 %v2376
    %v2875 = vunpack.c.l.b16 %v2377
    %v2876 = vunpack.c.l.b16 %v2378
    %v2877 = vunpack.c.l.b16 %v2379
    %v2878 = vunpack.c.l.b16 %v2380
    %v2879 = vunpack.c.l.b16 %v2381
    %v2880 = vunpack.c.l.b16 %v2382
    %v2881 = vunpack.c.l.b16 %v2383
    %v2882 = vunpack.c.l.b16 %v2384
    %v2883 = vunpack.c.l.b16 %v2385
    %v2884 = vunpack.c.l.b16 %v2386
    %v2885 = vunpack.c.l.b16 %v2387
    %v2886 = vpack.c.b16 %v2863, %v2862
    %v2887 = vpack.c.b16 %v2865, %v2864
    %v2888 = vpack.c.b16 %v2867, %v2866
    %v2889 = vpack.c.b16 %v2869, %v2868
    %v2890 = vpack.c.b16 %v2871, %v2870
    %v2891 = vpack.c.b16 %v2873, %v2872
    %v2892 = vpack.c.b16 %v2875, %v2874
    %v2893 = vpack.c.b16 %v2877, %v2876
    %v2894 = vpack.c.b16 %v2879, %v2878
    %v2895 = vpack.c.b16 %v2881, %v2880
    %v2896 = vpack.c.b16 %v2883, %v2882
    %v2897 = vpack.c.b16 %v2885, %v2884
    %v2911 = vsel %vm1009, %v2331, 0
    %v2914 = vsel %vm1009, %v2333, 0
    %v2917 = vsel %vm1009, %v2335, 0
    %v2920 = vsel %vm1009, %v2337, 0
    %v2923 = vsel %vm1009, %v2339, 0
    %v2926 = vsel %vm1009, %v2341, 0
    %v2929 = vsel %vm1009, %v2340, 0
    %2931 = vmatprep.subr.bf16.mxu0 0
    %2932 = vmatpush1.bf16.msra.mxu0 %v2893
    %2933 = vmatprep.subr.bf16.mxu0 0
    %2934 = vmatpush1.bf16.msra.mxu0 %v2892
    %2935 = vmatprep.subr.bf16.mxu0 0
    %2936 = vmatpush1.bf16.msra.mxu0 %v2891
    %2937 = vmatprep.subr.bf16.mxu0 0
    %2938 = vmatpush1.bf16.msra.mxu0 %v2890
    %2939 = vmatprep.subr.bf16.mxu0 0
    %2940 = vmatpush1.bf16.msra.mxu0 %v2889
    %2941 = vmatprep.subr.bf16.mxu0 0
    %2942 = vmatpush1.bf16.msra.mxu0 %v2888
    %2943 = vmatprep.subr.bf16.mxu0 0
    %2944 = vmatpush1.bf16.msra.mxu0 %v2887
    %2945 = vmatprep.subr.bf16.mxu0 0
    %2946 = vmatpush1.bf16.msra.mxu0 %v2886
    %2947 = vmatprep.subr.bf16.mxu0 0
    %2948 = vmatpush2.bf16.msra.mxu0 0
    %2949 = vmatprep.subr.bf16.mxu0 0
    %2950 = vmatpush2.bf16.msra.mxu0 0
    %2951 = vmatprep.subr.bf16.mxu0 0
    %2952 = vmatpush2.bf16.msra.mxu0 0
    %2953 = vmatprep.subr.bf16.mxu0 0
    %2954 = vmatpush2.bf16.msra.mxu0 0
    %2955 = vmatprep.subr.bf16.mxu0 0
    %2956 = vmatpush2.bf16.msra.mxu0 %v2897
    %2957 = vmatprep.subr.bf16.mxu0 0
    %2958 = vmatpush2.bf16.msra.mxu0 %v2896
    %2959 = vmatprep.subr.bf16.mxu0 0
    %2960 = vmatpush2.bf16.msra.mxu0 %v2895
    %2961 = vmatprep.subr.bf16.mxu0 0
    %2962 = vmatpush2.bf16.msra.mxu0 %v2894
    %2963 = vmatprep.mubr.bf16.mxu0 %v2911
    %2964 = vmatmul.mubr.bf16.gmra.mxu0 %v2343
    %v2965 = vpop.f32.mrf.mxu0
    %v2966 = vadd.f32 %v2785, %v2965
    %v2967 = vpop.f32.mrf.mxu0
    %v2968 = vpop.f32.mrf.mxu0
    %v2969 = vadd.f32 %v2788, %v2968
    %v2970 = vpop.f32.mrf.mxu0
    %2971 = vmatprep.mubr.bf16.mxu0 %v2914
    %2972 = vmatmul.mubr.bf16.gmra.mxu0 %v2346
    %v2973 = vpop.f32.mrf.mxu0
    %v2974 = vadd.f32 %v2793, %v2973
    %v2975 = vpop.f32.mrf.mxu0
    %v2976 = vpop.f32.mrf.mxu0
    %v2977 = vadd.f32 %v2796, %v2976
    %v2978 = vpop.f32.mrf.mxu0
    %2979 = vmatprep.mubr.bf16.mxu0 %v2917
    %2980 = vmatmul.mubr.bf16.gmra.mxu0 %v2349
    %v2981 = vpop.f32.mrf.mxu0
    %v2982 = vadd.f32 %v2801, %v2981
    %v2983 = vpop.f32.mrf.mxu0
    %v2984 = vpop.f32.mrf.mxu0
    %v2985 = vadd.f32 %v2804, %v2984
    %v2986 = vpop.f32.mrf.mxu0
    %2987 = vmatprep.mubr.bf16.mxu0 %v2920
    %2988 = vmatmul.mubr.bf16.gmra.mxu0 %v2352
    %v2989 = vpop.f32.mrf.mxu0
    %v2990 = vadd.f32 %v2809, %v2989
    %v2991 = vpop.f32.mrf.mxu0
    %v2992 = vpop.f32.mrf.mxu0
    %v2993 = vadd.f32 %v2812, %v2992
    %v2994 = vpop.f32.mrf.mxu0
    %2995 = vmatprep.mubr.bf16.mxu0 %v2923
    %2996 = vmatmul.mubr.bf16.gmra.mxu0 %v2355
    %v2997 = vpop.f32.mrf.mxu0
    %v2998 = vadd.f32 %v2817, %v2997
    %v2999 = vpop.f32.mrf.mxu0
    %v3000 = vpop.f32.mrf.mxu0
    %v3001 = vadd.f32 %v2820, %v3000
    %v3002 = vpop.f32.mrf.mxu0
    %3003 = vmatprep.mubr.bf16.mxu0 %v2926
    %3004 = vmatmul.mubr.bf16.gmra.mxu0 %v2358
    %v3005 = vpop.f32.mrf.mxu0
    %v3006 = vadd.f32 %v2825, %v3005
    %v3007 = vpop.f32.mrf.mxu0
    %v3008 = vpop.f32.mrf.mxu0
    %v3009 = vadd.f32 %v2828, %v3008
    %v3010 = vpop.f32.mrf.mxu0
    %3011 = vmatprep.mubr.bf16.mxu0 %v2929
    %3012 = vmatmul.mubr.bf16.gmra.mxu0 %v2362
    %v3013 = vpop.f32.mrf.mxu0
    %v3014 = vadd.f32 %v2833, %v3013
    %v3015 = vpop.f32.mrf.mxu0
    %v3016 = vpop.f32.mrf.mxu0
    %v3017 = vpop.f32.mrf.mxu0
    %3018 = vdwg.mxu0
    %v3019 = vld [vmem:[#allocation2 + $0x3c] sm:$0x8]
    %v3020 = vld [vmem:[#allocation2 + $0x40] sm:$0xf]
    %v3021 = vld [vmem:[#allocation2 + $0x44] sm:$0xf]
    %v3022 = vld [vmem:[#allocation2 + $0x48] sm:$0xf]
    %v3023 = vld [vmem:[#allocation2 + $0x4c] sm:$0xf]
    %v3024 = vld [vmem:[#allocation2 + $0x50] sm:$0xf]
    %v3025 = vld [vmem:[#allocation2 + $0x54] sm:$0xf]
    %v3026 = vld [vmem:[#allocation2 + $0x58] sm:$0xf]
    %v3027 = vld [vmem:[#allocation2 + $0x5c] sm:$0xf]
    %v3028 = vld [vmem:[#allocation2 + $0x60] sm:$0xf]
    %v3029 = vld [vmem:[#allocation2 + $0x64] sm:$0xf]
    %v3030 = vld [vmem:[#allocation2 + $0x68] sm:$0xf]
    %v3031 = vld [vmem:[#allocation2 + $0x6c] sm:$0xf]
    %v3032 = vld [vmem:[#allocation2 + $0x70] sm:$0x7]
    %v3033 = vld [vmem:[#allocation2 + $0x70] sm:$0xf]
    %v3048 = vunpack.c.l.b16 %v3019
    %v3049 = vunpack.c.l.b16 %v3020
    %v3050 = vunpack.c.l.b16 %v3021
    %v3051 = vunpack.c.l.b16 %v3022
    %v3052 = vunpack.c.l.b16 %v3023
    %v3053 = vunpack.c.l.b16 %v3024
    %v3054 = vunpack.c.l.b16 %v3025
    %v3055 = vunpack.c.l.b16 %v3026
    %v3056 = vunpack.c.l.b16 %v3027
    %v3057 = vunpack.c.l.b16 %v3028
    %v3058 = vunpack.c.l.b16 %v3029
    %v3059 = vunpack.c.l.b16 %v3030
    %v3060 = vunpack.c.l.b16 %v3031
    %v3061 = vunpack.c.l.b16 %v3032
    %v3062 = vpack.c.b16 %v3049, %v3048
    %v3063 = vpack.c.b16 %v3051, %v3050
    %v3064 = vpack.c.b16 %v3053, %v3052
    %v3065 = vpack.c.b16 %v3055, %v3054
    %v3066 = vpack.c.b16 %v3057, %v3056
    %v3067 = vpack.c.b16 %v3059, %v3058
    %v3068 = vpack.c.b16 %v3061, %v3060
    %v3070 = vunpack.c.l.b16 %v3033
    %v3071 = vpack.c.b16 %v3070, %v3060
    %v3073 = vshrl.u32 %v3062, 16
    %v3075 = vshll.u32 %v3062, 16
    %v3077 = vrot.slane %v3075, 1
    %v3078 = vor.u32 %v3073, %v3077
    %v3080 = vshll.u32 %v3063, 16
    %v3082 = vrot.slane %v3080, 1
    %v3083 = vsel %vm922, %v3078, %v3082
    %v3084 = vshrl.u32 %v3063, 16
    %v3086 = vor.u32 %v3084, %v3082
    %v3088 = vshll.u32 %v3064, 16
    %v3090 = vrot.slane %v3088, 1
    %v3091 = vsel %vm922, %v3086, %v3090
    %v3092 = vshrl.u32 %v3064, 16
    %v3094 = vor.u32 %v3092, %v3090
    %v3096 = vshll.u32 %v3065, 16
    %v3098 = vrot.slane %v3096, 1
    %v3099 = vsel %vm922, %v3094, %v3098
    %v3100 = vshrl.u32 %v3065, 16
    %v3102 = vor.u32 %v3100, %v3098
    %v3104 = vshll.u32 %v3066, 16
    %v3106 = vrot.slane %v3104, 1
    %v3107 = vsel %vm922, %v3102, %v3106
    %v3108 = vshrl.u32 %v3066, 16
    %v3110 = vor.u32 %v3108, %v3106
    %v3112 = vshll.u32 %v3067, 16
    %v3114 = vrot.slane %v3112, 1
    %v3115 = vsel %vm922, %v3110, %v3114
    %v3116 = vshrl.u32 %v3067, 16
    %v3118 = vor.u32 %v3116, %v3114
    %v3120 = vshll.u32 %v3071, 16
    %v3122 = vrot.slane %v3120, 1
    %v3123 = vsel %vm922, %v3118, %v3122
    %v3124 = vshrl.u32 %v3071, 16
    %v3126 = vor.u32 %v3124, %v3122
    %3127 = vrot.lane.b32.xlu0 %v3083, 64
    %v3128 = vpop.permute.xlu0 %3127
    %3129 = vrot.lane.b32.xlu0 %v3091, 64
    %v3130 = vpop.permute.xlu0 %3129
    %3131 = vrot.lane.b32.xlu0 %v3099, 64
    %v3132 = vpop.permute.xlu0 %3131
    %3133 = vrot.lane.b32.xlu0 %v3107, 64
    %v3134 = vpop.permute.xlu0 %3133
    %3135 = vrot.lane.b32.xlu0 %v3115, 64
    %v3136 = vpop.permute.xlu0 %3135
    %3137 = vrot.lane.b32.xlu0 %v3123, 64
    %v3138 = vpop.permute.xlu0 %3137
    %3139 = vrot.lane.b32.xlu0 %v3126, 64
    %v3140 = vpop.permute.xlu0 %3139
    %v3141 = vpack.c.b16 %v3050, %v3049
    %v3142 = vpack.c.b16 %v3052, %v3051
    %v3143 = vpack.c.b16 %v3054, %v3053
    %v3144 = vpack.c.b16 %v3056, %v3055
    %v3145 = vpack.c.b16 %v3058, %v3057
    %v3146 = vpack.c.b16 %v3060, %v3059
    %v3147 = vpack.c.b16 %v3070, %v3070
    %v3148 = vrot.slane %v3141, 5
    %v3149 = vrot.slane %v3142, 5
    %v3150 = vsel %vm1818, %v3148, %v3149
    %v3151 = vrot.slane %v3143, 5
    %v3152 = vsel %vm1818, %v3149, %v3151
    %v3153 = vrot.slane %v3144, 5
    %v3154 = vsel %vm1818, %v3151, %v3153
    %v3155 = vrot.slane %v3145, 5
    %v3156 = vsel %vm1818, %v3153, %v3155
    %v3157 = vrot.slane %v3146, 5
    %v3158 = vsel %vm1818, %v3155, %v3157
    %v3159 = vrot.slane %v3147, 5
    %v3160 = vsel %vm1818, %v3157, %v3159
    %v3162 = vsel %vm1009, %v3062, %v3128
    %v3164 = vsel %vm1009, %v3063, %v3130
    %v3166 = vsel %vm1009, %v3064, %v3132
    %v3168 = vsel %vm1009, %v3065, %v3134
    %v3170 = vsel %vm1009, %v3066, %v3136
    %v3172 = vsel %vm1009, %v3067, %v3138
    %v3175 = vsel %vm1009, %v3068, %v3140
    %v3176 = vld [vmem:[%s1847] sm:$0xf]
    %v3177 = vld [vmem:[%s1847 + $0x4] sm:$0xf]
    %v3178 = vld [vmem:[%s1847 + $0x8] sm:$0xf]
    %v3179 = vld [vmem:[%s1847 + $0xc] sm:$0xf]
    %v3180 = vld [vmem:[%s1847 + $0x10] sm:$0xf]
    %v3181 = vld [vmem:[%s1847 + $0x14] sm:$0xf]
    %v3182 = vld [vmem:[%s1847 + $0x18] sm:$0xf]
    %v3183 = vld [vmem:[%s1847 + $0x1c] sm:$0xf]
    %v3184 = vld [vmem:[%s1847 + $0x20] sm:$0xf]
    %v3185 = vld [vmem:[%s1847 + $0x24] sm:$0xf]
    %v3186 = vld [vmem:[%s1847 + $0x28] sm:$0xf]
    %v3187 = vld [vmem:[%s1847 + $0x2c] sm:$0xf]
    %v3188 = vld [vmem:[%s1847 + $0x30] sm:$0xf]
    %v3189 = vld [vmem:[%s1847 + $0x34] sm:$0xf]
    %v3190 = vld [vmem:[%s1847 + $0x38] sm:$0xf]
    %v3191 = vld [vmem:[%s1847 + $0x3c] sm:$0xf]
    %v3192 = vld [vmem:[%s1847 + $0x40] sm:$0xf]
    %v3193 = vld [vmem:[%s1847 + $0x44] sm:$0xf]
    %v3194 = vld [vmem:[%s1847 + $0x48] sm:$0xf]
    %v3195 = vld [vmem:[%s1847 + $0x4c] sm:$0xf]
    %v3196 = vld [vmem:[%s1847 + $0x50] sm:$0xf]
    %v3197 = vld [vmem:[%s1847 + $0x54] sm:$0xf]
    %v3198 = vld [vmem:[%s1847 + $0x58] sm:$0xf]
    %v3199 = vld [vmem:[%s1847 + $0x5c] sm:$0xf]
    %v3207 = vrot.slane %v3162, 3
    %v3208 = vrot.slane %v3164, 3
    %v3209 = vsel %vm1879, %v3207, %v3208
    %v3210 = vrot.slane %v3148, 3
    %v3211 = vrot.slane %v3150, 3
    %v3212 = vsel %vm1879, %v3210, %v3211
    %v3213 = vrot.slane %v3166, 3
    %v3214 = vsel %vm1879, %v3208, %v3213
    %v3215 = vrot.slane %v3152, 3
    %v3216 = vsel %vm1879, %v3211, %v3215
    %v3217 = vrot.slane %v3168, 3
    %v3218 = vsel %vm1879, %v3213, %v3217
    %v3219 = vrot.slane %v3154, 3
    %v3220 = vsel %vm1879, %v3215, %v3219
    %v3221 = vrot.slane %v3170, 3
    %v3222 = vsel %vm1879, %v3217, %v3221
    %v3223 = vrot.slane %v3156, 3
    %v3224 = vsel %vm1879, %v3219, %v3223
    %v3225 = vrot.slane %v3172, 3
    %v3226 = vsel %vm1879, %v3221, %v3225
    %v3227 = vrot.slane %v3158, 3
    %v3228 = vsel %vm1879, %v3223, %v3227
    %v3229 = vrot.slane %v3175, 3
    %v3230 = vsel %vm1879, %v3225, %v3229
    %v3231 = vrot.slane %v3160, 3
    %v3232 = vsel %vm1879, %v3227, %v3231
    %v3264 = vunpack.c.l.b16 %v3176
    %v3265 = vunpack.c.l.b16 %v3177
    %v3266 = vunpack.c.l.b16 %v3178
    %v3267 = vunpack.c.l.b16 %v3179
    %v3268 = vunpack.c.l.b16 %v3180
    %v3269 = vunpack.c.l.b16 %v3181
    %v3270 = vunpack.c.l.b16 %v3182
    %v3271 = vunpack.c.l.b16 %v3183
    %v3272 = vunpack.c.l.b16 %v3184
    %v3273 = vunpack.c.l.b16 %v3185
    %v3274 = vunpack.c.l.b16 %v3186
    %v3275 = vunpack.c.l.b16 %v3187
    %v3276 = vunpack.c.l.b16 %v3188
    %v3277 = vunpack.c.l.b16 %v3189
    %v3278 = vunpack.c.l.b16 %v3190
    %v3279 = vunpack.c.l.b16 %v3191
    %v3280 = vunpack.c.l.b16 %v3192
    %v3281 = vunpack.c.l.b16 %v3193
    %v3282 = vunpack.c.l.b16 %v3194
    %v3283 = vunpack.c.l.b16 %v3195
    %v3284 = vunpack.c.l.b16 %v3196
    %v3285 = vunpack.c.l.b16 %v3197
    %v3286 = vunpack.c.l.b16 %v3198
    %v3287 = vunpack.c.l.b16 %v3199
    %v3288 = vpack.c.b16 %v3265, %v3264
    %v3289 = vpack.c.b16 %v3267, %v3266
    %v3290 = vpack.c.b16 %v3269, %v3268
    %v3291 = vpack.c.b16 %v3271, %v3270
    %v3292 = vpack.c.b16 %v3273, %v3272
    %v3293 = vpack.c.b16 %v3275, %v3274
    %v3294 = vpack.c.b16 %v3277, %v3276
    %v3295 = vpack.c.b16 %v3279, %v3278
    %v3296 = vpack.c.b16 %v3281, %v3280
    %v3297 = vpack.c.b16 %v3283, %v3282
    %v3298 = vpack.c.b16 %v3285, %v3284
    %v3299 = vpack.c.b16 %v3287, %v3286
    %v3313 = vsel %vm1009, %v3212, 0
    %v3316 = vsel %vm1009, %v3216, 0
    %v3319 = vsel %vm1009, %v3220, 0
    %v3322 = vsel %vm1009, %v3224, 0
    %v3325 = vsel %vm1009, %v3228, 0
    %v3328 = vsel %vm1009, %v3232, 0
    %v3331 = vsel %vm1009, %v3231, 0
    %3333 = vmatprep.subr.bf16.mxu0 0
    %3334 = vmatpush1.bf16.msra.mxu0 %v3295
    %3335 = vmatprep.subr.bf16.mxu0 0
    %3336 = vmatpush1.bf16.msra.mxu0 %v3294
    %3337 = vmatprep.subr.bf16.mxu0 0
    %3338 = vmatpush1.bf16.msra.mxu0 %v3293
    %3339 = vmatprep.subr.bf16.mxu0 0
    %3340 = vmatpush1.bf16.msra.mxu0 %v3292
    %3341 = vmatprep.subr.bf16.mxu0 0
    %3342 = vmatpush1.bf16.msra.mxu0 %v3291
    %3343 = vmatprep.subr.bf16.mxu0 0
    %3344 = vmatpush1.bf16.msra.mxu0 %v3290
    %3345 = vmatprep.subr.bf16.mxu0 0
    %3346 = vmatpush1.bf16.msra.mxu0 %v3289
    %3347 = vmatprep.subr.bf16.mxu0 0
    %3348 = vmatpush1.bf16.msra.mxu0 %v3288
    %3349 = vmatprep.subr.bf16.mxu0 0
    %3350 = vmatpush2.bf16.msra.mxu0 0
    %3351 = vmatprep.subr.bf16.mxu0 0
    %3352 = vmatpush2.bf16.msra.mxu0 0
    %3353 = vmatprep.subr.bf16.mxu0 0
    %3354 = vmatpush2.bf16.msra.mxu0 0
    %3355 = vmatprep.subr.bf16.mxu0 0
    %3356 = vmatpush2.bf16.msra.mxu0 0
    %3357 = vmatprep.subr.bf16.mxu0 0
    %3358 = vmatpush2.bf16.msra.mxu0 %v3299
    %3359 = vmatprep.subr.bf16.mxu0 0
    %3360 = vmatpush2.bf16.msra.mxu0 %v3298
    %3361 = vmatprep.subr.bf16.mxu0 0
    %3362 = vmatpush2.bf16.msra.mxu0 %v3297
    %3363 = vmatprep.subr.bf16.mxu0 0
    %3364 = vmatpush2.bf16.msra.mxu0 %v3296
    %3365 = vmatprep.mubr.bf16.mxu0 %v3313
    %3366 = vmatmul.mubr.bf16.gmra.mxu0 %v3209
    %v3367 = vpop.f32.mrf.mxu0
    %v3368 = vadd.f32 0.0, %v3367
    %v3369 = vpop.f32.mrf.mxu0
    %v3370 = vpop.f32.mrf.mxu0
    %v3371 = vadd.f32 0.0, %v3370
    %v3372 = vpop.f32.mrf.mxu0
    %3373 = vmatprep.mubr.bf16.mxu0 %v3316
    %3374 = vmatmul.mubr.bf16.gmra.mxu0 %v3214
    %v3375 = vpop.f32.mrf.mxu0
    %v3376 = vadd.f32 0.0, %v3375
    %v3377 = vpop.f32.mrf.mxu0
    %v3378 = vpop.f32.mrf.mxu0
    %v3379 = vadd.f32 0.0, %v3378
    %v3380 = vpop.f32.mrf.mxu0
    %3381 = vmatprep.mubr.bf16.mxu0 %v3319
    %3382 = vmatmul.mubr.bf16.gmra.mxu0 %v3218
    %v3383 = vpop.f32.mrf.mxu0
    %v3384 = vadd.f32 0.0, %v3383
    %v3385 = vpop.f32.mrf.mxu0
    %v3386 = vpop.f32.mrf.mxu0
    %v3387 = vadd.f32 0.0, %v3386
    %v3388 = vpop.f32.mrf.mxu0
    %3389 = vmatprep.mubr.bf16.mxu0 %v3322
    %3390 = vmatmul.mubr.bf16.gmra.mxu0 %v3222
    %v3391 = vpop.f32.mrf.mxu0
    %v3392 = vadd.f32 0.0, %v3391
    %v3393 = vpop.f32.mrf.mxu0
    %v3394 = vpop.f32.mrf.mxu0
    %v3395 = vadd.f32 0.0, %v3394
    %v3396 = vpop.f32.mrf.mxu0
    %3397 = vmatprep.mubr.bf16.mxu0 %v3325
    %3398 = vmatmul.mubr.bf16.gmra.mxu0 %v3226
    %v3399 = vpop.f32.mrf.mxu0
    %v3400 = vadd.f32 0.0, %v3399
    %v3401 = vpop.f32.mrf.mxu0
    %v3402 = vpop.f32.mrf.mxu0
    %v3403 = vadd.f32 0.0, %v3402
    %v3404 = vpop.f32.mrf.mxu0
    %3405 = vmatprep.mubr.bf16.mxu0 %v3328
    %3406 = vmatmul.mubr.bf16.gmra.mxu0 %v3230
    %v3407 = vpop.f32.mrf.mxu0
    %v3408 = vadd.f32 0.0, %v3407
    %v3409 = vpop.f32.mrf.mxu0
    %v3410 = vpop.f32.mrf.mxu0
    %v3411 = vadd.f32 0.0, %v3410
    %v3412 = vpop.f32.mrf.mxu0
    %3413 = vmatprep.mubr.bf16.mxu0 %v3331
    %3414 = vmatmul.mubr.bf16.gmra.mxu0 %v3229
    %v3415 = vpop.f32.mrf.mxu0
    %v3416 = vadd.f32 0.0, %v3415
    %v3417 = vpop.f32.mrf.mxu0
    %v3418 = vpop.f32.mrf.mxu0
    %v3419 = vpop.f32.mrf.mxu0
    %3420 = vdwg.mxu0
    %v3421 = vadd.f32 %v2966, %v3368
    %v3422 = vadd.f32 %v2969, %v3371
    %v3423 = vadd.f32 %v2974, %v3376
    %v3424 = vadd.f32 %v2977, %v3379
    %v3425 = vadd.f32 %v2982, %v3384
    %v3426 = vadd.f32 %v2985, %v3387
    %v3427 = vadd.f32 %v2990, %v3392
    %v3428 = vadd.f32 %v2993, %v3395
    %v3429 = vadd.f32 %v2998, %v3400
    %v3430 = vadd.f32 %v3001, %v3403
    %v3431 = vadd.f32 %v3006, %v3408
    %v3432 = vadd.f32 %v3009, %v3411
    %v3433 = vadd.f32 %v3014, %v3416
    %v3434 = vld [vmem:[#allocation12] sm:$0x1]
    %v3436 = vlaneseq
    %v3437 = vshrl.u32 %v3436, 7
    %v3438 = vsub.s32 0, %v3437
    %v3439 = vrot.slane %v3434, %v3438
    %v3441 = vadd.f32 %v3421, %v3439
    %v3442 = vadd.f32 %v3422, %v3439
    %v3443 = vadd.f32 %v3423, %v3439
    %v3444 = vadd.f32 %v3424, %v3439
    %v3445 = vadd.f32 %v3425, %v3439
    %v3446 = vadd.f32 %v3426, %v3439
    %v3447 = vadd.f32 %v3427, %v3439
    %v3448 = vadd.f32 %v3428, %v3439
    %v3449 = vadd.f32 %v3429, %v3439
    %v3450 = vadd.f32 %v3430, %v3439
    %v3451 = vadd.f32 %v3431, %v3439
    %v3452 = vadd.f32 %v3432, %v3439
    %v3453 = vadd.f32 %v3433, %v3439
    %v3454 = vmax.f32 %v3441, 0.0
    %v3455 = vmax.f32 %v3442, 0.0
    %v3456 = vmax.f32 %v3443, 0.0
    %v3457 = vmax.f32 %v3444, 0.0
    %v3458 = vmax.f32 %v3445, 0.0
    %v3459 = vmax.f32 %v3446, 0.0
    %v3460 = vmax.f32 %v3447, 0.0
    %v3461 = vmax.f32 %v3448, 0.0
    %v3462 = vmax.f32 %v3449, 0.0
    %v3463 = vmax.f32 %v3450, 0.0
    %v3464 = vmax.f32 %v3451, 0.0
    %v3465 = vmax.f32 %v3452, 0.0
    %v3466 = vmax.f32 %v3453, 0.0
    %v3467 = vpack.c.bf16 %v3455, %v3454
    %v3468 = vpack.c.bf16 %v3457, %v3456
    %v3469 = vpack.c.bf16 %v3459, %v3458
    %v3470 = vpack.c.bf16 %v3461, %v3460
    %v3471 = vpack.c.bf16 %v3463, %v3462
    %v3472 = vpack.c.bf16 %v3465, %v3464
    %v3473 = vpack.c.bf16 %v3466, %v3466
    %v3481 = vunpack.c.l.b16 %v3467
    %v3482 = vunpack.c.h.b16 %v3467
    %v3483 = vunpack.c.l.b16 %v3468
    %v3484 = vunpack.c.h.b16 %v3468
    %v3485 = vunpack.c.l.b16 %v3469
    %v3486 = vunpack.c.h.b16 %v3469
    %v3487 = vunpack.c.l.b16 %v3470
    %v3488 = vunpack.c.h.b16 %v3470
    %v3489 = vunpack.c.l.b16 %v3471
    %v3490 = vunpack.c.h.b16 %v3471
    %v3491 = vunpack.c.l.b16 %v3472
    %v3492 = vunpack.c.h.b16 %v3472
    %v3493 = vunpack.c.l.b16 %v3473
    %v3494 = vpack.c.b16 %v3481, %v3481
    %v3495 = vpack.c.b16 %v3482, %v3482
    %v3496 = vpack.c.b16 %v3483, %v3483
    %v3497 = vpack.c.b16 %v3484, %v3484
    %v3498 = vpack.c.b16 %v3485, %v3485
    %v3499 = vpack.c.b16 %v3486, %v3486
    %v3500 = vpack.c.b16 %v3487, %v3487
    %v3501 = vpack.c.b16 %v3488, %v3488
    %v3502 = vpack.c.b16 %v3489, %v3489
    %v3503 = vpack.c.b16 %v3490, %v3490
    %v3504 = vpack.c.b16 %v3491, %v3491
    %v3505 = vpack.c.b16 %v3492, %v3492
    %v3506 = vpack.c.b16 %v3493, %v3493
    %3520 = vst [vmem:[#allocation3 + $0x34] sm:$0xf] %v3494
    %3521 = vst [vmem:[#allocation3 + $0x38] sm:$0xf] %v3495
    %3522 = vst [vmem:[#allocation3 + $0x3c] sm:$0xf] %v3496
    %3523 = vst [vmem:[#allocation3 + $0x40] sm:$0xf] %v3497
    %3524 = vst [vmem:[#allocation3 + $0x44] sm:$0xf] %v3498
    %3525 = vst [vmem:[#allocation3 + $0x48] sm:$0xf] %v3499
    %3526 = vst [vmem:[#allocation3 + $0x4c] sm:$0xf] %v3500
    %3527 = vst [vmem:[#allocation3 + $0x50] sm:$0xf] %v3501
    %3528 = vst [vmem:[#allocation3 + $0x54] sm:$0xf] %v3502
    %3529 = vst [vmem:[#allocation3 + $0x58] sm:$0xf] %v3503
    %3530 = vst [vmem:[#allocation3 + $0x5c] sm:$0xf] %v3504
    %3531 = vst [vmem:[#allocation3 + $0x60] sm:$0xf] %v3505
    %3532 = vst [vmem:[#allocation3 + $0x64] sm:$0xf] %v3506
    %v3533 = vld [vmem:[#allocation3] sm:$0xf]
    %v3534 = vld [vmem:[#allocation3 + $0x4] sm:$0xf]
    %v3535 = vld [vmem:[#allocation3 + $0x8] sm:$0xf]
    %v3536 = vld [vmem:[#allocation3 + $0xc] sm:$0xf]
    %v3537 = vld [vmem:[#allocation3 + $0x10] sm:$0xf]
    %v3538 = vld [vmem:[#allocation3 + $0x14] sm:$0xf]
    %v3539 = vld [vmem:[#allocation3 + $0x18] sm:$0xf]
    %v3540 = vld [vmem:[#allocation3 + $0x1c] sm:$0xf]
    %v3541 = vld [vmem:[#allocation3 + $0x20] sm:$0xf]
    %v3542 = vld [vmem:[#allocation3 + $0x24] sm:$0xf]
    %v3543 = vld [vmem:[#allocation3 + $0x28] sm:$0xf]
    %v3544 = vld [vmem:[#allocation3 + $0x2c] sm:$0xf]
    %v3545 = vld [vmem:[#allocation3 + $0x30] sm:$0xf]
    %v3546 = vld [vmem:[#allocation3 + $0x34] sm:$0x1]
    %v3547 = vld [vmem:[#allocation3] sm:$0xe]
    %v3561 = vunpack.c.l.b16 %v3533
    %v3562 = vunpack.c.l.b16 %v3534
    %v3563 = vunpack.c.l.b16 %v3535
    %v3564 = vunpack.c.l.b16 %v3536
    %v3565 = vunpack.c.l.b16 %v3537
    %v3566 = vunpack.c.l.b16 %v3538
    %v3567 = vunpack.c.l.b16 %v3539
    %v3568 = vunpack.c.l.b16 %v3540
    %v3569 = vunpack.c.l.b16 %v3541
    %v3570 = vunpack.c.l.b16 %v3542
    %v3571 = vunpack.c.l.b16 %v3543
    %v3572 = vunpack.c.l.b16 %v3544
    %v3573 = vunpack.c.l.b16 %v3545
    %v3574 = vpack.c.b16 %v3562, %v3561
    %v3575 = vpack.c.b16 %v3564, %v3563
    %v3576 = vpack.c.b16 %v3566, %v3565
    %v3577 = vpack.c.b16 %v3568, %v3567
    %v3578 = vpack.c.b16 %v3570, %v3569
    %v3579 = vpack.c.b16 %v3572, %v3571
    %v3580 = vpack.c.b16 %v3573, %v3573
    %v3589 = vunpack.c.l.b16 %v3546
    %v3590 = vpack.c.b16 %v3589, %v3573
    %v3592 = vshrl.u32 %v3574, 16
    %v3594 = vshll.u32 %v3574, 16
    %v3596 = vrot.slane %v3594, 1
    %v3597 = vor.u32 %v3592, %v3596
    %v3599 = vshll.u32 %v3575, 16
    %v3601 = vrot.slane %v3599, 1
    %v3602 = vsel %vm922, %v3597, %v3601
    %v3603 = vshrl.u32 %v3575, 16
    %v3605 = vor.u32 %v3603, %v3601
    %v3607 = vshll.u32 %v3576, 16
    %v3609 = vrot.slane %v3607, 1
    %v3610 = vsel %vm922, %v3605, %v3609
    %v3611 = vshrl.u32 %v3576, 16
    %v3613 = vor.u32 %v3611, %v3609
    %v3615 = vshll.u32 %v3577, 16
    %v3617 = vrot.slane %v3615, 1
    %v3618 = vsel %vm922, %v3613, %v3617
    %v3619 = vshrl.u32 %v3577, 16
    %v3621 = vor.u32 %v3619, %v3617
    %v3623 = vshll.u32 %v3578, 16
    %v3625 = vrot.slane %v3623, 1
    %v3626 = vsel %vm922, %v3621, %v3625
    %v3627 = vshrl.u32 %v3578, 16
    %v3629 = vor.u32 %v3627, %v3625
    %v3631 = vshll.u32 %v3579, 16
    %v3633 = vrot.slane %v3631, 1
    %v3634 = vsel %vm922, %v3629, %v3633
    %v3635 = vshrl.u32 %v3579, 16
    %v3637 = vor.u32 %v3635, %v3633
    %v3639 = vshll.u32 %v3590, 16
    %v3641 = vrot.slane %v3639, 1
    %v3642 = vsel %vm922, %v3637, %v3641
    %v3643 = vshrl.u32 %v3590, 16
    %v3645 = vor.u32 %v3643, %v3641
    %v3654 = vunpack.c.l.b16 %v3547
    %v3655 = vpack.c.b16 %v3562, %v3654
    %v3656 = vrot.slane %v3655, 1
    %v3657 = vrot.slane %v3575, 1
    %v3658 = vsel %vm995, %v3656, %v3657
    %v3659 = vrot.slane %v3576, 1
    %v3660 = vsel %vm995, %v3657, %v3659
    %v3661 = vrot.slane %v3577, 1
    %v3662 = vsel %vm995, %v3659, %v3661
    %v3663 = vrot.slane %v3578, 1
    %v3664 = vsel %vm995, %v3661, %v3663
    %v3665 = vrot.slane %v3579, 1
    %v3666 = vsel %vm995, %v3663, %v3665
    %v3667 = vrot.slane %v3590, 1
    %v3668 = vsel %vm995, %v3665, %v3667
    %v3676 = vld [vmem:[#allocation13] sm:$0xf]
    %v3677 = vld [vmem:[#allocation13 + $0x4] sm:$0xf]
    %v3678 = vld [vmem:[#allocation13 + $0x8] sm:$0xf]
    %v3679 = vld [vmem:[#allocation13 + $0xc] sm:$0xf]
    %v3680 = vld [vmem:[#allocation13 + $0x10] sm:$0xf]
    %v3681 = vld [vmem:[#allocation13 + $0x14] sm:$0xf]
    %v3682 = vld [vmem:[#allocation13 + $0x18] sm:$0xf]
    %v3683 = vld [vmem:[#allocation13 + $0x1c] sm:$0xf]
    %v3684 = vld [vmem:[#allocation13 + $0x20] sm:$0xf]
    %v3685 = vld [vmem:[#allocation13 + $0x24] sm:$0xf]
    %v3686 = vld [vmem:[#allocation13 + $0x28] sm:$0xf]
    %v3687 = vld [vmem:[#allocation13 + $0x2c] sm:$0xf]
    %v3688 = vld [vmem:[#allocation13 + $0x30] sm:$0xf]
    %v3689 = vld [vmem:[#allocation13 + $0x34] sm:$0xf]
    %v3690 = vld [vmem:[#allocation13 + $0x38] sm:$0xf]
    %v3691 = vld [vmem:[#allocation13 + $0x3c] sm:$0xf]
    %v3692 = vld [vmem:[#allocation13 + $0x40] sm:$0xf]
    %v3693 = vld [vmem:[#allocation13 + $0x44] sm:$0xf]
    %v3694 = vld [vmem:[#allocation13 + $0x48] sm:$0xf]
    %v3695 = vld [vmem:[#allocation13 + $0x4c] sm:$0xf]
    %v3696 = vld [vmem:[#allocation13 + $0x50] sm:$0xf]
    %v3697 = vld [vmem:[#allocation13 + $0x54] sm:$0xf]
    %v3698 = vld [vmem:[#allocation13 + $0x58] sm:$0xf]
    %v3699 = vld [vmem:[#allocation13 + $0x5c] sm:$0xf]
    %v3700 = vld [vmem:[#allocation13 + $0x60] sm:$0xf]
    %v3701 = vld [vmem:[#allocation13 + $0x64] sm:$0xf]
    %v3702 = vld [vmem:[#allocation13 + $0x68] sm:$0xf]
    %v3703 = vld [vmem:[#allocation13 + $0x6c] sm:$0xf]
    %v3704 = vld [vmem:[#allocation13 + $0x70] sm:$0xf]
    %v3705 = vld [vmem:[#allocation13 + $0x74] sm:$0xf]
    %v3706 = vld [vmem:[#allocation13 + $0x78] sm:$0xf]
    %v3707 = vld [vmem:[#allocation13 + $0x7c] sm:$0xf]
    %v3708 = vld [vmem:[#allocation13 + $0x80] sm:$0xf]
    %v3709 = vld [vmem:[#allocation13 + $0x84] sm:$0xf]
    %v3710 = vld [vmem:[#allocation13 + $0x88] sm:$0xf]
    %v3711 = vld [vmem:[#allocation13 + $0x8c] sm:$0xf]
    %v3712 = vld [vmem:[#allocation13 + $0x90] sm:$0xf]
    %v3713 = vld [vmem:[#allocation13 + $0x94] sm:$0xf]
    %v3714 = vld [vmem:[#allocation13 + $0x98] sm:$0xf]
    %v3715 = vld [vmem:[#allocation13 + $0x9c] sm:$0xf]
    %v3716 = vld [vmem:[#allocation13 + $0xa0] sm:$0xf]
    %v3717 = vld [vmem:[#allocation13 + $0xa4] sm:$0xf]
    %v3718 = vld [vmem:[#allocation13 + $0xa8] sm:$0xf]
    %v3719 = vld [vmem:[#allocation13 + $0xac] sm:$0xf]
    %v3720 = vld [vmem:[#allocation13 + $0xb0] sm:$0xf]
    %v3721 = vld [vmem:[#allocation13 + $0xb4] sm:$0xf]
    %v3722 = vld [vmem:[#allocation13 + $0xb8] sm:$0xf]
    %v3723 = vld [vmem:[#allocation13 + $0xbc] sm:$0xf]
    %v3724 = vld [vmem:[#allocation3 + $0x4] sm:$0xe]
    %v3725 = vld [vmem:[#allocation3 + $0x34] sm:$0xf]
    %v3726 = vld [vmem:[#allocation3 + $0x38] sm:$0x3]
    %v3727 = vld [vmem:[#allocation3 + $0x4] sm:$0xc]
    %v3728 = vld [vmem:[#allocation3 + $0x38] sm:$0x7]
    %v3732 = vunpack.c.l.b16 %v3724
    %v3733 = vunpack.c.l.b16 %v3725
    %v3734 = vunpack.c.l.b16 %v3726
    %v3735 = vpack.c.b16 %v3563, %v3732
    %v3736 = vpack.c.b16 %v3565, %v3564
    %v3737 = vpack.c.b16 %v3567, %v3566
    %v3738 = vpack.c.b16 %v3569, %v3568
    %v3739 = vpack.c.b16 %v3571, %v3570
    %v3740 = vpack.c.b16 %v3573, %v3572
    %v3741 = vpack.c.b16 %v3734, %v3733
    %v3743 = vunpack.c.l.b16 %v3727
    %v3744 = vpack.c.b16 %v3563, %v3743
    %v3746 = vshrl.u32 %v3744, 16
    %v3748 = vshll.u32 %v3744, 16
    %v3750 = vrot.slane %v3748, 1
    %v3751 = vor.u32 %v3746, %v3750
    %v3753 = vshll.u32 %v3736, 16
    %v3755 = vrot.slane %v3753, 1
    %v3756 = vsel %vm922, %v3751, %v3755
    %v3757 = vshrl.u32 %v3736, 16
    %v3759 = vor.u32 %v3757, %v3755
    %v3761 = vshll.u32 %v3737, 16
    %v3763 = vrot.slane %v3761, 1
    %v3764 = vsel %vm922, %v3759, %v3763
    %v3765 = vshrl.u32 %v3737, 16
    %v3767 = vor.u32 %v3765, %v3763
    %v3769 = vshll.u32 %v3738, 16
    %v3771 = vrot.slane %v3769, 1
    %v3772 = vsel %vm922, %v3767, %v3771
    %v3773 = vshrl.u32 %v3738, 16
    %v3775 = vor.u32 %v3773, %v3771
    %v3777 = vshll.u32 %v3739, 16
    %v3779 = vrot.slane %v3777, 1
    %v3780 = vsel %vm922, %v3775, %v3779
    %v3781 = vshrl.u32 %v3739, 16
    %v3783 = vor.u32 %v3781, %v3779
    %v3785 = vshll.u32 %v3740, 16
    %v3787 = vrot.slane %v3785, 1
    %v3788 = vsel %vm922, %v3783, %v3787
    %v3789 = vshrl.u32 %v3740, 16
    %v3791 = vor.u32 %v3789, %v3787
    %v3793 = vshll.u32 %v3741, 16
    %v3795 = vrot.slane %v3793, 1
    %v3796 = vsel %vm922, %v3791, %v3795
    %v3797 = vshrl.u32 %v3741, 16
    %v3799 = vor.u32 %v3797, %v3795
    %v3801 = vunpack.c.l.b16 %v3728
    %v3802 = vpack.c.b16 %v3801, %v3733
    %v3803 = vrot.slane %v3744, 1
    %v3804 = vrot.slane %v3736, 1
    %v3805 = vsel %vm995, %v3803, %v3804
    %v3806 = vrot.slane %v3737, 1
    %v3807 = vsel %vm995, %v3804, %v3806
    %v3808 = vrot.slane %v3738, 1
    %v3809 = vsel %vm995, %v3806, %v3808
    %v3810 = vrot.slane %v3739, 1
    %v3811 = vsel %vm995, %v3808, %v3810
    %v3812 = vrot.slane %v3740, 1
    %v3813 = vsel %vm995, %v3810, %v3812
    %v3814 = vrot.slane %v3802, 1
    %v3815 = vsel %vm995, %v3812, %v3814
    %s3816 = scalar_lea.vmem [#allocation13], 192
    %v3817 = vld [vmem:[%s3816] sm:$0xf]
    %v3818 = vld [vmem:[%s3816 + $0x4] sm:$0xf]
    %v3819 = vld [vmem:[%s3816 + $0x8] sm:$0xf]
    %v3820 = vld [vmem:[%s3816 + $0xc] sm:$0xf]
    %v3821 = vld [vmem:[%s3816 + $0x10] sm:$0xf]
    %v3822 = vld [vmem:[%s3816 + $0x14] sm:$0xf]
    %v3823 = vld [vmem:[%s3816 + $0x18] sm:$0xf]
    %v3824 = vld [vmem:[%s3816 + $0x1c] sm:$0xf]
    %v3825 = vld [vmem:[%s3816 + $0x20] sm:$0xf]
    %v3826 = vld [vmem:[%s3816 + $0x24] sm:$0xf]
    %v3827 = vld [vmem:[%s3816 + $0x28] sm:$0xf]
    %v3828 = vld [vmem:[%s3816 + $0x2c] sm:$0xf]
    %v3829 = vld [vmem:[%s3816 + $0x30] sm:$0xf]
    %v3830 = vld [vmem:[%s3816 + $0x34] sm:$0xf]
    %v3831 = vld [vmem:[%s3816 + $0x38] sm:$0xf]
    %v3832 = vld [vmem:[%s3816 + $0x3c] sm:$0xf]
    %v3833 = vld [vmem:[%s3816 + $0x40] sm:$0xf]
    %v3834 = vld [vmem:[%s3816 + $0x44] sm:$0xf]
    %v3835 = vld [vmem:[%s3816 + $0x48] sm:$0xf]
    %v3836 = vld [vmem:[%s3816 + $0x4c] sm:$0xf]
    %v3837 = vld [vmem:[%s3816 + $0x50] sm:$0xf]
    %v3838 = vld [vmem:[%s3816 + $0x54] sm:$0xf]
    %v3839 = vld [vmem:[%s3816 + $0x58] sm:$0xf]
    %v3840 = vld [vmem:[%s3816 + $0x5c] sm:$0xf]
    %v3841 = vld [vmem:[%s3816 + $0x60] sm:$0xf]
    %v3842 = vld [vmem:[%s3816 + $0x64] sm:$0xf]
    %v3843 = vld [vmem:[%s3816 + $0x68] sm:$0xf]
    %v3844 = vld [vmem:[%s3816 + $0x6c] sm:$0xf]
    %v3845 = vld [vmem:[%s3816 + $0x70] sm:$0xf]
    %v3846 = vld [vmem:[%s3816 + $0x74] sm:$0xf]
    %v3847 = vld [vmem:[%s3816 + $0x78] sm:$0xf]
    %v3848 = vld [vmem:[%s3816 + $0x7c] sm:$0xf]
    %v3849 = vld [vmem:[%s3816 + $0x80] sm:$0xf]
    %v3850 = vld [vmem:[%s3816 + $0x84] sm:$0xf]
    %v3851 = vld [vmem:[%s3816 + $0x88] sm:$0xf]
    %v3852 = vld [vmem:[%s3816 + $0x8c] sm:$0xf]
    %v3853 = vld [vmem:[%s3816 + $0x90] sm:$0xf]
    %v3854 = vld [vmem:[%s3816 + $0x94] sm:$0xf]
    %v3855 = vld [vmem:[%s3816 + $0x98] sm:$0xf]
    %v3856 = vld [vmem:[%s3816 + $0x9c] sm:$0xf]
    %v3857 = vld [vmem:[%s3816 + $0xa0] sm:$0xf]
    %v3858 = vld [vmem:[%s3816 + $0xa4] sm:$0xf]
    %v3859 = vld [vmem:[%s3816 + $0xa8] sm:$0xf]
    %v3860 = vld [vmem:[%s3816 + $0xac] sm:$0xf]
    %v3861 = vld [vmem:[%s3816 + $0xb0] sm:$0xf]
    %v3862 = vld [vmem:[%s3816 + $0xb4] sm:$0xf]
    %v3863 = vld [vmem:[%s3816 + $0xb8] sm:$0xf]
    %v3864 = vld [vmem:[%s3816 + $0xbc] sm:$0xf]
    %v3866 = vshrl.u32 %v3735, 16
    %v3868 = vrot.slane %v3866, 1
    %v3869 = vshll.u32 %v3735, 16
    %v3871 = vrot.slane %v3869, 2
    %v3872 = vor.u32 %v3868, %v3871
    %v3873 = vrot.slane %v3757, 1
    %v3874 = vrot.slane %v3753, 2
    %v3875 = vor.u32 %v3873, %v3874
    %v3876 = vsel %vm1202, %v3872, %v3875
    %v3878 = vshrl.u32 %v3756, 16
    %v3880 = vrot.slane %v3878, 1
    %v3881 = vshll.u32 %v3756, 16
    %v3883 = vrot.slane %v3881, 2
    %v3884 = vor.u32 %v3880, %v3883
    %v3886 = vshrl.u32 %v3764, 16
    %v3888 = vrot.slane %v3886, 1
    %v3889 = vshll.u32 %v3764, 16
    %v3891 = vrot.slane %v3889, 2
    %v3892 = vor.u32 %v3888, %v3891
    %v3893 = vsel %vm1202, %v3884, %v3892
    %v3895 = vshrl.u32 %v3805, 16
    %v3897 = vrot.slane %v3895, 1
    %v3898 = vshll.u32 %v3805, 16
    %v3900 = vrot.slane %v3898, 2
    %v3901 = vor.u32 %v3897, %v3900
    %v3903 = vshrl.u32 %v3807, 16
    %v3905 = vrot.slane %v3903, 1
    %v3906 = vshll.u32 %v3807, 16
    %v3908 = vrot.slane %v3906, 2
    %v3909 = vor.u32 %v3905, %v3908
    %v3910 = vsel %vm1202, %v3901, %v3909
    %v3911 = vrot.slane %v3765, 1
    %v3912 = vrot.slane %v3761, 2
    %v3913 = vor.u32 %v3911, %v3912
    %v3914 = vsel %vm1202, %v3875, %v3913
    %v3916 = vshrl.u32 %v3772, 16
    %v3918 = vrot.slane %v3916, 1
    %v3919 = vshll.u32 %v3772, 16
    %v3921 = vrot.slane %v3919, 2
    %v3922 = vor.u32 %v3918, %v3921
    %v3923 = vsel %vm1202, %v3892, %v3922
    %v3925 = vshrl.u32 %v3809, 16
    %v3927 = vrot.slane %v3925, 1
    %v3928 = vshll.u32 %v3809, 16
    %v3930 = vrot.slane %v3928, 2
    %v3931 = vor.u32 %v3927, %v3930
    %v3932 = vsel %vm1202, %v3909, %v3931
    %v3933 = vrot.slane %v3773, 1
    %v3934 = vrot.slane %v3769, 2
    %v3935 = vor.u32 %v3933, %v3934
    %v3936 = vsel %vm1202, %v3913, %v3935
    %v3938 = vshrl.u32 %v3780, 16
    %v3940 = vrot.slane %v3938, 1
    %v3941 = vshll.u32 %v3780, 16
    %v3943 = vrot.slane %v3941, 2
    %v3944 = vor.u32 %v3940, %v3943
    %v3945 = vsel %vm1202, %v3922, %v3944
    %v3947 = vshrl.u32 %v3811, 16
    %v3949 = vrot.slane %v3947, 1
    %v3950 = vshll.u32 %v3811, 16
    %v3952 = vrot.slane %v3950, 2
    %v3953 = vor.u32 %v3949, %v3952
    %v3954 = vsel %vm1202, %v3931, %v3953
    %v3955 = vrot.slane %v3781, 1
    %v3956 = vrot.slane %v3777, 2
    %v3957 = vor.u32 %v3955, %v3956
    %v3958 = vsel %vm1202, %v3935, %v3957
    %v3960 = vshrl.u32 %v3788, 16
    %v3962 = vrot.slane %v3960, 1
    %v3963 = vshll.u32 %v3788, 16
    %v3965 = vrot.slane %v3963, 2
    %v3966 = vor.u32 %v3962, %v3965
    %v3967 = vsel %vm1202, %v3944, %v3966
    %v3969 = vshrl.u32 %v3813, 16
    %v3971 = vrot.slane %v3969, 1
    %v3972 = vshll.u32 %v3813, 16
    %v3974 = vrot.slane %v3972, 2
    %v3975 = vor.u32 %v3971, %v3974
    %v3976 = vsel %vm1202, %v3953, %v3975
    %v3977 = vrot.slane %v3789, 1
    %v3978 = vrot.slane %v3785, 2
    %v3979 = vor.u32 %v3977, %v3978
    %v3980 = vsel %vm1202, %v3957, %v3979
    %v3982 = vshrl.u32 %v3796, 16
    %v3984 = vrot.slane %v3982, 1
    %v3985 = vshll.u32 %v3796, 16
    %v3987 = vrot.slane %v3985, 2
    %v3988 = vor.u32 %v3984, %v3987
    %v3989 = vsel %vm1202, %v3966, %v3988
    %v3991 = vshrl.u32 %v3815, 16
    %v3993 = vrot.slane %v3991, 1
    %v3994 = vshll.u32 %v3815, 16
    %v3996 = vrot.slane %v3994, 2
    %v3997 = vor.u32 %v3993, %v3996
    %v3998 = vsel %vm1202, %v3975, %v3997
    %v3999 = vrot.slane %v3797, 1
    %v4000 = vrot.slane %v3793, 2
    %v4001 = vor.u32 %v3999, %v4000
    %v4002 = vsel %vm1202, %v3979, %v4001
    %v4004 = vshrl.u32 %v3799, 16
    %v4006 = vrot.slane %v4004, 1
    %v4007 = vshll.u32 %v3799, 16
    %v4009 = vrot.slane %v4007, 2
    %v4010 = vor.u32 %v4006, %v4009
    %v4011 = vsel %vm1202, %v3988, %v4010
    %v4013 = vshrl.u32 %v3814, 16
    %v4015 = vrot.slane %v4013, 1
    %v4016 = vshll.u32 %v3814, 16
    %v4018 = vrot.slane %v4016, 2
    %v4019 = vor.u32 %v4015, %v4018
    %v4020 = vsel %vm1202, %v3997, %v4019
    %v4090 = vunpack.c.l.b16 %v3817
    %v4091 = vunpack.c.l.b16 %v3818
    %v4092 = vunpack.c.l.b16 %v3819
    %v4093 = vunpack.c.l.b16 %v3820
    %v4094 = vunpack.c.l.b16 %v3821
    %v4095 = vunpack.c.l.b16 %v3822
    %v4096 = vunpack.c.l.b16 %v3823
    %v4097 = vunpack.c.l.b16 %v3824
    %v4098 = vunpack.c.l.b16 %v3825
    %v4099 = vunpack.c.l.b16 %v3826
    %v4100 = vunpack.c.l.b16 %v3827
    %v4101 = vunpack.c.l.b16 %v3828
    %v4102 = vunpack.c.l.b16 %v3829
    %v4103 = vunpack.c.l.b16 %v3830
    %v4104 = vunpack.c.l.b16 %v3831
    %v4105 = vunpack.c.l.b16 %v3832
    %v4106 = vunpack.c.l.b16 %v3833
    %v4107 = vunpack.c.l.b16 %v3834
    %v4108 = vunpack.c.l.b16 %v3835
    %v4109 = vunpack.c.l.b16 %v3836
    %v4110 = vunpack.c.l.b16 %v3837
    %v4111 = vunpack.c.l.b16 %v3838
    %v4112 = vunpack.c.l.b16 %v3839
    %v4113 = vunpack.c.l.b16 %v3840
    %v4114 = vunpack.c.l.b16 %v3841
    %v4115 = vunpack.c.l.b16 %v3842
    %v4116 = vunpack.c.l.b16 %v3843
    %v4117 = vunpack.c.l.b16 %v3844
    %v4118 = vunpack.c.l.b16 %v3845
    %v4119 = vunpack.c.l.b16 %v3846
    %v4120 = vunpack.c.l.b16 %v3847
    %v4121 = vunpack.c.l.b16 %v3848
    %v4122 = vunpack.c.l.b16 %v3849
    %v4123 = vunpack.c.l.b16 %v3850
    %v4124 = vunpack.c.l.b16 %v3851
    %v4125 = vunpack.c.l.b16 %v3852
    %v4126 = vunpack.c.l.b16 %v3853
    %v4127 = vunpack.c.l.b16 %v3854
    %v4128 = vunpack.c.l.b16 %v3855
    %v4129 = vunpack.c.l.b16 %v3856
    %v4130 = vunpack.c.l.b16 %v3857
    %v4131 = vunpack.c.l.b16 %v3858
    %v4132 = vunpack.c.l.b16 %v3859
    %v4133 = vunpack.c.l.b16 %v3860
    %v4134 = vunpack.c.l.b16 %v3861
    %v4135 = vunpack.c.l.b16 %v3862
    %v4136 = vunpack.c.l.b16 %v3863
    %v4137 = vunpack.c.l.b16 %v3864
    %v4138 = vpack.c.b16 %v4091, %v4090
    %v4139 = vpack.c.b16 %v4093, %v4092
    %v4140 = vpack.c.b16 %v4095, %v4094
    %v4141 = vpack.c.b16 %v4097, %v4096
    %v4142 = vpack.c.b16 %v4099, %v4098
    %v4143 = vpack.c.b16 %v4101, %v4100
    %v4144 = vpack.c.b16 %v4103, %v4102
    %v4145 = vpack.c.b16 %v4105, %v4104
    %v4146 = vpack.c.b16 %v4107, %v4106
    %v4147 = vpack.c.b16 %v4109, %v4108
    %v4148 = vpack.c.b16 %v4111, %v4110
    %v4149 = vpack.c.b16 %v4113, %v4112
    %v4150 = vpack.c.b16 %v4115, %v4114
    %v4151 = vpack.c.b16 %v4117, %v4116
    %v4152 = vpack.c.b16 %v4119, %v4118
    %v4153 = vpack.c.b16 %v4121, %v4120
    %v4154 = vpack.c.b16 %v4123, %v4122
    %v4155 = vpack.c.b16 %v4125, %v4124
    %v4156 = vpack.c.b16 %v4127, %v4126
    %v4157 = vpack.c.b16 %v4129, %v4128
    %v4158 = vpack.c.b16 %v4131, %v4130
    %v4159 = vpack.c.b16 %v4133, %v4132
    %v4160 = vpack.c.b16 %v4135, %v4134
    %v4161 = vpack.c.b16 %v4137, %v4136
    %4186 = vmatprep.subr.bf16.mxu0 0
    %4187 = vmatpush1.bf16.msra.mxu0 %v4145
    %4188 = vmatprep.subr.bf16.mxu0 0
    %4189 = vmatpush1.bf16.msra.mxu0 %v4144
    %4190 = vmatprep.subr.bf16.mxu0 0
    %4191 = vmatpush1.bf16.msra.mxu0 %v4143
    %4192 = vmatprep.subr.bf16.mxu0 0
    %4193 = vmatpush1.bf16.msra.mxu0 %v4142
    %4194 = vmatprep.subr.bf16.mxu0 0
    %4195 = vmatpush1.bf16.msra.mxu0 %v4141
    %4196 = vmatprep.subr.bf16.mxu0 0
    %4197 = vmatpush1.bf16.msra.mxu0 %v4140
    %4198 = vmatprep.subr.bf16.mxu0 0
    %4199 = vmatpush1.bf16.msra.mxu0 %v4139
    %4200 = vmatprep.subr.bf16.mxu0 0
    %4201 = vmatpush1.bf16.msra.mxu0 %v4138
    %4202 = vmatprep.subr.bf16.mxu0 0
    %4203 = vmatpush2.bf16.msra.mxu0 %v4153
    %4204 = vmatprep.subr.bf16.mxu0 0
    %4205 = vmatpush2.bf16.msra.mxu0 %v4152
    %4206 = vmatprep.subr.bf16.mxu0 0
    %4207 = vmatpush2.bf16.msra.mxu0 %v4151
    %4208 = vmatprep.subr.bf16.mxu0 0
    %4209 = vmatpush2.bf16.msra.mxu0 %v4150
    %4210 = vmatprep.subr.bf16.mxu0 0
    %4211 = vmatpush2.bf16.msra.mxu0 %v4149
    %4212 = vmatprep.subr.bf16.mxu0 0
    %4213 = vmatpush2.bf16.msra.mxu0 %v4148
    %4214 = vmatprep.subr.bf16.mxu0 0
    %4215 = vmatpush2.bf16.msra.mxu0 %v4147
    %4216 = vmatprep.subr.bf16.mxu0 0
    %4217 = vmatpush2.bf16.msra.mxu0 %v4146
    %4218 = vmatprep.mubr.bf16.mxu0 %v3893
    %4219 = vmatmul.mubr.bf16.gmra.mxu0 %v3876
    %v4220 = vpop.f32.mrf.mxu0
    %v4221 = vadd.f32 0.0, %v4220
    %v4222 = vpop.f32.mrf.mxu0
    %v4223 = vpop.f32.mrf.mxu0
    %v4224 = vadd.f32 0.0, %v4223
    %v4225 = vpop.f32.mrf.mxu0
    %4226 = vmatprep.mubr.bf16.mxu0 %v3923
    %4227 = vmatmul.mubr.bf16.gmra.mxu0 %v3914
    %v4228 = vpop.f32.mrf.mxu0
    %v4229 = vadd.f32 0.0, %v4228
    %v4230 = vpop.f32.mrf.mxu0
    %v4231 = vpop.f32.mrf.mxu0
    %v4232 = vadd.f32 0.0, %v4231
    %v4233 = vpop.f32.mrf.mxu0
    %4234 = vmatprep.mubr.bf16.mxu0 %v3945
    %4235 = vmatmul.mubr.bf16.gmra.mxu0 %v3936
    %v4236 = vpop.f32.mrf.mxu0
    %v4237 = vadd.f32 0.0, %v4236
    %v4238 = vpop.f32.mrf.mxu0
    %v4239 = vpop.f32.mrf.mxu0
    %v4240 = vadd.f32 0.0, %v4239
    %v4241 = vpop.f32.mrf.mxu0
    %4242 = vmatprep.mubr.bf16.mxu0 %v3967
    %4243 = vmatmul.mubr.bf16.gmra.mxu0 %v3958
    %v4244 = vpop.f32.mrf.mxu0
    %v4245 = vadd.f32 0.0, %v4244
    %v4246 = vpop.f32.mrf.mxu0
    %v4247 = vpop.f32.mrf.mxu0
    %v4248 = vadd.f32 0.0, %v4247
    %v4249 = vpop.f32.mrf.mxu0
    %4250 = vmatprep.mubr.bf16.mxu0 %v3989
    %4251 = vmatmul.mubr.bf16.gmra.mxu0 %v3980
    %v4252 = vpop.f32.mrf.mxu0
    %v4253 = vadd.f32 0.0, %v4252
    %v4254 = vpop.f32.mrf.mxu0
    %v4255 = vpop.f32.mrf.mxu0
    %v4256 = vadd.f32 0.0, %v4255
    %v4257 = vpop.f32.mrf.mxu0
    %4258 = vmatprep.mubr.bf16.mxu0 %v4011
    %4259 = vmatmul.mubr.bf16.gmra.mxu0 %v4002
    %v4260 = vpop.f32.mrf.mxu0
    %v4261 = vadd.f32 0.0, %v4260
    %v4262 = vpop.f32.mrf.mxu0
    %v4263 = vpop.f32.mrf.mxu0
    %v4264 = vadd.f32 0.0, %v4263
    %v4265 = vpop.f32.mrf.mxu0
    %4266 = vmatprep.mubr.bf16.mxu0 %v4010
    %4267 = vmatmul.mubr.bf16.gmra.mxu0 %v4001
    %v4268 = vpop.f32.mrf.mxu0
    %v4269 = vadd.f32 0.0, %v4268
    %v4270 = vpop.f32.mrf.mxu0
    %v4271 = vpop.f32.mrf.mxu0
    %v4272 = vpop.f32.mrf.mxu0
    %4273 = vdwg.mxu0
    %4274 = vmatprep.subr.bf16.mxu0 0
    %4275 = vmatpush1.bf16.msra.mxu0 %v4161
    %4276 = vmatprep.subr.bf16.mxu0 0
    %4277 = vmatpush1.bf16.msra.mxu0 %v4160
    %4278 = vmatprep.subr.bf16.mxu0 0
    %4279 = vmatpush1.bf16.msra.mxu0 %v4159
    %4280 = vmatprep.subr.bf16.mxu0 0
    %4281 = vmatpush1.bf16.msra.mxu0 %v4158
    %4282 = vmatprep.subr.bf16.mxu0 0
    %4283 = vmatpush1.bf16.msra.mxu0 %v4157
    %4284 = vmatprep.subr.bf16.mxu0 0
    %4285 = vmatpush1.bf16.msra.mxu0 %v4156
    %4286 = vmatprep.subr.bf16.mxu0 0
    %4287 = vmatpush1.bf16.msra.mxu0 %v4155
    %4288 = vmatprep.subr.bf16.mxu0 0
    %4289 = vmatpush1.bf16.msra.mxu0 %v4154
    %4290 = vmatprep.subr.bf16.mxu0 0
    %4291 = vmatpush2.bf16.msra.mxu0 0
    %4292 = vmatprep.subr.bf16.mxu0 0
    %4293 = vmatpush2.bf16.msra.mxu0 0
    %4294 = vmatprep.subr.bf16.mxu0 0
    %4295 = vmatpush2.bf16.msra.mxu0 0
    %4296 = vmatprep.subr.bf16.mxu0 0
    %4297 = vmatpush2.bf16.msra.mxu0 0
    %4298 = vmatprep.subr.bf16.mxu0 0
    %4299 = vmatpush2.bf16.msra.mxu0 0
    %4300 = vmatprep.subr.bf16.mxu0 0
    %4301 = vmatpush2.bf16.msra.mxu0 0
    %4302 = vmatprep.subr.bf16.mxu0 0
    %4303 = vmatpush2.bf16.msra.mxu0 0
    %4304 = vmatprep.subr.bf16.mxu0 0
    %4305 = vmatpush2.bf16.msra.mxu0 0
    %4306 = vmatprep.mubr.bf16.mxu0 0
    %4307 = vmatmul.mubr.bf16.gmra.mxu0 %v3910
    %v4308 = vpop.f32.mrf.mxu0
    %v4309 = vadd.f32 %v4221, %v4308
    %v4310 = vpop.f32.mrf.mxu0
    %v4311 = vpop.f32.mrf.mxu0
    %v4312 = vadd.f32 %v4224, %v4311
    %v4313 = vpop.f32.mrf.mxu0
    %4314 = vmatprep.mubr.bf16.mxu0 0
    %4315 = vmatmul.mubr.bf16.gmra.mxu0 %v3932
    %v4316 = vpop.f32.mrf.mxu0
    %v4317 = vadd.f32 %v4229, %v4316
    %v4318 = vpop.f32.mrf.mxu0
    %v4319 = vpop.f32.mrf.mxu0
    %v4320 = vadd.f32 %v4232, %v4319
    %v4321 = vpop.f32.mrf.mxu0
    %4322 = vmatprep.mubr.bf16.mxu0 0
    %4323 = vmatmul.mubr.bf16.gmra.mxu0 %v3954
    %v4324 = vpop.f32.mrf.mxu0
    %v4325 = vadd.f32 %v4237, %v4324
    %v4326 = vpop.f32.mrf.mxu0
    %v4327 = vpop.f32.mrf.mxu0
    %v4328 = vadd.f32 %v4240, %v4327
    %v4329 = vpop.f32.mrf.mxu0
    %4330 = vmatprep.mubr.bf16.mxu0 0
    %4331 = vmatmul.mubr.bf16.gmra.mxu0 %v3976
    %v4332 = vpop.f32.mrf.mxu0
    %v4333 = vadd.f32 %v4245, %v4332
    %v4334 = vpop.f32.mrf.mxu0
    %v4335 = vpop.f32.mrf.mxu0
    %v4336 = vadd.f32 %v4248, %v4335
    %v4337 = vpop.f32.mrf.mxu0
    %4338 = vmatprep.mubr.bf16.mxu0 0
    %4339 = vmatmul.mubr.bf16.gmra.mxu0 %v3998
    %v4340 = vpop.f32.mrf.mxu0
    %v4341 = vadd.f32 %v4253, %v4340
    %v4342 = vpop.f32.mrf.mxu0
    %v4343 = vpop.f32.mrf.mxu0
    %v4344 = vadd.f32 %v4256, %v4343
    %v4345 = vpop.f32.mrf.mxu0
    %4346 = vmatprep.mubr.bf16.mxu0 0
    %4347 = vmatmul.mubr.bf16.gmra.mxu0 %v4020
    %v4348 = vpop.f32.mrf.mxu0
    %v4349 = vadd.f32 %v4261, %v4348
    %v4350 = vpop.f32.mrf.mxu0
    %v4351 = vpop.f32.mrf.mxu0
    %v4352 = vadd.f32 %v4264, %v4351
    %v4353 = vpop.f32.mrf.mxu0
    %4354 = vmatprep.mubr.bf16.mxu0 0
    %4355 = vmatmul.mubr.bf16.gmra.mxu0 %v4019
    %v4356 = vpop.f32.mrf.mxu0
    %v4357 = vadd.f32 %v4269, %v4356
    %v4358 = vpop.f32.mrf.mxu0
    %v4359 = vpop.f32.mrf.mxu0
    %v4360 = vpop.f32.mrf.mxu0
    %4361 = vdwg.mxu0
    %v4410 = vunpack.c.l.b16 %v3676
    %v4411 = vunpack.c.l.b16 %v3677
    %v4412 = vunpack.c.l.b16 %v3678
    %v4413 = vunpack.c.l.b16 %v3679
    %v4414 = vunpack.c.l.b16 %v3680
    %v4415 = vunpack.c.l.b16 %v3681
    %v4416 = vunpack.c.l.b16 %v3682
    %v4417 = vunpack.c.l.b16 %v3683
    %v4418 = vunpack.c.l.b16 %v3684
    %v4419 = vunpack.c.l.b16 %v3685
    %v4420 = vunpack.c.l.b16 %v3686
    %v4421 = vunpack.c.l.b16 %v3687
    %v4422 = vunpack.c.l.b16 %v3688
    %v4423 = vunpack.c.l.b16 %v3689
    %v4424 = vunpack.c.l.b16 %v3690
    %v4425 = vunpack.c.l.b16 %v3691
    %v4426 = vunpack.c.l.b16 %v3692
    %v4427 = vunpack.c.l.b16 %v3693
    %v4428 = vunpack.c.l.b16 %v3694
    %v4429 = vunpack.c.l.b16 %v3695
    %v4430 = vunpack.c.l.b16 %v3696
    %v4431 = vunpack.c.l.b16 %v3697
    %v4432 = vunpack.c.l.b16 %v3698
    %v4433 = vunpack.c.l.b16 %v3699
    %v4434 = vunpack.c.l.b16 %v3700
    %v4435 = vunpack.c.l.b16 %v3701
    %v4436 = vunpack.c.l.b16 %v3702
    %v4437 = vunpack.c.l.b16 %v3703
    %v4438 = vunpack.c.l.b16 %v3704
    %v4439 = vunpack.c.l.b16 %v3705
    %v4440 = vunpack.c.l.b16 %v3706
    %v4441 = vunpack.c.l.b16 %v3707
    %v4442 = vunpack.c.l.b16 %v3708
    %v4443 = vunpack.c.l.b16 %v3709
    %v4444 = vunpack.c.l.b16 %v3710
    %v4445 = vunpack.c.l.b16 %v3711
    %v4446 = vunpack.c.l.b16 %v3712
    %v4447 = vunpack.c.l.b16 %v3713
    %v4448 = vunpack.c.l.b16 %v3714
    %v4449 = vunpack.c.l.b16 %v3715
    %v4450 = vunpack.c.l.b16 %v3716
    %v4451 = vunpack.c.l.b16 %v3717
    %v4452 = vunpack.c.l.b16 %v3718
    %v4453 = vunpack.c.l.b16 %v3719
    %v4454 = vunpack.c.l.b16 %v3720
    %v4455 = vunpack.c.l.b16 %v3721
    %v4456 = vunpack.c.l.b16 %v3722
    %v4457 = vunpack.c.l.b16 %v3723
    %v4458 = vpack.c.b16 %v4411, %v4410
    %v4459 = vpack.c.b16 %v4413, %v4412
    %v4460 = vpack.c.b16 %v4415, %v4414
    %v4461 = vpack.c.b16 %v4417, %v4416
    %v4462 = vpack.c.b16 %v4419, %v4418
    %v4463 = vpack.c.b16 %v4421, %v4420
    %v4464 = vpack.c.b16 %v4423, %v4422
    %v4465 = vpack.c.b16 %v4425, %v4424
    %v4466 = vpack.c.b16 %v4427, %v4426
    %v4467 = vpack.c.b16 %v4429, %v4428
    %v4468 = vpack.c.b16 %v4431, %v4430
    %v4469 = vpack.c.b16 %v4433, %v4432
    %v4470 = vpack.c.b16 %v4435, %v4434
    %v4471 = vpack.c.b16 %v4437, %v4436
    %v4472 = vpack.c.b16 %v4439, %v4438
    %v4473 = vpack.c.b16 %v4441, %v4440
    %v4474 = vpack.c.b16 %v4443, %v4442
    %v4475 = vpack.c.b16 %v4445, %v4444
    %v4476 = vpack.c.b16 %v4447, %v4446
    %v4477 = vpack.c.b16 %v4449, %v4448
    %v4478 = vpack.c.b16 %v4451, %v4450
    %v4479 = vpack.c.b16 %v4453, %v4452
    %v4480 = vpack.c.b16 %v4455, %v4454
    %v4481 = vpack.c.b16 %v4457, %v4456
    %4506 = vmatprep.subr.bf16.mxu0 0
    %4507 = vmatpush1.bf16.msra.mxu0 %v4465
    %4508 = vmatprep.subr.bf16.mxu0 0
    %4509 = vmatpush1.bf16.msra.mxu0 %v4464
    %4510 = vmatprep.subr.bf16.mxu0 0
    %4511 = vmatpush1.bf16.msra.mxu0 %v4463
    %4512 = vmatprep.subr.bf16.mxu0 0
    %4513 = vmatpush1.bf16.msra.mxu0 %v4462
    %4514 = vmatprep.subr.bf16.mxu0 0
    %4515 = vmatpush1.bf16.msra.mxu0 %v4461
    %4516 = vmatprep.subr.bf16.mxu0 0
    %4517 = vmatpush1.bf16.msra.mxu0 %v4460
    %4518 = vmatprep.subr.bf16.mxu0 0
    %4519 = vmatpush1.bf16.msra.mxu0 %v4459
    %4520 = vmatprep.subr.bf16.mxu0 0
    %4521 = vmatpush1.bf16.msra.mxu0 %v4458
    %4522 = vmatprep.subr.bf16.mxu0 0
    %4523 = vmatpush2.bf16.msra.mxu0 %v4473
    %4524 = vmatprep.subr.bf16.mxu0 0
    %4525 = vmatpush2.bf16.msra.mxu0 %v4472
    %4526 = vmatprep.subr.bf16.mxu0 0
    %4527 = vmatpush2.bf16.msra.mxu0 %v4471
    %4528 = vmatprep.subr.bf16.mxu0 0
    %4529 = vmatpush2.bf16.msra.mxu0 %v4470
    %4530 = vmatprep.subr.bf16.mxu0 0
    %4531 = vmatpush2.bf16.msra.mxu0 %v4469
    %4532 = vmatprep.subr.bf16.mxu0 0
    %4533 = vmatpush2.bf16.msra.mxu0 %v4468
    %4534 = vmatprep.subr.bf16.mxu0 0
    %4535 = vmatpush2.bf16.msra.mxu0 %v4467
    %4536 = vmatprep.subr.bf16.mxu0 0
    %4537 = vmatpush2.bf16.msra.mxu0 %v4466
    %4538 = vmatprep.mubr.bf16.mxu0 %v3602
    %4539 = vmatmul.mubr.bf16.gmra.mxu0 %v3574
    %v4540 = vpop.f32.mrf.mxu0
    %v4541 = vadd.f32 %v4309, %v4540
    %v4542 = vpop.f32.mrf.mxu0
    %v4543 = vpop.f32.mrf.mxu0
    %v4544 = vadd.f32 %v4312, %v4543
    %v4545 = vpop.f32.mrf.mxu0
    %4546 = vmatprep.mubr.bf16.mxu0 %v3610
    %4547 = vmatmul.mubr.bf16.gmra.mxu0 %v3575
    %v4548 = vpop.f32.mrf.mxu0
    %v4549 = vadd.f32 %v4317, %v4548
    %v4550 = vpop.f32.mrf.mxu0
    %v4551 = vpop.f32.mrf.mxu0
    %v4552 = vadd.f32 %v4320, %v4551
    %v4553 = vpop.f32.mrf.mxu0
    %4554 = vmatprep.mubr.bf16.mxu0 %v3618
    %4555 = vmatmul.mubr.bf16.gmra.mxu0 %v3576
    %v4556 = vpop.f32.mrf.mxu0
    %v4557 = vadd.f32 %v4325, %v4556
    %v4558 = vpop.f32.mrf.mxu0
    %v4559 = vpop.f32.mrf.mxu0
    %v4560 = vadd.f32 %v4328, %v4559
    %v4561 = vpop.f32.mrf.mxu0
    %4562 = vmatprep.mubr.bf16.mxu0 %v3626
    %4563 = vmatmul.mubr.bf16.gmra.mxu0 %v3577
    %v4564 = vpop.f32.mrf.mxu0
    %v4565 = vadd.f32 %v4333, %v4564
    %v4566 = vpop.f32.mrf.mxu0
    %v4567 = vpop.f32.mrf.mxu0
    %v4568 = vadd.f32 %v4336, %v4567
    %v4569 = vpop.f32.mrf.mxu0
    %4570 = vmatprep.mubr.bf16.mxu0 %v3634
    %4571 = vmatmul.mubr.bf16.gmra.mxu0 %v3578
    %v4572 = vpop.f32.mrf.mxu0
    %v4573 = vadd.f32 %v4341, %v4572
    %v4574 = vpop.f32.mrf.mxu0
    %v4575 = vpop.f32.mrf.mxu0
    %v4576 = vadd.f32 %v4344, %v4575
    %v4577 = vpop.f32.mrf.mxu0
    %4578 = vmatprep.mubr.bf16.mxu0 %v3642
    %4579 = vmatmul.mubr.bf16.gmra.mxu0 %v3579
    %v4580 = vpop.f32.mrf.mxu0
    %v4581 = vadd.f32 %v4349, %v4580
    %v4582 = vpop.f32.mrf.mxu0
    %v4583 = vpop.f32.mrf.mxu0
    %v4584 = vadd.f32 %v4352, %v4583
    %v4585 = vpop.f32.mrf.mxu0
    %4586 = vmatprep.mubr.bf16.mxu0 %v3645
    %4587 = vmatmul.mubr.bf16.gmra.mxu0 %v3580
    %v4588 = vpop.f32.mrf.mxu0
    %v4589 = vadd.f32 %v4357, %v4588
    %v4590 = vpop.f32.mrf.mxu0
    %v4591 = vpop.f32.mrf.mxu0
    %v4592 = vpop.f32.mrf.mxu0
    %4593 = vdwg.mxu0
    %4594 = vmatprep.subr.bf16.mxu0 0
    %4595 = vmatpush1.bf16.msra.mxu0 %v4481
    %4596 = vmatprep.subr.bf16.mxu0 0
    %4597 = vmatpush1.bf16.msra.mxu0 %v4480
    %4598 = vmatprep.subr.bf16.mxu0 0
    %4599 = vmatpush1.bf16.msra.mxu0 %v4479
    %4600 = vmatprep.subr.bf16.mxu0 0
    %4601 = vmatpush1.bf16.msra.mxu0 %v4478
    %4602 = vmatprep.subr.bf16.mxu0 0
    %4603 = vmatpush1.bf16.msra.mxu0 %v4477
    %4604 = vmatprep.subr.bf16.mxu0 0
    %4605 = vmatpush1.bf16.msra.mxu0 %v4476
    %4606 = vmatprep.subr.bf16.mxu0 0
    %4607 = vmatpush1.bf16.msra.mxu0 %v4475
    %4608 = vmatprep.subr.bf16.mxu0 0
    %4609 = vmatpush1.bf16.msra.mxu0 %v4474
    %4610 = vmatprep.subr.bf16.mxu0 0
    %4611 = vmatpush2.bf16.msra.mxu0 0
    %4612 = vmatprep.subr.bf16.mxu0 0
    %4613 = vmatpush2.bf16.msra.mxu0 0
    %4614 = vmatprep.subr.bf16.mxu0 0
    %4615 = vmatpush2.bf16.msra.mxu0 0
    %4616 = vmatprep.subr.bf16.mxu0 0
    %4617 = vmatpush2.bf16.msra.mxu0 0
    %4618 = vmatprep.subr.bf16.mxu0 0
    %4619 = vmatpush2.bf16.msra.mxu0 0
    %4620 = vmatprep.subr.bf16.mxu0 0
    %4621 = vmatpush2.bf16.msra.mxu0 0
    %4622 = vmatprep.subr.bf16.mxu0 0
    %4623 = vmatpush2.bf16.msra.mxu0 0
    %4624 = vmatprep.subr.bf16.mxu0 0
    %4625 = vmatpush2.bf16.msra.mxu0 0
    %4626 = vmatprep.mubr.bf16.mxu0 0
    %4627 = vmatmul.mubr.bf16.gmra.mxu0 %v3658
    %v4628 = vpop.f32.mrf.mxu0
    %v4629 = vadd.f32 %v4541, %v4628
    %v4630 = vpop.f32.mrf.mxu0
    %v4631 = vpop.f32.mrf.mxu0
    %v4632 = vadd.f32 %v4544, %v4631
    %v4633 = vpop.f32.mrf.mxu0
    %4634 = vmatprep.mubr.bf16.mxu0 0
    %4635 = vmatmul.mubr.bf16.gmra.mxu0 %v3660
    %v4636 = vpop.f32.mrf.mxu0
    %v4637 = vadd.f32 %v4549, %v4636
    %v4638 = vpop.f32.mrf.mxu0
    %v4639 = vpop.f32.mrf.mxu0
    %v4640 = vadd.f32 %v4552, %v4639
    %v4641 = vpop.f32.mrf.mxu0
    %4642 = vmatprep.mubr.bf16.mxu0 0
    %4643 = vmatmul.mubr.bf16.gmra.mxu0 %v3662
    %v4644 = vpop.f32.mrf.mxu0
    %v4645 = vadd.f32 %v4557, %v4644
    %v4646 = vpop.f32.mrf.mxu0
    %v4647 = vpop.f32.mrf.mxu0
    %v4648 = vadd.f32 %v4560, %v4647
    %v4649 = vpop.f32.mrf.mxu0
    %4650 = vmatprep.mubr.bf16.mxu0 0
    %4651 = vmatmul.mubr.bf16.gmra.mxu0 %v3664
    %v4652 = vpop.f32.mrf.mxu0
    %v4653 = vadd.f32 %v4565, %v4652
    %v4654 = vpop.f32.mrf.mxu0
    %v4655 = vpop.f32.mrf.mxu0
    %v4656 = vadd.f32 %v4568, %v4655
    %v4657 = vpop.f32.mrf.mxu0
    %4658 = vmatprep.mubr.bf16.mxu0 0
    %4659 = vmatmul.mubr.bf16.gmra.mxu0 %v3666
    %v4660 = vpop.f32.mrf.mxu0
    %v4661 = vadd.f32 %v4573, %v4660
    %v4662 = vpop.f32.mrf.mxu0
    %v4663 = vpop.f32.mrf.mxu0
    %v4664 = vadd.f32 %v4576, %v4663
    %v4665 = vpop.f32.mrf.mxu0
    %4666 = vmatprep.mubr.bf16.mxu0 0
    %4667 = vmatmul.mubr.bf16.gmra.mxu0 %v3668
    %v4668 = vpop.f32.mrf.mxu0
    %v4669 = vadd.f32 %v4581, %v4668
    %v4670 = vpop.f32.mrf.mxu0
    %v4671 = vpop.f32.mrf.mxu0
    %v4672 = vadd.f32 %v4584, %v4671
    %v4673 = vpop.f32.mrf.mxu0
    %4674 = vmatprep.mubr.bf16.mxu0 0
    %4675 = vmatmul.mubr.bf16.gmra.mxu0 %v3667
    %v4676 = vpop.f32.mrf.mxu0
    %v4677 = vadd.f32 %v4589, %v4676
    %v4678 = vpop.f32.mrf.mxu0
    %v4679 = vpop.f32.mrf.mxu0
    %v4680 = vpop.f32.mrf.mxu0
    %4681 = vdwg.mxu0
    %v4682 = vld [vmem:[#allocation3 + $0x8] sm:$0x8]
    %v4683 = vld [vmem:[#allocation3 + $0xc] sm:$0xf]
    %v4684 = vld [vmem:[#allocation3 + $0x10] sm:$0xf]
    %v4685 = vld [vmem:[#allocation3 + $0x14] sm:$0xf]
    %v4686 = vld [vmem:[#allocation3 + $0x18] sm:$0xf]
    %v4687 = vld [vmem:[#allocation3 + $0x1c] sm:$0xf]
    %v4688 = vld [vmem:[#allocation3 + $0x20] sm:$0xf]
    %v4689 = vld [vmem:[#allocation3 + $0x24] sm:$0xf]
    %v4690 = vld [vmem:[#allocation3 + $0x28] sm:$0xf]
    %v4691 = vld [vmem:[#allocation3 + $0x2c] sm:$0xf]
    %v4692 = vld [vmem:[#allocation3 + $0x30] sm:$0xf]
    %v4693 = vld [vmem:[#allocation3 + $0x34] sm:$0xf]
    %v4694 = vld [vmem:[#allocation3 + $0x38] sm:$0xf]
    %v4695 = vld [vmem:[#allocation3 + $0x3c] sm:$0x7]
    %v4696 = vld [vmem:[#allocation3 + $0x3c] sm:$0xf]
    %v4711 = vunpack.c.l.b16 %v4682
    %v4712 = vunpack.c.l.b16 %v4683
    %v4713 = vunpack.c.l.b16 %v4684
    %v4714 = vunpack.c.l.b16 %v4685
    %v4715 = vunpack.c.l.b16 %v4686
    %v4716 = vunpack.c.l.b16 %v4687
    %v4717 = vunpack.c.l.b16 %v4688
    %v4718 = vunpack.c.l.b16 %v4689
    %v4719 = vunpack.c.l.b16 %v4690
    %v4720 = vunpack.c.l.b16 %v4691
    %v4721 = vunpack.c.l.b16 %v4692
    %v4722 = vunpack.c.l.b16 %v4693
    %v4723 = vunpack.c.l.b16 %v4694
    %v4724 = vunpack.c.l.b16 %v4695
    %v4725 = vpack.c.b16 %v4712, %v4711
    %v4726 = vpack.c.b16 %v4714, %v4713
    %v4727 = vpack.c.b16 %v4716, %v4715
    %v4728 = vpack.c.b16 %v4718, %v4717
    %v4729 = vpack.c.b16 %v4720, %v4719
    %v4730 = vpack.c.b16 %v4722, %v4721
    %v4731 = vpack.c.b16 %v4724, %v4723
    %v4733 = vunpack.c.l.b16 %v4696
    %v4734 = vpack.c.b16 %v4733, %v4723
    %v4736 = vshrl.u32 %v4725, 16
    %v4738 = vshll.u32 %v4725, 16
    %v4740 = vrot.slane %v4738, 1
    %v4741 = vor.u32 %v4736, %v4740
    %v4743 = vshll.u32 %v4726, 16
    %v4745 = vrot.slane %v4743, 1
    %v4746 = vsel %vm922, %v4741, %v4745
    %v4747 = vshrl.u32 %v4726, 16
    %v4749 = vor.u32 %v4747, %v4745
    %v4751 = vshll.u32 %v4727, 16
    %v4753 = vrot.slane %v4751, 1
    %v4754 = vsel %vm922, %v4749, %v4753
    %v4755 = vshrl.u32 %v4727, 16
    %v4757 = vor.u32 %v4755, %v4753
    %v4759 = vshll.u32 %v4728, 16
    %v4761 = vrot.slane %v4759, 1
    %v4762 = vsel %vm922, %v4757, %v4761
    %v4763 = vshrl.u32 %v4728, 16
    %v4765 = vor.u32 %v4763, %v4761
    %v4767 = vshll.u32 %v4729, 16
    %v4769 = vrot.slane %v4767, 1
    %v4770 = vsel %vm922, %v4765, %v4769
    %v4771 = vshrl.u32 %v4729, 16
    %v4773 = vor.u32 %v4771, %v4769
    %v4775 = vshll.u32 %v4730, 16
    %v4777 = vrot.slane %v4775, 1
    %v4778 = vsel %vm922, %v4773, %v4777
    %v4779 = vshrl.u32 %v4730, 16
    %v4781 = vor.u32 %v4779, %v4777
    %v4783 = vshll.u32 %v4734, 16
    %v4785 = vrot.slane %v4783, 1
    %v4786 = vsel %vm922, %v4781, %v4785
    %v4787 = vshrl.u32 %v4734, 16
    %v4789 = vor.u32 %v4787, %v4785
    %v4790 = vpack.c.b16 %v4713, %v4712
    %v4791 = vpack.c.b16 %v4715, %v4714
    %v4792 = vpack.c.b16 %v4717, %v4716
    %v4793 = vpack.c.b16 %v4719, %v4718
    %v4794 = vpack.c.b16 %v4721, %v4720
    %v4795 = vpack.c.b16 %v4723, %v4722
    %v4796 = vpack.c.b16 %v4733, %v4733
    %v4797 = vrot.slane %v4790, 5
    %v4798 = vrot.slane %v4791, 5
    %v4799 = vsel %vm1818, %v4797, %v4798
    %v4800 = vrot.slane %v4792, 5
    %v4801 = vsel %vm1818, %v4798, %v4800
    %v4802 = vrot.slane %v4793, 5
    %v4803 = vsel %vm1818, %v4800, %v4802
    %v4804 = vrot.slane %v4794, 5
    %v4805 = vsel %vm1818, %v4802, %v4804
    %v4806 = vrot.slane %v4795, 5
    %v4807 = vsel %vm1818, %v4804, %v4806
    %v4808 = vrot.slane %v4796, 5
    %v4809 = vsel %vm1818, %v4806, %v4808
    %s4810 = scalar_lea.vmem [#allocation13], 384
    %v4811 = vld [vmem:[%s4810] sm:$0xf]
    %v4812 = vld [vmem:[%s4810 + $0x4] sm:$0xf]
    %v4813 = vld [vmem:[%s4810 + $0x8] sm:$0xf]
    %v4814 = vld [vmem:[%s4810 + $0xc] sm:$0xf]
    %v4815 = vld [vmem:[%s4810 + $0x10] sm:$0xf]
    %v4816 = vld [vmem:[%s4810 + $0x14] sm:$0xf]
    %v4817 = vld [vmem:[%s4810 + $0x18] sm:$0xf]
    %v4818 = vld [vmem:[%s4810 + $0x1c] sm:$0xf]
    %v4819 = vld [vmem:[%s4810 + $0x20] sm:$0xf]
    %v4820 = vld [vmem:[%s4810 + $0x24] sm:$0xf]
    %v4821 = vld [vmem:[%s4810 + $0x28] sm:$0xf]
    %v4822 = vld [vmem:[%s4810 + $0x2c] sm:$0xf]
    %v4823 = vld [vmem:[%s4810 + $0x30] sm:$0xf]
    %v4824 = vld [vmem:[%s4810 + $0x34] sm:$0xf]
    %v4825 = vld [vmem:[%s4810 + $0x38] sm:$0xf]
    %v4826 = vld [vmem:[%s4810 + $0x3c] sm:$0xf]
    %v4827 = vld [vmem:[%s4810 + $0x40] sm:$0xf]
    %v4828 = vld [vmem:[%s4810 + $0x44] sm:$0xf]
    %v4829 = vld [vmem:[%s4810 + $0x48] sm:$0xf]
    %v4830 = vld [vmem:[%s4810 + $0x4c] sm:$0xf]
    %v4831 = vld [vmem:[%s4810 + $0x50] sm:$0xf]
    %v4832 = vld [vmem:[%s4810 + $0x54] sm:$0xf]
    %v4833 = vld [vmem:[%s4810 + $0x58] sm:$0xf]
    %v4834 = vld [vmem:[%s4810 + $0x5c] sm:$0xf]
    %v4835 = vld [vmem:[%s4810 + $0x60] sm:$0xf]
    %v4836 = vld [vmem:[%s4810 + $0x64] sm:$0xf]
    %v4837 = vld [vmem:[%s4810 + $0x68] sm:$0xf]
    %v4838 = vld [vmem:[%s4810 + $0x6c] sm:$0xf]
    %v4839 = vld [vmem:[%s4810 + $0x70] sm:$0xf]
    %v4840 = vld [vmem:[%s4810 + $0x74] sm:$0xf]
    %v4841 = vld [vmem:[%s4810 + $0x78] sm:$0xf]
    %v4842 = vld [vmem:[%s4810 + $0x7c] sm:$0xf]
    %v4843 = vld [vmem:[%s4810 + $0x80] sm:$0xf]
    %v4844 = vld [vmem:[%s4810 + $0x84] sm:$0xf]
    %v4845 = vld [vmem:[%s4810 + $0x88] sm:$0xf]
    %v4846 = vld [vmem:[%s4810 + $0x8c] sm:$0xf]
    %v4847 = vld [vmem:[%s4810 + $0x90] sm:$0xf]
    %v4848 = vld [vmem:[%s4810 + $0x94] sm:$0xf]
    %v4849 = vld [vmem:[%s4810 + $0x98] sm:$0xf]
    %v4850 = vld [vmem:[%s4810 + $0x9c] sm:$0xf]
    %v4851 = vld [vmem:[%s4810 + $0xa0] sm:$0xf]
    %v4852 = vld [vmem:[%s4810 + $0xa4] sm:$0xf]
    %v4853 = vld [vmem:[%s4810 + $0xa8] sm:$0xf]
    %v4854 = vld [vmem:[%s4810 + $0xac] sm:$0xf]
    %v4855 = vld [vmem:[%s4810 + $0xb0] sm:$0xf]
    %v4856 = vld [vmem:[%s4810 + $0xb4] sm:$0xf]
    %v4857 = vld [vmem:[%s4810 + $0xb8] sm:$0xf]
    %v4858 = vld [vmem:[%s4810 + $0xbc] sm:$0xf]
    %v4859 = vrot.slane %v4725, 3
    %v4860 = vrot.slane %v4726, 3
    %v4861 = vsel %vm1879, %v4859, %v4860
    %v4862 = vrot.slane %v4746, 3
    %v4863 = vrot.slane %v4754, 3
    %v4864 = vsel %vm1879, %v4862, %v4863
    %v4865 = vrot.slane %v4797, 3
    %v4866 = vrot.slane %v4799, 3
    %v4867 = vsel %vm1879, %v4865, %v4866
    %v4868 = vrot.slane %v4727, 3
    %v4869 = vsel %vm1879, %v4860, %v4868
    %v4870 = vrot.slane %v4762, 3
    %v4871 = vsel %vm1879, %v4863, %v4870
    %v4872 = vrot.slane %v4801, 3
    %v4873 = vsel %vm1879, %v4866, %v4872
    %v4874 = vrot.slane %v4728, 3
    %v4875 = vsel %vm1879, %v4868, %v4874
    %v4876 = vrot.slane %v4770, 3
    %v4877 = vsel %vm1879, %v4870, %v4876
    %v4878 = vrot.slane %v4803, 3
    %v4879 = vsel %vm1879, %v4872, %v4878
    %v4880 = vrot.slane %v4729, 3
    %v4881 = vsel %vm1879, %v4874, %v4880
    %v4882 = vrot.slane %v4778, 3
    %v4883 = vsel %vm1879, %v4876, %v4882
    %v4884 = vrot.slane %v4805, 3
    %v4885 = vsel %vm1879, %v4878, %v4884
    %v4886 = vrot.slane %v4730, 3
    %v4887 = vsel %vm1879, %v4880, %v4886
    %v4888 = vrot.slane %v4786, 3
    %v4889 = vsel %vm1879, %v4882, %v4888
    %v4890 = vrot.slane %v4807, 3
    %v4891 = vsel %vm1879, %v4884, %v4890
    %v4892 = vrot.slane %v4731, 3
    %v4893 = vsel %vm1879, %v4886, %v4892
    %v4894 = vrot.slane %v4789, 3
    %v4895 = vsel %vm1879, %v4888, %v4894
    %v4896 = vrot.slane %v4809, 3
    %v4897 = vsel %vm1879, %v4890, %v4896
    %v4967 = vunpack.c.l.b16 %v4811
    %v4968 = vunpack.c.l.b16 %v4812
    %v4969 = vunpack.c.l.b16 %v4813
    %v4970 = vunpack.c.l.b16 %v4814
    %v4971 = vunpack.c.l.b16 %v4815
    %v4972 = vunpack.c.l.b16 %v4816
    %v4973 = vunpack.c.l.b16 %v4817
    %v4974 = vunpack.c.l.b16 %v4818
    %v4975 = vunpack.c.l.b16 %v4819
    %v4976 = vunpack.c.l.b16 %v4820
    %v4977 = vunpack.c.l.b16 %v4821
    %v4978 = vunpack.c.l.b16 %v4822
    %v4979 = vunpack.c.l.b16 %v4823
    %v4980 = vunpack.c.l.b16 %v4824
    %v4981 = vunpack.c.l.b16 %v4825
    %v4982 = vunpack.c.l.b16 %v4826
    %v4983 = vunpack.c.l.b16 %v4827
    %v4984 = vunpack.c.l.b16 %v4828
    %v4985 = vunpack.c.l.b16 %v4829
    %v4986 = vunpack.c.l.b16 %v4830
    %v4987 = vunpack.c.l.b16 %v4831
    %v4988 = vunpack.c.l.b16 %v4832
    %v4989 = vunpack.c.l.b16 %v4833
    %v4990 = vunpack.c.l.b16 %v4834
    %v4991 = vunpack.c.l.b16 %v4835
    %v4992 = vunpack.c.l.b16 %v4836
    %v4993 = vunpack.c.l.b16 %v4837
    %v4994 = vunpack.c.l.b16 %v4838
    %v4995 = vunpack.c.l.b16 %v4839
    %v4996 = vunpack.c.l.b16 %v4840
    %v4997 = vunpack.c.l.b16 %v4841
    %v4998 = vunpack.c.l.b16 %v4842
    %v4999 = vunpack.c.l.b16 %v4843
    %v5000 = vunpack.c.l.b16 %v4844
    %v5001 = vunpack.c.l.b16 %v4845
    %v5002 = vunpack.c.l.b16 %v4846
    %v5003 = vunpack.c.l.b16 %v4847
    %v5004 = vunpack.c.l.b16 %v4848
    %v5005 = vunpack.c.l.b16 %v4849
    %v5006 = vunpack.c.l.b16 %v4850
    %v5007 = vunpack.c.l.b16 %v4851
    %v5008 = vunpack.c.l.b16 %v4852
    %v5009 = vunpack.c.l.b16 %v4853
    %v5010 = vunpack.c.l.b16 %v4854
    %v5011 = vunpack.c.l.b16 %v4855
    %v5012 = vunpack.c.l.b16 %v4856
    %v5013 = vunpack.c.l.b16 %v4857
    %v5014 = vunpack.c.l.b16 %v4858
    %v5015 = vpack.c.b16 %v4968, %v4967
    %v5016 = vpack.c.b16 %v4970, %v4969
    %v5017 = vpack.c.b16 %v4972, %v4971
    %v5018 = vpack.c.b16 %v4974, %v4973
    %v5019 = vpack.c.b16 %v4976, %v4975
    %v5020 = vpack.c.b16 %v4978, %v4977
    %v5021 = vpack.c.b16 %v4980, %v4979
    %v5022 = vpack.c.b16 %v4982, %v4981
    %v5023 = vpack.c.b16 %v4984, %v4983
    %v5024 = vpack.c.b16 %v4986, %v4985
    %v5025 = vpack.c.b16 %v4988, %v4987
    %v5026 = vpack.c.b16 %v4990, %v4989
    %v5027 = vpack.c.b16 %v4992, %v4991
    %v5028 = vpack.c.b16 %v4994, %v4993
    %v5029 = vpack.c.b16 %v4996, %v4995
    %v5030 = vpack.c.b16 %v4998, %v4997
    %v5031 = vpack.c.b16 %v5000, %v4999
    %v5032 = vpack.c.b16 %v5002, %v5001
    %v5033 = vpack.c.b16 %v5004, %v5003
    %v5034 = vpack.c.b16 %v5006, %v5005
    %v5035 = vpack.c.b16 %v5008, %v5007
    %v5036 = vpack.c.b16 %v5010, %v5009
    %v5037 = vpack.c.b16 %v5012, %v5011
    %v5038 = vpack.c.b16 %v5014, %v5013
    %5063 = vmatprep.subr.bf16.mxu0 0
    %5064 = vmatpush1.bf16.msra.mxu0 %v5022
    %5065 = vmatprep.subr.bf16.mxu0 0
    %5066 = vmatpush1.bf16.msra.mxu0 %v5021
    %5067 = vmatprep.subr.bf16.mxu0 0
    %5068 = vmatpush1.bf16.msra.mxu0 %v5020
    %5069 = vmatprep.subr.bf16.mxu0 0
    %5070 = vmatpush1.bf16.msra.mxu0 %v5019
    %5071 = vmatprep.subr.bf16.mxu0 0
    %5072 = vmatpush1.bf16.msra.mxu0 %v5018
    %5073 = vmatprep.subr.bf16.mxu0 0
    %5074 = vmatpush1.bf16.msra.mxu0 %v5017
    %5075 = vmatprep.subr.bf16.mxu0 0
    %5076 = vmatpush1.bf16.msra.mxu0 %v5016
    %5077 = vmatprep.subr.bf16.mxu0 0
    %5078 = vmatpush1.bf16.msra.mxu0 %v5015
    %5079 = vmatprep.subr.bf16.mxu0 0
    %5080 = vmatpush2.bf16.msra.mxu0 %v5030
    %5081 = vmatprep.subr.bf16.mxu0 0
    %5082 = vmatpush2.bf16.msra.mxu0 %v5029
    %5083 = vmatprep.subr.bf16.mxu0 0
    %5084 = vmatpush2.bf16.msra.mxu0 %v5028
    %5085 = vmatprep.subr.bf16.mxu0 0
    %5086 = vmatpush2.bf16.msra.mxu0 %v5027
    %5087 = vmatprep.subr.bf16.mxu0 0
    %5088 = vmatpush2.bf16.msra.mxu0 %v5026
    %5089 = vmatprep.subr.bf16.mxu0 0
    %5090 = vmatpush2.bf16.msra.mxu0 %v5025
    %5091 = vmatprep.subr.bf16.mxu0 0
    %5092 = vmatpush2.bf16.msra.mxu0 %v5024
    %5093 = vmatprep.subr.bf16.mxu0 0
    %5094 = vmatpush2.bf16.msra.mxu0 %v5023
    %5095 = vmatprep.mubr.bf16.mxu0 %v4864
    %5096 = vmatmul.mubr.bf16.gmra.mxu0 %v4861
    %v5097 = vpop.f32.mrf.mxu0
    %v5098 = vadd.f32 0.0, %v5097
    %v5099 = vpop.f32.mrf.mxu0
    %v5100 = vpop.f32.mrf.mxu0
    %v5101 = vadd.f32 0.0, %v5100
    %v5102 = vpop.f32.mrf.mxu0
    %5103 = vmatprep.mubr.bf16.mxu0 %v4871
    %5104 = vmatmul.mubr.bf16.gmra.mxu0 %v4869
    %v5105 = vpop.f32.mrf.mxu0
    %v5106 = vadd.f32 0.0, %v5105
    %v5107 = vpop.f32.mrf.mxu0
    %v5108 = vpop.f32.mrf.mxu0
    %v5109 = vadd.f32 0.0, %v5108
    %v5110 = vpop.f32.mrf.mxu0
    %5111 = vmatprep.mubr.bf16.mxu0 %v4877
    %5112 = vmatmul.mubr.bf16.gmra.mxu0 %v4875
    %v5113 = vpop.f32.mrf.mxu0
    %v5114 = vadd.f32 0.0, %v5113
    %v5115 = vpop.f32.mrf.mxu0
    %v5116 = vpop.f32.mrf.mxu0
    %v5117 = vadd.f32 0.0, %v5116
    %v5118 = vpop.f32.mrf.mxu0
    %5119 = vmatprep.mubr.bf16.mxu0 %v4883
    %5120 = vmatmul.mubr.bf16.gmra.mxu0 %v4881
    %v5121 = vpop.f32.mrf.mxu0
    %v5122 = vadd.f32 0.0, %v5121
    %v5123 = vpop.f32.mrf.mxu0
    %v5124 = vpop.f32.mrf.mxu0
    %v5125 = vadd.f32 0.0, %v5124
    %v5126 = vpop.f32.mrf.mxu0
    %5127 = vmatprep.mubr.bf16.mxu0 %v4889
    %5128 = vmatmul.mubr.bf16.gmra.mxu0 %v4887
    %v5129 = vpop.f32.mrf.mxu0
    %v5130 = vadd.f32 0.0, %v5129
    %v5131 = vpop.f32.mrf.mxu0
    %v5132 = vpop.f32.mrf.mxu0
    %v5133 = vadd.f32 0.0, %v5132
    %v5134 = vpop.f32.mrf.mxu0
    %5135 = vmatprep.mubr.bf16.mxu0 %v4895
    %5136 = vmatmul.mubr.bf16.gmra.mxu0 %v4893
    %v5137 = vpop.f32.mrf.mxu0
    %v5138 = vadd.f32 0.0, %v5137
    %v5139 = vpop.f32.mrf.mxu0
    %v5140 = vpop.f32.mrf.mxu0
    %v5141 = vadd.f32 0.0, %v5140
    %v5142 = vpop.f32.mrf.mxu0
    %5143 = vmatprep.mubr.bf16.mxu0 %v4894
    %5144 = vmatmul.mubr.bf16.gmra.mxu0 %v4892
    %v5145 = vpop.f32.mrf.mxu0
    %v5146 = vadd.f32 0.0, %v5145
    %v5147 = vpop.f32.mrf.mxu0
    %v5148 = vpop.f32.mrf.mxu0
    %v5149 = vpop.f32.mrf.mxu0
    %5150 = vdwg.mxu0
    %5151 = vmatprep.subr.bf16.mxu0 0
    %5152 = vmatpush1.bf16.msra.mxu0 %v5038
    %5153 = vmatprep.subr.bf16.mxu0 0
    %5154 = vmatpush1.bf16.msra.mxu0 %v5037
    %5155 = vmatprep.subr.bf16.mxu0 0
    %5156 = vmatpush1.bf16.msra.mxu0 %v5036
    %5157 = vmatprep.subr.bf16.mxu0 0
    %5158 = vmatpush1.bf16.msra.mxu0 %v5035
    %5159 = vmatprep.subr.bf16.mxu0 0
    %5160 = vmatpush1.bf16.msra.mxu0 %v5034
    %5161 = vmatprep.subr.bf16.mxu0 0
    %5162 = vmatpush1.bf16.msra.mxu0 %v5033
    %5163 = vmatprep.subr.bf16.mxu0 0
    %5164 = vmatpush1.bf16.msra.mxu0 %v5032
    %5165 = vmatprep.subr.bf16.mxu0 0
    %5166 = vmatpush1.bf16.msra.mxu0 %v5031
    %5167 = vmatprep.subr.bf16.mxu0 0
    %5168 = vmatpush2.bf16.msra.mxu0 0
    %5169 = vmatprep.subr.bf16.mxu0 0
    %5170 = vmatpush2.bf16.msra.mxu0 0
    %5171 = vmatprep.subr.bf16.mxu0 0
    %5172 = vmatpush2.bf16.msra.mxu0 0
    %5173 = vmatprep.subr.bf16.mxu0 0
    %5174 = vmatpush2.bf16.msra.mxu0 0
    %5175 = vmatprep.subr.bf16.mxu0 0
    %5176 = vmatpush2.bf16.msra.mxu0 0
    %5177 = vmatprep.subr.bf16.mxu0 0
    %5178 = vmatpush2.bf16.msra.mxu0 0
    %5179 = vmatprep.subr.bf16.mxu0 0
    %5180 = vmatpush2.bf16.msra.mxu0 0
    %5181 = vmatprep.subr.bf16.mxu0 0
    %5182 = vmatpush2.bf16.msra.mxu0 0
    %5183 = vmatprep.mubr.bf16.mxu0 0
    %5184 = vmatmul.mubr.bf16.gmra.mxu0 %v4867
    %v5185 = vpop.f32.mrf.mxu0
    %v5186 = vadd.f32 %v5098, %v5185
    %v5187 = vpop.f32.mrf.mxu0
    %v5188 = vpop.f32.mrf.mxu0
    %v5189 = vadd.f32 %v5101, %v5188
    %v5190 = vpop.f32.mrf.mxu0
    %5191 = vmatprep.mubr.bf16.mxu0 0
    %5192 = vmatmul.mubr.bf16.gmra.mxu0 %v4873
    %v5193 = vpop.f32.mrf.mxu0
    %v5194 = vadd.f32 %v5106, %v5193
    %v5195 = vpop.f32.mrf.mxu0
    %v5196 = vpop.f32.mrf.mxu0
    %v5197 = vadd.f32 %v5109, %v5196
    %v5198 = vpop.f32.mrf.mxu0
    %5199 = vmatprep.mubr.bf16.mxu0 0
    %5200 = vmatmul.mubr.bf16.gmra.mxu0 %v4879
    %v5201 = vpop.f32.mrf.mxu0
    %v5202 = vadd.f32 %v5114, %v5201
    %v5203 = vpop.f32.mrf.mxu0
    %v5204 = vpop.f32.mrf.mxu0
    %v5205 = vadd.f32 %v5117, %v5204
    %v5206 = vpop.f32.mrf.mxu0
    %5207 = vmatprep.mubr.bf16.mxu0 0
    %5208 = vmatmul.mubr.bf16.gmra.mxu0 %v4885
    %v5209 = vpop.f32.mrf.mxu0
    %v5210 = vadd.f32 %v5122, %v5209
    %v5211 = vpop.f32.mrf.mxu0
    %v5212 = vpop.f32.mrf.mxu0
    %v5213 = vadd.f32 %v5125, %v5212
    %v5214 = vpop.f32.mrf.mxu0
    %5215 = vmatprep.mubr.bf16.mxu0 0
    %5216 = vmatmul.mubr.bf16.gmra.mxu0 %v4891
    %v5217 = vpop.f32.mrf.mxu0
    %v5218 = vadd.f32 %v5130, %v5217
    %v5219 = vpop.f32.mrf.mxu0
    %v5220 = vpop.f32.mrf.mxu0
    %v5221 = vadd.f32 %v5133, %v5220
    %v5222 = vpop.f32.mrf.mxu0
    %5223 = vmatprep.mubr.bf16.mxu0 0
    %5224 = vmatmul.mubr.bf16.gmra.mxu0 %v4897
    %v5225 = vpop.f32.mrf.mxu0
    %v5226 = vadd.f32 %v5138, %v5225
    %v5227 = vpop.f32.mrf.mxu0
    %v5228 = vpop.f32.mrf.mxu0
    %v5229 = vadd.f32 %v5141, %v5228
    %v5230 = vpop.f32.mrf.mxu0
    %5231 = vmatprep.mubr.bf16.mxu0 0
    %5232 = vmatmul.mubr.bf16.gmra.mxu0 %v4896
    %v5233 = vpop.f32.mrf.mxu0
    %v5234 = vadd.f32 %v5146, %v5233
    %v5235 = vpop.f32.mrf.mxu0
    %v5236 = vpop.f32.mrf.mxu0
    %v5237 = vpop.f32.mrf.mxu0
    %5238 = vdwg.mxu0
    %v5239 = vadd.f32 %v4629, %v5186
    %v5240 = vadd.f32 %v4632, %v5189
    %v5241 = vadd.f32 %v4637, %v5194
    %v5242 = vadd.f32 %v4640, %v5197
    %v5243 = vadd.f32 %v4645, %v5202
    %v5244 = vadd.f32 %v4648, %v5205
    %v5245 = vadd.f32 %v4653, %v5210
    %v5246 = vadd.f32 %v4656, %v5213
    %v5247 = vadd.f32 %v4661, %v5218
    %v5248 = vadd.f32 %v4664, %v5221
    %v5249 = vadd.f32 %v4669, %v5226
    %v5250 = vadd.f32 %v4672, %v5229
    %v5251 = vadd.f32 %v4677, %v5234
    %v5252 = vld [vmem:[#allocation15] sm:$0x1]
    %v5254 = vlaneseq
    %v5255 = vshrl.u32 %v5254, 7
    %v5256 = vsub.s32 0, %v5255
    %v5257 = vrot.slane %v5252, %v5256
    %v5259 = vadd.f32 %v5239, %v5257
    %v5260 = vadd.f32 %v5240, %v5257
    %v5261 = vadd.f32 %v5241, %v5257
    %v5262 = vadd.f32 %v5242, %v5257
    %v5263 = vadd.f32 %v5243, %v5257
    %v5264 = vadd.f32 %v5244, %v5257
    %v5265 = vadd.f32 %v5245, %v5257
    %v5266 = vadd.f32 %v5246, %v5257
    %v5267 = vadd.f32 %v5247, %v5257
    %v5268 = vadd.f32 %v5248, %v5257
    %v5269 = vadd.f32 %v5249, %v5257
    %v5270 = vadd.f32 %v5250, %v5257
    %v5271 = vadd.f32 %v5251, %v5257
    %v5272 = vmax.f32 %v5259, 0.0
    %v5273 = vmax.f32 %v5260, 0.0
    %v5274 = vmax.f32 %v5261, 0.0
    %v5275 = vmax.f32 %v5262, 0.0
    %v5276 = vmax.f32 %v5263, 0.0
    %v5277 = vmax.f32 %v5264, 0.0
    %v5278 = vmax.f32 %v5265, 0.0
    %v5279 = vmax.f32 %v5266, 0.0
    %v5280 = vmax.f32 %v5267, 0.0
    %v5281 = vmax.f32 %v5268, 0.0
    %v5282 = vmax.f32 %v5269, 0.0
    %v5283 = vmax.f32 %v5270, 0.0
    %v5284 = vmax.f32 %v5271, 0.0
    %5285 = vst [vmem:[#allocation4] sm:$0xff] %v5272
    %5286 = vst [vmem:[#allocation4 + $0x8] sm:$0xff] %v5273
    %5287 = vst [vmem:[#allocation4 + $0x10] sm:$0xff] %v5274
    %5288 = vst [vmem:[#allocation4 + $0x18] sm:$0xff] %v5275
    %5289 = vst [vmem:[#allocation4 + $0x20] sm:$0xff] %v5276
    %5290 = vst [vmem:[#allocation4 + $0x28] sm:$0xff] %v5277
    %5291 = vst [vmem:[#allocation4 + $0x30] sm:$0xff] %v5278
    %5292 = vst [vmem:[#allocation4 + $0x38] sm:$0xff] %v5279
    %5293 = vst [vmem:[#allocation4 + $0x40] sm:$0xff] %v5280
    %5294 = vst [vmem:[#allocation4 + $0x48] sm:$0xff] %v5281
    %5295 = vst [vmem:[#allocation4 + $0x50] sm:$0xff] %v5282
    %5296 = vst [vmem:[#allocation4 + $0x58] sm:$0xff] %v5283
    %5297 = vst [vmem:[#allocation4 + $0x60] sm:$0xff] %v5284
    %v5298 = vld [vmem:[#allocation3 + $0x34] sm:$0xf]
    %v5299 = vld [vmem:[#allocation3 + $0x38] sm:$0xf]
    %v5300 = vld [vmem:[#allocation3 + $0x3c] sm:$0xf]
    %v5301 = vld [vmem:[#allocation3 + $0x40] sm:$0xf]
    %v5302 = vld [vmem:[#allocation3 + $0x44] sm:$0xf]
    %v5303 = vld [vmem:[#allocation3 + $0x48] sm:$0xf]
    %v5304 = vld [vmem:[#allocation3 + $0x4c] sm:$0xf]
    %v5305 = vld [vmem:[#allocation3 + $0x50] sm:$0xf]
    %v5306 = vld [vmem:[#allocation3 + $0x54] sm:$0xf]
    %v5307 = vld [vmem:[#allocation3 + $0x58] sm:$0xf]
    %v5308 = vld [vmem:[#allocation3 + $0x5c] sm:$0x1]
    %v5309 = vld [vmem:[#allocation3 + $0x34] sm:$0xe]
    %v5320 = vunpack.c.l.b16 %v5298
    %v5321 = vunpack.c.l.b16 %v5299
    %v5322 = vunpack.c.l.b16 %v5300
    %v5323 = vunpack.c.l.b16 %v5301
    %v5324 = vunpack.c.l.b16 %v5302
    %v5325 = vunpack.c.l.b16 %v5303
    %v5326 = vunpack.c.l.b16 %v5304
    %v5327 = vunpack.c.l.b16 %v5305
    %v5328 = vunpack.c.l.b16 %v5306
    %v5329 = vunpack.c.l.b16 %v5307
    %v5330 = vpack.c.b16 %v5321, %v5320
    %v5331 = vpack.c.b16 %v5323, %v5322
    %v5332 = vpack.c.b16 %v5325, %v5324
    %v5333 = vpack.c.b16 %v5327, %v5326
    %v5334 = vpack.c.b16 %v5329, %v5328
    %v5341 = vunpack.c.l.b16 %v5308
    %v5342 = vpack.c.b16 %v5341, %v5341
    %v5344 = vshrl.u32 %v5330, 16
    %v5346 = vshll.u32 %v5330, 16
    %v5348 = vrot.slane %v5346, 1
    %v5349 = vor.u32 %v5344, %v5348
    %v5351 = vshll.u32 %v5331, 16
    %v5353 = vrot.slane %v5351, 1
    %v5354 = vsel %vm922, %v5349, %v5353
    %v5355 = vshrl.u32 %v5331, 16
    %v5357 = vor.u32 %v5355, %v5353
    %v5359 = vshll.u32 %v5332, 16
    %v5361 = vrot.slane %v5359, 1
    %v5362 = vsel %vm922, %v5357, %v5361
    %v5363 = vshrl.u32 %v5332, 16
    %v5365 = vor.u32 %v5363, %v5361
    %v5367 = vshll.u32 %v5333, 16
    %v5369 = vrot.slane %v5367, 1
    %v5370 = vsel %vm922, %v5365, %v5369
    %v5371 = vshrl.u32 %v5333, 16
    %v5373 = vor.u32 %v5371, %v5369
    %v5375 = vshll.u32 %v5334, 16
    %v5377 = vrot.slane %v5375, 1
    %v5378 = vsel %vm922, %v5373, %v5377
    %v5379 = vshrl.u32 %v5334, 16
    %v5381 = vor.u32 %v5379, %v5377
    %v5383 = vshll.u32 %v5342, 16
    %v5385 = vrot.slane %v5383, 1
    %v5386 = vsel %vm922, %v5381, %v5385
    %v5393 = vunpack.c.l.b16 %v5309
    %v5394 = vpack.c.b16 %v5321, %v5393
    %v5395 = vrot.slane %v5394, 1
    %v5396 = vrot.slane %v5331, 1
    %v5397 = vsel %vm995, %v5395, %v5396
    %v5398 = vrot.slane %v5332, 1
    %v5399 = vsel %vm995, %v5396, %v5398
    %v5400 = vrot.slane %v5333, 1
    %v5401 = vsel %vm995, %v5398, %v5400
    %v5402 = vrot.slane %v5334, 1
    %v5403 = vsel %vm995, %v5400, %v5402
    %v5404 = vrot.slane %v5342, 1
    %v5405 = vsel %vm995, %v5402, %v5404
    %v5411 = vld [vmem:[#allocation13] sm:$0xf]
    %v5412 = vld [vmem:[#allocation13 + $0x4] sm:$0xf]
    %v5413 = vld [vmem:[#allocation13 + $0x8] sm:$0xf]
    %v5414 = vld [vmem:[#allocation13 + $0xc] sm:$0xf]
    %v5415 = vld [vmem:[#allocation13 + $0x10] sm:$0xf]
    %v5416 = vld [vmem:[#allocation13 + $0x14] sm:$0xf]
    %v5417 = vld [vmem:[#allocation13 + $0x18] sm:$0xf]
    %v5418 = vld [vmem:[#allocation13 + $0x1c] sm:$0xf]
    %v5419 = vld [vmem:[#allocation13 + $0x20] sm:$0xf]
    %v5420 = vld [vmem:[#allocation13 + $0x24] sm:$0xf]
    %v5421 = vld [vmem:[#allocation13 + $0x28] sm:$0xf]
    %v5422 = vld [vmem:[#allocation13 + $0x2c] sm:$0xf]
    %v5423 = vld [vmem:[#allocation13 + $0x30] sm:$0xf]
    %v5424 = vld [vmem:[#allocation13 + $0x34] sm:$0xf]
    %v5425 = vld [vmem:[#allocation13 + $0x38] sm:$0xf]
    %v5426 = vld [vmem:[#allocation13 + $0x3c] sm:$0xf]
    %v5427 = vld [vmem:[#allocation13 + $0x40] sm:$0xf]
    %v5428 = vld [vmem:[#allocation13 + $0x44] sm:$0xf]
    %v5429 = vld [vmem:[#allocation13 + $0x48] sm:$0xf]
    %v5430 = vld [vmem:[#allocation13 + $0x4c] sm:$0xf]
    %v5431 = vld [vmem:[#allocation13 + $0x50] sm:$0xf]
    %v5432 = vld [vmem:[#allocation13 + $0x54] sm:$0xf]
    %v5433 = vld [vmem:[#allocation13 + $0x58] sm:$0xf]
    %v5434 = vld [vmem:[#allocation13 + $0x5c] sm:$0xf]
    %v5435 = vld [vmem:[#allocation13 + $0x60] sm:$0xf]
    %v5436 = vld [vmem:[#allocation13 + $0x64] sm:$0xf]
    %v5437 = vld [vmem:[#allocation13 + $0x68] sm:$0xf]
    %v5438 = vld [vmem:[#allocation13 + $0x6c] sm:$0xf]
    %v5439 = vld [vmem:[#allocation13 + $0x70] sm:$0xf]
    %v5440 = vld [vmem:[#allocation13 + $0x74] sm:$0xf]
    %v5441 = vld [vmem:[#allocation13 + $0x78] sm:$0xf]
    %v5442 = vld [vmem:[#allocation13 + $0x7c] sm:$0xf]
    %v5443 = vld [vmem:[#allocation13 + $0x80] sm:$0xf]
    %v5444 = vld [vmem:[#allocation13 + $0x84] sm:$0xf]
    %v5445 = vld [vmem:[#allocation13 + $0x88] sm:$0xf]
    %v5446 = vld [vmem:[#allocation13 + $0x8c] sm:$0xf]
    %v5447 = vld [vmem:[#allocation13 + $0x90] sm:$0xf]
    %v5448 = vld [vmem:[#allocation13 + $0x94] sm:$0xf]
    %v5449 = vld [vmem:[#allocation13 + $0x98] sm:$0xf]
    %v5450 = vld [vmem:[#allocation13 + $0x9c] sm:$0xf]
    %v5451 = vld [vmem:[#allocation13 + $0xa0] sm:$0xf]
    %v5452 = vld [vmem:[#allocation13 + $0xa4] sm:$0xf]
    %v5453 = vld [vmem:[#allocation13 + $0xa8] sm:$0xf]
    %v5454 = vld [vmem:[#allocation13 + $0xac] sm:$0xf]
    %v5455 = vld [vmem:[#allocation13 + $0xb0] sm:$0xf]
    %v5456 = vld [vmem:[#allocation13 + $0xb4] sm:$0xf]
    %v5457 = vld [vmem:[#allocation13 + $0xb8] sm:$0xf]
    %v5458 = vld [vmem:[#allocation13 + $0xbc] sm:$0xf]
    %v5459 = vld [vmem:[#allocation3 + $0x38] sm:$0xe]
    %v5460 = vld [vmem:[#allocation3 + $0x5c] sm:$0xf]
    %v5461 = vld [vmem:[#allocation3 + $0x60] sm:$0x3]
    %v5462 = vld [vmem:[#allocation3 + $0x38] sm:$0xc]
    %v5463 = vld [vmem:[#allocation3 + $0x60] sm:$0x7]
    %v5467 = vunpack.c.l.b16 %v5459
    %v5468 = vunpack.c.l.b16 %v5460
    %v5469 = vunpack.c.l.b16 %v5461
    %v5470 = vpack.c.b16 %v5322, %v5467
    %v5471 = vpack.c.b16 %v5324, %v5323
    %v5472 = vpack.c.b16 %v5326, %v5325
    %v5473 = vpack.c.b16 %v5328, %v5327
    %v5474 = vpack.c.b16 %v5468, %v5329
    %v5475 = vpack.c.b16 %v5469, %v5469
    %v5477 = vunpack.c.l.b16 %v5462
    %v5478 = vpack.c.b16 %v5322, %v5477
    %v5480 = vshrl.u32 %v5478, 16
    %v5482 = vshll.u32 %v5478, 16
    %v5484 = vrot.slane %v5482, 1
    %v5485 = vor.u32 %v5480, %v5484
    %v5487 = vshll.u32 %v5471, 16
    %v5489 = vrot.slane %v5487, 1
    %v5490 = vsel %vm922, %v5485, %v5489
    %v5491 = vshrl.u32 %v5471, 16
    %v5493 = vor.u32 %v5491, %v5489
    %v5495 = vshll.u32 %v5472, 16
    %v5497 = vrot.slane %v5495, 1
    %v5498 = vsel %vm922, %v5493, %v5497
    %v5499 = vshrl.u32 %v5472, 16
    %v5501 = vor.u32 %v5499, %v5497
    %v5503 = vshll.u32 %v5473, 16
    %v5505 = vrot.slane %v5503, 1
    %v5506 = vsel %vm922, %v5501, %v5505
    %v5507 = vshrl.u32 %v5473, 16
    %v5509 = vor.u32 %v5507, %v5505
    %v5511 = vshll.u32 %v5474, 16
    %v5513 = vrot.slane %v5511, 1
    %v5514 = vsel %vm922, %v5509, %v5513
    %v5515 = vshrl.u32 %v5474, 16
    %v5517 = vor.u32 %v5515, %v5513
    %v5519 = vshll.u32 %v5475, 16
    %v5521 = vrot.slane %v5519, 1
    %v5522 = vsel %vm922, %v5517, %v5521
    %v5523 = vshrl.u32 %v5475, 16
    %v5525 = vor.u32 %v5523, %v5521
    %v5527 = vunpack.c.l.b16 %v5463
    %v5528 = vpack.c.b16 %v5527, %v5527
    %v5529 = vrot.slane %v5478, 1
    %v5530 = vrot.slane %v5471, 1
    %v5531 = vsel %vm995, %v5529, %v5530
    %v5532 = vrot.slane %v5472, 1
    %v5533 = vsel %vm995, %v5530, %v5532
    %v5534 = vrot.slane %v5473, 1
    %v5535 = vsel %vm995, %v5532, %v5534
    %v5536 = vrot.slane %v5474, 1
    %v5537 = vsel %vm995, %v5534, %v5536
    %v5538 = vrot.slane %v5528, 1
    %v5539 = vsel %vm995, %v5536, %v5538
    %v5540 = vld [vmem:[%s3816] sm:$0xf]
    %v5541 = vld [vmem:[%s3816 + $0x4] sm:$0xf]
    %v5542 = vld [vmem:[%s3816 + $0x8] sm:$0xf]
    %v5543 = vld [vmem:[%s3816 + $0xc] sm:$0xf]
    %v5544 = vld [vmem:[%s3816 + $0x10] sm:$0xf]
    %v5545 = vld [vmem:[%s3816 + $0x14] sm:$0xf]
    %v5546 = vld [vmem:[%s3816 + $0x18] sm:$0xf]
    %v5547 = vld [vmem:[%s3816 + $0x1c] sm:$0xf]
    %v5548 = vld [vmem:[%s3816 + $0x20] sm:$0xf]
    %v5549 = vld [vmem:[%s3816 + $0x24] sm:$0xf]
    %v5550 = vld [vmem:[%s3816 + $0x28] sm:$0xf]
    %v5551 = vld [vmem:[%s3816 + $0x2c] sm:$0xf]
    %v5552 = vld [vmem:[%s3816 + $0x30] sm:$0xf]
    %v5553 = vld [vmem:[%s3816 + $0x34] sm:$0xf]
    %v5554 = vld [vmem:[%s3816 + $0x38] sm:$0xf]
    %v5555 = vld [vmem:[%s3816 + $0x3c] sm:$0xf]
    %v5556 = vld [vmem:[%s3816 + $0x40] sm:$0xf]
    %v5557 = vld [vmem:[%s3816 + $0x44] sm:$0xf]
    %v5558 = vld [vmem:[%s3816 + $0x48] sm:$0xf]
    %v5559 = vld [vmem:[%s3816 + $0x4c] sm:$0xf]
    %v5560 = vld [vmem:[%s3816 + $0x50] sm:$0xf]
    %v5561 = vld [vmem:[%s3816 + $0x54] sm:$0xf]
    %v5562 = vld [vmem:[%s3816 + $0x58] sm:$0xf]
    %v5563 = vld [vmem:[%s3816 + $0x5c] sm:$0xf]
    %v5564 = vld [vmem:[%s3816 + $0x60] sm:$0xf]
    %v5565 = vld [vmem:[%s3816 + $0x64] sm:$0xf]
    %v5566 = vld [vmem:[%s3816 + $0x68] sm:$0xf]
    %v5567 = vld [vmem:[%s3816 + $0x6c] sm:$0xf]
    %v5568 = vld [vmem:[%s3816 + $0x70] sm:$0xf]
    %v5569 = vld [vmem:[%s3816 + $0x74] sm:$0xf]
    %v5570 = vld [vmem:[%s3816 + $0x78] sm:$0xf]
    %v5571 = vld [vmem:[%s3816 + $0x7c] sm:$0xf]
    %v5572 = vld [vmem:[%s3816 + $0x80] sm:$0xf]
    %v5573 = vld [vmem:[%s3816 + $0x84] sm:$0xf]
    %v5574 = vld [vmem:[%s3816 + $0x88] sm:$0xf]
    %v5575 = vld [vmem:[%s3816 + $0x8c] sm:$0xf]
    %v5576 = vld [vmem:[%s3816 + $0x90] sm:$0xf]
    %v5577 = vld [vmem:[%s3816 + $0x94] sm:$0xf]
    %v5578 = vld [vmem:[%s3816 + $0x98] sm:$0xf]
    %v5579 = vld [vmem:[%s3816 + $0x9c] sm:$0xf]
    %v5580 = vld [vmem:[%s3816 + $0xa0] sm:$0xf]
    %v5581 = vld [vmem:[%s3816 + $0xa4] sm:$0xf]
    %v5582 = vld [vmem:[%s3816 + $0xa8] sm:$0xf]
    %v5583 = vld [vmem:[%s3816 + $0xac] sm:$0xf]
    %v5584 = vld [vmem:[%s3816 + $0xb0] sm:$0xf]
    %v5585 = vld [vmem:[%s3816 + $0xb4] sm:$0xf]
    %v5586 = vld [vmem:[%s3816 + $0xb8] sm:$0xf]
    %v5587 = vld [vmem:[%s3816 + $0xbc] sm:$0xf]
    %v5589 = vshrl.u32 %v5470, 16
    %v5591 = vrot.slane %v5589, 1
    %v5592 = vshll.u32 %v5470, 16
    %v5594 = vrot.slane %v5592, 2
    %v5595 = vor.u32 %v5591, %v5594
    %v5596 = vrot.slane %v5491, 1
    %v5597 = vrot.slane %v5487, 2
    %v5598 = vor.u32 %v5596, %v5597
    %v5599 = vsel %vm1202, %v5595, %v5598
    %v5601 = vshrl.u32 %v5490, 16
    %v5603 = vrot.slane %v5601, 1
    %v5604 = vshll.u32 %v5490, 16
    %v5606 = vrot.slane %v5604, 2
    %v5607 = vor.u32 %v5603, %v5606
    %v5609 = vshrl.u32 %v5498, 16
    %v5611 = vrot.slane %v5609, 1
    %v5612 = vshll.u32 %v5498, 16
    %v5614 = vrot.slane %v5612, 2
    %v5615 = vor.u32 %v5611, %v5614
    %v5616 = vsel %vm1202, %v5607, %v5615
    %v5618 = vshrl.u32 %v5531, 16
    %v5620 = vrot.slane %v5618, 1
    %v5621 = vshll.u32 %v5531, 16
    %v5623 = vrot.slane %v5621, 2
    %v5624 = vor.u32 %v5620, %v5623
    %v5626 = vshrl.u32 %v5533, 16
    %v5628 = vrot.slane %v5626, 1
    %v5629 = vshll.u32 %v5533, 16
    %v5631 = vrot.slane %v5629, 2
    %v5632 = vor.u32 %v5628, %v5631
    %v5633 = vsel %vm1202, %v5624, %v5632
    %v5634 = vrot.slane %v5499, 1
    %v5635 = vrot.slane %v5495, 2
    %v5636 = vor.u32 %v5634, %v5635
    %v5637 = vsel %vm1202, %v5598, %v5636
    %v5639 = vshrl.u32 %v5506, 16
    %v5641 = vrot.slane %v5639, 1
    %v5642 = vshll.u32 %v5506, 16
    %v5644 = vrot.slane %v5642, 2
    %v5645 = vor.u32 %v5641, %v5644
    %v5646 = vsel %vm1202, %v5615, %v5645
    %v5648 = vshrl.u32 %v5535, 16
    %v5650 = vrot.slane %v5648, 1
    %v5651 = vshll.u32 %v5535, 16
    %v5653 = vrot.slane %v5651, 2
    %v5654 = vor.u32 %v5650, %v5653
    %v5655 = vsel %vm1202, %v5632, %v5654
    %v5656 = vrot.slane %v5507, 1
    %v5657 = vrot.slane %v5503, 2
    %v5658 = vor.u32 %v5656, %v5657
    %v5659 = vsel %vm1202, %v5636, %v5658
    %v5661 = vshrl.u32 %v5514, 16
    %v5663 = vrot.slane %v5661, 1
    %v5664 = vshll.u32 %v5514, 16
    %v5666 = vrot.slane %v5664, 2
    %v5667 = vor.u32 %v5663, %v5666
    %v5668 = vsel %vm1202, %v5645, %v5667
    %v5670 = vshrl.u32 %v5537, 16
    %v5672 = vrot.slane %v5670, 1
    %v5673 = vshll.u32 %v5537, 16
    %v5675 = vrot.slane %v5673, 2
    %v5676 = vor.u32 %v5672, %v5675
    %v5677 = vsel %vm1202, %v5654, %v5676
    %v5678 = vrot.slane %v5515, 1
    %v5679 = vrot.slane %v5511, 2
    %v5680 = vor.u32 %v5678, %v5679
    %v5681 = vsel %vm1202, %v5658, %v5680
    %v5683 = vshrl.u32 %v5522, 16
    %v5685 = vrot.slane %v5683, 1
    %v5686 = vshll.u32 %v5522, 16
    %v5688 = vrot.slane %v5686, 2
    %v5689 = vor.u32 %v5685, %v5688
    %v5690 = vsel %vm1202, %v5667, %v5689
    %v5692 = vshrl.u32 %v5539, 16
    %v5694 = vrot.slane %v5692, 1
    %v5695 = vshll.u32 %v5539, 16
    %v5697 = vrot.slane %v5695, 2
    %v5698 = vor.u32 %v5694, %v5697
    %v5699 = vsel %vm1202, %v5676, %v5698
    %v5700 = vrot.slane %v5523, 1
    %v5701 = vrot.slane %v5519, 2
    %v5702 = vor.u32 %v5700, %v5701
    %v5703 = vsel %vm1202, %v5680, %v5702
    %v5705 = vshrl.u32 %v5525, 16
    %v5707 = vrot.slane %v5705, 1
    %v5708 = vshll.u32 %v5525, 16
    %v5710 = vrot.slane %v5708, 2
    %v5711 = vor.u32 %v5707, %v5710
    %v5712 = vsel %vm1202, %v5689, %v5711
    %v5714 = vshrl.u32 %v5538, 16
    %v5716 = vrot.slane %v5714, 1
    %v5717 = vshll.u32 %v5538, 16
    %v5719 = vrot.slane %v5717, 2
    %v5720 = vor.u32 %v5716, %v5719
    %v5721 = vsel %vm1202, %v5698, %v5720
    %v5785 = vunpack.c.l.b16 %v5540
    %v5786 = vunpack.c.l.b16 %v5541
    %v5787 = vunpack.c.l.b16 %v5542
    %v5788 = vunpack.c.l.b16 %v5543
    %v5789 = vunpack.c.l.b16 %v5544
    %v5790 = vunpack.c.l.b16 %v5545
    %v5791 = vunpack.c.l.b16 %v5546
    %v5792 = vunpack.c.l.b16 %v5547
    %v5793 = vunpack.c.l.b16 %v5548
    %v5794 = vunpack.c.l.b16 %v5549
    %v5795 = vunpack.c.l.b16 %v5550
    %v5796 = vunpack.c.l.b16 %v5551
    %v5797 = vunpack.c.l.b16 %v5552
    %v5798 = vunpack.c.l.b16 %v5553
    %v5799 = vunpack.c.l.b16 %v5554
    %v5800 = vunpack.c.l.b16 %v5555
    %v5801 = vunpack.c.l.b16 %v5556
    %v5802 = vunpack.c.l.b16 %v5557
    %v5803 = vunpack.c.l.b16 %v5558
    %v5804 = vunpack.c.l.b16 %v5559
    %v5805 = vunpack.c.l.b16 %v5560
    %v5806 = vunpack.c.l.b16 %v5561
    %v5807 = vunpack.c.l.b16 %v5562
    %v5808 = vunpack.c.l.b16 %v5563
    %v5809 = vunpack.c.l.b16 %v5564
    %v5810 = vunpack.c.l.b16 %v5565
    %v5811 = vunpack.c.l.b16 %v5566
    %v5812 = vunpack.c.l.b16 %v5567
    %v5813 = vunpack.c.l.b16 %v5568
    %v5814 = vunpack.c.l.b16 %v5569
    %v5815 = vunpack.c.l.b16 %v5570
    %v5816 = vunpack.c.l.b16 %v5571
    %v5817 = vunpack.c.l.b16 %v5572
    %v5818 = vunpack.c.l.b16 %v5573
    %v5819 = vunpack.c.l.b16 %v5574
    %v5820 = vunpack.c.l.b16 %v5575
    %v5821 = vunpack.c.l.b16 %v5576
    %v5822 = vunpack.c.l.b16 %v5577
    %v5823 = vunpack.c.l.b16 %v5578
    %v5824 = vunpack.c.l.b16 %v5579
    %v5825 = vunpack.c.l.b16 %v5580
    %v5826 = vunpack.c.l.b16 %v5581
    %v5827 = vunpack.c.l.b16 %v5582
    %v5828 = vunpack.c.l.b16 %v5583
    %v5829 = vunpack.c.l.b16 %v5584
    %v5830 = vunpack.c.l.b16 %v5585
    %v5831 = vunpack.c.l.b16 %v5586
    %v5832 = vunpack.c.l.b16 %v5587
    %v5833 = vpack.c.b16 %v5786, %v5785
    %v5834 = vpack.c.b16 %v5788, %v5787
    %v5835 = vpack.c.b16 %v5790, %v5789
    %v5836 = vpack.c.b16 %v5792, %v5791
    %v5837 = vpack.c.b16 %v5794, %v5793
    %v5838 = vpack.c.b16 %v5796, %v5795
    %v5839 = vpack.c.b16 %v5798, %v5797
    %v5840 = vpack.c.b16 %v5800, %v5799
    %v5841 = vpack.c.b16 %v5802, %v5801
    %v5842 = vpack.c.b16 %v5804, %v5803
    %v5843 = vpack.c.b16 %v5806, %v5805
    %v5844 = vpack.c.b16 %v5808, %v5807
    %v5845 = vpack.c.b16 %v5810, %v5809
    %v5846 = vpack.c.b16 %v5812, %v5811
    %v5847 = vpack.c.b16 %v5814, %v5813
    %v5848 = vpack.c.b16 %v5816, %v5815
    %v5849 = vpack.c.b16 %v5818, %v5817
    %v5850 = vpack.c.b16 %v5820, %v5819
    %v5851 = vpack.c.b16 %v5822, %v5821
    %v5852 = vpack.c.b16 %v5824, %v5823
    %v5853 = vpack.c.b16 %v5826, %v5825
    %v5854 = vpack.c.b16 %v5828, %v5827
    %v5855 = vpack.c.b16 %v5830, %v5829
    %v5856 = vpack.c.b16 %v5832, %v5831
    %5881 = vmatprep.subr.bf16.mxu0 0
    %5882 = vmatpush1.bf16.msra.mxu0 %v5840
    %5883 = vmatprep.subr.bf16.mxu0 0
    %5884 = vmatpush1.bf16.msra.mxu0 %v5839
    %5885 = vmatprep.subr.bf16.mxu0 0
    %5886 = vmatpush1.bf16.msra.mxu0 %v5838
    %5887 = vmatprep.subr.bf16.mxu0 0
    %5888 = vmatpush1.bf16.msra.mxu0 %v5837
    %5889 = vmatprep.subr.bf16.mxu0 0
    %5890 = vmatpush1.bf16.msra.mxu0 %v5836
    %5891 = vmatprep.subr.bf16.mxu0 0
    %5892 = vmatpush1.bf16.msra.mxu0 %v5835
    %5893 = vmatprep.subr.bf16.mxu0 0
    %5894 = vmatpush1.bf16.msra.mxu0 %v5834
    %5895 = vmatprep.subr.bf16.mxu0 0
    %5896 = vmatpush1.bf16.msra.mxu0 %v5833
    %5897 = vmatprep.subr.bf16.mxu0 0
    %5898 = vmatpush2.bf16.msra.mxu0 %v5848
    %5899 = vmatprep.subr.bf16.mxu0 0
    %5900 = vmatpush2.bf16.msra.mxu0 %v5847
    %5901 = vmatprep.subr.bf16.mxu0 0
    %5902 = vmatpush2.bf16.msra.mxu0 %v5846
    %5903 = vmatprep.subr.bf16.mxu0 0
    %5904 = vmatpush2.bf16.msra.mxu0 %v5845
    %5905 = vmatprep.subr.bf16.mxu0 0
    %5906 = vmatpush2.bf16.msra.mxu0 %v5844
    %5907 = vmatprep.subr.bf16.mxu0 0
    %5908 = vmatpush2.bf16.msra.mxu0 %v5843
    %5909 = vmatprep.subr.bf16.mxu0 0
    %5910 = vmatpush2.bf16.msra.mxu0 %v5842
    %5911 = vmatprep.subr.bf16.mxu0 0
    %5912 = vmatpush2.bf16.msra.mxu0 %v5841
    %5913 = vmatprep.mubr.bf16.mxu0 %v5616
    %5914 = vmatmul.mubr.bf16.gmra.mxu0 %v5599
    %v5915 = vpop.f32.mrf.mxu0
    %v5916 = vadd.f32 0.0, %v5915
    %v5917 = vpop.f32.mrf.mxu0
    %v5918 = vpop.f32.mrf.mxu0
    %v5919 = vadd.f32 0.0, %v5918
    %v5920 = vpop.f32.mrf.mxu0
    %5921 = vmatprep.mubr.bf16.mxu0 %v5646
    %5922 = vmatmul.mubr.bf16.gmra.mxu0 %v5637
    %v5923 = vpop.f32.mrf.mxu0
    %v5924 = vadd.f32 0.0, %v5923
    %v5925 = vpop.f32.mrf.mxu0
    %v5926 = vpop.f32.mrf.mxu0
    %v5927 = vadd.f32 0.0, %v5926
    %v5928 = vpop.f32.mrf.mxu0
    %5929 = vmatprep.mubr.bf16.mxu0 %v5668
    %5930 = vmatmul.mubr.bf16.gmra.mxu0 %v5659
    %v5931 = vpop.f32.mrf.mxu0
    %v5932 = vadd.f32 0.0, %v5931
    %v5933 = vpop.f32.mrf.mxu0
    %v5934 = vpop.f32.mrf.mxu0
    %v5935 = vadd.f32 0.0, %v5934
    %v5936 = vpop.f32.mrf.mxu0
    %5937 = vmatprep.mubr.bf16.mxu0 %v5690
    %5938 = vmatmul.mubr.bf16.gmra.mxu0 %v5681
    %v5939 = vpop.f32.mrf.mxu0
    %v5940 = vadd.f32 0.0, %v5939
    %v5941 = vpop.f32.mrf.mxu0
    %v5942 = vpop.f32.mrf.mxu0
    %v5943 = vadd.f32 0.0, %v5942
    %v5944 = vpop.f32.mrf.mxu0
    %5945 = vmatprep.mubr.bf16.mxu0 %v5712
    %5946 = vmatmul.mubr.bf16.gmra.mxu0 %v5703
    %v5947 = vpop.f32.mrf.mxu0
    %v5948 = vadd.f32 0.0, %v5947
    %v5949 = vpop.f32.mrf.mxu0
    %v5950 = vpop.f32.mrf.mxu0
    %v5951 = vadd.f32 0.0, %v5950
    %v5952 = vpop.f32.mrf.mxu0
    %5953 = vdwg.mxu0
    %5954 = vmatprep.subr.bf16.mxu0 0
    %5955 = vmatpush1.bf16.msra.mxu0 %v5856
    %5956 = vmatprep.subr.bf16.mxu0 0
    %5957 = vmatpush1.bf16.msra.mxu0 %v5855
    %5958 = vmatprep.subr.bf16.mxu0 0
    %5959 = vmatpush1.bf16.msra.mxu0 %v5854
    %5960 = vmatprep.subr.bf16.mxu0 0
    %5961 = vmatpush1.bf16.msra.mxu0 %v5853
    %5962 = vmatprep.subr.bf16.mxu0 0
    %5963 = vmatpush1.bf16.msra.mxu0 %v5852
    %5964 = vmatprep.subr.bf16.mxu0 0
    %5965 = vmatpush1.bf16.msra.mxu0 %v5851
    %5966 = vmatprep.subr.bf16.mxu0 0
    %5967 = vmatpush1.bf16.msra.mxu0 %v5850
    %5968 = vmatprep.subr.bf16.mxu0 0
    %5969 = vmatpush1.bf16.msra.mxu0 %v5849
    %5970 = vmatprep.subr.bf16.mxu0 0
    %5971 = vmatpush2.bf16.msra.mxu0 0
    %5972 = vmatprep.subr.bf16.mxu0 0
    %5973 = vmatpush2.bf16.msra.mxu0 0
    %5974 = vmatprep.subr.bf16.mxu0 0
    %5975 = vmatpush2.bf16.msra.mxu0 0
    %5976 = vmatprep.subr.bf16.mxu0 0
    %5977 = vmatpush2.bf16.msra.mxu0 0
    %5978 = vmatprep.subr.bf16.mxu0 0
    %5979 = vmatpush2.bf16.msra.mxu0 0
    %5980 = vmatprep.subr.bf16.mxu0 0
    %5981 = vmatpush2.bf16.msra.mxu0 0
    %5982 = vmatprep.subr.bf16.mxu0 0
    %5983 = vmatpush2.bf16.msra.mxu0 0
    %5984 = vmatprep.subr.bf16.mxu0 0
    %5985 = vmatpush2.bf16.msra.mxu0 0
    %5986 = vmatprep.mubr.bf16.mxu0 0
    %5987 = vmatmul.mubr.bf16.gmra.mxu0 %v5633
    %v5988 = vpop.f32.mrf.mxu0
    %v5989 = vadd.f32 %v5916, %v5988
    %v5990 = vpop.f32.mrf.mxu0
    %v5991 = vpop.f32.mrf.mxu0
    %v5992 = vadd.f32 %v5919, %v5991
    %v5993 = vpop.f32.mrf.mxu0
    %5994 = vmatprep.mubr.bf16.mxu0 0
    %5995 = vmatmul.mubr.bf16.gmra.mxu0 %v5655
    %v5996 = vpop.f32.mrf.mxu0
    %v5997 = vadd.f32 %v5924, %v5996
    %v5998 = vpop.f32.mrf.mxu0
    %v5999 = vpop.f32.mrf.mxu0
    %v6000 = vadd.f32 %v5927, %v5999
    %v6001 = vpop.f32.mrf.mxu0
    %6002 = vmatprep.mubr.bf16.mxu0 0
    %6003 = vmatmul.mubr.bf16.gmra.mxu0 %v5677
    %v6004 = vpop.f32.mrf.mxu0
    %v6005 = vadd.f32 %v5932, %v6004
    %v6006 = vpop.f32.mrf.mxu0
    %v6007 = vpop.f32.mrf.mxu0
    %v6008 = vadd.f32 %v5935, %v6007
    %v6009 = vpop.f32.mrf.mxu0
    %6010 = vmatprep.mubr.bf16.mxu0 0
    %6011 = vmatmul.mubr.bf16.gmra.mxu0 %v5699
    %v6012 = vpop.f32.mrf.mxu0
    %v6013 = vadd.f32 %v5940, %v6012
    %v6014 = vpop.f32.mrf.mxu0
    %v6015 = vpop.f32.mrf.mxu0
    %v6016 = vadd.f32 %v5943, %v6015
    %v6017 = vpop.f32.mrf.mxu0
    %6018 = vmatprep.mubr.bf16.mxu0 0
    %6019 = vmatmul.mubr.bf16.gmra.mxu0 %v5721
    %v6020 = vpop.f32.mrf.mxu0
    %v6021 = vadd.f32 %v5948, %v6020
    %v6022 = vpop.f32.mrf.mxu0
    %v6023 = vpop.f32.mrf.mxu0
    %v6024 = vadd.f32 %v5951, %v6023
    %v6025 = vpop.f32.mrf.mxu0
    %6026 = vdwg.mxu0
    %v6075 = vunpack.c.l.b16 %v5411
    %v6076 = vunpack.c.l.b16 %v5412
    %v6077 = vunpack.c.l.b16 %v5413
    %v6078 = vunpack.c.l.b16 %v5414
    %v6079 = vunpack.c.l.b16 %v5415
    %v6080 = vunpack.c.l.b16 %v5416
    %v6081 = vunpack.c.l.b16 %v5417
    %v6082 = vunpack.c.l.b16 %v5418
    %v6083 = vunpack.c.l.b16 %v5419
    %v6084 = vunpack.c.l.b16 %v5420
    %v6085 = vunpack.c.l.b16 %v5421
    %v6086 = vunpack.c.l.b16 %v5422
    %v6087 = vunpack.c.l.b16 %v5423
    %v6088 = vunpack.c.l.b16 %v5424
    %v6089 = vunpack.c.l.b16 %v5425
    %v6090 = vunpack.c.l.b16 %v5426
    %v6091 = vunpack.c.l.b16 %v5427
    %v6092 = vunpack.c.l.b16 %v5428
    %v6093 = vunpack.c.l.b16 %v5429
    %v6094 = vunpack.c.l.b16 %v5430
    %v6095 = vunpack.c.l.b16 %v5431
    %v6096 = vunpack.c.l.b16 %v5432
    %v6097 = vunpack.c.l.b16 %v5433
    %v6098 = vunpack.c.l.b16 %v5434
    %v6099 = vunpack.c.l.b16 %v5435
    %v6100 = vunpack.c.l.b16 %v5436
    %v6101 = vunpack.c.l.b16 %v5437
    %v6102 = vunpack.c.l.b16 %v5438
    %v6103 = vunpack.c.l.b16 %v5439
    %v6104 = vunpack.c.l.b16 %v5440
    %v6105 = vunpack.c.l.b16 %v5441
    %v6106 = vunpack.c.l.b16 %v5442
    %v6107 = vunpack.c.l.b16 %v5443
    %v6108 = vunpack.c.l.b16 %v5444
    %v6109 = vunpack.c.l.b16 %v5445
    %v6110 = vunpack.c.l.b16 %v5446
    %v6111 = vunpack.c.l.b16 %v5447
    %v6112 = vunpack.c.l.b16 %v5448
    %v6113 = vunpack.c.l.b16 %v5449
    %v6114 = vunpack.c.l.b16 %v5450
    %v6115 = vunpack.c.l.b16 %v5451
    %v6116 = vunpack.c.l.b16 %v5452
    %v6117 = vunpack.c.l.b16 %v5453
    %v6118 = vunpack.c.l.b16 %v5454
    %v6119 = vunpack.c.l.b16 %v5455
    %v6120 = vunpack.c.l.b16 %v5456
    %v6121 = vunpack.c.l.b16 %v5457
    %v6122 = vunpack.c.l.b16 %v5458
    %v6123 = vpack.c.b16 %v6076, %v6075
    %v6124 = vpack.c.b16 %v6078, %v6077
    %v6125 = vpack.c.b16 %v6080, %v6079
    %v6126 = vpack.c.b16 %v6082, %v6081
    %v6127 = vpack.c.b16 %v6084, %v6083
    %v6128 = vpack.c.b16 %v6086, %v6085
    %v6129 = vpack.c.b16 %v6088, %v6087
    %v6130 = vpack.c.b16 %v6090, %v6089
    %v6131 = vpack.c.b16 %v6092, %v6091
    %v6132 = vpack.c.b16 %v6094, %v6093
    %v6133 = vpack.c.b16 %v6096, %v6095
    %v6134 = vpack.c.b16 %v6098, %v6097
    %v6135 = vpack.c.b16 %v6100, %v6099
    %v6136 = vpack.c.b16 %v6102, %v6101
    %v6137 = vpack.c.b16 %v6104, %v6103
    %v6138 = vpack.c.b16 %v6106, %v6105
    %v6139 = vpack.c.b16 %v6108, %v6107
    %v6140 = vpack.c.b16 %v6110, %v6109
    %v6141 = vpack.c.b16 %v6112, %v6111
    %v6142 = vpack.c.b16 %v6114, %v6113
    %v6143 = vpack.c.b16 %v6116, %v6115
    %v6144 = vpack.c.b16 %v6118, %v6117
    %v6145 = vpack.c.b16 %v6120, %v6119
    %v6146 = vpack.c.b16 %v6122, %v6121
    %6171 = vmatprep.subr.bf16.mxu0 0
    %6172 = vmatpush1.bf16.msra.mxu0 %v6130
    %6173 = vmatprep.subr.bf16.mxu0 0
    %6174 = vmatpush1.bf16.msra.mxu0 %v6129
    %6175 = vmatprep.subr.bf16.mxu0 0
    %6176 = vmatpush1.bf16.msra.mxu0 %v6128
    %6177 = vmatprep.subr.bf16.mxu0 0
    %6178 = vmatpush1.bf16.msra.mxu0 %v6127
    %6179 = vmatprep.subr.bf16.mxu0 0
    %6180 = vmatpush1.bf16.msra.mxu0 %v6126
    %6181 = vmatprep.subr.bf16.mxu0 0
    %6182 = vmatpush1.bf16.msra.mxu0 %v6125
    %6183 = vmatprep.subr.bf16.mxu0 0
    %6184 = vmatpush1.bf16.msra.mxu0 %v6124
    %6185 = vmatprep.subr.bf16.mxu0 0
    %6186 = vmatpush1.bf16.msra.mxu0 %v6123
    %6187 = vmatprep.subr.bf16.mxu0 0
    %6188 = vmatpush2.bf16.msra.mxu0 %v6138
    %6189 = vmatprep.subr.bf16.mxu0 0
    %6190 = vmatpush2.bf16.msra.mxu0 %v6137
    %6191 = vmatprep.subr.bf16.mxu0 0
    %6192 = vmatpush2.bf16.msra.mxu0 %v6136
    %6193 = vmatprep.subr.bf16.mxu0 0
    %6194 = vmatpush2.bf16.msra.mxu0 %v6135
    %6195 = vmatprep.subr.bf16.mxu0 0
    %6196 = vmatpush2.bf16.msra.mxu0 %v6134
    %6197 = vmatprep.subr.bf16.mxu0 0
    %6198 = vmatpush2.bf16.msra.mxu0 %v6133
    %6199 = vmatprep.subr.bf16.mxu0 0
    %6200 = vmatpush2.bf16.msra.mxu0 %v6132
    %6201 = vmatprep.subr.bf16.mxu0 0
    %6202 = vmatpush2.bf16.msra.mxu0 %v6131
    %6203 = vmatprep.mubr.bf16.mxu0 %v5354
    %6204 = vmatmul.mubr.bf16.gmra.mxu0 %v5330
    %v6205 = vpop.f32.mrf.mxu0
    %v6206 = vadd.f32 %v5989, %v6205
    %v6207 = vpop.f32.mrf.mxu0
    %v6208 = vpop.f32.mrf.mxu0
    %v6209 = vadd.f32 %v5992, %v6208
    %v6210 = vpop.f32.mrf.mxu0
    %6211 = vmatprep.mubr.bf16.mxu0 %v5362
    %6212 = vmatmul.mubr.bf16.gmra.mxu0 %v5331
    %v6213 = vpop.f32.mrf.mxu0
    %v6214 = vadd.f32 %v5997, %v6213
    %v6215 = vpop.f32.mrf.mxu0
    %v6216 = vpop.f32.mrf.mxu0
    %v6217 = vadd.f32 %v6000, %v6216
    %v6218 = vpop.f32.mrf.mxu0
    %6219 = vmatprep.mubr.bf16.mxu0 %v5370
    %6220 = vmatmul.mubr.bf16.gmra.mxu0 %v5332
    %v6221 = vpop.f32.mrf.mxu0
    %v6222 = vadd.f32 %v6005, %v6221
    %v6223 = vpop.f32.mrf.mxu0
    %v6224 = vpop.f32.mrf.mxu0
    %v6225 = vadd.f32 %v6008, %v6224
    %v6226 = vpop.f32.mrf.mxu0
    %6227 = vmatprep.mubr.bf16.mxu0 %v5378
    %6228 = vmatmul.mubr.bf16.gmra.mxu0 %v5333
    %v6229 = vpop.f32.mrf.mxu0
    %v6230 = vadd.f32 %v6013, %v6229
    %v6231 = vpop.f32.mrf.mxu0
    %v6232 = vpop.f32.mrf.mxu0
    %v6233 = vadd.f32 %v6016, %v6232
    %v6234 = vpop.f32.mrf.mxu0
    %6235 = vmatprep.mubr.bf16.mxu0 %v5386
    %6236 = vmatmul.mubr.bf16.gmra.mxu0 %v5334
    %v6237 = vpop.f32.mrf.mxu0
    %v6238 = vadd.f32 %v6021, %v6237
    %v6239 = vpop.f32.mrf.mxu0
    %v6240 = vpop.f32.mrf.mxu0
    %v6241 = vadd.f32 %v6024, %v6240
    %v6242 = vpop.f32.mrf.mxu0
    %6243 = vdwg.mxu0
    %6244 = vmatprep.subr.bf16.mxu0 0
    %6245 = vmatpush1.bf16.msra.mxu0 %v6146
    %6246 = vmatprep.subr.bf16.mxu0 0
    %6247 = vmatpush1.bf16.msra.mxu0 %v6145
    %6248 = vmatprep.subr.bf16.mxu0 0
    %6249 = vmatpush1.bf16.msra.mxu0 %v6144
    %6250 = vmatprep.subr.bf16.mxu0 0
    %6251 = vmatpush1.bf16.msra.mxu0 %v6143
    %6252 = vmatprep.subr.bf16.mxu0 0
    %6253 = vmatpush1.bf16.msra.mxu0 %v6142
    %6254 = vmatprep.subr.bf16.mxu0 0
    %6255 = vmatpush1.bf16.msra.mxu0 %v6141
    %6256 = vmatprep.subr.bf16.mxu0 0
    %6257 = vmatpush1.bf16.msra.mxu0 %v6140
    %6258 = vmatprep.subr.bf16.mxu0 0
    %6259 = vmatpush1.bf16.msra.mxu0 %v6139
    %6260 = vmatprep.subr.bf16.mxu0 0
    %6261 = vmatpush2.bf16.msra.mxu0 0
    %6262 = vmatprep.subr.bf16.mxu0 0
    %6263 = vmatpush2.bf16.msra.mxu0 0
    %6264 = vmatprep.subr.bf16.mxu0 0
    %6265 = vmatpush2.bf16.msra.mxu0 0
    %6266 = vmatprep.subr.bf16.mxu0 0
    %6267 = vmatpush2.bf16.msra.mxu0 0
    %6268 = vmatprep.subr.bf16.mxu0 0
    %6269 = vmatpush2.bf16.msra.mxu0 0
    %6270 = vmatprep.subr.bf16.mxu0 0
    %6271 = vmatpush2.bf16.msra.mxu0 0
    %6272 = vmatprep.subr.bf16.mxu0 0
    %6273 = vmatpush2.bf16.msra.mxu0 0
    %6274 = vmatprep.subr.bf16.mxu0 0
    %6275 = vmatpush2.bf16.msra.mxu0 0
    %6276 = vmatprep.mubr.bf16.mxu0 0
    %6277 = vmatmul.mubr.bf16.gmra.mxu0 %v5397
    %v6278 = vpop.f32.mrf.mxu0
    %v6279 = vadd.f32 %v6206, %v6278
    %v6280 = vpop.f32.mrf.mxu0
    %v6281 = vpop.f32.mrf.mxu0
    %v6282 = vadd.f32 %v6209, %v6281
    %v6283 = vpop.f32.mrf.mxu0
    %6284 = vmatprep.mubr.bf16.mxu0 0
    %6285 = vmatmul.mubr.bf16.gmra.mxu0 %v5399
    %v6286 = vpop.f32.mrf.mxu0
    %v6287 = vadd.f32 %v6214, %v6286
    %v6288 = vpop.f32.mrf.mxu0
    %v6289 = vpop.f32.mrf.mxu0
    %v6290 = vadd.f32 %v6217, %v6289
    %v6291 = vpop.f32.mrf.mxu0
    %6292 = vmatprep.mubr.bf16.mxu0 0
    %6293 = vmatmul.mubr.bf16.gmra.mxu0 %v5401
    %v6294 = vpop.f32.mrf.mxu0
    %v6295 = vadd.f32 %v6222, %v6294
    %v6296 = vpop.f32.mrf.mxu0
    %v6297 = vpop.f32.mrf.mxu0
    %v6298 = vadd.f32 %v6225, %v6297
    %v6299 = vpop.f32.mrf.mxu0
    %6300 = vmatprep.mubr.bf16.mxu0 0
    %6301 = vmatmul.mubr.bf16.gmra.mxu0 %v5403
    %v6302 = vpop.f32.mrf.mxu0
    %v6303 = vadd.f32 %v6230, %v6302
    %v6304 = vpop.f32.mrf.mxu0
    %v6305 = vpop.f32.mrf.mxu0
    %v6306 = vadd.f32 %v6233, %v6305
    %v6307 = vpop.f32.mrf.mxu0
    %6308 = vmatprep.mubr.bf16.mxu0 0
    %6309 = vmatmul.mubr.bf16.gmra.mxu0 %v5405
    %v6310 = vpop.f32.mrf.mxu0
    %v6311 = vadd.f32 %v6238, %v6310
    %v6312 = vpop.f32.mrf.mxu0
    %v6313 = vpop.f32.mrf.mxu0
    %v6314 = vadd.f32 %v6241, %v6313
    %v6315 = vpop.f32.mrf.mxu0
    %6316 = vdwg.mxu0
    %v6317 = vld [vmem:[#allocation3 + $0x3c] sm:$0x8]
    %v6318 = vld [vmem:[#allocation3 + $0x40] sm:$0xf]
    %v6319 = vld [vmem:[#allocation3 + $0x44] sm:$0xf]
    %v6320 = vld [vmem:[#allocation3 + $0x48] sm:$0xf]
    %v6321 = vld [vmem:[#allocation3 + $0x4c] sm:$0xf]
    %v6322 = vld [vmem:[#allocation3 + $0x50] sm:$0xf]
    %v6323 = vld [vmem:[#allocation3 + $0x54] sm:$0xf]
    %v6324 = vld [vmem:[#allocation3 + $0x58] sm:$0xf]
    %v6325 = vld [vmem:[#allocation3 + $0x5c] sm:$0xf]
    %v6326 = vld [vmem:[#allocation3 + $0x60] sm:$0xf]
    %v6327 = vld [vmem:[#allocation3 + $0x64] sm:$0x7]
    %v6328 = vld [vmem:[#allocation3 + $0x64] sm:$0xf]
    %v6340 = vunpack.c.l.b16 %v6317
    %v6341 = vunpack.c.l.b16 %v6318
    %v6342 = vunpack.c.l.b16 %v6319
    %v6343 = vunpack.c.l.b16 %v6320
    %v6344 = vunpack.c.l.b16 %v6321
    %v6345 = vunpack.c.l.b16 %v6322
    %v6346 = vunpack.c.l.b16 %v6323
    %v6347 = vunpack.c.l.b16 %v6324
    %v6348 = vunpack.c.l.b16 %v6325
    %v6349 = vunpack.c.l.b16 %v6326
    %v6350 = vunpack.c.l.b16 %v6327
    %v6351 = vpack.c.b16 %v6341, %v6340
    %v6352 = vpack.c.b16 %v6343, %v6342
    %v6353 = vpack.c.b16 %v6345, %v6344
    %v6354 = vpack.c.b16 %v6347, %v6346
    %v6355 = vpack.c.b16 %v6349, %v6348
    %v6356 = vpack.c.b16 %v6350, %v6350
    %v6358 = vunpack.c.l.b16 %v6328
    %v6359 = vpack.c.b16 %v6358, %v6358
    %v6361 = vshrl.u32 %v6351, 16
    %v6363 = vshll.u32 %v6351, 16
    %v6365 = vrot.slane %v6363, 1
    %v6366 = vor.u32 %v6361, %v6365
    %v6368 = vshll.u32 %v6352, 16
    %v6370 = vrot.slane %v6368, 1
    %v6371 = vsel %vm922, %v6366, %v6370
    %v6372 = vshrl.u32 %v6352, 16
    %v6374 = vor.u32 %v6372, %v6370
    %v6376 = vshll.u32 %v6353, 16
    %v6378 = vrot.slane %v6376, 1
    %v6379 = vsel %vm922, %v6374, %v6378
    %v6380 = vshrl.u32 %v6353, 16
    %v6382 = vor.u32 %v6380, %v6378
    %v6384 = vshll.u32 %v6354, 16
    %v6386 = vrot.slane %v6384, 1
    %v6387 = vsel %vm922, %v6382, %v6386
    %v6388 = vshrl.u32 %v6354, 16
    %v6390 = vor.u32 %v6388, %v6386
    %v6392 = vshll.u32 %v6355, 16
    %v6394 = vrot.slane %v6392, 1
    %v6395 = vsel %vm922, %v6390, %v6394
    %v6396 = vshrl.u32 %v6355, 16
    %v6398 = vor.u32 %v6396, %v6394
    %v6400 = vshll.u32 %v6359, 16
    %v6402 = vrot.slane %v6400, 1
    %v6403 = vsel %vm922, %v6398, %v6402
    %v6404 = vshrl.u32 %v6359, 16
    %v6406 = vor.u32 %v6404, %v6402
    %v6407 = vpack.c.b16 %v6342, %v6341
    %v6408 = vpack.c.b16 %v6344, %v6343
    %v6409 = vpack.c.b16 %v6346, %v6345
    %v6410 = vpack.c.b16 %v6348, %v6347
    %v6411 = vpack.c.b16 %v6358, %v6349
    %v6412 = vrot.slane %v6407, 5
    %v6413 = vrot.slane %v6408, 5
    %v6414 = vsel %vm1818, %v6412, %v6413
    %v6415 = vrot.slane %v6409, 5
    %v6416 = vsel %vm1818, %v6413, %v6415
    %v6417 = vrot.slane %v6410, 5
    %v6418 = vsel %vm1818, %v6415, %v6417
    %v6419 = vrot.slane %v6411, 5
    %v6420 = vsel %vm1818, %v6417, %v6419
    %v6421 = vld [vmem:[%s4810] sm:$0xf]
    %v6422 = vld [vmem:[%s4810 + $0x4] sm:$0xf]
    %v6423 = vld [vmem:[%s4810 + $0x8] sm:$0xf]
    %v6424 = vld [vmem:[%s4810 + $0xc] sm:$0xf]
    %v6425 = vld [vmem:[%s4810 + $0x10] sm:$0xf]
    %v6426 = vld [vmem:[%s4810 + $0x14] sm:$0xf]
    %v6427 = vld [vmem:[%s4810 + $0x18] sm:$0xf]
    %v6428 = vld [vmem:[%s4810 + $0x1c] sm:$0xf]
    %v6429 = vld [vmem:[%s4810 + $0x20] sm:$0xf]
    %v6430 = vld [vmem:[%s4810 + $0x24] sm:$0xf]
    %v6431 = vld [vmem:[%s4810 + $0x28] sm:$0xf]
    %v6432 = vld [vmem:[%s4810 + $0x2c] sm:$0xf]
    %v6433 = vld [vmem:[%s4810 + $0x30] sm:$0xf]
    %v6434 = vld [vmem:[%s4810 + $0x34] sm:$0xf]
    %v6435 = vld [vmem:[%s4810 + $0x38] sm:$0xf]
    %v6436 = vld [vmem:[%s4810 + $0x3c] sm:$0xf]
    %v6437 = vld [vmem:[%s4810 + $0x40] sm:$0xf]
    %v6438 = vld [vmem:[%s4810 + $0x44] sm:$0xf]
    %v6439 = vld [vmem:[%s4810 + $0x48] sm:$0xf]
    %v6440 = vld [vmem:[%s4810 + $0x4c] sm:$0xf]
    %v6441 = vld [vmem:[%s4810 + $0x50] sm:$0xf]
    %v6442 = vld [vmem:[%s4810 + $0x54] sm:$0xf]
    %v6443 = vld [vmem:[%s4810 + $0x58] sm:$0xf]
    %v6444 = vld [vmem:[%s4810 + $0x5c] sm:$0xf]
    %v6445 = vld [vmem:[%s4810 + $0x60] sm:$0xf]
    %v6446 = vld [vmem:[%s4810 + $0x64] sm:$0xf]
    %v6447 = vld [vmem:[%s4810 + $0x68] sm:$0xf]
    %v6448 = vld [vmem:[%s4810 + $0x6c] sm:$0xf]
    %v6449 = vld [vmem:[%s4810 + $0x70] sm:$0xf]
    %v6450 = vld [vmem:[%s4810 + $0x74] sm:$0xf]
    %v6451 = vld [vmem:[%s4810 + $0x78] sm:$0xf]
    %v6452 = vld [vmem:[%s4810 + $0x7c] sm:$0xf]
    %v6453 = vld [vmem:[%s4810 + $0x80] sm:$0xf]
    %v6454 = vld [vmem:[%s4810 + $0x84] sm:$0xf]
    %v6455 = vld [vmem:[%s4810 + $0x88] sm:$0xf]
    %v6456 = vld [vmem:[%s4810 + $0x8c] sm:$0xf]
    %v6457 = vld [vmem:[%s4810 + $0x90] sm:$0xf]
    %v6458 = vld [vmem:[%s4810 + $0x94] sm:$0xf]
    %v6459 = vld [vmem:[%s4810 + $0x98] sm:$0xf]
    %v6460 = vld [vmem:[%s4810 + $0x9c] sm:$0xf]
    %v6461 = vld [vmem:[%s4810 + $0xa0] sm:$0xf]
    %v6462 = vld [vmem:[%s4810 + $0xa4] sm:$0xf]
    %v6463 = vld [vmem:[%s4810 + $0xa8] sm:$0xf]
    %v6464 = vld [vmem:[%s4810 + $0xac] sm:$0xf]
    %v6465 = vld [vmem:[%s4810 + $0xb0] sm:$0xf]
    %v6466 = vld [vmem:[%s4810 + $0xb4] sm:$0xf]
    %v6467 = vld [vmem:[%s4810 + $0xb8] sm:$0xf]
    %v6468 = vld [vmem:[%s4810 + $0xbc] sm:$0xf]
    %v6469 = vrot.slane %v6351, 3
    %v6470 = vrot.slane %v6352, 3
    %v6471 = vsel %vm1879, %v6469, %v6470
    %v6472 = vrot.slane %v6371, 3
    %v6473 = vrot.slane %v6379, 3
    %v6474 = vsel %vm1879, %v6472, %v6473
    %v6475 = vrot.slane %v6412, 3
    %v6476 = vrot.slane %v6414, 3
    %v6477 = vsel %vm1879, %v6475, %v6476
    %v6478 = vrot.slane %v6353, 3
    %v6479 = vsel %vm1879, %v6470, %v6478
    %v6480 = vrot.slane %v6387, 3
    %v6481 = vsel %vm1879, %v6473, %v6480
    %v6482 = vrot.slane %v6416, 3
    %v6483 = vsel %vm1879, %v6476, %v6482
    %v6484 = vrot.slane %v6354, 3
    %v6485 = vsel %vm1879, %v6478, %v6484
    %v6486 = vrot.slane %v6395, 3
    %v6487 = vsel %vm1879, %v6480, %v6486
    %v6488 = vrot.slane %v6418, 3
    %v6489 = vsel %vm1879, %v6482, %v6488
    %v6490 = vrot.slane %v6355, 3
    %v6491 = vsel %vm1879, %v6484, %v6490
    %v6492 = vrot.slane %v6403, 3
    %v6493 = vsel %vm1879, %v6486, %v6492
    %v6494 = vrot.slane %v6420, 3
    %v6495 = vsel %vm1879, %v6488, %v6494
    %v6496 = vrot.slane %v6356, 3
    %v6497 = vsel %vm1879, %v6490, %v6496
    %v6498 = vrot.slane %v6406, 3
    %v6499 = vsel %vm1879, %v6492, %v6498
    %v6500 = vrot.slane %v6419, 3
    %v6501 = vsel %vm1879, %v6494, %v6500
    %v6565 = vunpack.c.l.b16 %v6421
    %v6566 = vunpack.c.l.b16 %v6422
    %v6567 = vunpack.c.l.b16 %v6423
    %v6568 = vunpack.c.l.b16 %v6424
    %v6569 = vunpack.c.l.b16 %v6425
    %v6570 = vunpack.c.l.b16 %v6426
    %v6571 = vunpack.c.l.b16 %v6427
    %v6572 = vunpack.c.l.b16 %v6428
    %v6573 = vunpack.c.l.b16 %v6429
    %v6574 = vunpack.c.l.b16 %v6430
    %v6575 = vunpack.c.l.b16 %v6431
    %v6576 = vunpack.c.l.b16 %v6432
    %v6577 = vunpack.c.l.b16 %v6433
    %v6578 = vunpack.c.l.b16 %v6434
    %v6579 = vunpack.c.l.b16 %v6435
    %v6580 = vunpack.c.l.b16 %v6436
    %v6581 = vunpack.c.l.b16 %v6437
    %v6582 = vunpack.c.l.b16 %v6438
    %v6583 = vunpack.c.l.b16 %v6439
    %v6584 = vunpack.c.l.b16 %v6440
    %v6585 = vunpack.c.l.b16 %v6441
    %v6586 = vunpack.c.l.b16 %v6442
    %v6587 = vunpack.c.l.b16 %v6443
    %v6588 = vunpack.c.l.b16 %v6444
    %v6589 = vunpack.c.l.b16 %v6445
    %v6590 = vunpack.c.l.b16 %v6446
    %v6591 = vunpack.c.l.b16 %v6447
    %v6592 = vunpack.c.l.b16 %v6448
    %v6593 = vunpack.c.l.b16 %v6449
    %v6594 = vunpack.c.l.b16 %v6450
    %v6595 = vunpack.c.l.b16 %v6451
    %v6596 = vunpack.c.l.b16 %v6452
    %v6597 = vunpack.c.l.b16 %v6453
    %v6598 = vunpack.c.l.b16 %v6454
    %v6599 = vunpack.c.l.b16 %v6455
    %v6600 = vunpack.c.l.b16 %v6456
    %v6601 = vunpack.c.l.b16 %v6457
    %v6602 = vunpack.c.l.b16 %v6458
    %v6603 = vunpack.c.l.b16 %v6459
    %v6604 = vunpack.c.l.b16 %v6460
    %v6605 = vunpack.c.l.b16 %v6461
    %v6606 = vunpack.c.l.b16 %v6462
    %v6607 = vunpack.c.l.b16 %v6463
    %v6608 = vunpack.c.l.b16 %v6464
    %v6609 = vunpack.c.l.b16 %v6465
    %v6610 = vunpack.c.l.b16 %v6466
    %v6611 = vunpack.c.l.b16 %v6467
    %v6612 = vunpack.c.l.b16 %v6468
    %v6613 = vpack.c.b16 %v6566, %v6565
    %v6614 = vpack.c.b16 %v6568, %v6567
    %v6615 = vpack.c.b16 %v6570, %v6569
    %v6616 = vpack.c.b16 %v6572, %v6571
    %v6617 = vpack.c.b16 %v6574, %v6573
    %v6618 = vpack.c.b16 %v6576, %v6575
    %v6619 = vpack.c.b16 %v6578, %v6577
    %v6620 = vpack.c.b16 %v6580, %v6579
    %v6621 = vpack.c.b16 %v6582, %v6581
    %v6622 = vpack.c.b16 %v6584, %v6583
    %v6623 = vpack.c.b16 %v6586, %v6585
    %v6624 = vpack.c.b16 %v6588, %v6587
    %v6625 = vpack.c.b16 %v6590, %v6589
    %v6626 = vpack.c.b16 %v6592, %v6591
    %v6627 = vpack.c.b16 %v6594, %v6593
    %v6628 = vpack.c.b16 %v6596, %v6595
    %v6629 = vpack.c.b16 %v6598, %v6597
    %v6630 = vpack.c.b16 %v6600, %v6599
    %v6631 = vpack.c.b16 %v6602, %v6601
    %v6632 = vpack.c.b16 %v6604, %v6603
    %v6633 = vpack.c.b16 %v6606, %v6605
    %v6634 = vpack.c.b16 %v6608, %v6607
    %v6635 = vpack.c.b16 %v6610, %v6609
    %v6636 = vpack.c.b16 %v6612, %v6611
    %6661 = vmatprep.subr.bf16.mxu0 0
    %6662 = vmatpush1.bf16.msra.mxu0 %v6620
    %6663 = vmatprep.subr.bf16.mxu0 0
    %6664 = vmatpush1.bf16.msra.mxu0 %v6619
    %6665 = vmatprep.subr.bf16.mxu0 0
    %6666 = vmatpush1.bf16.msra.mxu0 %v6618
    %6667 = vmatprep.subr.bf16.mxu0 0
    %6668 = vmatpush1.bf16.msra.mxu0 %v6617
    %6669 = vmatprep.subr.bf16.mxu0 0
    %6670 = vmatpush1.bf16.msra.mxu0 %v6616
    %6671 = vmatprep.subr.bf16.mxu0 0
    %6672 = vmatpush1.bf16.msra.mxu0 %v6615
    %6673 = vmatprep.subr.bf16.mxu0 0
    %6674 = vmatpush1.bf16.msra.mxu0 %v6614
    %6675 = vmatprep.subr.bf16.mxu0 0
    %6676 = vmatpush1.bf16.msra.mxu0 %v6613
    %6677 = vmatprep.subr.bf16.mxu0 0
    %6678 = vmatpush2.bf16.msra.mxu0 %v6628
    %6679 = vmatprep.subr.bf16.mxu0 0
    %6680 = vmatpush2.bf16.msra.mxu0 %v6627
    %6681 = vmatprep.subr.bf16.mxu0 0
    %6682 = vmatpush2.bf16.msra.mxu0 %v6626
    %6683 = vmatprep.subr.bf16.mxu0 0
    %6684 = vmatpush2.bf16.msra.mxu0 %v6625
    %6685 = vmatprep.subr.bf16.mxu0 0
    %6686 = vmatpush2.bf16.msra.mxu0 %v6624
    %6687 = vmatprep.subr.bf16.mxu0 0
    %6688 = vmatpush2.bf16.msra.mxu0 %v6623
    %6689 = vmatprep.subr.bf16.mxu0 0
    %6690 = vmatpush2.bf16.msra.mxu0 %v6622
    %6691 = vmatprep.subr.bf16.mxu0 0
    %6692 = vmatpush2.bf16.msra.mxu0 %v6621
    %6693 = vmatprep.mubr.bf16.mxu0 %v6474
    %6694 = vmatmul.mubr.bf16.gmra.mxu0 %v6471
    %v6695 = vpop.f32.mrf.mxu0
    %v6696 = vadd.f32 0.0, %v6695
    %v6697 = vpop.f32.mrf.mxu0
    %v6698 = vpop.f32.mrf.mxu0
    %v6699 = vadd.f32 0.0, %v6698
    %v6700 = vpop.f32.mrf.mxu0
    %6701 = vmatprep.mubr.bf16.mxu0 %v6481
    %6702 = vmatmul.mubr.bf16.gmra.mxu0 %v6479
    %v6703 = vpop.f32.mrf.mxu0
    %v6704 = vadd.f32 0.0, %v6703
    %v6705 = vpop.f32.mrf.mxu0
    %v6706 = vpop.f32.mrf.mxu0
    %v6707 = vadd.f32 0.0, %v6706
    %v6708 = vpop.f32.mrf.mxu0
    %6709 = vmatprep.mubr.bf16.mxu0 %v6487
    %6710 = vmatmul.mubr.bf16.gmra.mxu0 %v6485
    %v6711 = vpop.f32.mrf.mxu0
    %v6712 = vadd.f32 0.0, %v6711
    %v6713 = vpop.f32.mrf.mxu0
    %v6714 = vpop.f32.mrf.mxu0
    %v6715 = vadd.f32 0.0, %v6714
    %v6716 = vpop.f32.mrf.mxu0
    %6717 = vmatprep.mubr.bf16.mxu0 %v6493
    %6718 = vmatmul.mubr.bf16.gmra.mxu0 %v6491
    %v6719 = vpop.f32.mrf.mxu0
    %v6720 = vadd.f32 0.0, %v6719
    %v6721 = vpop.f32.mrf.mxu0
    %v6722 = vpop.f32.mrf.mxu0
    %v6723 = vadd.f32 0.0, %v6722
    %v6724 = vpop.f32.mrf.mxu0
    %6725 = vmatprep.mubr.bf16.mxu0 %v6499
    %6726 = vmatmul.mubr.bf16.gmra.mxu0 %v6497
    %v6727 = vpop.f32.mrf.mxu0
    %v6728 = vadd.f32 0.0, %v6727
    %v6729 = vpop.f32.mrf.mxu0
    %v6730 = vpop.f32.mrf.mxu0
    %v6731 = vadd.f32 0.0, %v6730
    %v6732 = vpop.f32.mrf.mxu0
    %6733 = vdwg.mxu0
    %6734 = vmatprep.subr.bf16.mxu0 0
    %6735 = vmatpush1.bf16.msra.mxu0 %v6636
    %6736 = vmatprep.subr.bf16.mxu0 0
    %6737 = vmatpush1.bf16.msra.mxu0 %v6635
    %6738 = vmatprep.subr.bf16.mxu0 0
    %6739 = vmatpush1.bf16.msra.mxu0 %v6634
    %6740 = vmatprep.subr.bf16.mxu0 0
    %6741 = vmatpush1.bf16.msra.mxu0 %v6633
    %6742 = vmatprep.subr.bf16.mxu0 0
    %6743 = vmatpush1.bf16.msra.mxu0 %v6632
    %6744 = vmatprep.subr.bf16.mxu0 0
    %6745 = vmatpush1.bf16.msra.mxu0 %v6631
    %6746 = vmatprep.subr.bf16.mxu0 0
    %6747 = vmatpush1.bf16.msra.mxu0 %v6630
    %6748 = vmatprep.subr.bf16.mxu0 0
    %6749 = vmatpush1.bf16.msra.mxu0 %v6629
    %6750 = vmatprep.subr.bf16.mxu0 0
    %6751 = vmatpush2.bf16.msra.mxu0 0
    %6752 = vmatprep.subr.bf16.mxu0 0
    %6753 = vmatpush2.bf16.msra.mxu0 0
    %6754 = vmatprep.subr.bf16.mxu0 0
    %6755 = vmatpush2.bf16.msra.mxu0 0
    %6756 = vmatprep.subr.bf16.mxu0 0
    %6757 = vmatpush2.bf16.msra.mxu0 0
    %6758 = vmatprep.subr.bf16.mxu0 0
    %6759 = vmatpush2.bf16.msra.mxu0 0
    %6760 = vmatprep.subr.bf16.mxu0 0
    %6761 = vmatpush2.bf16.msra.mxu0 0
    %6762 = vmatprep.subr.bf16.mxu0 0
    %6763 = vmatpush2.bf16.msra.mxu0 0
    %6764 = vmatprep.subr.bf16.mxu0 0
    %6765 = vmatpush2.bf16.msra.mxu0 0
    %6766 = vmatprep.mubr.bf16.mxu0 0
    %6767 = vmatmul.mubr.bf16.gmra.mxu0 %v6477
    %v6768 = vpop.f32.mrf.mxu0
    %v6769 = vadd.f32 %v6696, %v6768
    %v6770 = vpop.f32.mrf.mxu0
    %v6771 = vpop.f32.mrf.mxu0
    %v6772 = vadd.f32 %v6699, %v6771
    %v6773 = vpop.f32.mrf.mxu0
    %6774 = vmatprep.mubr.bf16.mxu0 0
    %6775 = vmatmul.mubr.bf16.gmra.mxu0 %v6483
    %v6776 = vpop.f32.mrf.mxu0
    %v6777 = vadd.f32 %v6704, %v6776
    %v6778 = vpop.f32.mrf.mxu0
    %v6779 = vpop.f32.mrf.mxu0
    %v6780 = vadd.f32 %v6707, %v6779
    %v6781 = vpop.f32.mrf.mxu0
    %6782 = vmatprep.mubr.bf16.mxu0 0
    %6783 = vmatmul.mubr.bf16.gmra.mxu0 %v6489
    %v6784 = vpop.f32.mrf.mxu0
    %v6785 = vadd.f32 %v6712, %v6784
    %v6786 = vpop.f32.mrf.mxu0
    %v6787 = vpop.f32.mrf.mxu0
    %v6788 = vadd.f32 %v6715, %v6787
    %v6789 = vpop.f32.mrf.mxu0
    %6790 = vmatprep.mubr.bf16.mxu0 0
    %6791 = vmatmul.mubr.bf16.gmra.mxu0 %v6495
    %v6792 = vpop.f32.mrf.mxu0
    %v6793 = vadd.f32 %v6720, %v6792
    %v6794 = vpop.f32.mrf.mxu0
    %v6795 = vpop.f32.mrf.mxu0
    %v6796 = vadd.f32 %v6723, %v6795
    %v6797 = vpop.f32.mrf.mxu0
    %6798 = vmatprep.mubr.bf16.mxu0 0
    %6799 = vmatmul.mubr.bf16.gmra.mxu0 %v6501
    %v6800 = vpop.f32.mrf.mxu0
    %v6801 = vadd.f32 %v6728, %v6800
    %v6802 = vpop.f32.mrf.mxu0
    %v6803 = vpop.f32.mrf.mxu0
    %v6804 = vadd.f32 %v6731, %v6803
    %v6805 = vpop.f32.mrf.mxu0
    %6806 = vdwg.mxu0
    %v6807 = vadd.f32 %v6279, %v6769
    %v6808 = vadd.f32 %v6282, %v6772
    %v6809 = vadd.f32 %v6287, %v6777
    %v6810 = vadd.f32 %v6290, %v6780
    %v6811 = vadd.f32 %v6295, %v6785
    %v6812 = vadd.f32 %v6298, %v6788
    %v6813 = vadd.f32 %v6303, %v6793
    %v6814 = vadd.f32 %v6306, %v6796
    %v6815 = vadd.f32 %v6311, %v6801
    %v6816 = vadd.f32 %v6314, %v6804
    %v6817 = vld [vmem:[#allocation15] sm:$0x1]
    %v6819 = vlaneseq
    %v6820 = vshrl.u32 %v6819, 7
    %v6821 = vsub.s32 0, %v6820
    %v6822 = vrot.slane %v6817, %v6821
    %v6824 = vadd.f32 %v6807, %v6822
    %v6825 = vadd.f32 %v6808, %v6822
    %v6826 = vadd.f32 %v6809, %v6822
    %v6827 = vadd.f32 %v6810, %v6822
    %v6828 = vadd.f32 %v6811, %v6822
    %v6829 = vadd.f32 %v6812, %v6822
    %v6830 = vadd.f32 %v6813, %v6822
    %v6831 = vadd.f32 %v6814, %v6822
    %v6832 = vadd.f32 %v6815, %v6822
    %v6833 = vadd.f32 %v6816, %v6822
    %v6834 = vmax.f32 %v6824, 0.0
    %v6835 = vmax.f32 %v6825, 0.0
    %v6836 = vmax.f32 %v6826, 0.0
    %v6837 = vmax.f32 %v6827, 0.0
    %v6838 = vmax.f32 %v6828, 0.0
    %v6839 = vmax.f32 %v6829, 0.0
    %v6840 = vmax.f32 %v6830, 0.0
    %v6841 = vmax.f32 %v6831, 0.0
    %v6842 = vmax.f32 %v6832, 0.0
    %v6843 = vmax.f32 %v6833, 0.0
    %6844 = vst [vmem:[#allocation4 + $0x68] sm:$0xff] %v6834
    %6845 = vst [vmem:[#allocation4 + $0x70] sm:$0xff] %v6835
    %6846 = vst [vmem:[#allocation4 + $0x78] sm:$0xff] %v6836
    %6847 = vst [vmem:[#allocation4 + $0x80] sm:$0xff] %v6837
    %6848 = vst [vmem:[#allocation4 + $0x88] sm:$0xff] %v6838
    %6849 = vst [vmem:[#allocation4 + $0x90] sm:$0xff] %v6839
    %6850 = vst [vmem:[#allocation4 + $0x98] sm:$0xff] %v6840
    %6851 = vst [vmem:[#allocation4 + $0xa0] sm:$0xff] %v6841
    %6852 = vst [vmem:[#allocation4 + $0xa8] sm:$0xff] %v6842
    %6853 = vst [vmem:[#allocation4 + $0xb0] sm:$0xff] %v6843
    %v6854 = vld [vmem:[#allocation4] ss:$128 sm:$0x1]
    %v6855 = vld [vmem:[#allocation4] ss:$128 sm:$0x2]
    %v6856 = vor.u32 %v6854, %v6855
    %v6857 = vpack.c.bf16 %v6856, %v6856
    %v6858 = vld [vmem:[#allocation16] sm:$0xff]
    %v6859 = vld [vmem:[#allocation16 + $0x8] sm:$0xff]
    %v6860 = vld [vmem:[#allocation16 + $0x10] sm:$0xff]
    %v6861 = vld [vmem:[#allocation16 + $0x18] sm:$0xff]
    %v6862 = vld [vmem:[#allocation16 + $0x20] sm:$0xff]
    %v6863 = vld [vmem:[#allocation16 + $0x28] sm:$0xff]
    %v6864 = vld [vmem:[#allocation16 + $0x30] sm:$0xff]
    %v6865 = vld [vmem:[#allocation16 + $0x38] sm:$0xff]
    %v6866 = vld [vmem:[#allocation16 + $0x40] sm:$0xff]
    %v6867 = vld [vmem:[#allocation16 + $0x48] sm:$0xff]
    %v6868 = vld [vmem:[#allocation16 + $0x50] sm:$0xff]
    %v6869 = vld [vmem:[#allocation16 + $0x58] sm:$0xff]
    %v6870 = vld [vmem:[#allocation16 + $0x60] sm:$0xff]
    %v6871 = vld [vmem:[#allocation16 + $0x68] sm:$0xff]
    %v6872 = vld [vmem:[#allocation16 + $0x70] sm:$0xff]
    %v6873 = vld [vmem:[#allocation16 + $0x78] sm:$0xff]
    %s6874 = scalar_lea.vmem [#allocation4], 1
    %v6875 = vld [vmem:[%s6874] ss:$128 sm:$0x1]
    %v6876 = vld [vmem:[%s6874] ss:$128 sm:$0x2]
    %v6877 = vor.u32 %v6875, %v6876
    %v6878 = vpack.c.bf16 %v6877, %v6877
    %s6879 = scalar_lea.vmem [#allocation16], 128
    %v6880 = vld [vmem:[%s6879] sm:$0xff]
    %v6881 = vld [vmem:[%s6879 + $0x8] sm:$0xff]
    %v6882 = vld [vmem:[%s6879 + $0x10] sm:$0xff]
    %v6883 = vld [vmem:[%s6879 + $0x18] sm:$0xff]
    %v6884 = vld [vmem:[%s6879 + $0x20] sm:$0xff]
    %v6885 = vld [vmem:[%s6879 + $0x28] sm:$0xff]
    %v6886 = vld [vmem:[%s6879 + $0x30] sm:$0xff]
    %v6887 = vld [vmem:[%s6879 + $0x38] sm:$0xff]
    %v6888 = vld [vmem:[%s6879 + $0x40] sm:$0xff]
    %v6889 = vld [vmem:[%s6879 + $0x48] sm:$0xff]
    %v6890 = vld [vmem:[%s6879 + $0x50] sm:$0xff]
    %v6891 = vld [vmem:[%s6879 + $0x58] sm:$0xff]
    %v6892 = vld [vmem:[%s6879 + $0x60] sm:$0xff]
    %v6893 = vld [vmem:[%s6879 + $0x68] sm:$0xff]
    %v6894 = vld [vmem:[%s6879 + $0x70] sm:$0xff]
    %v6895 = vld [vmem:[%s6879 + $0x78] sm:$0xff]
    %v6912 = vunpack.c.l.b16 %v6880
    %v6913 = vunpack.c.h.b16 %v6880
    %v6914 = vunpack.c.l.b16 %v6881
    %v6915 = vunpack.c.h.b16 %v6881
    %v6916 = vunpack.c.l.b16 %v6882
    %v6917 = vunpack.c.h.b16 %v6882
    %v6918 = vunpack.c.l.b16 %v6883
    %v6919 = vunpack.c.h.b16 %v6883
    %v6920 = vunpack.c.l.b16 %v6884
    %v6921 = vunpack.c.h.b16 %v6884
    %v6922 = vunpack.c.l.b16 %v6885
    %v6923 = vunpack.c.h.b16 %v6885
    %v6924 = vunpack.c.l.b16 %v6886
    %v6925 = vunpack.c.h.b16 %v6886
    %v6926 = vunpack.c.l.b16 %v6887
    %v6927 = vunpack.c.h.b16 %v6887
    %v6928 = vunpack.c.l.b16 %v6888
    %v6929 = vunpack.c.h.b16 %v6888
    %v6930 = vunpack.c.l.b16 %v6889
    %v6931 = vunpack.c.h.b16 %v6889
    %v6932 = vunpack.c.l.b16 %v6890
    %v6933 = vunpack.c.h.b16 %v6890
    %v6934 = vunpack.c.l.b16 %v6891
    %v6935 = vunpack.c.h.b16 %v6891
    %v6936 = vunpack.c.l.b16 %v6892
    %v6937 = vunpack.c.h.b16 %v6892
    %v6938 = vunpack.c.l.b16 %v6893
    %v6939 = vunpack.c.h.b16 %v6893
    %v6940 = vunpack.c.l.b16 %v6894
    %v6941 = vunpack.c.h.b16 %v6894
    %v6942 = vunpack.c.l.b16 %v6895
    %v6943 = vunpack.c.h.b16 %v6895
    %v6944 = vpack.c.b16 %v6914, %v6912
    %v6945 = vpack.c.b16 %v6915, %v6913
    %v6946 = vpack.c.b16 %v6918, %v6916
    %v6947 = vpack.c.b16 %v6919, %v6917
    %v6948 = vpack.c.b16 %v6922, %v6920
    %v6949 = vpack.c.b16 %v6923, %v6921
    %v6950 = vpack.c.b16 %v6926, %v6924
    %v6951 = vpack.c.b16 %v6927, %v6925
    %v6952 = vpack.c.b16 %v6930, %v6928
    %v6953 = vpack.c.b16 %v6931, %v6929
    %v6954 = vpack.c.b16 %v6934, %v6932
    %v6955 = vpack.c.b16 %v6935, %v6933
    %v6956 = vpack.c.b16 %v6938, %v6936
    %v6957 = vpack.c.b16 %v6939, %v6937
    %v6958 = vpack.c.b16 %v6942, %v6940
    %v6959 = vpack.c.b16 %v6943, %v6941
    %6976 = vmatprep.subr.bf16.mxu0 %v6959
    %6977 = vmatpush1.bf16.msra.mxu0 %v6958
    %6978 = vmatprep.subr.bf16.mxu0 %v6957
    %6979 = vmatpush1.bf16.msra.mxu0 %v6956
    %6980 = vmatprep.subr.bf16.mxu0 %v6955
    %6981 = vmatpush1.bf16.msra.mxu0 %v6954
    %6982 = vmatprep.subr.bf16.mxu0 %v6953
    %6983 = vmatpush1.bf16.msra.mxu0 %v6952
    %6984 = vmatprep.subr.bf16.mxu0 %v6951
    %6985 = vmatpush1.bf16.msra.mxu0 %v6950
    %6986 = vmatprep.subr.bf16.mxu0 %v6949
    %6987 = vmatpush1.bf16.msra.mxu0 %v6948
    %6988 = vmatprep.subr.bf16.mxu0 %v6947
    %6989 = vmatpush1.bf16.msra.mxu0 %v6946
    %6990 = vmatprep.subr.bf16.mxu0 %v6945
    %6991 = vmatpush1.bf16.msra.mxu0 %v6944
    %6992 = vmatprep.subr.bf16.mxu0 0
    %6993 = vmatpush2.bf16.msra.mxu0 0
    %6994 = vmatprep.subr.bf16.mxu0 0
    %6995 = vmatpush2.bf16.msra.mxu0 0
    %6996 = vmatprep.subr.bf16.mxu0 0
    %6997 = vmatpush2.bf16.msra.mxu0 0
    %6998 = vmatprep.subr.bf16.mxu0 0
    %6999 = vmatpush2.bf16.msra.mxu0 0
    %7000 = vmatprep.subr.bf16.mxu0 0
    %7001 = vmatpush2.bf16.msra.mxu0 0
    %7002 = vmatprep.subr.bf16.mxu0 0
    %7003 = vmatpush2.bf16.msra.mxu0 0
    %7004 = vmatprep.subr.bf16.mxu0 0
    %7005 = vmatpush2.bf16.msra.mxu0 0
    %7006 = vmatprep.subr.bf16.mxu0 0
    %7007 = vmatpush2.bf16.msra.mxu0 0
    %7008 = vmatprep.mubr.bf16.mxu0 0
    %7009 = vmatmul.mubr.bf16.gmra.mxu0 %v6878
    %v7010 = vpop.f32.mrf.mxu0
    %v7011 = vadd.f32 0.0, %v7010
    %v7012 = vpop.f32.mrf.mxu0
    %v7013 = vadd.f32 0.0, %v7012
    %v7014 = vpop.f32.mrf.mxu0
    %v7015 = vpop.f32.mrf.mxu0
    %7016 = vdwg.mxu0
    %v7033 = vunpack.c.l.b16 %v6858
    %v7034 = vunpack.c.h.b16 %v6858
    %v7035 = vunpack.c.l.b16 %v6859
    %v7036 = vunpack.c.h.b16 %v6859
    %v7037 = vunpack.c.l.b16 %v6860
    %v7038 = vunpack.c.h.b16 %v6860
    %v7039 = vunpack.c.l.b16 %v6861
    %v7040 = vunpack.c.h.b16 %v6861
    %v7041 = vunpack.c.l.b16 %v6862
    %v7042 = vunpack.c.h.b16 %v6862
    %v7043 = vunpack.c.l.b16 %v6863
    %v7044 = vunpack.c.h.b16 %v6863
    %v7045 = vunpack.c.l.b16 %v6864
    %v7046 = vunpack.c.h.b16 %v6864
    %v7047 = vunpack.c.l.b16 %v6865
    %v7048 = vunpack.c.h.b16 %v6865
    %v7049 = vunpack.c.l.b16 %v6866
    %v7050 = vunpack.c.h.b16 %v6866
    %v7051 = vunpack.c.l.b16 %v6867
    %v7052 = vunpack.c.h.b16 %v6867
    %v7053 = vunpack.c.l.b16 %v6868
    %v7054 = vunpack.c.h.b16 %v6868
    %v7055 = vunpack.c.l.b16 %v6869
    %v7056 = vunpack.c.h.b16 %v6869
    %v7057 = vunpack.c.l.b16 %v6870
    %v7058 = vunpack.c.h.b16 %v6870
    %v7059 = vunpack.c.l.b16 %v6871
    %v7060 = vunpack.c.h.b16 %v6871
    %v7061 = vunpack.c.l.b16 %v6872
    %v7062 = vunpack.c.h.b16 %v6872
    %v7063 = vunpack.c.l.b16 %v6873
    %v7064 = vunpack.c.h.b16 %v6873
    %v7065 = vpack.c.b16 %v7035, %v7033
    %v7066 = vpack.c.b16 %v7036, %v7034
    %v7067 = vpack.c.b16 %v7039, %v7037
    %v7068 = vpack.c.b16 %v7040, %v7038
    %v7069 = vpack.c.b16 %v7043, %v7041
    %v7070 = vpack.c.b16 %v7044, %v7042
    %v7071 = vpack.c.b16 %v7047, %v7045
    %v7072 = vpack.c.b16 %v7048, %v7046
    %v7073 = vpack.c.b16 %v7051, %v7049
    %v7074 = vpack.c.b16 %v7052, %v7050
    %v7075 = vpack.c.b16 %v7055, %v7053
    %v7076 = vpack.c.b16 %v7056, %v7054
    %v7077 = vpack.c.b16 %v7059, %v7057
    %v7078 = vpack.c.b16 %v7060, %v7058
    %v7079 = vpack.c.b16 %v7063, %v7061
    %v7080 = vpack.c.b16 %v7064, %v7062
    %7097 = vmatprep.subr.bf16.mxu0 %v7080
    %7098 = vmatpush1.bf16.msra.mxu0 %v7079
    %7099 = vmatprep.subr.bf16.mxu0 %v7078
    %7100 = vmatpush1.bf16.msra.mxu0 %v7077
    %7101 = vmatprep.subr.bf16.mxu0 %v7076
    %7102 = vmatpush1.bf16.msra.mxu0 %v7075
    %7103 = vmatprep.subr.bf16.mxu0 %v7074
    %7104 = vmatpush1.bf16.msra.mxu0 %v7073
    %7105 = vmatprep.subr.bf16.mxu0 %v7072
    %7106 = vmatpush1.bf16.msra.mxu0 %v7071
    %7107 = vmatprep.subr.bf16.mxu0 %v7070
    %7108 = vmatpush1.bf16.msra.mxu0 %v7069
    %7109 = vmatprep.subr.bf16.mxu0 %v7068
    %7110 = vmatpush1.bf16.msra.mxu0 %v7067
    %7111 = vmatprep.subr.bf16.mxu0 %v7066
    %7112 = vmatpush1.bf16.msra.mxu0 %v7065
    %7113 = vmatprep.subr.bf16.mxu0 0
    %7114 = vmatpush2.bf16.msra.mxu0 0
    %7115 = vmatprep.subr.bf16.mxu0 0
    %7116 = vmatpush2.bf16.msra.mxu0 0
    %7117 = vmatprep.subr.bf16.mxu0 0
    %7118 = vmatpush2.bf16.msra.mxu0 0
    %7119 = vmatprep.subr.bf16.mxu0 0
    %7120 = vmatpush2.bf16.msra.mxu0 0
    %7121 = vmatprep.subr.bf16.mxu0 0
    %7122 = vmatpush2.bf16.msra.mxu0 0
    %7123 = vmatprep.subr.bf16.mxu0 0
    %7124 = vmatpush2.bf16.msra.mxu0 0
    %7125 = vmatprep.subr.bf16.mxu0 0
    %7126 = vmatpush2.bf16.msra.mxu0 0
    %7127 = vmatprep.subr.bf16.mxu0 0
    %7128 = vmatpush2.bf16.msra.mxu0 0
    %7129 = vmatprep.mubr.bf16.mxu0 0
    %7130 = vmatmul.mubr.bf16.gmra.mxu0 %v6857
    %v7131 = vpop.f32.mrf.mxu0
    %v7132 = vadd.f32 %v7011, %v7131
    %v7133 = vpop.f32.mrf.mxu0
    %v7134 = vadd.f32 %v7013, %v7133
    %v7135 = vpop.f32.mrf.mxu0
    %v7136 = vpop.f32.mrf.mxu0
    %7137 = vdwg.mxu0
    %s7138 = scalar_lea.vmem [#allocation4], 2
    %v7139 = vld [vmem:[%s7138] ss:$128 sm:$0x1]
    %v7140 = vld [vmem:[%s7138] ss:$128 sm:$0x2]
    %v7141 = vor.u32 %v7139, %v7140
    %v7142 = vpack.c.bf16 %v7141, %v7141
    %s7143 = scalar_lea.vmem [#allocation16], 256
    %v7144 = vld [vmem:[%s7143] sm:$0xff]
    %v7145 = vld [vmem:[%s7143 + $0x8] sm:$0xff]
    %v7146 = vld [vmem:[%s7143 + $0x10] sm:$0xff]
    %v7147 = vld [vmem:[%s7143 + $0x18] sm:$0xff]
    %v7148 = vld [vmem:[%s7143 + $0x20] sm:$0xff]
    %v7149 = vld [vmem:[%s7143 + $0x28] sm:$0xff]
    %v7150 = vld [vmem:[%s7143 + $0x30] sm:$0xff]
    %v7151 = vld [vmem:[%s7143 + $0x38] sm:$0xff]
    %v7152 = vld [vmem:[%s7143 + $0x40] sm:$0xff]
    %v7153 = vld [vmem:[%s7143 + $0x48] sm:$0xff]
    %v7154 = vld [vmem:[%s7143 + $0x50] sm:$0xff]
    %v7155 = vld [vmem:[%s7143 + $0x58] sm:$0xff]
    %v7156 = vld [vmem:[%s7143 + $0x60] sm:$0xff]
    %v7157 = vld [vmem:[%s7143 + $0x68] sm:$0xff]
    %v7158 = vld [vmem:[%s7143 + $0x70] sm:$0xff]
    %v7159 = vld [vmem:[%s7143 + $0x78] sm:$0xff]
    %v7176 = vunpack.c.l.b16 %v7144
    %v7177 = vunpack.c.h.b16 %v7144
    %v7178 = vunpack.c.l.b16 %v7145
    %v7179 = vunpack.c.h.b16 %v7145
    %v7180 = vunpack.c.l.b16 %v7146
    %v7181 = vunpack.c.h.b16 %v7146
    %v7182 = vunpack.c.l.b16 %v7147
    %v7183 = vunpack.c.h.b16 %v7147
    %v7184 = vunpack.c.l.b16 %v7148
    %v7185 = vunpack.c.h.b16 %v7148
    %v7186 = vunpack.c.l.b16 %v7149
    %v7187 = vunpack.c.h.b16 %v7149
    %v7188 = vunpack.c.l.b16 %v7150
    %v7189 = vunpack.c.h.b16 %v7150
    %v7190 = vunpack.c.l.b16 %v7151
    %v7191 = vunpack.c.h.b16 %v7151
    %v7192 = vunpack.c.l.b16 %v7152
    %v7193 = vunpack.c.h.b16 %v7152
    %v7194 = vunpack.c.l.b16 %v7153
    %v7195 = vunpack.c.h.b16 %v7153
    %v7196 = vunpack.c.l.b16 %v7154
    %v7197 = vunpack.c.h.b16 %v7154
    %v7198 = vunpack.c.l.b16 %v7155
    %v7199 = vunpack.c.h.b16 %v7155
    %v7200 = vunpack.c.l.b16 %v7156
    %v7201 = vunpack.c.h.b16 %v7156
    %v7202 = vunpack.c.l.b16 %v7157
    %v7203 = vunpack.c.h.b16 %v7157
    %v7204 = vunpack.c.l.b16 %v7158
    %v7205 = vunpack.c.h.b16 %v7158
    %v7206 = vunpack.c.l.b16 %v7159
    %v7207 = vunpack.c.h.b16 %v7159
    %v7208 = vpack.c.b16 %v7178, %v7176
    %v7209 = vpack.c.b16 %v7179, %v7177
    %v7210 = vpack.c.b16 %v7182, %v7180
    %v7211 = vpack.c.b16 %v7183, %v7181
    %v7212 = vpack.c.b16 %v7186, %v7184
    %v7213 = vpack.c.b16 %v7187, %v7185
    %v7214 = vpack.c.b16 %v7190, %v7188
    %v7215 = vpack.c.b16 %v7191, %v7189
    %v7216 = vpack.c.b16 %v7194, %v7192
    %v7217 = vpack.c.b16 %v7195, %v7193
    %v7218 = vpack.c.b16 %v7198, %v7196
    %v7219 = vpack.c.b16 %v7199, %v7197
    %v7220 = vpack.c.b16 %v7202, %v7200
    %v7221 = vpack.c.b16 %v7203, %v7201
    %v7222 = vpack.c.b16 %v7206, %v7204
    %v7223 = vpack.c.b16 %v7207, %v7205
    %7240 = vmatprep.subr.bf16.mxu0 %v7223
    %7241 = vmatpush1.bf16.msra.mxu0 %v7222
    %7242 = vmatprep.subr.bf16.mxu0 %v7221
    %7243 = vmatpush1.bf16.msra.mxu0 %v7220
    %7244 = vmatprep.subr.bf16.mxu0 %v7219
    %7245 = vmatpush1.bf16.msra.mxu0 %v7218
    %7246 = vmatprep.subr.bf16.mxu0 %v7217
    %7247 = vmatpush1.bf16.msra.mxu0 %v7216
    %7248 = vmatprep.subr.bf16.mxu0 %v7215
    %7249 = vmatpush1.bf16.msra.mxu0 %v7214
    %7250 = vmatprep.subr.bf16.mxu0 %v7213
    %7251 = vmatpush1.bf16.msra.mxu0 %v7212
    %7252 = vmatprep.subr.bf16.mxu0 %v7211
    %7253 = vmatpush1.bf16.msra.mxu0 %v7210
    %7254 = vmatprep.subr.bf16.mxu0 %v7209
    %7255 = vmatpush1.bf16.msra.mxu0 %v7208
    %7256 = vmatprep.subr.bf16.mxu0 0
    %7257 = vmatpush2.bf16.msra.mxu0 0
    %7258 = vmatprep.subr.bf16.mxu0 0
    %7259 = vmatpush2.bf16.msra.mxu0 0
    %7260 = vmatprep.subr.bf16.mxu0 0
    %7261 = vmatpush2.bf16.msra.mxu0 0
    %7262 = vmatprep.subr.bf16.mxu0 0
    %7263 = vmatpush2.bf16.msra.mxu0 0
    %7264 = vmatprep.subr.bf16.mxu0 0
    %7265 = vmatpush2.bf16.msra.mxu0 0
    %7266 = vmatprep.subr.bf16.mxu0 0
    %7267 = vmatpush2.bf16.msra.mxu0 0
    %7268 = vmatprep.subr.bf16.mxu0 0
    %7269 = vmatpush2.bf16.msra.mxu0 0
    %7270 = vmatprep.subr.bf16.mxu0 0
    %7271 = vmatpush2.bf16.msra.mxu0 0
    %7272 = vmatprep.mubr.bf16.mxu0 0
    %7273 = vmatmul.mubr.bf16.gmra.mxu0 %v7142
    %v7274 = vpop.f32.mrf.mxu0
    %v7275 = vadd.f32 0.0, %v7274
    %v7276 = vpop.f32.mrf.mxu0
    %v7277 = vadd.f32 0.0, %v7276
    %v7278 = vpop.f32.mrf.mxu0
    %v7279 = vpop.f32.mrf.mxu0
    %7280 = vdwg.mxu0
    %v7281 = vadd.f32 %v7132, %v7275
    %v7282 = vadd.f32 %v7134, %v7277
    %s7283 = scalar_lea.vmem [#allocation4], 3
    %v7284 = vld [vmem:[%s7283] ss:$128 sm:$0x1]
    %v7285 = vld [vmem:[%s7283] ss:$128 sm:$0x2]
    %v7286 = vor.u32 %v7284, %v7285
    %v7287 = vpack.c.bf16 %v7286, %v7286
    %s7288 = scalar_lea.vmem [#allocation16], 384
    %v7289 = vld [vmem:[%s7288] sm:$0xff]
    %v7290 = vld [vmem:[%s7288 + $0x8] sm:$0xff]
    %v7291 = vld [vmem:[%s7288 + $0x10] sm:$0xff]
    %v7292 = vld [vmem:[%s7288 + $0x18] sm:$0xff]
    %v7293 = vld [vmem:[%s7288 + $0x20] sm:$0xff]
    %v7294 = vld [vmem:[%s7288 + $0x28] sm:$0xff]
    %v7295 = vld [vmem:[%s7288 + $0x30] sm:$0xff]
    %v7296 = vld [vmem:[%s7288 + $0x38] sm:$0xff]
    %v7297 = vld [vmem:[%s7288 + $0x40] sm:$0xff]
    %v7298 = vld [vmem:[%s7288 + $0x48] sm:$0xff]
    %v7299 = vld [vmem:[%s7288 + $0x50] sm:$0xff]
    %v7300 = vld [vmem:[%s7288 + $0x58] sm:$0xff]
    %v7301 = vld [vmem:[%s7288 + $0x60] sm:$0xff]
    %v7302 = vld [vmem:[%s7288 + $0x68] sm:$0xff]
    %v7303 = vld [vmem:[%s7288 + $0x70] sm:$0xff]
    %v7304 = vld [vmem:[%s7288 + $0x78] sm:$0xff]
    %v7321 = vunpack.c.l.b16 %v7289
    %v7322 = vunpack.c.h.b16 %v7289
    %v7323 = vunpack.c.l.b16 %v7290
    %v7324 = vunpack.c.h.b16 %v7290
    %v7325 = vunpack.c.l.b16 %v7291
    %v7326 = vunpack.c.h.b16 %v7291
    %v7327 = vunpack.c.l.b16 %v7292
    %v7328 = vunpack.c.h.b16 %v7292
    %v7329 = vunpack.c.l.b16 %v7293
    %v7330 = vunpack.c.h.b16 %v7293
    %v7331 = vunpack.c.l.b16 %v7294
    %v7332 = vunpack.c.h.b16 %v7294
    %v7333 = vunpack.c.l.b16 %v7295
    %v7334 = vunpack.c.h.b16 %v7295
    %v7335 = vunpack.c.l.b16 %v7296
    %v7336 = vunpack.c.h.b16 %v7296
    %v7337 = vunpack.c.l.b16 %v7297
    %v7338 = vunpack.c.h.b16 %v7297
    %v7339 = vunpack.c.l.b16 %v7298
    %v7340 = vunpack.c.h.b16 %v7298
    %v7341 = vunpack.c.l.b16 %v7299
    %v7342 = vunpack.c.h.b16 %v7299
    %v7343 = vunpack.c.l.b16 %v7300
    %v7344 = vunpack.c.h.b16 %v7300
    %v7345 = vunpack.c.l.b16 %v7301
    %v7346 = vunpack.c.h.b16 %v7301
    %v7347 = vunpack.c.l.b16 %v7302
    %v7348 = vunpack.c.h.b16 %v7302
    %v7349 = vunpack.c.l.b16 %v7303
    %v7350 = vunpack.c.h.b16 %v7303
    %v7351 = vunpack.c.l.b16 %v7304
    %v7352 = vunpack.c.h.b16 %v7304
    %v7353 = vpack.c.b16 %v7323, %v7321
    %v7354 = vpack.c.b16 %v7324, %v7322
    %v7355 = vpack.c.b16 %v7327, %v7325
    %v7356 = vpack.c.b16 %v7328, %v7326
    %v7357 = vpack.c.b16 %v7331, %v7329
    %v7358 = vpack.c.b16 %v7332, %v7330
    %v7359 = vpack.c.b16 %v7335, %v7333
    %v7360 = vpack.c.b16 %v7336, %v7334
    %v7361 = vpack.c.b16 %v7339, %v7337
    %v7362 = vpack.c.b16 %v7340, %v7338
    %v7363 = vpack.c.b16 %v7343, %v7341
    %v7364 = vpack.c.b16 %v7344, %v7342
    %v7365 = vpack.c.b16 %v7347, %v7345
    %v7366 = vpack.c.b16 %v7348, %v7346
    %v7367 = vpack.c.b16 %v7351, %v7349
    %v7368 = vpack.c.b16 %v7352, %v7350
    %7385 = vmatprep.subr.bf16.mxu0 %v7368
    %7386 = vmatpush1.bf16.msra.mxu0 %v7367
    %7387 = vmatprep.subr.bf16.mxu0 %v7366
    %7388 = vmatpush1.bf16.msra.mxu0 %v7365
    %7389 = vmatprep.subr.bf16.mxu0 %v7364
    %7390 = vmatpush1.bf16.msra.mxu0 %v7363
    %7391 = vmatprep.subr.bf16.mxu0 %v7362
    %7392 = vmatpush1.bf16.msra.mxu0 %v7361
    %7393 = vmatprep.subr.bf16.mxu0 %v7360
    %7394 = vmatpush1.bf16.msra.mxu0 %v7359
    %7395 = vmatprep.subr.bf16.mxu0 %v7358
    %7396 = vmatpush1.bf16.msra.mxu0 %v7357
    %7397 = vmatprep.subr.bf16.mxu0 %v7356
    %7398 = vmatpush1.bf16.msra.mxu0 %v7355
    %7399 = vmatprep.subr.bf16.mxu0 %v7354
    %7400 = vmatpush1.bf16.msra.mxu0 %v7353
    %7401 = vmatprep.subr.bf16.mxu0 0
    %7402 = vmatpush2.bf16.msra.mxu0 0
    %7403 = vmatprep.subr.bf16.mxu0 0
    %7404 = vmatpush2.bf16.msra.mxu0 0
    %7405 = vmatprep.subr.bf16.mxu0 0
    %7406 = vmatpush2.bf16.msra.mxu0 0
    %7407 = vmatprep.subr.bf16.mxu0 0
    %7408 = vmatpush2.bf16.msra.mxu0 0
    %7409 = vmatprep.subr.bf16.mxu0 0
    %7410 = vmatpush2.bf16.msra.mxu0 0
    %7411 = vmatprep.subr.bf16.mxu0 0
    %7412 = vmatpush2.bf16.msra.mxu0 0
    %7413 = vmatprep.subr.bf16.mxu0 0
    %7414 = vmatpush2.bf16.msra.mxu0 0
    %7415 = vmatprep.subr.bf16.mxu0 0
    %7416 = vmatpush2.bf16.msra.mxu0 0
    %7417 = vmatprep.mubr.bf16.mxu0 0
    %7418 = vmatmul.mubr.bf16.gmra.mxu0 %v7287
    %v7419 = vpop.f32.mrf.mxu0
    %v7420 = vadd.f32 0.0, %v7419
    %v7421 = vpop.f32.mrf.mxu0
    %v7422 = vadd.f32 0.0, %v7421
    %v7423 = vpop.f32.mrf.mxu0
    %v7424 = vpop.f32.mrf.mxu0
    %7425 = vdwg.mxu0
    %v7426 = vadd.f32 %v7281, %v7420
    %v7427 = vadd.f32 %v7282, %v7422
    %s7428 = scalar_lea.vmem [#allocation4], 4
    %v7429 = vld [vmem:[%s7428] ss:$128 sm:$0x1]
    %v7430 = vld [vmem:[%s7428] ss:$128 sm:$0x2]
    %v7431 = vor.u32 %v7429, %v7430
    %v7432 = vpack.c.bf16 %v7431, %v7431
    %s7433 = scalar_lea.vmem [#allocation16], 512
    %v7434 = vld [vmem:[%s7433] sm:$0xff]
    %v7435 = vld [vmem:[%s7433 + $0x8] sm:$0xff]
    %v7436 = vld [vmem:[%s7433 + $0x10] sm:$0xff]
    %v7437 = vld [vmem:[%s7433 + $0x18] sm:$0xff]
    %v7438 = vld [vmem:[%s7433 + $0x20] sm:$0xff]
    %v7439 = vld [vmem:[%s7433 + $0x28] sm:$0xff]
    %v7440 = vld [vmem:[%s7433 + $0x30] sm:$0xff]
    %v7441 = vld [vmem:[%s7433 + $0x38] sm:$0xff]
    %v7442 = vld [vmem:[%s7433 + $0x40] sm:$0xff]
    %v7443 = vld [vmem:[%s7433 + $0x48] sm:$0xff]
    %v7444 = vld [vmem:[%s7433 + $0x50] sm:$0xff]
    %v7445 = vld [vmem:[%s7433 + $0x58] sm:$0xff]
    %v7446 = vld [vmem:[%s7433 + $0x60] sm:$0xff]
    %v7447 = vld [vmem:[%s7433 + $0x68] sm:$0xff]
    %v7448 = vld [vmem:[%s7433 + $0x70] sm:$0xff]
    %v7449 = vld [vmem:[%s7433 + $0x78] sm:$0xff]
    %v7466 = vunpack.c.l.b16 %v7434
    %v7467 = vunpack.c.h.b16 %v7434
    %v7468 = vunpack.c.l.b16 %v7435
    %v7469 = vunpack.c.h.b16 %v7435
    %v7470 = vunpack.c.l.b16 %v7436
    %v7471 = vunpack.c.h.b16 %v7436
    %v7472 = vunpack.c.l.b16 %v7437
    %v7473 = vunpack.c.h.b16 %v7437
    %v7474 = vunpack.c.l.b16 %v7438
    %v7475 = vunpack.c.h.b16 %v7438
    %v7476 = vunpack.c.l.b16 %v7439
    %v7477 = vunpack.c.h.b16 %v7439
    %v7478 = vunpack.c.l.b16 %v7440
    %v7479 = vunpack.c.h.b16 %v7440
    %v7480 = vunpack.c.l.b16 %v7441
    %v7481 = vunpack.c.h.b16 %v7441
    %v7482 = vunpack.c.l.b16 %v7442
    %v7483 = vunpack.c.h.b16 %v7442
    %v7484 = vunpack.c.l.b16 %v7443
    %v7485 = vunpack.c.h.b16 %v7443
    %v7486 = vunpack.c.l.b16 %v7444
    %v7487 = vunpack.c.h.b16 %v7444
    %v7488 = vunpack.c.l.b16 %v7445
    %v7489 = vunpack.c.h.b16 %v7445
    %v7490 = vunpack.c.l.b16 %v7446
    %v7491 = vunpack.c.h.b16 %v7446
    %v7492 = vunpack.c.l.b16 %v7447
    %v7493 = vunpack.c.h.b16 %v7447
    %v7494 = vunpack.c.l.b16 %v7448
    %v7495 = vunpack.c.h.b16 %v7448
    %v7496 = vunpack.c.l.b16 %v7449
    %v7497 = vunpack.c.h.b16 %v7449
    %v7498 = vpack.c.b16 %v7468, %v7466
    %v7499 = vpack.c.b16 %v7469, %v7467
    %v7500 = vpack.c.b16 %v7472, %v7470
    %v7501 = vpack.c.b16 %v7473, %v7471
    %v7502 = vpack.c.b16 %v7476, %v7474
    %v7503 = vpack.c.b16 %v7477, %v7475
    %v7504 = vpack.c.b16 %v7480, %v7478
    %v7505 = vpack.c.b16 %v7481, %v7479
    %v7506 = vpack.c.b16 %v7484, %v7482
    %v7507 = vpack.c.b16 %v7485, %v7483
    %v7508 = vpack.c.b16 %v7488, %v7486
    %v7509 = vpack.c.b16 %v7489, %v7487
    %v7510 = vpack.c.b16 %v7492, %v7490
    %v7511 = vpack.c.b16 %v7493, %v7491
    %v7512 = vpack.c.b16 %v7496, %v7494
    %v7513 = vpack.c.b16 %v7497, %v7495
    %7530 = vmatprep.subr.bf16.mxu0 %v7513
    %7531 = vmatpush1.bf16.msra.mxu0 %v7512
    %7532 = vmatprep.subr.bf16.mxu0 %v7511
    %7533 = vmatpush1.bf16.msra.mxu0 %v7510
    %7534 = vmatprep.subr.bf16.mxu0 %v7509
    %7535 = vmatpush1.bf16.msra.mxu0 %v7508
    %7536 = vmatprep.subr.bf16.mxu0 %v7507
    %7537 = vmatpush1.bf16.msra.mxu0 %v7506
    %7538 = vmatprep.subr.bf16.mxu0 %v7505
    %7539 = vmatpush1.bf16.msra.mxu0 %v7504
    %7540 = vmatprep.subr.bf16.mxu0 %v7503
    %7541 = vmatpush1.bf16.msra.mxu0 %v7502
    %7542 = vmatprep.subr.bf16.mxu0 %v7501
    %7543 = vmatpush1.bf16.msra.mxu0 %v7500
    %7544 = vmatprep.subr.bf16.mxu0 %v7499
    %7545 = vmatpush1.bf16.msra.mxu0 %v7498
    %7546 = vmatprep.subr.bf16.mxu0 0
    %7547 = vmatpush2.bf16.msra.mxu0 0
    %7548 = vmatprep.subr.bf16.mxu0 0
    %7549 = vmatpush2.bf16.msra.mxu0 0
    %7550 = vmatprep.subr.bf16.mxu0 0
    %7551 = vmatpush2.bf16.msra.mxu0 0
    %7552 = vmatprep.subr.bf16.mxu0 0
    %7553 = vmatpush2.bf16.msra.mxu0 0
    %7554 = vmatprep.subr.bf16.mxu0 0
    %7555 = vmatpush2.bf16.msra.mxu0 0
    %7556 = vmatprep.subr.bf16.mxu0 0
    %7557 = vmatpush2.bf16.msra.mxu0 0
    %7558 = vmatprep.subr.bf16.mxu0 0
    %7559 = vmatpush2.bf16.msra.mxu0 0
    %7560 = vmatprep.subr.bf16.mxu0 0
    %7561 = vmatpush2.bf16.msra.mxu0 0
    %7562 = vmatprep.mubr.bf16.mxu0 0
    %7563 = vmatmul.mubr.bf16.gmra.mxu0 %v7432
    %v7564 = vpop.f32.mrf.mxu0
    %v7565 = vadd.f32 0.0, %v7564
    %v7566 = vpop.f32.mrf.mxu0
    %v7567 = vadd.f32 0.0, %v7566
    %v7568 = vpop.f32.mrf.mxu0
    %v7569 = vpop.f32.mrf.mxu0
    %7570 = vdwg.mxu0
    %v7571 = vadd.f32 %v7426, %v7565
    %v7572 = vadd.f32 %v7427, %v7567
    %s7573 = scalar_lea.vmem [#allocation4], 11
    %v7574 = vld [vmem:[%s7573] ss:$128 sm:$0x1]
    %v7575 = vld [vmem:[%s7573] ss:$128 sm:$0x2]
    %v7576 = vor.u32 %v7574, %v7575
    %v7577 = vpack.c.bf16 %v7576, %v7576
    %s7578 = scalar_lea.vmem [#allocation16], 640
    %v7579 = vld [vmem:[%s7578] sm:$0xff]
    %v7580 = vld [vmem:[%s7578 + $0x8] sm:$0xff]
    %v7581 = vld [vmem:[%s7578 + $0x10] sm:$0xff]
    %v7582 = vld [vmem:[%s7578 + $0x18] sm:$0xff]
    %v7583 = vld [vmem:[%s7578 + $0x20] sm:$0xff]
    %v7584 = vld [vmem:[%s7578 + $0x28] sm:$0xff]
    %v7585 = vld [vmem:[%s7578 + $0x30] sm:$0xff]
    %v7586 = vld [vmem:[%s7578 + $0x38] sm:$0xff]
    %v7587 = vld [vmem:[%s7578 + $0x40] sm:$0xff]
    %v7588 = vld [vmem:[%s7578 + $0x48] sm:$0xff]
    %v7589 = vld [vmem:[%s7578 + $0x50] sm:$0xff]
    %v7590 = vld [vmem:[%s7578 + $0x58] sm:$0xff]
    %v7591 = vld [vmem:[%s7578 + $0x60] sm:$0xff]
    %v7592 = vld [vmem:[%s7578 + $0x68] sm:$0xff]
    %v7593 = vld [vmem:[%s7578 + $0x70] sm:$0xff]
    %v7594 = vld [vmem:[%s7578 + $0x78] sm:$0xff]
    %v7611 = vunpack.c.l.b16 %v7579
    %v7612 = vunpack.c.h.b16 %v7579
    %v7613 = vunpack.c.l.b16 %v7580
    %v7614 = vunpack.c.h.b16 %v7580
    %v7615 = vunpack.c.l.b16 %v7581
    %v7616 = vunpack.c.h.b16 %v7581
    %v7617 = vunpack.c.l.b16 %v7582
    %v7618 = vunpack.c.h.b16 %v7582
    %v7619 = vunpack.c.l.b16 %v7583
    %v7620 = vunpack.c.h.b16 %v7583
    %v7621 = vunpack.c.l.b16 %v7584
    %v7622 = vunpack.c.h.b16 %v7584
    %v7623 = vunpack.c.l.b16 %v7585
    %v7624 = vunpack.c.h.b16 %v7585
    %v7625 = vunpack.c.l.b16 %v7586
    %v7626 = vunpack.c.h.b16 %v7586
    %v7627 = vunpack.c.l.b16 %v7587
    %v7628 = vunpack.c.h.b16 %v7587
    %v7629 = vunpack.c.l.b16 %v7588
    %v7630 = vunpack.c.h.b16 %v7588
    %v7631 = vunpack.c.l.b16 %v7589
    %v7632 = vunpack.c.h.b16 %v7589
    %v7633 = vunpack.c.l.b16 %v7590
    %v7634 = vunpack.c.h.b16 %v7590
    %v7635 = vunpack.c.l.b16 %v7591
    %v7636 = vunpack.c.h.b16 %v7591
    %v7637 = vunpack.c.l.b16 %v7592
    %v7638 = vunpack.c.h.b16 %v7592
    %v7639 = vunpack.c.l.b16 %v7593
    %v7640 = vunpack.c.h.b16 %v7593
    %v7641 = vunpack.c.l.b16 %v7594
    %v7642 = vunpack.c.h.b16 %v7594
    %v7643 = vpack.c.b16 %v7613, %v7611
    %v7644 = vpack.c.b16 %v7614, %v7612
    %v7645 = vpack.c.b16 %v7617, %v7615
    %v7646 = vpack.c.b16 %v7618, %v7616
    %v7647 = vpack.c.b16 %v7621, %v7619
    %v7648 = vpack.c.b16 %v7622, %v7620
    %v7649 = vpack.c.b16 %v7625, %v7623
    %v7650 = vpack.c.b16 %v7626, %v7624
    %v7651 = vpack.c.b16 %v7629, %v7627
    %v7652 = vpack.c.b16 %v7630, %v7628
    %v7653 = vpack.c.b16 %v7633, %v7631
    %v7654 = vpack.c.b16 %v7634, %v7632
    %v7655 = vpack.c.b16 %v7637, %v7635
    %v7656 = vpack.c.b16 %v7638, %v7636
    %v7657 = vpack.c.b16 %v7641, %v7639
    %v7658 = vpack.c.b16 %v7642, %v7640
    %7675 = vmatprep.subr.bf16.mxu0 %v7658
    %7676 = vmatpush1.bf16.msra.mxu0 %v7657
    %7677 = vmatprep.subr.bf16.mxu0 %v7656
    %7678 = vmatpush1.bf16.msra.mxu0 %v7655
    %7679 = vmatprep.subr.bf16.mxu0 %v7654
    %7680 = vmatpush1.bf16.msra.mxu0 %v7653
    %7681 = vmatprep.subr.bf16.mxu0 %v7652
    %7682 = vmatpush1.bf16.msra.mxu0 %v7651
    %7683 = vmatprep.subr.bf16.mxu0 %v7650
    %7684 = vmatpush1.bf16.msra.mxu0 %v7649
    %7685 = vmatprep.subr.bf16.mxu0 %v7648
    %7686 = vmatpush1.bf16.msra.mxu0 %v7647
    %7687 = vmatprep.subr.bf16.mxu0 %v7646
    %7688 = vmatpush1.bf16.msra.mxu0 %v7645
    %7689 = vmatprep.subr.bf16.mxu0 %v7644
    %7690 = vmatpush1.bf16.msra.mxu0 %v7643
    %7691 = vmatprep.subr.bf16.mxu0 0
    %7692 = vmatpush2.bf16.msra.mxu0 0
    %7693 = vmatprep.subr.bf16.mxu0 0
    %7694 = vmatpush2.bf16.msra.mxu0 0
    %7695 = vmatprep.subr.bf16.mxu0 0
    %7696 = vmatpush2.bf16.msra.mxu0 0
    %7697 = vmatprep.subr.bf16.mxu0 0
    %7698 = vmatpush2.bf16.msra.mxu0 0
    %7699 = vmatprep.subr.bf16.mxu0 0
    %7700 = vmatpush2.bf16.msra.mxu0 0
    %7701 = vmatprep.subr.bf16.mxu0 0
    %7702 = vmatpush2.bf16.msra.mxu0 0
    %7703 = vmatprep.subr.bf16.mxu0 0
    %7704 = vmatpush2.bf16.msra.mxu0 0
    %7705 = vmatprep.subr.bf16.mxu0 0
    %7706 = vmatpush2.bf16.msra.mxu0 0
    %7707 = vmatprep.mubr.bf16.mxu0 0
    %7708 = vmatmul.mubr.bf16.gmra.mxu0 %v7577
    %v7709 = vpop.f32.mrf.mxu0
    %v7710 = vadd.f32 0.0, %v7709
    %v7711 = vpop.f32.mrf.mxu0
    %v7712 = vadd.f32 0.0, %v7711
    %v7713 = vpop.f32.mrf.mxu0
    %v7714 = vpop.f32.mrf.mxu0
    %7715 = vdwg.mxu0
    %v7716 = vadd.f32 %v7571, %v7710
    %v7717 = vadd.f32 %v7572, %v7712
    %s7718 = scalar_lea.vmem [#allocation4], 12
    %v7719 = vld [vmem:[%s7718] ss:$128 sm:$0x1]
    %v7720 = vld [vmem:[%s7718] ss:$128 sm:$0x2]
    %v7721 = vor.u32 %v7719, %v7720
    %v7722 = vpack.c.bf16 %v7721, %v7721
    %s7723 = scalar_lea.vmem [#allocation16], 768
    %v7724 = vld [vmem:[%s7723] sm:$0xff]
    %v7725 = vld [vmem:[%s7723 + $0x8] sm:$0xff]
    %v7726 = vld [vmem:[%s7723 + $0x10] sm:$0xff]
    %v7727 = vld [vmem:[%s7723 + $0x18] sm:$0xff]
    %v7728 = vld [vmem:[%s7723 + $0x20] sm:$0xff]
    %v7729 = vld [vmem:[%s7723 + $0x28] sm:$0xff]
    %v7730 = vld [vmem:[%s7723 + $0x30] sm:$0xff]
    %v7731 = vld [vmem:[%s7723 + $0x38] sm:$0xff]
    %v7732 = vld [vmem:[%s7723 + $0x40] sm:$0xff]
    %v7733 = vld [vmem:[%s7723 + $0x48] sm:$0xff]
    %v7734 = vld [vmem:[%s7723 + $0x50] sm:$0xff]
    %v7735 = vld [vmem:[%s7723 + $0x58] sm:$0xff]
    %v7736 = vld [vmem:[%s7723 + $0x60] sm:$0xff]
    %v7737 = vld [vmem:[%s7723 + $0x68] sm:$0xff]
    %v7738 = vld [vmem:[%s7723 + $0x70] sm:$0xff]
    %v7739 = vld [vmem:[%s7723 + $0x78] sm:$0xff]
    %v7756 = vunpack.c.l.b16 %v7724
    %v7757 = vunpack.c.h.b16 %v7724
    %v7758 = vunpack.c.l.b16 %v7725
    %v7759 = vunpack.c.h.b16 %v7725
    %v7760 = vunpack.c.l.b16 %v7726
    %v7761 = vunpack.c.h.b16 %v7726
    %v7762 = vunpack.c.l.b16 %v7727
    %v7763 = vunpack.c.h.b16 %v7727
    %v7764 = vunpack.c.l.b16 %v7728
    %v7765 = vunpack.c.h.b16 %v7728
    %v7766 = vunpack.c.l.b16 %v7729
    %v7767 = vunpack.c.h.b16 %v7729
    %v7768 = vunpack.c.l.b16 %v7730
    %v7769 = vunpack.c.h.b16 %v7730
    %v7770 = vunpack.c.l.b16 %v7731
    %v7771 = vunpack.c.h.b16 %v7731
    %v7772 = vunpack.c.l.b16 %v7732
    %v7773 = vunpack.c.h.b16 %v7732
    %v7774 = vunpack.c.l.b16 %v7733
    %v7775 = vunpack.c.h.b16 %v7733
    %v7776 = vunpack.c.l.b16 %v7734
    %v7777 = vunpack.c.h.b16 %v7734
    %v7778 = vunpack.c.l.b16 %v7735
    %v7779 = vunpack.c.h.b16 %v7735
    %v7780 = vunpack.c.l.b16 %v7736
    %v7781 = vunpack.c.h.b16 %v7736
    %v7782 = vunpack.c.l.b16 %v7737
    %v7783 = vunpack.c.h.b16 %v7737
    %v7784 = vunpack.c.l.b16 %v7738
    %v7785 = vunpack.c.h.b16 %v7738
    %v7786 = vunpack.c.l.b16 %v7739
    %v7787 = vunpack.c.h.b16 %v7739
    %v7788 = vpack.c.b16 %v7758, %v7756
    %v7789 = vpack.c.b16 %v7759, %v7757
    %v7790 = vpack.c.b16 %v7762, %v7760
    %v7791 = vpack.c.b16 %v7763, %v7761
    %v7792 = vpack.c.b16 %v7766, %v7764
    %v7793 = vpack.c.b16 %v7767, %v7765
    %v7794 = vpack.c.b16 %v7770, %v7768
    %v7795 = vpack.c.b16 %v7771, %v7769
    %v7796 = vpack.c.b16 %v7774, %v7772
    %v7797 = vpack.c.b16 %v7775, %v7773
    %v7798 = vpack.c.b16 %v7778, %v7776
    %v7799 = vpack.c.b16 %v7779, %v7777
    %v7800 = vpack.c.b16 %v7782, %v7780
    %v7801 = vpack.c.b16 %v7783, %v7781
    %v7802 = vpack.c.b16 %v7786, %v7784
    %v7803 = vpack.c.b16 %v7787, %v7785
    %7820 = vmatprep.subr.bf16.mxu0 %v7803
    %7821 = vmatpush1.bf16.msra.mxu0 %v7802
    %7822 = vmatprep.subr.bf16.mxu0 %v7801
    %7823 = vmatpush1.bf16.msra.mxu0 %v7800
    %7824 = vmatprep.subr.bf16.mxu0 %v7799
    %7825 = vmatpush1.bf16.msra.mxu0 %v7798
    %7826 = vmatprep.subr.bf16.mxu0 %v7797
    %7827 = vmatpush1.bf16.msra.mxu0 %v7796
    %7828 = vmatprep.subr.bf16.mxu0 %v7795
    %7829 = vmatpush1.bf16.msra.mxu0 %v7794
    %7830 = vmatprep.subr.bf16.mxu0 %v7793
    %7831 = vmatpush1.bf16.msra.mxu0 %v7792
    %7832 = vmatprep.subr.bf16.mxu0 %v7791
    %7833 = vmatpush1.bf16.msra.mxu0 %v7790
    %7834 = vmatprep.subr.bf16.mxu0 %v7789
    %7835 = vmatpush1.bf16.msra.mxu0 %v7788
    %7836 = vmatprep.subr.bf16.mxu0 0
    %7837 = vmatpush2.bf16.msra.mxu0 0
    %7838 = vmatprep.subr.bf16.mxu0 0
    %7839 = vmatpush2.bf16.msra.mxu0 0
    %7840 = vmatprep.subr.bf16.mxu0 0
    %7841 = vmatpush2.bf16.msra.mxu0 0
    %7842 = vmatprep.subr.bf16.mxu0 0
    %7843 = vmatpush2.bf16.msra.mxu0 0
    %7844 = vmatprep.subr.bf16.mxu0 0
    %7845 = vmatpush2.bf16.msra.mxu0 0
    %7846 = vmatprep.subr.bf16.mxu0 0
    %7847 = vmatpush2.bf16.msra.mxu0 0
    %7848 = vmatprep.subr.bf16.mxu0 0
    %7849 = vmatpush2.bf16.msra.mxu0 0
    %7850 = vmatprep.subr.bf16.mxu0 0
    %7851 = vmatpush2.bf16.msra.mxu0 0
    %7852 = vmatprep.mubr.bf16.mxu0 0
    %7853 = vmatmul.mubr.bf16.gmra.mxu0 %v7722
    %v7854 = vpop.f32.mrf.mxu0
    %v7855 = vadd.f32 0.0, %v7854
    %v7856 = vpop.f32.mrf.mxu0
    %v7857 = vadd.f32 0.0, %v7856
    %v7858 = vpop.f32.mrf.mxu0
    %v7859 = vpop.f32.mrf.mxu0
    %7860 = vdwg.mxu0
    %v7861 = vadd.f32 %v7716, %v7855
    %v7862 = vadd.f32 %v7717, %v7857
    %s7863 = scalar_lea.vmem [#allocation4], 13
    %v7864 = vld [vmem:[%s7863] ss:$128 sm:$0x1]
    %v7865 = vld [vmem:[%s7863] ss:$128 sm:$0x2]
    %v7866 = vor.u32 %v7864, %v7865
    %v7867 = vpack.c.bf16 %v7866, %v7866
    %s7868 = scalar_lea.vmem [#allocation16], 896
    %v7869 = vld [vmem:[%s7868] sm:$0xff]
    %v7870 = vld [vmem:[%s7868 + $0x8] sm:$0xff]
    %v7871 = vld [vmem:[%s7868 + $0x10] sm:$0xff]
    %v7872 = vld [vmem:[%s7868 + $0x18] sm:$0xff]
    %v7873 = vld [vmem:[%s7868 + $0x20] sm:$0xff]
    %v7874 = vld [vmem:[%s7868 + $0x28] sm:$0xff]
    %v7875 = vld [vmem:[%s7868 + $0x30] sm:$0xff]
    %v7876 = vld [vmem:[%s7868 + $0x38] sm:$0xff]
    %v7877 = vld [vmem:[%s7868 + $0x40] sm:$0xff]
    %v7878 = vld [vmem:[%s7868 + $0x48] sm:$0xff]
    %v7879 = vld [vmem:[%s7868 + $0x50] sm:$0xff]
    %v7880 = vld [vmem:[%s7868 + $0x58] sm:$0xff]
    %v7881 = vld [vmem:[%s7868 + $0x60] sm:$0xff]
    %v7882 = vld [vmem:[%s7868 + $0x68] sm:$0xff]
    %v7883 = vld [vmem:[%s7868 + $0x70] sm:$0xff]
    %v7884 = vld [vmem:[%s7868 + $0x78] sm:$0xff]
    %v7901 = vunpack.c.l.b16 %v7869
    %v7902 = vunpack.c.h.b16 %v7869
    %v7903 = vunpack.c.l.b16 %v7870
    %v7904 = vunpack.c.h.b16 %v7870
    %v7905 = vunpack.c.l.b16 %v7871
    %v7906 = vunpack.c.h.b16 %v7871
    %v7907 = vunpack.c.l.b16 %v7872
    %v7908 = vunpack.c.h.b16 %v7872
    %v7909 = vunpack.c.l.b16 %v7873
    %v7910 = vunpack.c.h.b16 %v7873
    %v7911 = vunpack.c.l.b16 %v7874
    %v7912 = vunpack.c.h.b16 %v7874
    %v7913 = vunpack.c.l.b16 %v7875
    %v7914 = vunpack.c.h.b16 %v7875
    %v7915 = vunpack.c.l.b16 %v7876
    %v7916 = vunpack.c.h.b16 %v7876
    %v7917 = vunpack.c.l.b16 %v7877
    %v7918 = vunpack.c.h.b16 %v7877
    %v7919 = vunpack.c.l.b16 %v7878
    %v7920 = vunpack.c.h.b16 %v7878
    %v7921 = vunpack.c.l.b16 %v7879
    %v7922 = vunpack.c.h.b16 %v7879
    %v7923 = vunpack.c.l.b16 %v7880
    %v7924 = vunpack.c.h.b16 %v7880
    %v7925 = vunpack.c.l.b16 %v7881
    %v7926 = vunpack.c.h.b16 %v7881
    %v7927 = vunpack.c.l.b16 %v7882
    %v7928 = vunpack.c.h.b16 %v7882
    %v7929 = vunpack.c.l.b16 %v7883
    %v7930 = vunpack.c.h.b16 %v7883
    %v7931 = vunpack.c.l.b16 %v7884
    %v7932 = vunpack.c.h.b16 %v7884
    %v7933 = vpack.c.b16 %v7903, %v7901
    %v7934 = vpack.c.b16 %v7904, %v7902
    %v7935 = vpack.c.b16 %v7907, %v7905
    %v7936 = vpack.c.b16 %v7908, %v7906
    %v7937 = vpack.c.b16 %v7911, %v7909
    %v7938 = vpack.c.b16 %v7912, %v7910
    %v7939 = vpack.c.b16 %v7915, %v7913
    %v7940 = vpack.c.b16 %v7916, %v7914
    %v7941 = vpack.c.b16 %v7919, %v7917
    %v7942 = vpack.c.b16 %v7920, %v7918
    %v7943 = vpack.c.b16 %v7923, %v7921
    %v7944 = vpack.c.b16 %v7924, %v7922
    %v7945 = vpack.c.b16 %v7927, %v7925
    %v7946 = vpack.c.b16 %v7928, %v7926
    %v7947 = vpack.c.b16 %v7931, %v7929
    %v7948 = vpack.c.b16 %v7932, %v7930
    %7965 = vmatprep.subr.bf16.mxu0 %v7948
    %7966 = vmatpush1.bf16.msra.mxu0 %v7947
    %7967 = vmatprep.subr.bf16.mxu0 %v7946
    %7968 = vmatpush1.bf16.msra.mxu0 %v7945
    %7969 = vmatprep.subr.bf16.mxu0 %v7944
    %7970 = vmatpush1.bf16.msra.mxu0 %v7943
    %7971 = vmatprep.subr.bf16.mxu0 %v7942
    %7972 = vmatpush1.bf16.msra.mxu0 %v7941
    %7973 = vmatprep.subr.bf16.mxu0 %v7940
    %7974 = vmatpush1.bf16.msra.mxu0 %v7939
    %7975 = vmatprep.subr.bf16.mxu0 %v7938
    %7976 = vmatpush1.bf16.msra.mxu0 %v7937
    %7977 = vmatprep.subr.bf16.mxu0 %v7936
    %7978 = vmatpush1.bf16.msra.mxu0 %v7935
    %7979 = vmatprep.subr.bf16.mxu0 %v7934
    %7980 = vmatpush1.bf16.msra.mxu0 %v7933
    %7981 = vmatprep.subr.bf16.mxu0 0
    %7982 = vmatpush2.bf16.msra.mxu0 0
    %7983 = vmatprep.subr.bf16.mxu0 0
    %7984 = vmatpush2.bf16.msra.mxu0 0
    %7985 = vmatprep.subr.bf16.mxu0 0
    %7986 = vmatpush2.bf16.msra.mxu0 0
    %7987 = vmatprep.subr.bf16.mxu0 0
    %7988 = vmatpush2.bf16.msra.mxu0 0
    %7989 = vmatprep.subr.bf16.mxu0 0
    %7990 = vmatpush2.bf16.msra.mxu0 0
    %7991 = vmatprep.subr.bf16.mxu0 0
    %7992 = vmatpush2.bf16.msra.mxu0 0
    %7993 = vmatprep.subr.bf16.mxu0 0
    %7994 = vmatpush2.bf16.msra.mxu0 0
    %7995 = vmatprep.subr.bf16.mxu0 0
    %7996 = vmatpush2.bf16.msra.mxu0 0
    %7997 = vmatprep.mubr.bf16.mxu0 0
    %7998 = vmatmul.mubr.bf16.gmra.mxu0 %v7867
    %v7999 = vpop.f32.mrf.mxu0
    %v8000 = vadd.f32 0.0, %v7999
    %v8001 = vpop.f32.mrf.mxu0
    %v8002 = vadd.f32 0.0, %v8001
    %v8003 = vpop.f32.mrf.mxu0
    %v8004 = vpop.f32.mrf.mxu0
    %8005 = vdwg.mxu0
    %v8006 = vadd.f32 %v7861, %v8000
    %v8007 = vadd.f32 %v7862, %v8002
    %s8008 = scalar_lea.vmem [#allocation4], 14
    %v8009 = vld [vmem:[%s8008] ss:$128 sm:$0x1]
    %v8010 = vld [vmem:[%s8008] ss:$128 sm:$0x2]
    %v8011 = vor.u32 %v8009, %v8010
    %v8012 = vpack.c.bf16 %v8011, %v8011
    %s8013 = scalar_lea.vmem [#allocation16], 1024
    %v8014 = vld [vmem:[%s8013] sm:$0xff]
    %v8015 = vld [vmem:[%s8013 + $0x8] sm:$0xff]
    %v8016 = vld [vmem:[%s8013 + $0x10] sm:$0xff]
    %v8017 = vld [vmem:[%s8013 + $0x18] sm:$0xff]
    %v8018 = vld [vmem:[%s8013 + $0x20] sm:$0xff]
    %v8019 = vld [vmem:[%s8013 + $0x28] sm:$0xff]
    %v8020 = vld [vmem:[%s8013 + $0x30] sm:$0xff]
    %v8021 = vld [vmem:[%s8013 + $0x38] sm:$0xff]
    %v8022 = vld [vmem:[%s8013 + $0x40] sm:$0xff]
    %v8023 = vld [vmem:[%s8013 + $0x48] sm:$0xff]
    %v8024 = vld [vmem:[%s8013 + $0x50] sm:$0xff]
    %v8025 = vld [vmem:[%s8013 + $0x58] sm:$0xff]
    %v8026 = vld [vmem:[%s8013 + $0x60] sm:$0xff]
    %v8027 = vld [vmem:[%s8013 + $0x68] sm:$0xff]
    %v8028 = vld [vmem:[%s8013 + $0x70] sm:$0xff]
    %v8029 = vld [vmem:[%s8013 + $0x78] sm:$0xff]
    %v8046 = vunpack.c.l.b16 %v8014
    %v8047 = vunpack.c.h.b16 %v8014
    %v8048 = vunpack.c.l.b16 %v8015
    %v8049 = vunpack.c.h.b16 %v8015
    %v8050 = vunpack.c.l.b16 %v8016
    %v8051 = vunpack.c.h.b16 %v8016
    %v8052 = vunpack.c.l.b16 %v8017
    %v8053 = vunpack.c.h.b16 %v8017
    %v8054 = vunpack.c.l.b16 %v8018
    %v8055 = vunpack.c.h.b16 %v8018
    %v8056 = vunpack.c.l.b16 %v8019
    %v8057 = vunpack.c.h.b16 %v8019
    %v8058 = vunpack.c.l.b16 %v8020
    %v8059 = vunpack.c.h.b16 %v8020
    %v8060 = vunpack.c.l.b16 %v8021
    %v8061 = vunpack.c.h.b16 %v8021
    %v8062 = vunpack.c.l.b16 %v8022
    %v8063 = vunpack.c.h.b16 %v8022
    %v8064 = vunpack.c.l.b16 %v8023
    %v8065 = vunpack.c.h.b16 %v8023
    %v8066 = vunpack.c.l.b16 %v8024
    %v8067 = vunpack.c.h.b16 %v8024
    %v8068 = vunpack.c.l.b16 %v8025
    %v8069 = vunpack.c.h.b16 %v8025
    %v8070 = vunpack.c.l.b16 %v8026
    %v8071 = vunpack.c.h.b16 %v8026
    %v8072 = vunpack.c.l.b16 %v8027
    %v8073 = vunpack.c.h.b16 %v8027
    %v8074 = vunpack.c.l.b16 %v8028
    %v8075 = vunpack.c.h.b16 %v8028
    %v8076 = vunpack.c.l.b16 %v8029
    %v8077 = vunpack.c.h.b16 %v8029
    %v8078 = vpack.c.b16 %v8048, %v8046
    %v8079 = vpack.c.b16 %v8049, %v8047
    %v8080 = vpack.c.b16 %v8052, %v8050
    %v8081 = vpack.c.b16 %v8053, %v8051
    %v8082 = vpack.c.b16 %v8056, %v8054
    %v8083 = vpack.c.b16 %v8057, %v8055
    %v8084 = vpack.c.b16 %v8060, %v8058
    %v8085 = vpack.c.b16 %v8061, %v8059
    %v8086 = vpack.c.b16 %v8064, %v8062
    %v8087 = vpack.c.b16 %v8065, %v8063
    %v8088 = vpack.c.b16 %v8068, %v8066
    %v8089 = vpack.c.b16 %v8069, %v8067
    %v8090 = vpack.c.b16 %v8072, %v8070
    %v8091 = vpack.c.b16 %v8073, %v8071
    %v8092 = vpack.c.b16 %v8076, %v8074
    %v8093 = vpack.c.b16 %v8077, %v8075
    %8110 = vmatprep.subr.bf16.mxu0 %v8093
    %8111 = vmatpush1.bf16.msra.mxu0 %v8092
    %8112 = vmatprep.subr.bf16.mxu0 %v8091
    %8113 = vmatpush1.bf16.msra.mxu0 %v8090
    %8114 = vmatprep.subr.bf16.mxu0 %v8089
    %8115 = vmatpush1.bf16.msra.mxu0 %v8088
    %8116 = vmatprep.subr.bf16.mxu0 %v8087
    %8117 = vmatpush1.bf16.msra.mxu0 %v8086
    %8118 = vmatprep.subr.bf16.mxu0 %v8085
    %8119 = vmatpush1.bf16.msra.mxu0 %v8084
    %8120 = vmatprep.subr.bf16.mxu0 %v8083
    %8121 = vmatpush1.bf16.msra.mxu0 %v8082
    %8122 = vmatprep.subr.bf16.mxu0 %v8081
    %8123 = vmatpush1.bf16.msra.mxu0 %v8080
    %8124 = vmatprep.subr.bf16.mxu0 %v8079
    %8125 = vmatpush1.bf16.msra.mxu0 %v8078
    %8126 = vmatprep.subr.bf16.mxu0 0
    %8127 = vmatpush2.bf16.msra.mxu0 0
    %8128 = vmatprep.subr.bf16.mxu0 0
    %8129 = vmatpush2.bf16.msra.mxu0 0
    %8130 = vmatprep.subr.bf16.mxu0 0
    %8131 = vmatpush2.bf16.msra.mxu0 0
    %8132 = vmatprep.subr.bf16.mxu0 0
    %8133 = vmatpush2.bf16.msra.mxu0 0
    %8134 = vmatprep.subr.bf16.mxu0 0
    %8135 = vmatpush2.bf16.msra.mxu0 0
    %8136 = vmatprep.subr.bf16.mxu0 0
    %8137 = vmatpush2.bf16.msra.mxu0 0
    %8138 = vmatprep.subr.bf16.mxu0 0
    %8139 = vmatpush2.bf16.msra.mxu0 0
    %8140 = vmatprep.subr.bf16.mxu0 0
    %8141 = vmatpush2.bf16.msra.mxu0 0
    %8142 = vmatprep.mubr.bf16.mxu0 0
    %8143 = vmatmul.mubr.bf16.gmra.mxu0 %v8012
    %v8144 = vpop.f32.mrf.mxu0
    %v8145 = vadd.f32 0.0, %v8144
    %v8146 = vpop.f32.mrf.mxu0
    %v8147 = vadd.f32 0.0, %v8146
    %v8148 = vpop.f32.mrf.mxu0
    %v8149 = vpop.f32.mrf.mxu0
    %8150 = vdwg.mxu0
    %v8151 = vadd.f32 %v8006, %v8145
    %v8152 = vadd.f32 %v8007, %v8147
    %s8153 = scalar_lea.vmem [#allocation4], 15
    %v8154 = vld [vmem:[%s8153] ss:$128 sm:$0x1]
    %v8155 = vld [vmem:[%s8153] ss:$128 sm:$0x2]
    %v8156 = vor.u32 %v8154, %v8155
    %v8157 = vpack.c.bf16 %v8156, %v8156
    %s8158 = scalar_lea.vmem [#allocation16], 1152
    %v8159 = vld [vmem:[%s8158] sm:$0xff]
    %v8160 = vld [vmem:[%s8158 + $0x8] sm:$0xff]
    %v8161 = vld [vmem:[%s8158 + $0x10] sm:$0xff]
    %v8162 = vld [vmem:[%s8158 + $0x18] sm:$0xff]
    %v8163 = vld [vmem:[%s8158 + $0x20] sm:$0xff]
    %v8164 = vld [vmem:[%s8158 + $0x28] sm:$0xff]
    %v8165 = vld [vmem:[%s8158 + $0x30] sm:$0xff]
    %v8166 = vld [vmem:[%s8158 + $0x38] sm:$0xff]
    %v8167 = vld [vmem:[%s8158 + $0x40] sm:$0xff]
    %v8168 = vld [vmem:[%s8158 + $0x48] sm:$0xff]
    %v8169 = vld [vmem:[%s8158 + $0x50] sm:$0xff]
    %v8170 = vld [vmem:[%s8158 + $0x58] sm:$0xff]
    %v8171 = vld [vmem:[%s8158 + $0x60] sm:$0xff]
    %v8172 = vld [vmem:[%s8158 + $0x68] sm:$0xff]
    %v8173 = vld [vmem:[%s8158 + $0x70] sm:$0xff]
    %v8174 = vld [vmem:[%s8158 + $0x78] sm:$0xff]
    %v8191 = vunpack.c.l.b16 %v8159
    %v8192 = vunpack.c.h.b16 %v8159
    %v8193 = vunpack.c.l.b16 %v8160
    %v8194 = vunpack.c.h.b16 %v8160
    %v8195 = vunpack.c.l.b16 %v8161
    %v8196 = vunpack.c.h.b16 %v8161
    %v8197 = vunpack.c.l.b16 %v8162
    %v8198 = vunpack.c.h.b16 %v8162
    %v8199 = vunpack.c.l.b16 %v8163
    %v8200 = vunpack.c.h.b16 %v8163
    %v8201 = vunpack.c.l.b16 %v8164
    %v8202 = vunpack.c.h.b16 %v8164
    %v8203 = vunpack.c.l.b16 %v8165
    %v8204 = vunpack.c.h.b16 %v8165
    %v8205 = vunpack.c.l.b16 %v8166
    %v8206 = vunpack.c.h.b16 %v8166
    %v8207 = vunpack.c.l.b16 %v8167
    %v8208 = vunpack.c.h.b16 %v8167
    %v8209 = vunpack.c.l.b16 %v8168
    %v8210 = vunpack.c.h.b16 %v8168
    %v8211 = vunpack.c.l.b16 %v8169
    %v8212 = vunpack.c.h.b16 %v8169
    %v8213 = vunpack.c.l.b16 %v8170
    %v8214 = vunpack.c.h.b16 %v8170
    %v8215 = vunpack.c.l.b16 %v8171
    %v8216 = vunpack.c.h.b16 %v8171
    %v8217 = vunpack.c.l.b16 %v8172
    %v8218 = vunpack.c.h.b16 %v8172
    %v8219 = vunpack.c.l.b16 %v8173
    %v8220 = vunpack.c.h.b16 %v8173
    %v8221 = vunpack.c.l.b16 %v8174
    %v8222 = vunpack.c.h.b16 %v8174
    %v8223 = vpack.c.b16 %v8193, %v8191
    %v8224 = vpack.c.b16 %v8194, %v8192
    %v8225 = vpack.c.b16 %v8197, %v8195
    %v8226 = vpack.c.b16 %v8198, %v8196
    %v8227 = vpack.c.b16 %v8201, %v8199
    %v8228 = vpack.c.b16 %v8202, %v8200
    %v8229 = vpack.c.b16 %v8205, %v8203
    %v8230 = vpack.c.b16 %v8206, %v8204
    %v8231 = vpack.c.b16 %v8209, %v8207
    %v8232 = vpack.c.b16 %v8210, %v8208
    %v8233 = vpack.c.b16 %v8213, %v8211
    %v8234 = vpack.c.b16 %v8214, %v8212
    %v8235 = vpack.c.b16 %v8217, %v8215
    %v8236 = vpack.c.b16 %v8218, %v8216
    %v8237 = vpack.c.b16 %v8221, %v8219
    %v8238 = vpack.c.b16 %v8222, %v8220
    %8255 = vmatprep.subr.bf16.mxu0 %v8238
    %8256 = vmatpush1.bf16.msra.mxu0 %v8237
    %8257 = vmatprep.subr.bf16.mxu0 %v8236
    %8258 = vmatpush1.bf16.msra.mxu0 %v8235
    %8259 = vmatprep.subr.bf16.mxu0 %v8234
    %8260 = vmatpush1.bf16.msra.mxu0 %v8233
    %8261 = vmatprep.subr.bf16.mxu0 %v8232
    %8262 = vmatpush1.bf16.msra.mxu0 %v8231
    %8263 = vmatprep.subr.bf16.mxu0 %v8230
    %8264 = vmatpush1.bf16.msra.mxu0 %v8229
    %8265 = vmatprep.subr.bf16.mxu0 %v8228
    %8266 = vmatpush1.bf16.msra.mxu0 %v8227
    %8267 = vmatprep.subr.bf16.mxu0 %v8226
    %8268 = vmatpush1.bf16.msra.mxu0 %v8225
    %8269 = vmatprep.subr.bf16.mxu0 %v8224
    %8270 = vmatpush1.bf16.msra.mxu0 %v8223
    %8271 = vmatprep.subr.bf16.mxu0 0
    %8272 = vmatpush2.bf16.msra.mxu0 0
    %8273 = vmatprep.subr.bf16.mxu0 0
    %8274 = vmatpush2.bf16.msra.mxu0 0
    %8275 = vmatprep.subr.bf16.mxu0 0
    %8276 = vmatpush2.bf16.msra.mxu0 0
    %8277 = vmatprep.subr.bf16.mxu0 0
    %8278 = vmatpush2.bf16.msra.mxu0 0
    %8279 = vmatprep.subr.bf16.mxu0 0
    %8280 = vmatpush2.bf16.msra.mxu0 0
    %8281 = vmatprep.subr.bf16.mxu0 0
    %8282 = vmatpush2.bf16.msra.mxu0 0
    %8283 = vmatprep.subr.bf16.mxu0 0
    %8284 = vmatpush2.bf16.msra.mxu0 0
    %8285 = vmatprep.subr.bf16.mxu0 0
    %8286 = vmatpush2.bf16.msra.mxu0 0
    %8287 = vmatprep.mubr.bf16.mxu0 0
    %8288 = vmatmul.mubr.bf16.gmra.mxu0 %v8157
    %v8289 = vpop.f32.mrf.mxu0
    %v8290 = vadd.f32 0.0, %v8289
    %v8291 = vpop.f32.mrf.mxu0
    %v8292 = vadd.f32 0.0, %v8291
    %v8293 = vpop.f32.mrf.mxu0
    %v8294 = vpop.f32.mrf.mxu0
    %8295 = vdwg.mxu0
    %v8296 = vadd.f32 %v8151, %v8290
    %v8297 = vadd.f32 %v8152, %v8292
    %s8298 = scalar_lea.vmem [#allocation4], 22
    %v8299 = vld [vmem:[%s8298] ss:$128 sm:$0x1]
    %v8300 = vld [vmem:[%s8298] ss:$128 sm:$0x2]
    %v8301 = vor.u32 %v8299, %v8300
    %v8302 = vpack.c.bf16 %v8301, %v8301
    %s8303 = scalar_lea.vmem [#allocation16], 1280
    %v8304 = vld [vmem:[%s8303] sm:$0xff]
    %v8305 = vld [vmem:[%s8303 + $0x8] sm:$0xff]
    %v8306 = vld [vmem:[%s8303 + $0x10] sm:$0xff]
    %v8307 = vld [vmem:[%s8303 + $0x18] sm:$0xff]
    %v8308 = vld [vmem:[%s8303 + $0x20] sm:$0xff]
    %v8309 = vld [vmem:[%s8303 + $0x28] sm:$0xff]
    %v8310 = vld [vmem:[%s8303 + $0x30] sm:$0xff]
    %v8311 = vld [vmem:[%s8303 + $0x38] sm:$0xff]
    %v8312 = vld [vmem:[%s8303 + $0x40] sm:$0xff]
    %v8313 = vld [vmem:[%s8303 + $0x48] sm:$0xff]
    %v8314 = vld [vmem:[%s8303 + $0x50] sm:$0xff]
    %v8315 = vld [vmem:[%s8303 + $0x58] sm:$0xff]
    %v8316 = vld [vmem:[%s8303 + $0x60] sm:$0xff]
    %v8317 = vld [vmem:[%s8303 + $0x68] sm:$0xff]
    %v8318 = vld [vmem:[%s8303 + $0x70] sm:$0xff]
    %v8319 = vld [vmem:[%s8303 + $0x78] sm:$0xff]
    %v8336 = vunpack.c.l.b16 %v8304
    %v8337 = vunpack.c.h.b16 %v8304
    %v8338 = vunpack.c.l.b16 %v8305
    %v8339 = vunpack.c.h.b16 %v8305
    %v8340 = vunpack.c.l.b16 %v8306
    %v8341 = vunpack.c.h.b16 %v8306
    %v8342 = vunpack.c.l.b16 %v8307
    %v8343 = vunpack.c.h.b16 %v8307
    %v8344 = vunpack.c.l.b16 %v8308
    %v8345 = vunpack.c.h.b16 %v8308
    %v8346 = vunpack.c.l.b16 %v8309
    %v8347 = vunpack.c.h.b16 %v8309
    %v8348 = vunpack.c.l.b16 %v8310
    %v8349 = vunpack.c.h.b16 %v8310
    %v8350 = vunpack.c.l.b16 %v8311
    %v8351 = vunpack.c.h.b16 %v8311
    %v8352 = vunpack.c.l.b16 %v8312
    %v8353 = vunpack.c.h.b16 %v8312
    %v8354 = vunpack.c.l.b16 %v8313
    %v8355 = vunpack.c.h.b16 %v8313
    %v8356 = vunpack.c.l.b16 %v8314
    %v8357 = vunpack.c.h.b16 %v8314
    %v8358 = vunpack.c.l.b16 %v8315
    %v8359 = vunpack.c.h.b16 %v8315
    %v8360 = vunpack.c.l.b16 %v8316
    %v8361 = vunpack.c.h.b16 %v8316
    %v8362 = vunpack.c.l.b16 %v8317
    %v8363 = vunpack.c.h.b16 %v8317
    %v8364 = vunpack.c.l.b16 %v8318
    %v8365 = vunpack.c.h.b16 %v8318
    %v8366 = vunpack.c.l.b16 %v8319
    %v8367 = vunpack.c.h.b16 %v8319
    %v8368 = vpack.c.b16 %v8338, %v8336
    %v8369 = vpack.c.b16 %v8339, %v8337
    %v8370 = vpack.c.b16 %v8342, %v8340
    %v8371 = vpack.c.b16 %v8343, %v8341
    %v8372 = vpack.c.b16 %v8346, %v8344
    %v8373 = vpack.c.b16 %v8347, %v8345
    %v8374 = vpack.c.b16 %v8350, %v8348
    %v8375 = vpack.c.b16 %v8351, %v8349
    %v8376 = vpack.c.b16 %v8354, %v8352
    %v8377 = vpack.c.b16 %v8355, %v8353
    %v8378 = vpack.c.b16 %v8358, %v8356
    %v8379 = vpack.c.b16 %v8359, %v8357
    %v8380 = vpack.c.b16 %v8362, %v8360
    %v8381 = vpack.c.b16 %v8363, %v8361
    %v8382 = vpack.c.b16 %v8366, %v8364
    %v8383 = vpack.c.b16 %v8367, %v8365
    %8400 = vmatprep.subr.bf16.mxu0 %v8383
    %8401 = vmatpush1.bf16.msra.mxu0 %v8382
    %8402 = vmatprep.subr.bf16.mxu0 %v8381
    %8403 = vmatpush1.bf16.msra.mxu0 %v8380
    %8404 = vmatprep.subr.bf16.mxu0 %v8379
    %8405 = vmatpush1.bf16.msra.mxu0 %v8378
    %8406 = vmatprep.subr.bf16.mxu0 %v8377
    %8407 = vmatpush1.bf16.msra.mxu0 %v8376
    %8408 = vmatprep.subr.bf16.mxu0 %v8375
    %8409 = vmatpush1.bf16.msra.mxu0 %v8374
    %8410 = vmatprep.subr.bf16.mxu0 %v8373
    %8411 = vmatpush1.bf16.msra.mxu0 %v8372
    %8412 = vmatprep.subr.bf16.mxu0 %v8371
    %8413 = vmatpush1.bf16.msra.mxu0 %v8370
    %8414 = vmatprep.subr.bf16.mxu0 %v8369
    %8415 = vmatpush1.bf16.msra.mxu0 %v8368
    %8416 = vmatprep.subr.bf16.mxu0 0
    %8417 = vmatpush2.bf16.msra.mxu0 0
    %8418 = vmatprep.subr.bf16.mxu0 0
    %8419 = vmatpush2.bf16.msra.mxu0 0
    %8420 = vmatprep.subr.bf16.mxu0 0
    %8421 = vmatpush2.bf16.msra.mxu0 0
    %8422 = vmatprep.subr.bf16.mxu0 0
    %8423 = vmatpush2.bf16.msra.mxu0 0
    %8424 = vmatprep.subr.bf16.mxu0 0
    %8425 = vmatpush2.bf16.msra.mxu0 0
    %8426 = vmatprep.subr.bf16.mxu0 0
    %8427 = vmatpush2.bf16.msra.mxu0 0
    %8428 = vmatprep.subr.bf16.mxu0 0
    %8429 = vmatpush2.bf16.msra.mxu0 0
    %8430 = vmatprep.subr.bf16.mxu0 0
    %8431 = vmatpush2.bf16.msra.mxu0 0
    %8432 = vmatprep.mubr.bf16.mxu0 0
    %8433 = vmatmul.mubr.bf16.gmra.mxu0 %v8302
    %v8434 = vpop.f32.mrf.mxu0
    %v8435 = vadd.f32 0.0, %v8434
    %v8436 = vpop.f32.mrf.mxu0
    %v8437 = vadd.f32 0.0, %v8436
    %v8438 = vpop.f32.mrf.mxu0
    %v8439 = vpop.f32.mrf.mxu0
    %8440 = vdwg.mxu0
    %v8441 = vadd.f32 %v8296, %v8435
    %v8442 = vadd.f32 %v8297, %v8437
    %s8443 = scalar_lea.vmem [#allocation4], 23
    %v8444 = vld [vmem:[%s8443] ss:$128 sm:$0x1]
    %v8445 = vld [vmem:[%s8443] ss:$128 sm:$0x2]
    %v8446 = vor.u32 %v8444, %v8445
    %v8447 = vpack.c.bf16 %v8446, %v8446
    %s8448 = scalar_lea.vmem [#allocation16], 1408
    %v8449 = vld [vmem:[%s8448] sm:$0xff]
    %v8450 = vld [vmem:[%s8448 + $0x8] sm:$0xff]
    %v8451 = vld [vmem:[%s8448 + $0x10] sm:$0xff]
    %v8452 = vld [vmem:[%s8448 + $0x18] sm:$0xff]
    %v8453 = vld [vmem:[%s8448 + $0x20] sm:$0xff]
    %v8454 = vld [vmem:[%s8448 + $0x28] sm:$0xff]
    %v8455 = vld [vmem:[%s8448 + $0x30] sm:$0xff]
    %v8456 = vld [vmem:[%s8448 + $0x38] sm:$0xff]
    %v8457 = vld [vmem:[%s8448 + $0x40] sm:$0xff]
    %v8458 = vld [vmem:[%s8448 + $0x48] sm:$0xff]
    %v8459 = vld [vmem:[%s8448 + $0x50] sm:$0xff]
    %v8460 = vld [vmem:[%s8448 + $0x58] sm:$0xff]
    %v8461 = vld [vmem:[%s8448 + $0x60] sm:$0xff]
    %v8462 = vld [vmem:[%s8448 + $0x68] sm:$0xff]
    %v8463 = vld [vmem:[%s8448 + $0x70] sm:$0xff]
    %v8464 = vld [vmem:[%s8448 + $0x78] sm:$0xff]
    %v8481 = vunpack.c.l.b16 %v8449
    %v8482 = vunpack.c.h.b16 %v8449
    %v8483 = vunpack.c.l.b16 %v8450
    %v8484 = vunpack.c.h.b16 %v8450
    %v8485 = vunpack.c.l.b16 %v8451
    %v8486 = vunpack.c.h.b16 %v8451
    %v8487 = vunpack.c.l.b16 %v8452
    %v8488 = vunpack.c.h.b16 %v8452
    %v8489 = vunpack.c.l.b16 %v8453
    %v8490 = vunpack.c.h.b16 %v8453
    %v8491 = vunpack.c.l.b16 %v8454
    %v8492 = vunpack.c.h.b16 %v8454
    %v8493 = vunpack.c.l.b16 %v8455
    %v8494 = vunpack.c.h.b16 %v8455
    %v8495 = vunpack.c.l.b16 %v8456
    %v8496 = vunpack.c.h.b16 %v8456
    %v8497 = vunpack.c.l.b16 %v8457
    %v8498 = vunpack.c.h.b16 %v8457
    %v8499 = vunpack.c.l.b16 %v8458
    %v8500 = vunpack.c.h.b16 %v8458
    %v8501 = vunpack.c.l.b16 %v8459
    %v8502 = vunpack.c.h.b16 %v8459
    %v8503 = vunpack.c.l.b16 %v8460
    %v8504 = vunpack.c.h.b16 %v8460
    %v8505 = vunpack.c.l.b16 %v8461
    %v8506 = vunpack.c.h.b16 %v8461
    %v8507 = vunpack.c.l.b16 %v8462
    %v8508 = vunpack.c.h.b16 %v8462
    %v8509 = vunpack.c.l.b16 %v8463
    %v8510 = vunpack.c.h.b16 %v8463
    %v8511 = vunpack.c.l.b16 %v8464
    %v8512 = vunpack.c.h.b16 %v8464
    %v8513 = vpack.c.b16 %v8483, %v8481
    %v8514 = vpack.c.b16 %v8484, %v8482
    %v8515 = vpack.c.b16 %v8487, %v8485
    %v8516 = vpack.c.b16 %v8488, %v8486
    %v8517 = vpack.c.b16 %v8491, %v8489
    %v8518 = vpack.c.b16 %v8492, %v8490
    %v8519 = vpack.c.b16 %v8495, %v8493
    %v8520 = vpack.c.b16 %v8496, %v8494
    %v8521 = vpack.c.b16 %v8499, %v8497
    %v8522 = vpack.c.b16 %v8500, %v8498
    %v8523 = vpack.c.b16 %v8503, %v8501
    %v8524 = vpack.c.b16 %v8504, %v8502
    %v8525 = vpack.c.b16 %v8507, %v8505
    %v8526 = vpack.c.b16 %v8508, %v8506
    %v8527 = vpack.c.b16 %v8511, %v8509
    %v8528 = vpack.c.b16 %v8512, %v8510
    %8545 = vmatprep.subr.bf16.mxu0 %v8528
    %8546 = vmatpush1.bf16.msra.mxu0 %v8527
    %8547 = vmatprep.subr.bf16.mxu0 %v8526
    %8548 = vmatpush1.bf16.msra.mxu0 %v8525
    %8549 = vmatprep.subr.bf16.mxu0 %v8524
    %8550 = vmatpush1.bf16.msra.mxu0 %v8523
    %8551 = vmatprep.subr.bf16.mxu0 %v8522
    %8552 = vmatpush1.bf16.msra.mxu0 %v8521
    %8553 = vmatprep.subr.bf16.mxu0 %v8520
    %8554 = vmatpush1.bf16.msra.mxu0 %v8519
    %8555 = vmatprep.subr.bf16.mxu0 %v8518
    %8556 = vmatpush1.bf16.msra.mxu0 %v8517
    %8557 = vmatprep.subr.bf16.mxu0 %v8516
    %8558 = vmatpush1.bf16.msra.mxu0 %v8515
    %8559 = vmatprep.subr.bf16.mxu0 %v8514
    %8560 = vmatpush1.bf16.msra.mxu0 %v8513
    %8561 = vmatprep.subr.bf16.mxu0 0
    %8562 = vmatpush2.bf16.msra.mxu0 0
    %8563 = vmatprep.subr.bf16.mxu0 0
    %8564 = vmatpush2.bf16.msra.mxu0 0
    %8565 = vmatprep.subr.bf16.mxu0 0
    %8566 = vmatpush2.bf16.msra.mxu0 0
    %8567 = vmatprep.subr.bf16.mxu0 0
    %8568 = vmatpush2.bf16.msra.mxu0 0
    %8569 = vmatprep.subr.bf16.mxu0 0
    %8570 = vmatpush2.bf16.msra.mxu0 0
    %8571 = vmatprep.subr.bf16.mxu0 0
    %8572 = vmatpush2.bf16.msra.mxu0 0
    %8573 = vmatprep.subr.bf16.mxu0 0
    %8574 = vmatpush2.bf16.msra.mxu0 0
    %8575 = vmatprep.subr.bf16.mxu0 0
    %8576 = vmatpush2.bf16.msra.mxu0 0
    %8577 = vmatprep.mubr.bf16.mxu0 0
    %8578 = vmatmul.mubr.bf16.gmra.mxu0 %v8447
    %v8579 = vpop.f32.mrf.mxu0
    %v8580 = vadd.f32 0.0, %v8579
    %v8581 = vpop.f32.mrf.mxu0
    %v8582 = vadd.f32 0.0, %v8581
    %v8583 = vpop.f32.mrf.mxu0
    %v8584 = vpop.f32.mrf.mxu0
    %8585 = vdwg.mxu0
    %v8586 = vadd.f32 %v8441, %v8580
    %v8587 = vadd.f32 %v8442, %v8582
    %s8588 = scalar_lea.vmem [#allocation4], 24
    %v8589 = vld [vmem:[%s8588] ss:$128 sm:$0x1]
    %v8590 = vld [vmem:[%s8588] ss:$128 sm:$0x2]
    %v8591 = vor.u32 %v8589, %v8590
    %v8592 = vpack.c.bf16 %v8591, %v8591
    %s8593 = scalar_lea.vmem [#allocation16], 1536
    %v8594 = vld [vmem:[%s8593] sm:$0xff]
    %v8595 = vld [vmem:[%s8593 + $0x8] sm:$0xff]
    %v8596 = vld [vmem:[%s8593 + $0x10] sm:$0xff]
    %v8597 = vld [vmem:[%s8593 + $0x18] sm:$0xff]
    %v8598 = vld [vmem:[%s8593 + $0x20] sm:$0xff]
    %v8599 = vld [vmem:[%s8593 + $0x28] sm:$0xff]
    %v8600 = vld [vmem:[%s8593 + $0x30] sm:$0xff]
    %v8601 = vld [vmem:[%s8593 + $0x38] sm:$0xff]
    %v8602 = vld [vmem:[%s8593 + $0x40] sm:$0xff]
    %v8603 = vld [vmem:[%s8593 + $0x48] sm:$0xff]
    %v8604 = vld [vmem:[%s8593 + $0x50] sm:$0xff]
    %v8605 = vld [vmem:[%s8593 + $0x58] sm:$0xff]
    %v8606 = vld [vmem:[%s8593 + $0x60] sm:$0xff]
    %v8607 = vld [vmem:[%s8593 + $0x68] sm:$0xff]
    %v8608 = vld [vmem:[%s8593 + $0x70] sm:$0xff]
    %v8609 = vld [vmem:[%s8593 + $0x78] sm:$0xff]
    %v8626 = vunpack.c.l.b16 %v8594
    %v8627 = vunpack.c.h.b16 %v8594
    %v8628 = vunpack.c.l.b16 %v8595
    %v8629 = vunpack.c.h.b16 %v8595
    %v8630 = vunpack.c.l.b16 %v8596
    %v8631 = vunpack.c.h.b16 %v8596
    %v8632 = vunpack.c.l.b16 %v8597
    %v8633 = vunpack.c.h.b16 %v8597
    %v8634 = vunpack.c.l.b16 %v8598
    %v8635 = vunpack.c.h.b16 %v8598
    %v8636 = vunpack.c.l.b16 %v8599
    %v8637 = vunpack.c.h.b16 %v8599
    %v8638 = vunpack.c.l.b16 %v8600
    %v8639 = vunpack.c.h.b16 %v8600
    %v8640 = vunpack.c.l.b16 %v8601
    %v8641 = vunpack.c.h.b16 %v8601
    %v8642 = vunpack.c.l.b16 %v8602
    %v8643 = vunpack.c.h.b16 %v8602
    %v8644 = vunpack.c.l.b16 %v8603
    %v8645 = vunpack.c.h.b16 %v8603
    %v8646 = vunpack.c.l.b16 %v8604
    %v8647 = vunpack.c.h.b16 %v8604
    %v8648 = vunpack.c.l.b16 %v8605
    %v8649 = vunpack.c.h.b16 %v8605
    %v8650 = vunpack.c.l.b16 %v8606
    %v8651 = vunpack.c.h.b16 %v8606
    %v8652 = vunpack.c.l.b16 %v8607
    %v8653 = vunpack.c.h.b16 %v8607
    %v8654 = vunpack.c.l.b16 %v8608
    %v8655 = vunpack.c.h.b16 %v8608
    %v8656 = vunpack.c.l.b16 %v8609
    %v8657 = vunpack.c.h.b16 %v8609
    %v8658 = vpack.c.b16 %v8628, %v8626
    %v8659 = vpack.c.b16 %v8629, %v8627
    %v8660 = vpack.c.b16 %v8632, %v8630
    %v8661 = vpack.c.b16 %v8633, %v8631
    %v8662 = vpack.c.b16 %v8636, %v8634
    %v8663 = vpack.c.b16 %v8637, %v8635
    %v8664 = vpack.c.b16 %v8640, %v8638
    %v8665 = vpack.c.b16 %v8641, %v8639
    %v8666 = vpack.c.b16 %v8644, %v8642
    %v8667 = vpack.c.b16 %v8645, %v8643
    %v8668 = vpack.c.b16 %v8648, %v8646
    %v8669 = vpack.c.b16 %v8649, %v8647
    %v8670 = vpack.c.b16 %v8652, %v8650
    %v8671 = vpack.c.b16 %v8653, %v8651
    %v8672 = vpack.c.b16 %v8656, %v8654
    %v8673 = vpack.c.b16 %v8657, %v8655
    %8690 = vmatprep.subr.bf16.mxu0 %v8673
    %8691 = vmatpush1.bf16.msra.mxu0 %v8672
    %8692 = vmatprep.subr.bf16.mxu0 %v8671
    %8693 = vmatpush1.bf16.msra.mxu0 %v8670
    %8694 = vmatprep.subr.bf16.mxu0 %v8669
    %8695 = vmatpush1.bf16.msra.mxu0 %v8668
    %8696 = vmatprep.subr.bf16.mxu0 %v8667
    %8697 = vmatpush1.bf16.msra.mxu0 %v8666
    %8698 = vmatprep.subr.bf16.mxu0 %v8665
    %8699 = vmatpush1.bf16.msra.mxu0 %v8664
    %8700 = vmatprep.subr.bf16.mxu0 %v8663
    %8701 = vmatpush1.bf16.msra.mxu0 %v8662
    %8702 = vmatprep.subr.bf16.mxu0 %v8661
    %8703 = vmatpush1.bf16.msra.mxu0 %v8660
    %8704 = vmatprep.subr.bf16.mxu0 %v8659
    %8705 = vmatpush1.bf16.msra.mxu0 %v8658
    %8706 = vmatprep.subr.bf16.mxu0 0
    %8707 = vmatpush2.bf16.msra.mxu0 0
    %8708 = vmatprep.subr.bf16.mxu0 0
    %8709 = vmatpush2.bf16.msra.mxu0 0
    %8710 = vmatprep.subr.bf16.mxu0 0
    %8711 = vmatpush2.bf16.msra.mxu0 0
    %8712 = vmatprep.subr.bf16.mxu0 0
    %8713 = vmatpush2.bf16.msra.mxu0 0
    %8714 = vmatprep.subr.bf16.mxu0 0
    %8715 = vmatpush2.bf16.msra.mxu0 0
    %8716 = vmatprep.subr.bf16.mxu0 0
    %8717 = vmatpush2.bf16.msra.mxu0 0
    %8718 = vmatprep.subr.bf16.mxu0 0
    %8719 = vmatpush2.bf16.msra.mxu0 0
    %8720 = vmatprep.subr.bf16.mxu0 0
    %8721 = vmatpush2.bf16.msra.mxu0 0
    %8722 = vmatprep.mubr.bf16.mxu0 0
    %8723 = vmatmul.mubr.bf16.gmra.mxu0 %v8592
    %v8724 = vpop.f32.mrf.mxu0
    %v8725 = vadd.f32 0.0, %v8724
    %v8726 = vpop.f32.mrf.mxu0
    %v8727 = vadd.f32 0.0, %v8726
    %v8728 = vpop.f32.mrf.mxu0
    %v8729 = vpop.f32.mrf.mxu0
    %8730 = vdwg.mxu0
    %v8731 = vadd.f32 %v8586, %v8725
    %v8732 = vadd.f32 %v8587, %v8727
    %s8733 = scalar_lea.vmem [#allocation4], 25
    %v8734 = vld [vmem:[%s8733] ss:$128 sm:$0x1]
    %v8735 = vld [vmem:[%s8733] ss:$128 sm:$0x2]
    %v8736 = vor.u32 %v8734, %v8735
    %v8737 = vpack.c.bf16 %v8736, %v8736
    %s8738 = scalar_lea.vmem [#allocation16], 1664
    %v8739 = vld [vmem:[%s8738] sm:$0xff]
    %v8740 = vld [vmem:[%s8738 + $0x8] sm:$0xff]
    %v8741 = vld [vmem:[%s8738 + $0x10] sm:$0xff]
    %v8742 = vld [vmem:[%s8738 + $0x18] sm:$0xff]
    %v8743 = vld [vmem:[%s8738 + $0x20] sm:$0xff]
    %v8744 = vld [vmem:[%s8738 + $0x28] sm:$0xff]
    %v8745 = vld [vmem:[%s8738 + $0x30] sm:$0xff]
    %v8746 = vld [vmem:[%s8738 + $0x38] sm:$0xff]
    %v8747 = vld [vmem:[%s8738 + $0x40] sm:$0xff]
    %v8748 = vld [vmem:[%s8738 + $0x48] sm:$0xff]
    %v8749 = vld [vmem:[%s8738 + $0x50] sm:$0xff]
    %v8750 = vld [vmem:[%s8738 + $0x58] sm:$0xff]
    %v8751 = vld [vmem:[%s8738 + $0x60] sm:$0xff]
    %v8752 = vld [vmem:[%s8738 + $0x68] sm:$0xff]
    %v8753 = vld [vmem:[%s8738 + $0x70] sm:$0xff]
    %v8754 = vld [vmem:[%s8738 + $0x78] sm:$0xff]
    %v8771 = vunpack.c.l.b16 %v8739
    %v8772 = vunpack.c.h.b16 %v8739
    %v8773 = vunpack.c.l.b16 %v8740
    %v8774 = vunpack.c.h.b16 %v8740
    %v8775 = vunpack.c.l.b16 %v8741
    %v8776 = vunpack.c.h.b16 %v8741
    %v8777 = vunpack.c.l.b16 %v8742
    %v8778 = vunpack.c.h.b16 %v8742
    %v8779 = vunpack.c.l.b16 %v8743
    %v8780 = vunpack.c.h.b16 %v8743
    %v8781 = vunpack.c.l.b16 %v8744
    %v8782 = vunpack.c.h.b16 %v8744
    %v8783 = vunpack.c.l.b16 %v8745
    %v8784 = vunpack.c.h.b16 %v8745
    %v8785 = vunpack.c.l.b16 %v8746
    %v8786 = vunpack.c.h.b16 %v8746
    %v8787 = vunpack.c.l.b16 %v8747
    %v8788 = vunpack.c.h.b16 %v8747
    %v8789 = vunpack.c.l.b16 %v8748
    %v8790 = vunpack.c.h.b16 %v8748
    %v8791 = vunpack.c.l.b16 %v8749
    %v8792 = vunpack.c.h.b16 %v8749
    %v8793 = vunpack.c.l.b16 %v8750
    %v8794 = vunpack.c.h.b16 %v8750
    %v8795 = vunpack.c.l.b16 %v8751
    %v8796 = vunpack.c.h.b16 %v8751
    %v8797 = vunpack.c.l.b16 %v8752
    %v8798 = vunpack.c.h.b16 %v8752
    %v8799 = vunpack.c.l.b16 %v8753
    %v8800 = vunpack.c.h.b16 %v8753
    %v8801 = vunpack.c.l.b16 %v8754
    %v8802 = vunpack.c.h.b16 %v8754
    %v8803 = vpack.c.b16 %v8773, %v8771
    %v8804 = vpack.c.b16 %v8774, %v8772
    %v8805 = vpack.c.b16 %v8777, %v8775
    %v8806 = vpack.c.b16 %v8778, %v8776
    %v8807 = vpack.c.b16 %v8781, %v8779
    %v8808 = vpack.c.b16 %v8782, %v8780
    %v8809 = vpack.c.b16 %v8785, %v8783
    %v8810 = vpack.c.b16 %v8786, %v8784
    %v8811 = vpack.c.b16 %v8789, %v8787
    %v8812 = vpack.c.b16 %v8790, %v8788
    %v8813 = vpack.c.b16 %v8793, %v8791
    %v8814 = vpack.c.b16 %v8794, %v8792
    %v8815 = vpack.c.b16 %v8797, %v8795
    %v8816 = vpack.c.b16 %v8798, %v8796
    %v8817 = vpack.c.b16 %v8801, %v8799
    %v8818 = vpack.c.b16 %v8802, %v8800
    %8835 = vmatprep.subr.bf16.mxu0 %v8818
    %8836 = vmatpush1.bf16.msra.mxu0 %v8817
    %8837 = vmatprep.subr.bf16.mxu0 %v8816
    %8838 = vmatpush1.bf16.msra.mxu0 %v8815
    %8839 = vmatprep.subr.bf16.mxu0 %v8814
    %8840 = vmatpush1.bf16.msra.mxu0 %v8813
    %8841 = vmatprep.subr.bf16.mxu0 %v8812
    %8842 = vmatpush1.bf16.msra.mxu0 %v8811
    %8843 = vmatprep.subr.bf16.mxu0 %v8810
    %8844 = vmatpush1.bf16.msra.mxu0 %v8809
    %8845 = vmatprep.subr.bf16.mxu0 %v8808
    %8846 = vmatpush1.bf16.msra.mxu0 %v8807
    %8847 = vmatprep.subr.bf16.mxu0 %v8806
    %8848 = vmatpush1.bf16.msra.mxu0 %v8805
    %8849 = vmatprep.subr.bf16.mxu0 %v8804
    %8850 = vmatpush1.bf16.msra.mxu0 %v8803
    %8851 = vmatprep.subr.bf16.mxu0 0
    %8852 = vmatpush2.bf16.msra.mxu0 0
    %8853 = vmatprep.subr.bf16.mxu0 0
    %8854 = vmatpush2.bf16.msra.mxu0 0
    %8855 = vmatprep.subr.bf16.mxu0 0
    %8856 = vmatpush2.bf16.msra.mxu0 0
    %8857 = vmatprep.subr.bf16.mxu0 0
    %8858 = vmatpush2.bf16.msra.mxu0 0
    %8859 = vmatprep.subr.bf16.mxu0 0
    %8860 = vmatpush2.bf16.msra.mxu0 0
    %8861 = vmatprep.subr.bf16.mxu0 0
    %8862 = vmatpush2.bf16.msra.mxu0 0
    %8863 = vmatprep.subr.bf16.mxu0 0
    %8864 = vmatpush2.bf16.msra.mxu0 0
    %8865 = vmatprep.subr.bf16.mxu0 0
    %8866 = vmatpush2.bf16.msra.mxu0 0
    %8867 = vmatprep.mubr.bf16.mxu0 0
    %8868 = vmatmul.mubr.bf16.gmra.mxu0 %v8737
    %v8869 = vpop.f32.mrf.mxu0
    %v8870 = vadd.f32 0.0, %v8869
    %v8871 = vpop.f32.mrf.mxu0
    %v8872 = vadd.f32 0.0, %v8871
    %v8873 = vpop.f32.mrf.mxu0
    %v8874 = vpop.f32.mrf.mxu0
    %8875 = vdwg.mxu0
    %v8876 = vadd.f32 %v8731, %v8870
    %v8877 = vadd.f32 %v8732, %v8872
    %s8878 = scalar_lea.vmem [#allocation4], 26
    %v8879 = vld [vmem:[%s8878] ss:$128 sm:$0x1]
    %v8880 = vld [vmem:[%s8878] ss:$128 sm:$0x2]
    %v8881 = vor.u32 %v8879, %v8880
    %v8882 = vpack.c.bf16 %v8881, %v8881
    %s8883 = scalar_lea.vmem [#allocation16], 1792
    %v8884 = vld [vmem:[%s8883] sm:$0xff]
    %v8885 = vld [vmem:[%s8883 + $0x8] sm:$0xff]
    %v8886 = vld [vmem:[%s8883 + $0x10] sm:$0xff]
    %v8887 = vld [vmem:[%s8883 + $0x18] sm:$0xff]
    %v8888 = vld [vmem:[%s8883 + $0x20] sm:$0xff]
    %v8889 = vld [vmem:[%s8883 + $0x28] sm:$0xff]
    %v8890 = vld [vmem:[%s8883 + $0x30] sm:$0xff]
    %v8891 = vld [vmem:[%s8883 + $0x38] sm:$0xff]
    %v8892 = vld [vmem:[%s8883 + $0x40] sm:$0xff]
    %v8893 = vld [vmem:[%s8883 + $0x48] sm:$0xff]
    %v8894 = vld [vmem:[%s8883 + $0x50] sm:$0xff]
    %v8895 = vld [vmem:[%s8883 + $0x58] sm:$0xff]
    %v8896 = vld [vmem:[%s8883 + $0x60] sm:$0xff]
    %v8897 = vld [vmem:[%s8883 + $0x68] sm:$0xff]
    %v8898 = vld [vmem:[%s8883 + $0x70] sm:$0xff]
    %v8899 = vld [vmem:[%s8883 + $0x78] sm:$0xff]
    %v8916 = vunpack.c.l.b16 %v8884
    %v8917 = vunpack.c.h.b16 %v8884
    %v8918 = vunpack.c.l.b16 %v8885
    %v8919 = vunpack.c.h.b16 %v8885
    %v8920 = vunpack.c.l.b16 %v8886
    %v8921 = vunpack.c.h.b16 %v8886
    %v8922 = vunpack.c.l.b16 %v8887
    %v8923 = vunpack.c.h.b16 %v8887
    %v8924 = vunpack.c.l.b16 %v8888
    %v8925 = vunpack.c.h.b16 %v8888
    %v8926 = vunpack.c.l.b16 %v8889
    %v8927 = vunpack.c.h.b16 %v8889
    %v8928 = vunpack.c.l.b16 %v8890
    %v8929 = vunpack.c.h.b16 %v8890
    %v8930 = vunpack.c.l.b16 %v8891
    %v8931 = vunpack.c.h.b16 %v8891
    %v8932 = vunpack.c.l.b16 %v8892
    %v8933 = vunpack.c.h.b16 %v8892
    %v8934 = vunpack.c.l.b16 %v8893
    %v8935 = vunpack.c.h.b16 %v8893
    %v8936 = vunpack.c.l.b16 %v8894
    %v8937 = vunpack.c.h.b16 %v8894
    %v8938 = vunpack.c.l.b16 %v8895
    %v8939 = vunpack.c.h.b16 %v8895
    %v8940 = vunpack.c.l.b16 %v8896
    %v8941 = vunpack.c.h.b16 %v8896
    %v8942 = vunpack.c.l.b16 %v8897
    %v8943 = vunpack.c.h.b16 %v8897
    %v8944 = vunpack.c.l.b16 %v8898
    %v8945 = vunpack.c.h.b16 %v8898
    %v8946 = vunpack.c.l.b16 %v8899
    %v8947 = vunpack.c.h.b16 %v8899
    %v8948 = vpack.c.b16 %v8918, %v8916
    %v8949 = vpack.c.b16 %v8919, %v8917
    %v8950 = vpack.c.b16 %v8922, %v8920
    %v8951 = vpack.c.b16 %v8923, %v8921
    %v8952 = vpack.c.b16 %v8926, %v8924
    %v8953 = vpack.c.b16 %v8927, %v8925
    %v8954 = vpack.c.b16 %v8930, %v8928
    %v8955 = vpack.c.b16 %v8931, %v8929
    %v8956 = vpack.c.b16 %v8934, %v8932
    %v8957 = vpack.c.b16 %v8935, %v8933
    %v8958 = vpack.c.b16 %v8938, %v8936
    %v8959 = vpack.c.b16 %v8939, %v8937
    %v8960 = vpack.c.b16 %v8942, %v8940
    %v8961 = vpack.c.b16 %v8943, %v8941
    %v8962 = vpack.c.b16 %v8946, %v8944
    %v8963 = vpack.c.b16 %v8947, %v8945
    %8980 = vmatprep.subr.bf16.mxu0 %v8963
    %8981 = vmatpush1.bf16.msra.mxu0 %v8962
    %8982 = vmatprep.subr.bf16.mxu0 %v8961
    %8983 = vmatpush1.bf16.msra.mxu0 %v8960
    %8984 = vmatprep.subr.bf16.mxu0 %v8959
    %8985 = vmatpush1.bf16.msra.mxu0 %v8958
    %8986 = vmatprep.subr.bf16.mxu0 %v8957
    %8987 = vmatpush1.bf16.msra.mxu0 %v8956
    %8988 = vmatprep.subr.bf16.mxu0 %v8955
    %8989 = vmatpush1.bf16.msra.mxu0 %v8954
    %8990 = vmatprep.subr.bf16.mxu0 %v8953
    %8991 = vmatpush1.bf16.msra.mxu0 %v8952
    %8992 = vmatprep.subr.bf16.mxu0 %v8951
    %8993 = vmatpush1.bf16.msra.mxu0 %v8950
    %8994 = vmatprep.subr.bf16.mxu0 %v8949
    %8995 = vmatpush1.bf16.msra.mxu0 %v8948
    %8996 = vmatprep.subr.bf16.mxu0 0
    %8997 = vmatpush2.bf16.msra.mxu0 0
    %8998 = vmatprep.subr.bf16.mxu0 0
    %8999 = vmatpush2.bf16.msra.mxu0 0
    %9000 = vmatprep.subr.bf16.mxu0 0
    %9001 = vmatpush2.bf16.msra.mxu0 0
    %9002 = vmatprep.subr.bf16.mxu0 0
    %9003 = vmatpush2.bf16.msra.mxu0 0
    %9004 = vmatprep.subr.bf16.mxu0 0
    %9005 = vmatpush2.bf16.msra.mxu0 0
    %9006 = vmatprep.subr.bf16.mxu0 0
    %9007 = vmatpush2.bf16.msra.mxu0 0
    %9008 = vmatprep.subr.bf16.mxu0 0
    %9009 = vmatpush2.bf16.msra.mxu0 0
    %9010 = vmatprep.subr.bf16.mxu0 0
    %9011 = vmatpush2.bf16.msra.mxu0 0
    %9012 = vmatprep.mubr.bf16.mxu0 0
    %9013 = vmatmul.mubr.bf16.gmra.mxu0 %v8882
    %v9014 = vpop.f32.mrf.mxu0
    %v9015 = vadd.f32 0.0, %v9014
    %v9016 = vpop.f32.mrf.mxu0
    %v9017 = vadd.f32 0.0, %v9016
    %v9018 = vpop.f32.mrf.mxu0
    %v9019 = vpop.f32.mrf.mxu0
    %9020 = vdwg.mxu0
    %v9021 = vadd.f32 %v8876, %v9015
    %v9022 = vadd.f32 %v8877, %v9017
    %s9023 = scalar_lea.vmem [#allocation4], 33
    %v9024 = vld [vmem:[%s9023] ss:$128 sm:$0x1]
    %v9025 = vld [vmem:[%s9023] ss:$128 sm:$0x2]
    %v9026 = vor.u32 %v9024, %v9025
    %v9027 = vpack.c.bf16 %v9026, %v9026
    %s9028 = scalar_lea.vmem [#allocation16], 1920
    %v9029 = vld [vmem:[%s9028] sm:$0xff]
    %v9030 = vld [vmem:[%s9028 + $0x8] sm:$0xff]
    %v9031 = vld [vmem:[%s9028 + $0x10] sm:$0xff]
    %v9032 = vld [vmem:[%s9028 + $0x18] sm:$0xff]
    %v9033 = vld [vmem:[%s9028 + $0x20] sm:$0xff]
    %v9034 = vld [vmem:[%s9028 + $0x28] sm:$0xff]
    %v9035 = vld [vmem:[%s9028 + $0x30] sm:$0xff]
    %v9036 = vld [vmem:[%s9028 + $0x38] sm:$0xff]
    %v9037 = vld [vmem:[%s9028 + $0x40] sm:$0xff]
    %v9038 = vld [vmem:[%s9028 + $0x48] sm:$0xff]
    %v9039 = vld [vmem:[%s9028 + $0x50] sm:$0xff]
    %v9040 = vld [vmem:[%s9028 + $0x58] sm:$0xff]
    %v9041 = vld [vmem:[%s9028 + $0x60] sm:$0xff]
    %v9042 = vld [vmem:[%s9028 + $0x68] sm:$0xff]
    %v9043 = vld [vmem:[%s9028 + $0x70] sm:$0xff]
    %v9044 = vld [vmem:[%s9028 + $0x78] sm:$0xff]
    %v9061 = vunpack.c.l.b16 %v9029
    %v9062 = vunpack.c.h.b16 %v9029
    %v9063 = vunpack.c.l.b16 %v9030
    %v9064 = vunpack.c.h.b16 %v9030
    %v9065 = vunpack.c.l.b16 %v9031
    %v9066 = vunpack.c.h.b16 %v9031
    %v9067 = vunpack.c.l.b16 %v9032
    %v9068 = vunpack.c.h.b16 %v9032
    %v9069 = vunpack.c.l.b16 %v9033
    %v9070 = vunpack.c.h.b16 %v9033
    %v9071 = vunpack.c.l.b16 %v9034
    %v9072 = vunpack.c.h.b16 %v9034
    %v9073 = vunpack.c.l.b16 %v9035
    %v9074 = vunpack.c.h.b16 %v9035
    %v9075 = vunpack.c.l.b16 %v9036
    %v9076 = vunpack.c.h.b16 %v9036
    %v9077 = vunpack.c.l.b16 %v9037
    %v9078 = vunpack.c.h.b16 %v9037
    %v9079 = vunpack.c.l.b16 %v9038
    %v9080 = vunpack.c.h.b16 %v9038
    %v9081 = vunpack.c.l.b16 %v9039
    %v9082 = vunpack.c.h.b16 %v9039
    %v9083 = vunpack.c.l.b16 %v9040
    %v9084 = vunpack.c.h.b16 %v9040
    %v9085 = vunpack.c.l.b16 %v9041
    %v9086 = vunpack.c.h.b16 %v9041
    %v9087 = vunpack.c.l.b16 %v9042
    %v9088 = vunpack.c.h.b16 %v9042
    %v9089 = vunpack.c.l.b16 %v9043
    %v9090 = vunpack.c.h.b16 %v9043
    %v9091 = vunpack.c.l.b16 %v9044
    %v9092 = vunpack.c.h.b16 %v9044
    %v9093 = vpack.c.b16 %v9063, %v9061
    %v9094 = vpack.c.b16 %v9064, %v9062
    %v9095 = vpack.c.b16 %v9067, %v9065
    %v9096 = vpack.c.b16 %v9068, %v9066
    %v9097 = vpack.c.b16 %v9071, %v9069
    %v9098 = vpack.c.b16 %v9072, %v9070
    %v9099 = vpack.c.b16 %v9075, %v9073
    %v9100 = vpack.c.b16 %v9076, %v9074
    %v9101 = vpack.c.b16 %v9079, %v9077
    %v9102 = vpack.c.b16 %v9080, %v9078
    %v9103 = vpack.c.b16 %v9083, %v9081
    %v9104 = vpack.c.b16 %v9084, %v9082
    %v9105 = vpack.c.b16 %v9087, %v9085
    %v9106 = vpack.c.b16 %v9088, %v9086
    %v9107 = vpack.c.b16 %v9091, %v9089
    %v9108 = vpack.c.b16 %v9092, %v9090
    %9125 = vmatprep.subr.bf16.mxu0 %v9108
    %9126 = vmatpush1.bf16.msra.mxu0 %v9107
    %9127 = vmatprep.subr.bf16.mxu0 %v9106
    %9128 = vmatpush1.bf16.msra.mxu0 %v9105
    %9129 = vmatprep.subr.bf16.mxu0 %v9104
    %9130 = vmatpush1.bf16.msra.mxu0 %v9103
    %9131 = vmatprep.subr.bf16.mxu0 %v9102
    %9132 = vmatpush1.bf16.msra.mxu0 %v9101
    %9133 = vmatprep.subr.bf16.mxu0 %v9100
    %9134 = vmatpush1.bf16.msra.mxu0 %v9099
    %9135 = vmatprep.subr.bf16.mxu0 %v9098
    %9136 = vmatpush1.bf16.msra.mxu0 %v9097
    %9137 = vmatprep.subr.bf16.mxu0 %v9096
    %9138 = vmatpush1.bf16.msra.mxu0 %v9095
    %9139 = vmatprep.subr.bf16.mxu0 %v9094
    %9140 = vmatpush1.bf16.msra.mxu0 %v9093
    %9141 = vmatprep.subr.bf16.mxu0 0
    %9142 = vmatpush2.bf16.msra.mxu0 0
    %9143 = vmatprep.subr.bf16.mxu0 0
    %9144 = vmatpush2.bf16.msra.mxu0 0
    %9145 = vmatprep.subr.bf16.mxu0 0
    %9146 = vmatpush2.bf16.msra.mxu0 0
    %9147 = vmatprep.subr.bf16.mxu0 0
    %9148 = vmatpush2.bf16.msra.mxu0 0
    %9149 = vmatprep.subr.bf16.mxu0 0
    %9150 = vmatpush2.bf16.msra.mxu0 0
    %9151 = vmatprep.subr.bf16.mxu0 0
    %9152 = vmatpush2.bf16.msra.mxu0 0
    %9153 = vmatprep.subr.bf16.mxu0 0
    %9154 = vmatpush2.bf16.msra.mxu0 0
    %9155 = vmatprep.subr.bf16.mxu0 0
    %9156 = vmatpush2.bf16.msra.mxu0 0
    %9157 = vmatprep.mubr.bf16.mxu0 0
    %9158 = vmatmul.mubr.bf16.gmra.mxu0 %v9027
    %v9159 = vpop.f32.mrf.mxu0
    %v9160 = vadd.f32 0.0, %v9159
    %v9161 = vpop.f32.mrf.mxu0
    %v9162 = vadd.f32 0.0, %v9161
    %v9163 = vpop.f32.mrf.mxu0
    %v9164 = vpop.f32.mrf.mxu0
    %9165 = vdwg.mxu0
    %v9166 = vadd.f32 %v9021, %v9160
    %v9167 = vadd.f32 %v9022, %v9162
    %s9168 = scalar_lea.vmem [#allocation4], 34
    %v9169 = vld [vmem:[%s9168] ss:$128 sm:$0x1]
    %v9170 = vld [vmem:[%s9168] ss:$128 sm:$0x2]
    %v9171 = vor.u32 %v9169, %v9170
    %v9172 = vpack.c.bf16 %v9171, %v9171
    %s9173 = scalar_lea.vmem [#allocation16], 2048
    %v9174 = vld [vmem:[%s9173] sm:$0xff]
    %v9175 = vld [vmem:[%s9173 + $0x8] sm:$0xff]
    %v9176 = vld [vmem:[%s9173 + $0x10] sm:$0xff]
    %v9177 = vld [vmem:[%s9173 + $0x18] sm:$0xff]
    %v9178 = vld [vmem:[%s9173 + $0x20] sm:$0xff]
    %v9179 = vld [vmem:[%s9173 + $0x28] sm:$0xff]
    %v9180 = vld [vmem:[%s9173 + $0x30] sm:$0xff]
    %v9181 = vld [vmem:[%s9173 + $0x38] sm:$0xff]
    %v9182 = vld [vmem:[%s9173 + $0x40] sm:$0xff]
    %v9183 = vld [vmem:[%s9173 + $0x48] sm:$0xff]
    %v9184 = vld [vmem:[%s9173 + $0x50] sm:$0xff]
    %v9185 = vld [vmem:[%s9173 + $0x58] sm:$0xff]
    %v9186 = vld [vmem:[%s9173 + $0x60] sm:$0xff]
    %v9187 = vld [vmem:[%s9173 + $0x68] sm:$0xff]
    %v9188 = vld [vmem:[%s9173 + $0x70] sm:$0xff]
    %v9189 = vld [vmem:[%s9173 + $0x78] sm:$0xff]
    %v9206 = vunpack.c.l.b16 %v9174
    %v9207 = vunpack.c.h.b16 %v9174
    %v9208 = vunpack.c.l.b16 %v9175
    %v9209 = vunpack.c.h.b16 %v9175
    %v9210 = vunpack.c.l.b16 %v9176
    %v9211 = vunpack.c.h.b16 %v9176
    %v9212 = vunpack.c.l.b16 %v9177
    %v9213 = vunpack.c.h.b16 %v9177
    %v9214 = vunpack.c.l.b16 %v9178
    %v9215 = vunpack.c.h.b16 %v9178
    %v9216 = vunpack.c.l.b16 %v9179
    %v9217 = vunpack.c.h.b16 %v9179
    %v9218 = vunpack.c.l.b16 %v9180
    %v9219 = vunpack.c.h.b16 %v9180
    %v9220 = vunpack.c.l.b16 %v9181
    %v9221 = vunpack.c.h.b16 %v9181
    %v9222 = vunpack.c.l.b16 %v9182
    %v9223 = vunpack.c.h.b16 %v9182
    %v9224 = vunpack.c.l.b16 %v9183
    %v9225 = vunpack.c.h.b16 %v9183
    %v9226 = vunpack.c.l.b16 %v9184
    %v9227 = vunpack.c.h.b16 %v9184
    %v9228 = vunpack.c.l.b16 %v9185
    %v9229 = vunpack.c.h.b16 %v9185
    %v9230 = vunpack.c.l.b16 %v9186
    %v9231 = vunpack.c.h.b16 %v9186
    %v9232 = vunpack.c.l.b16 %v9187
    %v9233 = vunpack.c.h.b16 %v9187
    %v9234 = vunpack.c.l.b16 %v9188
    %v9235 = vunpack.c.h.b16 %v9188
    %v9236 = vunpack.c.l.b16 %v9189
    %v9237 = vunpack.c.h.b16 %v9189
    %v9238 = vpack.c.b16 %v9208, %v9206
    %v9239 = vpack.c.b16 %v9209, %v9207
    %v9240 = vpack.c.b16 %v9212, %v9210
    %v9241 = vpack.c.b16 %v9213, %v9211
    %v9242 = vpack.c.b16 %v9216, %v9214
    %v9243 = vpack.c.b16 %v9217, %v9215
    %v9244 = vpack.c.b16 %v9220, %v9218
    %v9245 = vpack.c.b16 %v9221, %v9219
    %v9246 = vpack.c.b16 %v9224, %v9222
    %v9247 = vpack.c.b16 %v9225, %v9223
    %v9248 = vpack.c.b16 %v9228, %v9226
    %v9249 = vpack.c.b16 %v9229, %v9227
    %v9250 = vpack.c.b16 %v9232, %v9230
    %v9251 = vpack.c.b16 %v9233, %v9231
    %v9252 = vpack.c.b16 %v9236, %v9234
    %v9253 = vpack.c.b16 %v9237, %v9235
    %9270 = vmatprep.subr.bf16.mxu0 %v9253
    %9271 = vmatpush1.bf16.msra.mxu0 %v9252
    %9272 = vmatprep.subr.bf16.mxu0 %v9251
    %9273 = vmatpush1.bf16.msra.mxu0 %v9250
    %9274 = vmatprep.subr.bf16.mxu0 %v9249
    %9275 = vmatpush1.bf16.msra.mxu0 %v9248
    %9276 = vmatprep.subr.bf16.mxu0 %v9247
    %9277 = vmatpush1.bf16.msra.mxu0 %v9246
    %9278 = vmatprep.subr.bf16.mxu0 %v9245
    %9279 = vmatpush1.bf16.msra.mxu0 %v9244
    %9280 = vmatprep.subr.bf16.mxu0 %v9243
    %9281 = vmatpush1.bf16.msra.mxu0 %v9242
    %9282 = vmatprep.subr.bf16.mxu0 %v9241
    %9283 = vmatpush1.bf16.msra.mxu0 %v9240
    %9284 = vmatprep.subr.bf16.mxu0 %v9239
    %9285 = vmatpush1.bf16.msra.mxu0 %v9238
    %9286 = vmatprep.subr.bf16.mxu0 0
    %9287 = vmatpush2.bf16.msra.mxu0 0
    %9288 = vmatprep.subr.bf16.mxu0 0
    %9289 = vmatpush2.bf16.msra.mxu0 0
    %9290 = vmatprep.subr.bf16.mxu0 0
    %9291 = vmatpush2.bf16.msra.mxu0 0
    %9292 = vmatprep.subr.bf16.mxu0 0
    %9293 = vmatpush2.bf16.msra.mxu0 0
    %9294 = vmatprep.subr.bf16.mxu0 0
    %9295 = vmatpush2.bf16.msra.mxu0 0
    %9296 = vmatprep.subr.bf16.mxu0 0
    %9297 = vmatpush2.bf16.msra.mxu0 0
    %9298 = vmatprep.subr.bf16.mxu0 0
    %9299 = vmatpush2.bf16.msra.mxu0 0
    %9300 = vmatprep.subr.bf16.mxu0 0
    %9301 = vmatpush2.bf16.msra.mxu0 0
    %9302 = vmatprep.mubr.bf16.mxu0 0
    %9303 = vmatmul.mubr.bf16.gmra.mxu0 %v9172
    %v9304 = vpop.f32.mrf.mxu0
    %v9305 = vadd.f32 0.0, %v9304
    %v9306 = vpop.f32.mrf.mxu0
    %v9307 = vadd.f32 0.0, %v9306
    %v9308 = vpop.f32.mrf.mxu0
    %v9309 = vpop.f32.mrf.mxu0
    %9310 = vdwg.mxu0
    %v9311 = vadd.f32 %v9166, %v9305
    %v9312 = vadd.f32 %v9167, %v9307
    %s9313 = scalar_lea.vmem [#allocation4], 35
    %v9314 = vld [vmem:[%s9313] ss:$128 sm:$0x1]
    %v9315 = vld [vmem:[%s9313] ss:$128 sm:$0x2]
    %v9316 = vor.u32 %v9314, %v9315
    %v9317 = vpack.c.bf16 %v9316, %v9316
    %s9318 = scalar_lea.vmem [#allocation16], 2176
    %v9319 = vld [vmem:[%s9318] sm:$0xff]
    %v9320 = vld [vmem:[%s9318 + $0x8] sm:$0xff]
    %v9321 = vld [vmem:[%s9318 + $0x10] sm:$0xff]
    %v9322 = vld [vmem:[%s9318 + $0x18] sm:$0xff]
    %v9323 = vld [vmem:[%s9318 + $0x20] sm:$0xff]
    %v9324 = vld [vmem:[%s9318 + $0x28] sm:$0xff]
    %v9325 = vld [vmem:[%s9318 + $0x30] sm:$0xff]
    %v9326 = vld [vmem:[%s9318 + $0x38] sm:$0xff]
    %v9327 = vld [vmem:[%s9318 + $0x40] sm:$0xff]
    %v9328 = vld [vmem:[%s9318 + $0x48] sm:$0xff]
    %v9329 = vld [vmem:[%s9318 + $0x50] sm:$0xff]
    %v9330 = vld [vmem:[%s9318 + $0x58] sm:$0xff]
    %v9331 = vld [vmem:[%s9318 + $0x60] sm:$0xff]
    %v9332 = vld [vmem:[%s9318 + $0x68] sm:$0xff]
    %v9333 = vld [vmem:[%s9318 + $0x70] sm:$0xff]
    %v9334 = vld [vmem:[%s9318 + $0x78] sm:$0xff]
    %v9351 = vunpack.c.l.b16 %v9319
    %v9352 = vunpack.c.h.b16 %v9319
    %v9353 = vunpack.c.l.b16 %v9320
    %v9354 = vunpack.c.h.b16 %v9320
    %v9355 = vunpack.c.l.b16 %v9321
    %v9356 = vunpack.c.h.b16 %v9321
    %v9357 = vunpack.c.l.b16 %v9322
    %v9358 = vunpack.c.h.b16 %v9322
    %v9359 = vunpack.c.l.b16 %v9323
    %v9360 = vunpack.c.h.b16 %v9323
    %v9361 = vunpack.c.l.b16 %v9324
    %v9362 = vunpack.c.h.b16 %v9324
    %v9363 = vunpack.c.l.b16 %v9325
    %v9364 = vunpack.c.h.b16 %v9325
    %v9365 = vunpack.c.l.b16 %v9326
    %v9366 = vunpack.c.h.b16 %v9326
    %v9367 = vunpack.c.l.b16 %v9327
    %v9368 = vunpack.c.h.b16 %v9327
    %v9369 = vunpack.c.l.b16 %v9328
    %v9370 = vunpack.c.h.b16 %v9328
    %v9371 = vunpack.c.l.b16 %v9329
    %v9372 = vunpack.c.h.b16 %v9329
    %v9373 = vunpack.c.l.b16 %v9330
    %v9374 = vunpack.c.h.b16 %v9330
    %v9375 = vunpack.c.l.b16 %v9331
    %v9376 = vunpack.c.h.b16 %v9331
    %v9377 = vunpack.c.l.b16 %v9332
    %v9378 = vunpack.c.h.b16 %v9332
    %v9379 = vunpack.c.l.b16 %v9333
    %v9380 = vunpack.c.h.b16 %v9333
    %v9381 = vunpack.c.l.b16 %v9334
    %v9382 = vunpack.c.h.b16 %v9334
    %v9383 = vpack.c.b16 %v9353, %v9351
    %v9384 = vpack.c.b16 %v9354, %v9352
    %v9385 = vpack.c.b16 %v9357, %v9355
    %v9386 = vpack.c.b16 %v9358, %v9356
    %v9387 = vpack.c.b16 %v9361, %v9359
    %v9388 = vpack.c.b16 %v9362, %v9360
    %v9389 = vpack.c.b16 %v9365, %v9363
    %v9390 = vpack.c.b16 %v9366, %v9364
    %v9391 = vpack.c.b16 %v9369, %v9367
    %v9392 = vpack.c.b16 %v9370, %v9368
    %v9393 = vpack.c.b16 %v9373, %v9371
    %v9394 = vpack.c.b16 %v9374, %v9372
    %v9395 = vpack.c.b16 %v9377, %v9375
    %v9396 = vpack.c.b16 %v9378, %v9376
    %v9397 = vpack.c.b16 %v9381, %v9379
    %v9398 = vpack.c.b16 %v9382, %v9380
    %9415 = vmatprep.subr.bf16.mxu0 %v9398
    %9416 = vmatpush1.bf16.msra.mxu0 %v9397
    %9417 = vmatprep.subr.bf16.mxu0 %v9396
    %9418 = vmatpush1.bf16.msra.mxu0 %v9395
    %9419 = vmatprep.subr.bf16.mxu0 %v9394
    %9420 = vmatpush1.bf16.msra.mxu0 %v9393
    %9421 = vmatprep.subr.bf16.mxu0 %v9392
    %9422 = vmatpush1.bf16.msra.mxu0 %v9391
    %9423 = vmatprep.subr.bf16.mxu0 %v9390
    %9424 = vmatpush1.bf16.msra.mxu0 %v9389
    %9425 = vmatprep.subr.bf16.mxu0 %v9388
    %9426 = vmatpush1.bf16.msra.mxu0 %v9387
    %9427 = vmatprep.subr.bf16.mxu0 %v9386
    %9428 = vmatpush1.bf16.msra.mxu0 %v9385
    %9429 = vmatprep.subr.bf16.mxu0 %v9384
    %9430 = vmatpush1.bf16.msra.mxu0 %v9383
    %9431 = vmatprep.subr.bf16.mxu0 0
    %9432 = vmatpush2.bf16.msra.mxu0 0
    %9433 = vmatprep.subr.bf16.mxu0 0
    %9434 = vmatpush2.bf16.msra.mxu0 0
    %9435 = vmatprep.subr.bf16.mxu0 0
    %9436 = vmatpush2.bf16.msra.mxu0 0
    %9437 = vmatprep.subr.bf16.mxu0 0
    %9438 = vmatpush2.bf16.msra.mxu0 0
    %9439 = vmatprep.subr.bf16.mxu0 0
    %9440 = vmatpush2.bf16.msra.mxu0 0
    %9441 = vmatprep.subr.bf16.mxu0 0
    %9442 = vmatpush2.bf16.msra.mxu0 0
    %9443 = vmatprep.subr.bf16.mxu0 0
    %9444 = vmatpush2.bf16.msra.mxu0 0
    %9445 = vmatprep.subr.bf16.mxu0 0
    %9446 = vmatpush2.bf16.msra.mxu0 0
    %9447 = vmatprep.mubr.bf16.mxu0 0
    %9448 = vmatmul.mubr.bf16.gmra.mxu0 %v9317
    %v9449 = vpop.f32.mrf.mxu0
    %v9450 = vadd.f32 0.0, %v9449
    %v9451 = vpop.f32.mrf.mxu0
    %v9452 = vadd.f32 0.0, %v9451
    %v9453 = vpop.f32.mrf.mxu0
    %v9454 = vpop.f32.mrf.mxu0
    %9455 = vdwg.mxu0
    %v9456 = vadd.f32 %v9311, %v9450
    %v9457 = vadd.f32 %v9312, %v9452
    %s9458 = scalar_lea.vmem [#allocation4], 36
    %v9459 = vld [vmem:[%s9458] ss:$128 sm:$0x1]
    %v9460 = vld [vmem:[%s9458] ss:$128 sm:$0x2]
    %v9461 = vor.u32 %v9459, %v9460
    %v9462 = vpack.c.bf16 %v9461, %v9461
    %s9463 = scalar_lea.vmem [#allocation16], 2304
    %v9464 = vld [vmem:[%s9463] sm:$0xff]
    %v9465 = vld [vmem:[%s9463 + $0x8] sm:$0xff]
    %v9466 = vld [vmem:[%s9463 + $0x10] sm:$0xff]
    %v9467 = vld [vmem:[%s9463 + $0x18] sm:$0xff]
    %v9468 = vld [vmem:[%s9463 + $0x20] sm:$0xff]
    %v9469 = vld [vmem:[%s9463 + $0x28] sm:$0xff]
    %v9470 = vld [vmem:[%s9463 + $0x30] sm:$0xff]
    %v9471 = vld [vmem:[%s9463 + $0x38] sm:$0xff]
    %v9472 = vld [vmem:[%s9463 + $0x40] sm:$0xff]
    %v9473 = vld [vmem:[%s9463 + $0x48] sm:$0xff]
    %v9474 = vld [vmem:[%s9463 + $0x50] sm:$0xff]
    %v9475 = vld [vmem:[%s9463 + $0x58] sm:$0xff]
    %v9476 = vld [vmem:[%s9463 + $0x60] sm:$0xff]
    %v9477 = vld [vmem:[%s9463 + $0x68] sm:$0xff]
    %v9478 = vld [vmem:[%s9463 + $0x70] sm:$0xff]
    %v9479 = vld [vmem:[%s9463 + $0x78] sm:$0xff]
    %v9496 = vunpack.c.l.b16 %v9464
    %v9497 = vunpack.c.h.b16 %v9464
    %v9498 = vunpack.c.l.b16 %v9465
    %v9499 = vunpack.c.h.b16 %v9465
    %v9500 = vunpack.c.l.b16 %v9466
    %v9501 = vunpack.c.h.b16 %v9466
    %v9502 = vunpack.c.l.b16 %v9467
    %v9503 = vunpack.c.h.b16 %v9467
    %v9504 = vunpack.c.l.b16 %v9468
    %v9505 = vunpack.c.h.b16 %v9468
    %v9506 = vunpack.c.l.b16 %v9469
    %v9507 = vunpack.c.h.b16 %v9469
    %v9508 = vunpack.c.l.b16 %v9470
    %v9509 = vunpack.c.h.b16 %v9470
    %v9510 = vunpack.c.l.b16 %v9471
    %v9511 = vunpack.c.h.b16 %v9471
    %v9512 = vunpack.c.l.b16 %v9472
    %v9513 = vunpack.c.h.b16 %v9472
    %v9514 = vunpack.c.l.b16 %v9473
    %v9515 = vunpack.c.h.b16 %v9473
    %v9516 = vunpack.c.l.b16 %v9474
    %v9517 = vunpack.c.h.b16 %v9474
    %v9518 = vunpack.c.l.b16 %v9475
    %v9519 = vunpack.c.h.b16 %v9475
    %v9520 = vunpack.c.l.b16 %v9476
    %v9521 = vunpack.c.h.b16 %v9476
    %v9522 = vunpack.c.l.b16 %v9477
    %v9523 = vunpack.c.h.b16 %v9477
    %v9524 = vunpack.c.l.b16 %v9478
    %v9525 = vunpack.c.h.b16 %v9478
    %v9526 = vunpack.c.l.b16 %v9479
    %v9527 = vunpack.c.h.b16 %v9479
    %v9528 = vpack.c.b16 %v9498, %v9496
    %v9529 = vpack.c.b16 %v9499, %v9497
    %v9530 = vpack.c.b16 %v9502, %v9500
    %v9531 = vpack.c.b16 %v9503, %v9501
    %v9532 = vpack.c.b16 %v9506, %v9504
    %v9533 = vpack.c.b16 %v9507, %v9505
    %v9534 = vpack.c.b16 %v9510, %v9508
    %v9535 = vpack.c.b16 %v9511, %v9509
    %v9536 = vpack.c.b16 %v9514, %v9512
    %v9537 = vpack.c.b16 %v9515, %v9513
    %v9538 = vpack.c.b16 %v9518, %v9516
    %v9539 = vpack.c.b16 %v9519, %v9517
    %v9540 = vpack.c.b16 %v9522, %v9520
    %v9541 = vpack.c.b16 %v9523, %v9521
    %v9542 = vpack.c.b16 %v9526, %v9524
    %v9543 = vpack.c.b16 %v9527, %v9525
    %9560 = vmatprep.subr.bf16.mxu0 %v9543
    %9561 = vmatpush1.bf16.msra.mxu0 %v9542
    %9562 = vmatprep.subr.bf16.mxu0 %v9541
    %9563 = vmatpush1.bf16.msra.mxu0 %v9540
    %9564 = vmatprep.subr.bf16.mxu0 %v9539
    %9565 = vmatpush1.bf16.msra.mxu0 %v9538
    %9566 = vmatprep.subr.bf16.mxu0 %v9537
    %9567 = vmatpush1.bf16.msra.mxu0 %v9536
    %9568 = vmatprep.subr.bf16.mxu0 %v9535
    %9569 = vmatpush1.bf16.msra.mxu0 %v9534
    %9570 = vmatprep.subr.bf16.mxu0 %v9533
    %9571 = vmatpush1.bf16.msra.mxu0 %v9532
    %9572 = vmatprep.subr.bf16.mxu0 %v9531
    %9573 = vmatpush1.bf16.msra.mxu0 %v9530
    %9574 = vmatprep.subr.bf16.mxu0 %v9529
    %9575 = vmatpush1.bf16.msra.mxu0 %v9528
    %9576 = vmatprep.subr.bf16.mxu0 0
    %9577 = vmatpush2.bf16.msra.mxu0 0
    %9578 = vmatprep.subr.bf16.mxu0 0
    %9579 = vmatpush2.bf16.msra.mxu0 0
    %9580 = vmatprep.subr.bf16.mxu0 0
    %9581 = vmatpush2.bf16.msra.mxu0 0
    %9582 = vmatprep.subr.bf16.mxu0 0
    %9583 = vmatpush2.bf16.msra.mxu0 0
    %9584 = vmatprep.subr.bf16.mxu0 0
    %9585 = vmatpush2.bf16.msra.mxu0 0
    %9586 = vmatprep.subr.bf16.mxu0 0
    %9587 = vmatpush2.bf16.msra.mxu0 0
    %9588 = vmatprep.subr.bf16.mxu0 0
    %9589 = vmatpush2.bf16.msra.mxu0 0
    %9590 = vmatprep.subr.bf16.mxu0 0
    %9591 = vmatpush2.bf16.msra.mxu0 0
    %9592 = vmatprep.mubr.bf16.mxu0 0
    %9593 = vmatmul.mubr.bf16.gmra.mxu0 %v9462
    %v9594 = vpop.f32.mrf.mxu0
    %v9595 = vadd.f32 0.0, %v9594
    %v9596 = vpop.f32.mrf.mxu0
    %v9597 = vadd.f32 0.0, %v9596
    %v9598 = vpop.f32.mrf.mxu0
    %v9599 = vpop.f32.mrf.mxu0
    %9600 = vdwg.mxu0
    %v9601 = vadd.f32 %v9456, %v9595
    %v9602 = vadd.f32 %v9457, %v9597
    %s9603 = scalar_lea.vmem [#allocation4], 37
    %v9604 = vld [vmem:[%s9603] ss:$128 sm:$0x1]
    %v9605 = vld [vmem:[%s9603] ss:$128 sm:$0x2]
    %v9606 = vor.u32 %v9604, %v9605
    %v9607 = vpack.c.bf16 %v9606, %v9606
    %s9608 = scalar_lea.vmem [#allocation16], 2432
    %v9609 = vld [vmem:[%s9608] sm:$0xff]
    %v9610 = vld [vmem:[%s9608 + $0x8] sm:$0xff]
    %v9611 = vld [vmem:[%s9608 + $0x10] sm:$0xff]
    %v9612 = vld [vmem:[%s9608 + $0x18] sm:$0xff]
    %v9613 = vld [vmem:[%s9608 + $0x20] sm:$0xff]
    %v9614 = vld [vmem:[%s9608 + $0x28] sm:$0xff]
    %v9615 = vld [vmem:[%s9608 + $0x30] sm:$0xff]
    %v9616 = vld [vmem:[%s9608 + $0x38] sm:$0xff]
    %v9617 = vld [vmem:[%s9608 + $0x40] sm:$0xff]
    %v9618 = vld [vmem:[%s9608 + $0x48] sm:$0xff]
    %v9619 = vld [vmem:[%s9608 + $0x50] sm:$0xff]
    %v9620 = vld [vmem:[%s9608 + $0x58] sm:$0xff]
    %v9621 = vld [vmem:[%s9608 + $0x60] sm:$0xff]
    %v9622 = vld [vmem:[%s9608 + $0x68] sm:$0xff]
    %v9623 = vld [vmem:[%s9608 + $0x70] sm:$0xff]
    %v9624 = vld [vmem:[%s9608 + $0x78] sm:$0xff]
    %v9641 = vunpack.c.l.b16 %v9609
    %v9642 = vunpack.c.h.b16 %v9609
    %v9643 = vunpack.c.l.b16 %v9610
    %v9644 = vunpack.c.h.b16 %v9610
    %v9645 = vunpack.c.l.b16 %v9611
    %v9646 = vunpack.c.h.b16 %v9611
    %v9647 = vunpack.c.l.b16 %v9612
    %v9648 = vunpack.c.h.b16 %v9612
    %v9649 = vunpack.c.l.b16 %v9613
    %v9650 = vunpack.c.h.b16 %v9613
    %v9651 = vunpack.c.l.b16 %v9614
    %v9652 = vunpack.c.h.b16 %v9614
    %v9653 = vunpack.c.l.b16 %v9615
    %v9654 = vunpack.c.h.b16 %v9615
    %v9655 = vunpack.c.l.b16 %v9616
    %v9656 = vunpack.c.h.b16 %v9616
    %v9657 = vunpack.c.l.b16 %v9617
    %v9658 = vunpack.c.h.b16 %v9617
    %v9659 = vunpack.c.l.b16 %v9618
    %v9660 = vunpack.c.h.b16 %v9618
    %v9661 = vunpack.c.l.b16 %v9619
    %v9662 = vunpack.c.h.b16 %v9619
    %v9663 = vunpack.c.l.b16 %v9620
    %v9664 = vunpack.c.h.b16 %v9620
    %v9665 = vunpack.c.l.b16 %v9621
    %v9666 = vunpack.c.h.b16 %v9621
    %v9667 = vunpack.c.l.b16 %v9622
    %v9668 = vunpack.c.h.b16 %v9622
    %v9669 = vunpack.c.l.b16 %v9623
    %v9670 = vunpack.c.h.b16 %v9623
    %v9671 = vunpack.c.l.b16 %v9624
    %v9672 = vunpack.c.h.b16 %v9624
    %v9673 = vpack.c.b16 %v9643, %v9641
    %v9674 = vpack.c.b16 %v9644, %v9642
    %v9675 = vpack.c.b16 %v9647, %v9645
    %v9676 = vpack.c.b16 %v9648, %v9646
    %v9677 = vpack.c.b16 %v9651, %v9649
    %v9678 = vpack.c.b16 %v9652, %v9650
    %v9679 = vpack.c.b16 %v9655, %v9653
    %v9680 = vpack.c.b16 %v9656, %v9654
    %v9681 = vpack.c.b16 %v9659, %v9657
    %v9682 = vpack.c.b16 %v9660, %v9658
    %v9683 = vpack.c.b16 %v9663, %v9661
    %v9684 = vpack.c.b16 %v9664, %v9662
    %v9685 = vpack.c.b16 %v9667, %v9665
    %v9686 = vpack.c.b16 %v9668, %v9666
    %v9687 = vpack.c.b16 %v9671, %v9669
    %v9688 = vpack.c.b16 %v9672, %v9670
    %9705 = vmatprep.subr.bf16.mxu0 %v9688
    %9706 = vmatpush1.bf16.msra.mxu0 %v9687
    %9707 = vmatprep.subr.bf16.mxu0 %v9686
    %9708 = vmatpush1.bf16.msra.mxu0 %v9685
    %9709 = vmatprep.subr.bf16.mxu0 %v9684
    %9710 = vmatpush1.bf16.msra.mxu0 %v9683
    %9711 = vmatprep.subr.bf16.mxu0 %v9682
    %9712 = vmatpush1.bf16.msra.mxu0 %v9681
    %9713 = vmatprep.subr.bf16.mxu0 %v9680
    %9714 = vmatpush1.bf16.msra.mxu0 %v9679
    %9715 = vmatprep.subr.bf16.mxu0 %v9678
    %9716 = vmatpush1.bf16.msra.mxu0 %v9677
    %9717 = vmatprep.subr.bf16.mxu0 %v9676
    %9718 = vmatpush1.bf16.msra.mxu0 %v9675
    %9719 = vmatprep.subr.bf16.mxu0 %v9674
    %9720 = vmatpush1.bf16.msra.mxu0 %v9673
    %9721 = vmatprep.subr.bf16.mxu0 0
    %9722 = vmatpush2.bf16.msra.mxu0 0
    %9723 = vmatprep.subr.bf16.mxu0 0
    %9724 = vmatpush2.bf16.msra.mxu0 0
    %9725 = vmatprep.subr.bf16.mxu0 0
    %9726 = vmatpush2.bf16.msra.mxu0 0
    %9727 = vmatprep.subr.bf16.mxu0 0
    %9728 = vmatpush2.bf16.msra.mxu0 0
    %9729 = vmatprep.subr.bf16.mxu0 0
    %9730 = vmatpush2.bf16.msra.mxu0 0
    %9731 = vmatprep.subr.bf16.mxu0 0
    %9732 = vmatpush2.bf16.msra.mxu0 0
    %9733 = vmatprep.subr.bf16.mxu0 0
    %9734 = vmatpush2.bf16.msra.mxu0 0
    %9735 = vmatprep.subr.bf16.mxu0 0
    %9736 = vmatpush2.bf16.msra.mxu0 0
    %9737 = vmatprep.mubr.bf16.mxu0 0
    %9738 = vmatmul.mubr.bf16.gmra.mxu0 %v9607
    %v9739 = vpop.f32.mrf.mxu0
    %v9740 = vadd.f32 0.0, %v9739
    %v9741 = vpop.f32.mrf.mxu0
    %v9742 = vadd.f32 0.0, %v9741
    %v9743 = vpop.f32.mrf.mxu0
    %v9744 = vpop.f32.mrf.mxu0
    %9745 = vdwg.mxu0
    %v9746 = vadd.f32 %v9601, %v9740
    %v9747 = vadd.f32 %v9602, %v9742
    %s9748 = scalar_lea.vmem [#allocation4], 44
    %v9749 = vld [vmem:[%s9748] ss:$128 sm:$0x1]
    %v9750 = vld [vmem:[%s9748] ss:$128 sm:$0x2]
    %v9751 = vor.u32 %v9749, %v9750
    %v9752 = vpack.c.bf16 %v9751, %v9751
    %s9753 = scalar_lea.vmem [#allocation16], 2560
    %v9754 = vld [vmem:[%s9753] sm:$0xff]
    %v9755 = vld [vmem:[%s9753 + $0x8] sm:$0xff]
    %v9756 = vld [vmem:[%s9753 + $0x10] sm:$0xff]
    %v9757 = vld [vmem:[%s9753 + $0x18] sm:$0xff]
    %v9758 = vld [vmem:[%s9753 + $0x20] sm:$0xff]
    %v9759 = vld [vmem:[%s9753 + $0x28] sm:$0xff]
    %v9760 = vld [vmem:[%s9753 + $0x30] sm:$0xff]
    %v9761 = vld [vmem:[%s9753 + $0x38] sm:$0xff]
    %v9762 = vld [vmem:[%s9753 + $0x40] sm:$0xff]
    %v9763 = vld [vmem:[%s9753 + $0x48] sm:$0xff]
    %v9764 = vld [vmem:[%s9753 + $0x50] sm:$0xff]
    %v9765 = vld [vmem:[%s9753 + $0x58] sm:$0xff]
    %v9766 = vld [vmem:[%s9753 + $0x60] sm:$0xff]
    %v9767 = vld [vmem:[%s9753 + $0x68] sm:$0xff]
    %v9768 = vld [vmem:[%s9753 + $0x70] sm:$0xff]
    %v9769 = vld [vmem:[%s9753 + $0x78] sm:$0xff]
    %v9786 = vunpack.c.l.b16 %v9754
    %v9787 = vunpack.c.h.b16 %v9754
    %v9788 = vunpack.c.l.b16 %v9755
    %v9789 = vunpack.c.h.b16 %v9755
    %v9790 = vunpack.c.l.b16 %v9756
    %v9791 = vunpack.c.h.b16 %v9756
    %v9792 = vunpack.c.l.b16 %v9757
    %v9793 = vunpack.c.h.b16 %v9757
    %v9794 = vunpack.c.l.b16 %v9758
    %v9795 = vunpack.c.h.b16 %v9758
    %v9796 = vunpack.c.l.b16 %v9759
    %v9797 = vunpack.c.h.b16 %v9759
    %v9798 = vunpack.c.l.b16 %v9760
    %v9799 = vunpack.c.h.b16 %v9760
    %v9800 = vunpack.c.l.b16 %v9761
    %v9801 = vunpack.c.h.b16 %v9761
    %v9802 = vunpack.c.l.b16 %v9762
    %v9803 = vunpack.c.h.b16 %v9762
    %v9804 = vunpack.c.l.b16 %v9763
    %v9805 = vunpack.c.h.b16 %v9763
    %v9806 = vunpack.c.l.b16 %v9764
    %v9807 = vunpack.c.h.b16 %v9764
    %v9808 = vunpack.c.l.b16 %v9765
    %v9809 = vunpack.c.h.b16 %v9765
    %v9810 = vunpack.c.l.b16 %v9766
    %v9811 = vunpack.c.h.b16 %v9766
    %v9812 = vunpack.c.l.b16 %v9767
    %v9813 = vunpack.c.h.b16 %v9767
    %v9814 = vunpack.c.l.b16 %v9768
    %v9815 = vunpack.c.h.b16 %v9768
    %v9816 = vunpack.c.l.b16 %v9769
    %v9817 = vunpack.c.h.b16 %v9769
    %v9818 = vpack.c.b16 %v9788, %v9786
    %v9819 = vpack.c.b16 %v9789, %v9787
    %v9820 = vpack.c.b16 %v9792, %v9790
    %v9821 = vpack.c.b16 %v9793, %v9791
    %v9822 = vpack.c.b16 %v9796, %v9794
    %v9823 = vpack.c.b16 %v9797, %v9795
    %v9824 = vpack.c.b16 %v9800, %v9798
    %v9825 = vpack.c.b16 %v9801, %v9799
    %v9826 = vpack.c.b16 %v9804, %v9802
    %v9827 = vpack.c.b16 %v9805, %v9803
    %v9828 = vpack.c.b16 %v9808, %v9806
    %v9829 = vpack.c.b16 %v9809, %v9807
    %v9830 = vpack.c.b16 %v9812, %v9810
    %v9831 = vpack.c.b16 %v9813, %v9811
    %v9832 = vpack.c.b16 %v9816, %v9814
    %v9833 = vpack.c.b16 %v9817, %v9815
    %9850 = vmatprep.subr.bf16.mxu0 %v9833
    %9851 = vmatpush1.bf16.msra.mxu0 %v9832
    %9852 = vmatprep.subr.bf16.mxu0 %v9831
    %9853 = vmatpush1.bf16.msra.mxu0 %v9830
    %9854 = vmatprep.subr.bf16.mxu0 %v9829
    %9855 = vmatpush1.bf16.msra.mxu0 %v9828
    %9856 = vmatprep.subr.bf16.mxu0 %v9827
    %9857 = vmatpush1.bf16.msra.mxu0 %v9826
    %9858 = vmatprep.subr.bf16.mxu0 %v9825
    %9859 = vmatpush1.bf16.msra.mxu0 %v9824
    %9860 = vmatprep.subr.bf16.mxu0 %v9823
    %9861 = vmatpush1.bf16.msra.mxu0 %v9822
    %9862 = vmatprep.subr.bf16.mxu0 %v9821
    %9863 = vmatpush1.bf16.msra.mxu0 %v9820
    %9864 = vmatprep.subr.bf16.mxu0 %v9819
    %9865 = vmatpush1.bf16.msra.mxu0 %v9818
    %9866 = vmatprep.subr.bf16.mxu0 0
    %9867 = vmatpush2.bf16.msra.mxu0 0
    %9868 = vmatprep.subr.bf16.mxu0 0
    %9869 = vmatpush2.bf16.msra.mxu0 0
    %9870 = vmatprep.subr.bf16.mxu0 0
    %9871 = vmatpush2.bf16.msra.mxu0 0
    %9872 = vmatprep.subr.bf16.mxu0 0
    %9873 = vmatpush2.bf16.msra.mxu0 0
    %9874 = vmatprep.subr.bf16.mxu0 0
    %9875 = vmatpush2.bf16.msra.mxu0 0
    %9876 = vmatprep.subr.bf16.mxu0 0
    %9877 = vmatpush2.bf16.msra.mxu0 0
    %9878 = vmatprep.subr.bf16.mxu0 0
    %9879 = vmatpush2.bf16.msra.mxu0 0
    %9880 = vmatprep.subr.bf16.mxu0 0
    %9881 = vmatpush2.bf16.msra.mxu0 0
    %9882 = vmatprep.mubr.bf16.mxu0 0
    %9883 = vmatmul.mubr.bf16.gmra.mxu0 %v9752
    %v9884 = vpop.f32.mrf.mxu0
    %v9885 = vadd.f32 0.0, %v9884
    %v9886 = vpop.f32.mrf.mxu0
    %v9887 = vadd.f32 0.0, %v9886
    %v9888 = vpop.f32.mrf.mxu0
    %v9889 = vpop.f32.mrf.mxu0
    %9890 = vdwg.mxu0
    %v9891 = vadd.f32 %v9746, %v9885
    %v9892 = vadd.f32 %v9747, %v9887
    %s9893 = scalar_lea.vmem [#allocation4], 45
    %v9894 = vld [vmem:[%s9893] ss:$128 sm:$0x1]
    %v9895 = vld [vmem:[%s9893] ss:$128 sm:$0x2]
    %v9896 = vor.u32 %v9894, %v9895
    %v9897 = vpack.c.bf16 %v9896, %v9896
    %s9898 = scalar_lea.vmem [#allocation16], 2688
    %v9899 = vld [vmem:[%s9898] sm:$0xff]
    %v9900 = vld [vmem:[%s9898 + $0x8] sm:$0xff]
    %v9901 = vld [vmem:[%s9898 + $0x10] sm:$0xff]
    %v9902 = vld [vmem:[%s9898 + $0x18] sm:$0xff]
    %v9903 = vld [vmem:[%s9898 + $0x20] sm:$0xff]
    %v9904 = vld [vmem:[%s9898 + $0x28] sm:$0xff]
    %v9905 = vld [vmem:[%s9898 + $0x30] sm:$0xff]
    %v9906 = vld [vmem:[%s9898 + $0x38] sm:$0xff]
    %v9907 = vld [vmem:[%s9898 + $0x40] sm:$0xff]
    %v9908 = vld [vmem:[%s9898 + $0x48] sm:$0xff]
    %v9909 = vld [vmem:[%s9898 + $0x50] sm:$0xff]
    %v9910 = vld [vmem:[%s9898 + $0x58] sm:$0xff]
    %v9911 = vld [vmem:[%s9898 + $0x60] sm:$0xff]
    %v9912 = vld [vmem:[%s9898 + $0x68] sm:$0xff]
    %v9913 = vld [vmem:[%s9898 + $0x70] sm:$0xff]
    %v9914 = vld [vmem:[%s9898 + $0x78] sm:$0xff]
    %v9931 = vunpack.c.l.b16 %v9899
    %v9932 = vunpack.c.h.b16 %v9899
    %v9933 = vunpack.c.l.b16 %v9900
    %v9934 = vunpack.c.h.b16 %v9900
    %v9935 = vunpack.c.l.b16 %v9901
    %v9936 = vunpack.c.h.b16 %v9901
    %v9937 = vunpack.c.l.b16 %v9902
    %v9938 = vunpack.c.h.b16 %v9902
    %v9939 = vunpack.c.l.b16 %v9903
    %v9940 = vunpack.c.h.b16 %v9903
    %v9941 = vunpack.c.l.b16 %v9904
    %v9942 = vunpack.c.h.b16 %v9904
    %v9943 = vunpack.c.l.b16 %v9905
    %v9944 = vunpack.c.h.b16 %v9905
    %v9945 = vunpack.c.l.b16 %v9906
    %v9946 = vunpack.c.h.b16 %v9906
    %v9947 = vunpack.c.l.b16 %v9907
    %v9948 = vunpack.c.h.b16 %v9907
    %v9949 = vunpack.c.l.b16 %v9908
    %v9950 = vunpack.c.h.b16 %v9908
    %v9951 = vunpack.c.l.b16 %v9909
    %v9952 = vunpack.c.h.b16 %v9909
    %v9953 = vunpack.c.l.b16 %v9910
    %v9954 = vunpack.c.h.b16 %v9910
    %v9955 = vunpack.c.l.b16 %v9911
    %v9956 = vunpack.c.h.b16 %v9911
    %v9957 = vunpack.c.l.b16 %v9912
    %v9958 = vunpack.c.h.b16 %v9912
    %v9959 = vunpack.c.l.b16 %v9913
    %v9960 = vunpack.c.h.b16 %v9913
    %v9961 = vunpack.c.l.b16 %v9914
    %v9962 = vunpack.c.h.b16 %v9914
    %v9963 = vpack.c.b16 %v9933, %v9931
    %v9964 = vpack.c.b16 %v9934, %v9932
    %v9965 = vpack.c.b16 %v9937, %v9935
    %v9966 = vpack.c.b16 %v9938, %v9936
    %v9967 = vpack.c.b16 %v9941, %v9939
    %v9968 = vpack.c.b16 %v9942, %v9940
    %v9969 = vpack.c.b16 %v9945, %v9943
    %v9970 = vpack.c.b16 %v9946, %v9944
    %v9971 = vpack.c.b16 %v9949, %v9947
    %v9972 = vpack.c.b16 %v9950, %v9948
    %v9973 = vpack.c.b16 %v9953, %v9951
    %v9974 = vpack.c.b16 %v9954, %v9952
    %v9975 = vpack.c.b16 %v9957, %v9955
    %v9976 = vpack.c.b16 %v9958, %v9956
    %v9977 = vpack.c.b16 %v9961, %v9959
    %v9978 = vpack.c.b16 %v9962, %v9960
    %9995 = vmatprep.subr.bf16.mxu0 %v9978
    %9996 = vmatpush1.bf16.msra.mxu0 %v9977
    %9997 = vmatprep.subr.bf16.mxu0 %v9976
    %9998 = vmatpush1.bf16.msra.mxu0 %v9975
    %9999 = vmatprep.subr.bf16.mxu0 %v9974
    %10000 = vmatpush1.bf16.msra.mxu0 %v9973
    %10001 = vmatprep.subr.bf16.mxu0 %v9972
    %10002 = vmatpush1.bf16.msra.mxu0 %v9971
    %10003 = vmatprep.subr.bf16.mxu0 %v9970
    %10004 = vmatpush1.bf16.msra.mxu0 %v9969
    %10005 = vmatprep.subr.bf16.mxu0 %v9968
    %10006 = vmatpush1.bf16.msra.mxu0 %v9967
    %10007 = vmatprep.subr.bf16.mxu0 %v9966
    %10008 = vmatpush1.bf16.msra.mxu0 %v9965
    %10009 = vmatprep.subr.bf16.mxu0 %v9964
    %10010 = vmatpush1.bf16.msra.mxu0 %v9963
    %10011 = vmatprep.subr.bf16.mxu0 0
    %10012 = vmatpush2.bf16.msra.mxu0 0
    %10013 = vmatprep.subr.bf16.mxu0 0
    %10014 = vmatpush2.bf16.msra.mxu0 0
    %10015 = vmatprep.subr.bf16.mxu0 0
    %10016 = vmatpush2.bf16.msra.mxu0 0
    %10017 = vmatprep.subr.bf16.mxu0 0
    %10018 = vmatpush2.bf16.msra.mxu0 0
    %10019 = vmatprep.subr.bf16.mxu0 0
    %10020 = vmatpush2.bf16.msra.mxu0 0
    %10021 = vmatprep.subr.bf16.mxu0 0
    %10022 = vmatpush2.bf16.msra.mxu0 0
    %10023 = vmatprep.subr.bf16.mxu0 0
    %10024 = vmatpush2.bf16.msra.mxu0 0
    %10025 = vmatprep.subr.bf16.mxu0 0
    %10026 = vmatpush2.bf16.msra.mxu0 0
    %10027 = vmatprep.mubr.bf16.mxu0 0
    %10028 = vmatmul.mubr.bf16.gmra.mxu0 %v9897
    %v10029 = vpop.f32.mrf.mxu0
    %v10030 = vadd.f32 0.0, %v10029
    %v10031 = vpop.f32.mrf.mxu0
    %v10032 = vadd.f32 0.0, %v10031
    %v10033 = vpop.f32.mrf.mxu0
    %v10034 = vpop.f32.mrf.mxu0
    %10035 = vdwg.mxu0
    %v10036 = vadd.f32 %v9891, %v10030
    %v10037 = vadd.f32 %v9892, %v10032
    %s10038 = scalar_lea.vmem [#allocation4], 46
    %v10039 = vld [vmem:[%s10038] ss:$128 sm:$0x1]
    %v10040 = vld [vmem:[%s10038] ss:$128 sm:$0x2]
    %v10041 = vor.u32 %v10039, %v10040
    %v10042 = vpack.c.bf16 %v10041, %v10041
    %s10043 = scalar_lea.vmem [#allocation16], 2816
    %v10044 = vld [vmem:[%s10043] sm:$0xff]
    %v10045 = vld [vmem:[%s10043 + $0x8] sm:$0xff]
    %v10046 = vld [vmem:[%s10043 + $0x10] sm:$0xff]
    %v10047 = vld [vmem:[%s10043 + $0x18] sm:$0xff]
    %v10048 = vld [vmem:[%s10043 + $0x20] sm:$0xff]
    %v10049 = vld [vmem:[%s10043 + $0x28] sm:$0xff]
    %v10050 = vld [vmem:[%s10043 + $0x30] sm:$0xff]
    %v10051 = vld [vmem:[%s10043 + $0x38] sm:$0xff]
    %v10052 = vld [vmem:[%s10043 + $0x40] sm:$0xff]
    %v10053 = vld [vmem:[%s10043 + $0x48] sm:$0xff]
    %v10054 = vld [vmem:[%s10043 + $0x50] sm:$0xff]
    %v10055 = vld [vmem:[%s10043 + $0x58] sm:$0xff]
    %v10056 = vld [vmem:[%s10043 + $0x60] sm:$0xff]
    %v10057 = vld [vmem:[%s10043 + $0x68] sm:$0xff]
    %v10058 = vld [vmem:[%s10043 + $0x70] sm:$0xff]
    %v10059 = vld [vmem:[%s10043 + $0x78] sm:$0xff]
    %v10076 = vunpack.c.l.b16 %v10044
    %v10077 = vunpack.c.h.b16 %v10044
    %v10078 = vunpack.c.l.b16 %v10045
    %v10079 = vunpack.c.h.b16 %v10045
    %v10080 = vunpack.c.l.b16 %v10046
    %v10081 = vunpack.c.h.b16 %v10046
    %v10082 = vunpack.c.l.b16 %v10047
    %v10083 = vunpack.c.h.b16 %v10047
    %v10084 = vunpack.c.l.b16 %v10048
    %v10085 = vunpack.c.h.b16 %v10048
    %v10086 = vunpack.c.l.b16 %v10049
    %v10087 = vunpack.c.h.b16 %v10049
    %v10088 = vunpack.c.l.b16 %v10050
    %v10089 = vunpack.c.h.b16 %v10050
    %v10090 = vunpack.c.l.b16 %v10051
    %v10091 = vunpack.c.h.b16 %v10051
    %v10092 = vunpack.c.l.b16 %v10052
    %v10093 = vunpack.c.h.b16 %v10052
    %v10094 = vunpack.c.l.b16 %v10053
    %v10095 = vunpack.c.h.b16 %v10053
    %v10096 = vunpack.c.l.b16 %v10054
    %v10097 = vunpack.c.h.b16 %v10054
    %v10098 = vunpack.c.l.b16 %v10055
    %v10099 = vunpack.c.h.b16 %v10055
    %v10100 = vunpack.c.l.b16 %v10056
    %v10101 = vunpack.c.h.b16 %v10056
    %v10102 = vunpack.c.l.b16 %v10057
    %v10103 = vunpack.c.h.b16 %v10057
    %v10104 = vunpack.c.l.b16 %v10058
    %v10105 = vunpack.c.h.b16 %v10058
    %v10106 = vunpack.c.l.b16 %v10059
    %v10107 = vunpack.c.h.b16 %v10059
    %v10108 = vpack.c.b16 %v10078, %v10076
    %v10109 = vpack.c.b16 %v10079, %v10077
    %v10110 = vpack.c.b16 %v10082, %v10080
    %v10111 = vpack.c.b16 %v10083, %v10081
    %v10112 = vpack.c.b16 %v10086, %v10084
    %v10113 = vpack.c.b16 %v10087, %v10085
    %v10114 = vpack.c.b16 %v10090, %v10088
    %v10115 = vpack.c.b16 %v10091, %v10089
    %v10116 = vpack.c.b16 %v10094, %v10092
    %v10117 = vpack.c.b16 %v10095, %v10093
    %v10118 = vpack.c.b16 %v10098, %v10096
    %v10119 = vpack.c.b16 %v10099, %v10097
    %v10120 = vpack.c.b16 %v10102, %v10100
    %v10121 = vpack.c.b16 %v10103, %v10101
    %v10122 = vpack.c.b16 %v10106, %v10104
    %v10123 = vpack.c.b16 %v10107, %v10105
    %10140 = vmatprep.subr.bf16.mxu0 %v10123
    %10141 = vmatpush1.bf16.msra.mxu0 %v10122
    %10142 = vmatprep.subr.bf16.mxu0 %v10121
    %10143 = vmatpush1.bf16.msra.mxu0 %v10120
    %10144 = vmatprep.subr.bf16.mxu0 %v10119
    %10145 = vmatpush1.bf16.msra.mxu0 %v10118
    %10146 = vmatprep.subr.bf16.mxu0 %v10117
    %10147 = vmatpush1.bf16.msra.mxu0 %v10116
    %10148 = vmatprep.subr.bf16.mxu0 %v10115
    %10149 = vmatpush1.bf16.msra.mxu0 %v10114
    %10150 = vmatprep.subr.bf16.mxu0 %v10113
    %10151 = vmatpush1.bf16.msra.mxu0 %v10112
    %10152 = vmatprep.subr.bf16.mxu0 %v10111
    %10153 = vmatpush1.bf16.msra.mxu0 %v10110
    %10154 = vmatprep.subr.bf16.mxu0 %v10109
    %10155 = vmatpush1.bf16.msra.mxu0 %v10108
    %10156 = vmatprep.subr.bf16.mxu0 0
    %10157 = vmatpush2.bf16.msra.mxu0 0
    %10158 = vmatprep.subr.bf16.mxu0 0
    %10159 = vmatpush2.bf16.msra.mxu0 0
    %10160 = vmatprep.subr.bf16.mxu0 0
    %10161 = vmatpush2.bf16.msra.mxu0 0
    %10162 = vmatprep.subr.bf16.mxu0 0
    %10163 = vmatpush2.bf16.msra.mxu0 0
    %10164 = vmatprep.subr.bf16.mxu0 0
    %10165 = vmatpush2.bf16.msra.mxu0 0
    %10166 = vmatprep.subr.bf16.mxu0 0
    %10167 = vmatpush2.bf16.msra.mxu0 0
    %10168 = vmatprep.subr.bf16.mxu0 0
    %10169 = vmatpush2.bf16.msra.mxu0 0
    %10170 = vmatprep.subr.bf16.mxu0 0
    %10171 = vmatpush2.bf16.msra.mxu0 0
    %10172 = vmatprep.mubr.bf16.mxu0 0
    %10173 = vmatmul.mubr.bf16.gmra.mxu0 %v10042
    %v10174 = vpop.f32.mrf.mxu0
    %v10175 = vadd.f32 0.0, %v10174
    %v10176 = vpop.f32.mrf.mxu0
    %v10177 = vadd.f32 0.0, %v10176
    %v10178 = vpop.f32.mrf.mxu0
    %v10179 = vpop.f32.mrf.mxu0
    %10180 = vdwg.mxu0
    %v10181 = vadd.f32 %v10036, %v10175
    %v10182 = vadd.f32 %v10037, %v10177
    %s10183 = scalar_lea.vmem [#allocation4], 47
    %v10184 = vld [vmem:[%s10183] ss:$128 sm:$0x1]
    %v10185 = vld [vmem:[%s10183] ss:$128 sm:$0x2]
    %v10186 = vor.u32 %v10184, %v10185
    %v10187 = vpack.c.bf16 %v10186, %v10186
    %s10188 = scalar_lea.vmem [#allocation16], 2944
    %v10189 = vld [vmem:[%s10188] sm:$0xff]
    %v10190 = vld [vmem:[%s10188 + $0x8] sm:$0xff]
    %v10191 = vld [vmem:[%s10188 + $0x10] sm:$0xff]
    %v10192 = vld [vmem:[%s10188 + $0x18] sm:$0xff]
    %v10193 = vld [vmem:[%s10188 + $0x20] sm:$0xff]
    %v10194 = vld [vmem:[%s10188 + $0x28] sm:$0xff]
    %v10195 = vld [vmem:[%s10188 + $0x30] sm:$0xff]
    %v10196 = vld [vmem:[%s10188 + $0x38] sm:$0xff]
    %v10197 = vld [vmem:[%s10188 + $0x40] sm:$0xff]
    %v10198 = vld [vmem:[%s10188 + $0x48] sm:$0xff]
    %v10199 = vld [vmem:[%s10188 + $0x50] sm:$0xff]
    %v10200 = vld [vmem:[%s10188 + $0x58] sm:$0xff]
    %v10201 = vld [vmem:[%s10188 + $0x60] sm:$0xff]
    %v10202 = vld [vmem:[%s10188 + $0x68] sm:$0xff]
    %v10203 = vld [vmem:[%s10188 + $0x70] sm:$0xff]
    %v10204 = vld [vmem:[%s10188 + $0x78] sm:$0xff]
    %v10221 = vunpack.c.l.b16 %v10189
    %v10222 = vunpack.c.h.b16 %v10189
    %v10223 = vunpack.c.l.b16 %v10190
    %v10224 = vunpack.c.h.b16 %v10190
    %v10225 = vunpack.c.l.b16 %v10191
    %v10226 = vunpack.c.h.b16 %v10191
    %v10227 = vunpack.c.l.b16 %v10192
    %v10228 = vunpack.c.h.b16 %v10192
    %v10229 = vunpack.c.l.b16 %v10193
    %v10230 = vunpack.c.h.b16 %v10193
    %v10231 = vunpack.c.l.b16 %v10194
    %v10232 = vunpack.c.h.b16 %v10194
    %v10233 = vunpack.c.l.b16 %v10195
    %v10234 = vunpack.c.h.b16 %v10195
    %v10235 = vunpack.c.l.b16 %v10196
    %v10236 = vunpack.c.h.b16 %v10196
    %v10237 = vunpack.c.l.b16 %v10197
    %v10238 = vunpack.c.h.b16 %v10197
    %v10239 = vunpack.c.l.b16 %v10198
    %v10240 = vunpack.c.h.b16 %v10198
    %v10241 = vunpack.c.l.b16 %v10199
    %v10242 = vunpack.c.h.b16 %v10199
    %v10243 = vunpack.c.l.b16 %v10200
    %v10244 = vunpack.c.h.b16 %v10200
    %v10245 = vunpack.c.l.b16 %v10201
    %v10246 = vunpack.c.h.b16 %v10201
    %v10247 = vunpack.c.l.b16 %v10202
    %v10248 = vunpack.c.h.b16 %v10202
    %v10249 = vunpack.c.l.b16 %v10203
    %v10250 = vunpack.c.h.b16 %v10203
    %v10251 = vunpack.c.l.b16 %v10204
    %v10252 = vunpack.c.h.b16 %v10204
    %v10253 = vpack.c.b16 %v10223, %v10221
    %v10254 = vpack.c.b16 %v10224, %v10222
    %v10255 = vpack.c.b16 %v10227, %v10225
    %v10256 = vpack.c.b16 %v10228, %v10226
    %v10257 = vpack.c.b16 %v10231, %v10229
    %v10258 = vpack.c.b16 %v10232, %v10230
    %v10259 = vpack.c.b16 %v10235, %v10233
    %v10260 = vpack.c.b16 %v10236, %v10234
    %v10261 = vpack.c.b16 %v10239, %v10237
    %v10262 = vpack.c.b16 %v10240, %v10238
    %v10263 = vpack.c.b16 %v10243, %v10241
    %v10264 = vpack.c.b16 %v10244, %v10242
    %v10265 = vpack.c.b16 %v10247, %v10245
    %v10266 = vpack.c.b16 %v10248, %v10246
    %v10267 = vpack.c.b16 %v10251, %v10249
    %v10268 = vpack.c.b16 %v10252, %v10250
    %10285 = vmatprep.subr.bf16.mxu0 %v10268
    %10286 = vmatpush1.bf16.msra.mxu0 %v10267
    %10287 = vmatprep.subr.bf16.mxu0 %v10266
    %10288 = vmatpush1.bf16.msra.mxu0 %v10265
    %10289 = vmatprep.subr.bf16.mxu0 %v10264
    %10290 = vmatpush1.bf16.msra.mxu0 %v10263
    %10291 = vmatprep.subr.bf16.mxu0 %v10262
    %10292 = vmatpush1.bf16.msra.mxu0 %v10261
    %10293 = vmatprep.subr.bf16.mxu0 %v10260
    %10294 = vmatpush1.bf16.msra.mxu0 %v10259
    %10295 = vmatprep.subr.bf16.mxu0 %v10258
    %10296 = vmatpush1.bf16.msra.mxu0 %v10257
    %10297 = vmatprep.subr.bf16.mxu0 %v10256
    %10298 = vmatpush1.bf16.msra.mxu0 %v10255
    %10299 = vmatprep.subr.bf16.mxu0 %v10254
    %10300 = vmatpush1.bf16.msra.mxu0 %v10253
    %10301 = vmatprep.subr.bf16.mxu0 0
    %10302 = vmatpush2.bf16.msra.mxu0 0
    %10303 = vmatprep.subr.bf16.mxu0 0
    %10304 = vmatpush2.bf16.msra.mxu0 0
    %10305 = vmatprep.subr.bf16.mxu0 0
    %10306 = vmatpush2.bf16.msra.mxu0 0
    %10307 = vmatprep.subr.bf16.mxu0 0
    %10308 = vmatpush2.bf16.msra.mxu0 0
    %10309 = vmatprep.subr.bf16.mxu0 0
    %10310 = vmatpush2.bf16.msra.mxu0 0
    %10311 = vmatprep.subr.bf16.mxu0 0
    %10312 = vmatpush2.bf16.msra.mxu0 0
    %10313 = vmatprep.subr.bf16.mxu0 0
    %10314 = vmatpush2.bf16.msra.mxu0 0
    %10315 = vmatprep.subr.bf16.mxu0 0
    %10316 = vmatpush2.bf16.msra.mxu0 0
    %10317 = vmatprep.mubr.bf16.mxu0 0
    %10318 = vmatmul.mubr.bf16.gmra.mxu0 %v10187
    %v10319 = vpop.f32.mrf.mxu0
    %v10320 = vadd.f32 0.0, %v10319
    %v10321 = vpop.f32.mrf.mxu0
    %v10322 = vadd.f32 0.0, %v10321
    %v10323 = vpop.f32.mrf.mxu0
    %v10324 = vpop.f32.mrf.mxu0
    %10325 = vdwg.mxu0
    %v10326 = vadd.f32 %v10181, %v10320
    %v10327 = vadd.f32 %v10182, %v10322
    %s10328 = scalar_lea.vmem [#allocation4], 48
    %v10329 = vld [vmem:[%s10328] ss:$128 sm:$0x1]
    %v10330 = vld [vmem:[%s10328] ss:$128 sm:$0x2]
    %v10331 = vor.u32 %v10329, %v10330
    %v10332 = vpack.c.bf16 %v10331, %v10331
    %s10333 = scalar_lea.vmem [#allocation16], 3072
    %v10334 = vld [vmem:[%s10333] sm:$0xff]
    %v10335 = vld [vmem:[%s10333 + $0x8] sm:$0xff]
    %v10336 = vld [vmem:[%s10333 + $0x10] sm:$0xff]
    %v10337 = vld [vmem:[%s10333 + $0x18] sm:$0xff]
    %v10338 = vld [vmem:[%s10333 + $0x20] sm:$0xff]
    %v10339 = vld [vmem:[%s10333 + $0x28] sm:$0xff]
    %v10340 = vld [vmem:[%s10333 + $0x30] sm:$0xff]
    %v10341 = vld [vmem:[%s10333 + $0x38] sm:$0xff]
    %v10342 = vld [vmem:[%s10333 + $0x40] sm:$0xff]
    %v10343 = vld [vmem:[%s10333 + $0x48] sm:$0xff]
    %v10344 = vld [vmem:[%s10333 + $0x50] sm:$0xff]
    %v10345 = vld [vmem:[%s10333 + $0x58] sm:$0xff]
    %v10346 = vld [vmem:[%s10333 + $0x60] sm:$0xff]
    %v10347 = vld [vmem:[%s10333 + $0x68] sm:$0xff]
    %v10348 = vld [vmem:[%s10333 + $0x70] sm:$0xff]
    %v10349 = vld [vmem:[%s10333 + $0x78] sm:$0xff]
    %v10366 = vunpack.c.l.b16 %v10334
    %v10367 = vunpack.c.h.b16 %v10334
    %v10368 = vunpack.c.l.b16 %v10335
    %v10369 = vunpack.c.h.b16 %v10335
    %v10370 = vunpack.c.l.b16 %v10336
    %v10371 = vunpack.c.h.b16 %v10336
    %v10372 = vunpack.c.l.b16 %v10337
    %v10373 = vunpack.c.h.b16 %v10337
    %v10374 = vunpack.c.l.b16 %v10338
    %v10375 = vunpack.c.h.b16 %v10338
    %v10376 = vunpack.c.l.b16 %v10339
    %v10377 = vunpack.c.h.b16 %v10339
    %v10378 = vunpack.c.l.b16 %v10340
    %v10379 = vunpack.c.h.b16 %v10340
    %v10380 = vunpack.c.l.b16 %v10341
    %v10381 = vunpack.c.h.b16 %v10341
    %v10382 = vunpack.c.l.b16 %v10342
    %v10383 = vunpack.c.h.b16 %v10342
    %v10384 = vunpack.c.l.b16 %v10343
    %v10385 = vunpack.c.h.b16 %v10343
    %v10386 = vunpack.c.l.b16 %v10344
    %v10387 = vunpack.c.h.b16 %v10344
    %v10388 = vunpack.c.l.b16 %v10345
    %v10389 = vunpack.c.h.b16 %v10345
    %v10390 = vunpack.c.l.b16 %v10346
    %v10391 = vunpack.c.h.b16 %v10346
    %v10392 = vunpack.c.l.b16 %v10347
    %v10393 = vunpack.c.h.b16 %v10347
    %v10394 = vunpack.c.l.b16 %v10348
    %v10395 = vunpack.c.h.b16 %v10348
    %v10396 = vunpack.c.l.b16 %v10349
    %v10397 = vunpack.c.h.b16 %v10349
    %v10398 = vpack.c.b16 %v10368, %v10366
    %v10399 = vpack.c.b16 %v10369, %v10367
    %v10400 = vpack.c.b16 %v10372, %v10370
    %v10401 = vpack.c.b16 %v10373, %v10371
    %v10402 = vpack.c.b16 %v10376, %v10374
    %v10403 = vpack.c.b16 %v10377, %v10375
    %v10404 = vpack.c.b16 %v10380, %v10378
    %v10405 = vpack.c.b16 %v10381, %v10379
    %v10406 = vpack.c.b16 %v10384, %v10382
    %v10407 = vpack.c.b16 %v10385, %v10383
    %v10408 = vpack.c.b16 %v10388, %v10386
    %v10409 = vpack.c.b16 %v10389, %v10387
    %v10410 = vpack.c.b16 %v10392, %v10390
    %v10411 = vpack.c.b16 %v10393, %v10391
    %v10412 = vpack.c.b16 %v10396, %v10394
    %v10413 = vpack.c.b16 %v10397, %v10395
    %10430 = vmatprep.subr.bf16.mxu0 %v10413
    %10431 = vmatpush1.bf16.msra.mxu0 %v10412
    %10432 = vmatprep.subr.bf16.mxu0 %v10411
    %10433 = vmatpush1.bf16.msra.mxu0 %v10410
    %10434 = vmatprep.subr.bf16.mxu0 %v10409
    %10435 = vmatpush1.bf16.msra.mxu0 %v10408
    %10436 = vmatprep.subr.bf16.mxu0 %v10407
    %10437 = vmatpush1.bf16.msra.mxu0 %v10406
    %10438 = vmatprep.subr.bf16.mxu0 %v10405
    %10439 = vmatpush1.bf16.msra.mxu0 %v10404
    %10440 = vmatprep.subr.bf16.mxu0 %v10403
    %10441 = vmatpush1.bf16.msra.mxu0 %v10402
    %10442 = vmatprep.subr.bf16.mxu0 %v10401
    %10443 = vmatpush1.bf16.msra.mxu0 %v10400
    %10444 = vmatprep.subr.bf16.mxu0 %v10399
    %10445 = vmatpush1.bf16.msra.mxu0 %v10398
    %10446 = vmatprep.subr.bf16.mxu0 0
    %10447 = vmatpush2.bf16.msra.mxu0 0
    %10448 = vmatprep.subr.bf16.mxu0 0
    %10449 = vmatpush2.bf16.msra.mxu0 0
    %10450 = vmatprep.subr.bf16.mxu0 0
    %10451 = vmatpush2.bf16.msra.mxu0 0
    %10452 = vmatprep.subr.bf16.mxu0 0
    %10453 = vmatpush2.bf16.msra.mxu0 0
    %10454 = vmatprep.subr.bf16.mxu0 0
    %10455 = vmatpush2.bf16.msra.mxu0 0
    %10456 = vmatprep.subr.bf16.mxu0 0
    %10457 = vmatpush2.bf16.msra.mxu0 0
    %10458 = vmatprep.subr.bf16.mxu0 0
    %10459 = vmatpush2.bf16.msra.mxu0 0
    %10460 = vmatprep.subr.bf16.mxu0 0
    %10461 = vmatpush2.bf16.msra.mxu0 0
    %10462 = vmatprep.mubr.bf16.mxu0 0
    %10463 = vmatmul.mubr.bf16.gmra.mxu0 %v10332
    %v10464 = vpop.f32.mrf.mxu0
    %v10465 = vadd.f32 0.0, %v10464
    %v10466 = vpop.f32.mrf.mxu0
    %v10467 = vadd.f32 0.0, %v10466
    %v10468 = vpop.f32.mrf.mxu0
    %v10469 = vpop.f32.mrf.mxu0
    %10470 = vdwg.mxu0
    %v10471 = vadd.f32 %v10326, %v10465
    %v10472 = vadd.f32 %v10327, %v10467
    %v10473 = vld [vmem:[#allocation18] sm:$0x3]
    %v10475 = vlaneseq
    %v10476 = vshrl.u32 %v10475, 7
    %v10477 = vsub.s32 0, %v10476
    %v10478 = vrot.slane %v10473, %v10477
    %v10479 = vlaneseq
    %v10480 = vshrl.u32 %v10479, 7
    %v10481 = vsub.s32 1, %v10480
    %v10482 = vrot.slane %v10473, %v10481
    %v10485 = vadd.f32 %v10471, %v10478
    %v10486 = vadd.f32 %v10472, %v10482
    %v10487 = vmax.f32 %v10485, 0.0
    %v10488 = vmax.f32 %v10486, 0.0
    %v10489 = vpack.c.bf16 %v10487, %v10487
    %v10490 = vpack.c.bf16 %v10488, %v10488
    %v10491 = vld [vmem:[%s12] sm:$0xf]
    %v10492 = vld [vmem:[%s12 + $0x4] sm:$0xf]
    %v10493 = vld [vmem:[%s12 + $0x8] sm:$0xf]
    %v10494 = vld [vmem:[%s12 + $0xc] sm:$0xf]
    %v10495 = vld [vmem:[%s12 + $0x10] sm:$0xf]
    %v10496 = vld [vmem:[%s12 + $0x14] sm:$0xf]
    %v10497 = vld [vmem:[%s12 + $0x18] sm:$0xf]
    %v10498 = vld [vmem:[%s12 + $0x1c] sm:$0xf]
    %v10499 = vld [vmem:[%s12 + $0x20] sm:$0xf]
    %v10500 = vld [vmem:[%s12 + $0x24] sm:$0xf]
    %v10501 = vld [vmem:[%s12 + $0x28] sm:$0xf]
    %v10502 = vld [vmem:[%s12 + $0x2c] sm:$0xf]
    %v10503 = vld [vmem:[%s12 + $0x30] sm:$0xf]
    %v10504 = vld [vmem:[%s12 + $0x34] sm:$0xf]
    %v10505 = vld [vmem:[%s12 + $0x38] sm:$0xf]
    %v10506 = vld [vmem:[%s12 + $0x3c] sm:$0xf]
    %v10507 = vld [vmem:[%s12 + $0x40] sm:$0xf]
    %v10508 = vld [vmem:[%s12 + $0x44] sm:$0xf]
    %v10509 = vld [vmem:[%s12 + $0x48] sm:$0xf]
    %v10510 = vld [vmem:[%s12 + $0x4c] sm:$0xf]
    %v10511 = vld [vmem:[%s12 + $0x50] sm:$0xf]
    %v10512 = vld [vmem:[%s12 + $0x54] sm:$0xf]
    %v10513 = vld [vmem:[%s12 + $0x58] sm:$0xf]
    %v10514 = vld [vmem:[%s12 + $0x5c] sm:$0xf]
    %v10515 = vld [vmem:[%s12 + $0x60] sm:$0xf]
    %v10516 = vld [vmem:[%s12 + $0x64] sm:$0xf]
    %v10517 = vld [vmem:[%s12 + $0x68] sm:$0xf]
    %v10518 = vld [vmem:[%s12 + $0x6c] sm:$0xf]
    %v10519 = vld [vmem:[%s12 + $0x70] sm:$0xf]
    %v10520 = vld [vmem:[%s12 + $0x74] sm:$0xf]
    %v10521 = vld [vmem:[%s12 + $0x78] sm:$0xf]
    %v10522 = vld [vmem:[%s12 + $0x7c] sm:$0xf]
    %v10523 = vld [vmem:[#allocation5] sm:$0x3]
    %v10524 = vld [vmem:[#allocation19] sm:$0xff]
    %vm10525 = vcmask 64512
    %v10527 = vsel %vm10525, %v10523, 0
    %10529 = vmatprep.subr.mxu0 0.0
    %10530 = vmatpush1.msra.mxu0 0.0
    %10531 = vmatprep.subr.mxu0 0.0
    %10532 = vmatpush1.msra.mxu0 0.0
    %10533 = vmatprep.subr.mxu0 0.0
    %10534 = vmatpush1.msra.mxu0 0.0
    %10535 = vmatprep.subr.mxu0 0.0
    %10536 = vmatpush1.msra.mxu0 0.0
    %10537 = vmatprep.subr.mxu0 0.0
    %10538 = vmatpush1.msra.mxu0 0.0
    %10539 = vmatprep.subr.mxu0 0.0
    %10540 = vmatpush1.msra.mxu0 0.0
    %10541 = vmatprep.subr.mxu0 0.0
    %10542 = vmatpush1.msra.mxu0 0.0
    %10543 = vmatprep.subr.mxu0 0.0
    %10544 = vmatpush1.msra.mxu0 0.0
    %10545 = vmatprep.subr.mxu0 0.0
    %10546 = vmatpush1.msra.mxu0 0.0
    %10547 = vmatprep.subr.mxu0 0.0
    %10548 = vmatpush1.msra.mxu0 0.0
    %10549 = vmatprep.subr.mxu0 0.0
    %10550 = vmatpush1.msra.mxu0 0.0
    %10551 = vmatprep.subr.mxu0 0.0
    %10552 = vmatpush1.msra.mxu0 0.0
    %10553 = vmatprep.subr.mxu0 0.0
    %10554 = vmatpush1.msra.mxu0 0.0
    %10555 = vmatprep.subr.mxu0 0.0
    %10556 = vmatpush1.msra.mxu0 0.0
    %10557 = vmatprep.subr.mxu0 0.0
    %10558 = vmatpush1.msra.mxu0 0.0
    %10559 = vmatprep.subr.mxu0 0.0
    %10560 = vmatpush1.msra.mxu0 %v10524
    %10561 = vmatprep.subr.mxu0 0.0
    %10562 = vmatpush2.msra.mxu0 0.0
    %10563 = vmatprep.subr.mxu0 0.0
    %10564 = vmatpush2.msra.mxu0 0.0
    %10565 = vmatprep.subr.mxu0 0.0
    %10566 = vmatpush2.msra.mxu0 0.0
    %10567 = vmatprep.subr.mxu0 0.0
    %10568 = vmatpush2.msra.mxu0 0.0
    %10569 = vmatprep.subr.mxu0 0.0
    %10570 = vmatpush2.msra.mxu0 0.0
    %10571 = vmatprep.subr.mxu0 0.0
    %10572 = vmatpush2.msra.mxu0 0.0
    %10573 = vmatprep.subr.mxu0 0.0
    %10574 = vmatpush2.msra.mxu0 0.0
    %10575 = vmatprep.subr.mxu0 0.0
    %10576 = vmatpush2.msra.mxu0 0.0
    %10577 = vmatprep.subr.mxu0 0.0
    %10578 = vmatpush2.msra.mxu0 0.0
    %10579 = vmatprep.subr.mxu0 0.0
    %10580 = vmatpush2.msra.mxu0 0.0
    %10581 = vmatprep.subr.mxu0 0.0
    %10582 = vmatpush2.msra.mxu0 0.0
    %10583 = vmatprep.subr.mxu0 0.0
    %10584 = vmatpush2.msra.mxu0 0.0
    %10585 = vmatprep.subr.mxu0 0.0
    %10586 = vmatpush2.msra.mxu0 0.0
    %10587 = vmatprep.subr.mxu0 0.0
    %10588 = vmatpush2.msra.mxu0 0.0
    %10589 = vmatprep.subr.mxu0 0.0
    %10590 = vmatpush2.msra.mxu0 0.0
    %10591 = vmatprep.subr.mxu0 0.0
    %10592 = vmatpush2.msra.mxu0 0.0
    %10593 = vmatprep.mubr.f32.mxu0 0.0
    %10594 = vmatmul.mubr.f32.gmra.mxu0 %v10527
    %v10595 = vpop.f32.mrf.mxu0
    %v10596 = vadd.f32 0.0, %v10595
    %v10597 = vpop.f32.mrf.mxu0
    %10598 = vdwg.mxu0
    %v10631 = vunpack.c.l.b16 %v10491
    %v10632 = vunpack.c.l.b16 %v10492
    %v10633 = vunpack.c.l.b16 %v10493
    %v10634 = vunpack.c.l.b16 %v10494
    %v10635 = vunpack.c.l.b16 %v10495
    %v10636 = vunpack.c.l.b16 %v10496
    %v10637 = vunpack.c.l.b16 %v10497
    %v10638 = vunpack.c.l.b16 %v10498
    %v10639 = vunpack.c.l.b16 %v10499
    %v10640 = vunpack.c.l.b16 %v10500
    %v10641 = vunpack.c.l.b16 %v10501
    %v10642 = vunpack.c.l.b16 %v10502
    %v10643 = vunpack.c.l.b16 %v10503
    %v10644 = vunpack.c.l.b16 %v10504
    %v10645 = vunpack.c.l.b16 %v10505
    %v10646 = vunpack.c.l.b16 %v10506
    %v10647 = vunpack.c.l.b16 %v10507
    %v10648 = vunpack.c.l.b16 %v10508
    %v10649 = vunpack.c.l.b16 %v10509
    %v10650 = vunpack.c.l.b16 %v10510
    %v10651 = vunpack.c.l.b16 %v10511
    %v10652 = vunpack.c.l.b16 %v10512
    %v10653 = vunpack.c.l.b16 %v10513
    %v10654 = vunpack.c.l.b16 %v10514
    %v10655 = vunpack.c.l.b16 %v10515
    %v10656 = vunpack.c.l.b16 %v10516
    %v10657 = vunpack.c.l.b16 %v10517
    %v10658 = vunpack.c.l.b16 %v10518
    %v10659 = vunpack.c.l.b16 %v10519
    %v10660 = vunpack.c.l.b16 %v10520
    %v10661 = vunpack.c.l.b16 %v10521
    %v10662 = vunpack.c.l.b16 %v10522
    %v10663 = vpack.c.b16 %v10632, %v10631
    %v10664 = vpack.c.b16 %v10634, %v10633
    %v10665 = vpack.c.b16 %v10636, %v10635
    %v10666 = vpack.c.b16 %v10638, %v10637
    %v10667 = vpack.c.b16 %v10640, %v10639
    %v10668 = vpack.c.b16 %v10642, %v10641
    %v10669 = vpack.c.b16 %v10644, %v10643
    %v10670 = vpack.c.b16 %v10646, %v10645
    %v10671 = vpack.c.b16 %v10648, %v10647
    %v10672 = vpack.c.b16 %v10650, %v10649
    %v10673 = vpack.c.b16 %v10652, %v10651
    %v10674 = vpack.c.b16 %v10654, %v10653
    %v10675 = vpack.c.b16 %v10656, %v10655
    %v10676 = vpack.c.b16 %v10658, %v10657
    %v10677 = vpack.c.b16 %v10660, %v10659
    %v10678 = vpack.c.b16 %v10662, %v10661
    %10695 = vmatprep.subr.bf16.mxu0 0
    %10696 = vmatpush1.bf16.msra.mxu0 %v10670
    %10697 = vmatprep.subr.bf16.mxu0 0
    %10698 = vmatpush1.bf16.msra.mxu0 %v10669
    %10699 = vmatprep.subr.bf16.mxu0 0
    %10700 = vmatpush1.bf16.msra.mxu0 %v10668
    %10701 = vmatprep.subr.bf16.mxu0 0
    %10702 = vmatpush1.bf16.msra.mxu0 %v10667
    %10703 = vmatprep.subr.bf16.mxu0 0
    %10704 = vmatpush1.bf16.msra.mxu0 %v10666
    %10705 = vmatprep.subr.bf16.mxu0 0
    %10706 = vmatpush1.bf16.msra.mxu0 %v10665
    %10707 = vmatprep.subr.bf16.mxu0 0
    %10708 = vmatpush1.bf16.msra.mxu0 %v10664
    %10709 = vmatprep.subr.bf16.mxu0 0
    %10710 = vmatpush1.bf16.msra.mxu0 %v10663
    %10711 = vmatprep.subr.bf16.mxu0 0
    %10712 = vmatpush2.bf16.msra.mxu0 %v10678
    %10713 = vmatprep.subr.bf16.mxu0 0
    %10714 = vmatpush2.bf16.msra.mxu0 %v10677
    %10715 = vmatprep.subr.bf16.mxu0 0
    %10716 = vmatpush2.bf16.msra.mxu0 %v10676
    %10717 = vmatprep.subr.bf16.mxu0 0
    %10718 = vmatpush2.bf16.msra.mxu0 %v10675
    %10719 = vmatprep.subr.bf16.mxu0 0
    %10720 = vmatpush2.bf16.msra.mxu0 %v10674
    %10721 = vmatprep.subr.bf16.mxu0 0
    %10722 = vmatpush2.bf16.msra.mxu0 %v10673
    %10723 = vmatprep.subr.bf16.mxu0 0
    %10724 = vmatpush2.bf16.msra.mxu0 %v10672
    %10725 = vmatprep.subr.bf16.mxu0 0
    %10726 = vmatpush2.bf16.msra.mxu0 %v10671
    %10727 = vmatprep.mubr.bf16.mxu0 %v10490
    %10728 = vmatmul.mubr.bf16.gmra.mxu0 %v10489
    %v10729 = vpop.f32.mrf.mxu0
    %v10730 = vadd.f32 %v10596, %v10729
    %v10731 = vpop.f32.mrf.mxu0
    %v10732 = vpop.f32.mrf.mxu0
    %v10733 = vpop.f32.mrf.mxu0
    %10734 = vdwg.mxu0
    %v10735 = vld [vmem:[#allocation21] sm:$0x1]
    %v10737 = vlaneseq
    %v10738 = vshrl.u32 %v10737, 7
    %v10739 = vsub.s32 0, %v10738
    %v10740 = vrot.slane %v10735, %v10739
    %v10742 = vadd.f32 %v10730, %v10740
    %v10743 = vmax.f32 %v10742, 0.0
    %v10744 = vld [vmem:[#allocation7] sm:$0x3]
    %v10745 = vld [vmem:[#allocation22] sm:$0xff]
    %v10746 = vld [vmem:[#allocation22 + $0x8] sm:$0xff]
    %v10747 = vld [vmem:[#allocation22 + $0x10] sm:$0xff]
    %v10748 = vld [vmem:[#allocation22 + $0x18] sm:$0xff]
    %v10749 = vld [vmem:[#allocation25] sm:$0x1]
    %v10751 = vlaneseq
    %v10752 = vshrl.u32 %v10751, 7
    %v10753 = vsub.s32 0, %v10752
    %v10754 = vrot.slane %v10749, %v10753
    %vm10756 = vcmask 261120
    %v10758 = vsel %vm10756, %v10743, 0
    %10760 = vmatprep.subr.mxu0 0.0
    %10761 = vmatpush1.msra.mxu0 0.0
    %10762 = vmatprep.subr.mxu0 0.0
    %10763 = vmatpush1.msra.mxu0 0.0
    %10764 = vmatprep.subr.mxu0 0.0
    %10765 = vmatpush1.msra.mxu0 0.0
    %10766 = vmatprep.subr.mxu0 0.0
    %10767 = vmatpush1.msra.mxu0 0.0
    %10768 = vmatprep.subr.mxu0 0.0
    %10769 = vmatpush1.msra.mxu0 0.0
    %10770 = vmatprep.subr.mxu0 0.0
    %10771 = vmatpush1.msra.mxu0 0.0
    %10772 = vmatprep.subr.mxu0 0.0
    %10773 = vmatpush1.msra.mxu0 0.0
    %10774 = vmatprep.subr.mxu0 0.0
    %10775 = vmatpush1.msra.mxu0 0.0
    %10776 = vmatprep.subr.mxu0 0.0
    %10777 = vmatpush1.msra.mxu0 0.0
    %10778 = vmatprep.subr.mxu0 0.0
    %10779 = vmatpush1.msra.mxu0 0.0
    %10780 = vmatprep.subr.mxu0 0.0
    %10781 = vmatpush1.msra.mxu0 0.0
    %10782 = vmatprep.subr.mxu0 0.0
    %10783 = vmatpush1.msra.mxu0 0.0
    %10784 = vmatprep.subr.mxu0 0.0
    %10785 = vmatpush1.msra.mxu0 %v10748
    %10786 = vmatprep.subr.mxu0 0.0
    %10787 = vmatpush1.msra.mxu0 %v10747
    %10788 = vmatprep.subr.mxu0 0.0
    %10789 = vmatpush1.msra.mxu0 %v10746
    %10790 = vmatprep.subr.mxu0 0.0
    %10791 = vmatpush1.msra.mxu0 %v10745
    %10792 = vmatprep.subr.mxu0 0.0
    %10793 = vmatpush2.msra.mxu0 0.0
    %10794 = vmatprep.subr.mxu0 0.0
    %10795 = vmatpush2.msra.mxu0 0.0
    %10796 = vmatprep.subr.mxu0 0.0
    %10797 = vmatpush2.msra.mxu0 0.0
    %10798 = vmatprep.subr.mxu0 0.0
    %10799 = vmatpush2.msra.mxu0 0.0
    %10800 = vmatprep.subr.mxu0 0.0
    %10801 = vmatpush2.msra.mxu0 0.0
    %10802 = vmatprep.subr.mxu0 0.0
    %10803 = vmatpush2.msra.mxu0 0.0
    %10804 = vmatprep.subr.mxu0 0.0
    %10805 = vmatpush2.msra.mxu0 0.0
    %10806 = vmatprep.subr.mxu0 0.0
    %10807 = vmatpush2.msra.mxu0 0.0
    %10808 = vmatprep.subr.mxu0 0.0
    %10809 = vmatpush2.msra.mxu0 0.0
    %10810 = vmatprep.subr.mxu0 0.0
    %10811 = vmatpush2.msra.mxu0 0.0
    %10812 = vmatprep.subr.mxu0 0.0
    %10813 = vmatpush2.msra.mxu0 0.0
    %10814 = vmatprep.subr.mxu0 0.0
    %10815 = vmatpush2.msra.mxu0 0.0
    %10816 = vmatprep.subr.mxu0 0.0
    %10817 = vmatpush2.msra.mxu0 0.0
    %10818 = vmatprep.subr.mxu0 0.0
    %10819 = vmatpush2.msra.mxu0 0.0
    %10820 = vmatprep.subr.mxu0 0.0
    %10821 = vmatpush2.msra.mxu0 0.0
    %10822 = vmatprep.subr.mxu0 0.0
    %10823 = vmatpush2.msra.mxu0 0.0
    %10824 = vmatprep.mubr.f32.mxu0 0.0
    %10825 = vmatmul.mubr.f32.gmra.mxu0 %v10758
    %v10826 = vpop.f32.mrf.mxu0
    %v10827 = vadd.f32 %v10754, %v10826
    %v10828 = vpop.f32.mrf.mxu0
    %10829 = vdwg.mxu0
    %v10830 = vld [vmem:[#allocation24] sm:$0xff]
    %v10831 = vld [vmem:[#allocation24 + $0x8] sm:$0xff]
    %v10832 = vld [vmem:[#allocation24 + $0x10] sm:$0xff]
    %v10833 = vld [vmem:[#allocation24 + $0x18] sm:$0xff]
    %v10834 = vld [vmem:[#allocation27] sm:$0x1]
    %v10836 = vlaneseq
    %v10837 = vshrl.u32 %v10836, 7
    %v10838 = vsub.s32 0, %v10837
    %v10839 = vrot.slane %v10834, %v10838
    %v10842 = vsel %vm10756, %v10744, 0
    %10844 = vmatprep.subr.mxu0 0.0
    %10845 = vmatpush1.msra.mxu0 0.0
    %10846 = vmatprep.subr.mxu0 0.0
    %10847 = vmatpush1.msra.mxu0 0.0
    %10848 = vmatprep.subr.mxu0 0.0
    %10849 = vmatpush1.msra.mxu0 0.0
    %10850 = vmatprep.subr.mxu0 0.0
    %10851 = vmatpush1.msra.mxu0 0.0
    %10852 = vmatprep.subr.mxu0 0.0
    %10853 = vmatpush1.msra.mxu0 0.0
    %10854 = vmatprep.subr.mxu0 0.0
    %10855 = vmatpush1.msra.mxu0 0.0
    %10856 = vmatprep.subr.mxu0 0.0
    %10857 = vmatpush1.msra.mxu0 0.0
    %10858 = vmatprep.subr.mxu0 0.0
    %10859 = vmatpush1.msra.mxu0 0.0
    %10860 = vmatprep.subr.mxu0 0.0
    %10861 = vmatpush1.msra.mxu0 0.0
    %10862 = vmatprep.subr.mxu0 0.0
    %10863 = vmatpush1.msra.mxu0 0.0
    %10864 = vmatprep.subr.mxu0 0.0
    %10865 = vmatpush1.msra.mxu0 0.0
    %10866 = vmatprep.subr.mxu0 0.0
    %10867 = vmatpush1.msra.mxu0 0.0
    %10868 = vmatprep.subr.mxu0 0.0
    %10869 = vmatpush1.msra.mxu0 %v10833
    %10870 = vmatprep.subr.mxu0 0.0
    %10871 = vmatpush1.msra.mxu0 %v10832
    %10872 = vmatprep.subr.mxu0 0.0
    %10873 = vmatpush1.msra.mxu0 %v10831
    %10874 = vmatprep.subr.mxu0 0.0
    %10875 = vmatpush1.msra.mxu0 %v10830
    %10876 = vmatprep.subr.mxu0 0.0
    %10877 = vmatpush2.msra.mxu0 0.0
    %10878 = vmatprep.subr.mxu0 0.0
    %10879 = vmatpush2.msra.mxu0 0.0
    %10880 = vmatprep.subr.mxu0 0.0
    %10881 = vmatpush2.msra.mxu0 0.0
    %10882 = vmatprep.subr.mxu0 0.0
    %10883 = vmatpush2.msra.mxu0 0.0
    %10884 = vmatprep.subr.mxu0 0.0
    %10885 = vmatpush2.msra.mxu0 0.0
    %10886 = vmatprep.subr.mxu0 0.0
    %10887 = vmatpush2.msra.mxu0 0.0
    %10888 = vmatprep.subr.mxu0 0.0
    %10889 = vmatpush2.msra.mxu0 0.0
    %10890 = vmatprep.subr.mxu0 0.0
    %10891 = vmatpush2.msra.mxu0 0.0
    %10892 = vmatprep.subr.mxu0 0.0
    %10893 = vmatpush2.msra.mxu0 0.0
    %10894 = vmatprep.subr.mxu0 0.0
    %10895 = vmatpush2.msra.mxu0 0.0
    %10896 = vmatprep.subr.mxu0 0.0
    %10897 = vmatpush2.msra.mxu0 0.0
    %10898 = vmatprep.subr.mxu0 0.0
    %10899 = vmatpush2.msra.mxu0 0.0
    %10900 = vmatprep.subr.mxu0 0.0
    %10901 = vmatpush2.msra.mxu0 0.0
    %10902 = vmatprep.subr.mxu0 0.0
    %10903 = vmatpush2.msra.mxu0 0.0
    %10904 = vmatprep.subr.mxu0 0.0
    %10905 = vmatpush2.msra.mxu0 0.0
    %10906 = vmatprep.subr.mxu0 0.0
    %10907 = vmatpush2.msra.mxu0 0.0
    %10908 = vmatprep.mubr.f32.mxu0 0.0
    %10909 = vmatmul.mubr.f32.gmra.mxu0 %v10842
    %v10910 = vpop.f32.mrf.mxu0
    %v10911 = vadd.f32 %v10839, %v10910
    %v10912 = vpop.f32.mrf.mxu0
    %10913 = vdwg.mxu0
    %v10914 = vadd.f32 %v10827, %v10911
    %v10915 = vxor.u32 %v10914, 2147483648
    %v10916 = vmul.f32 %v10915, 1.442695
    %v10917 = vpow.pop %v10916
    %v10918 = vadd.f32 %v10917, 1.0
    %v10919 = vrcp.pop %v10918
    %v10920 = vmul.f32 1.0, %v10919
    %10922 = vrot.lane.b32.xlu0 %v10911, 64
    %v10923 = vpop.permute.xlu0 %10922
    %v10925 = vmul.f32 %v10920, %v10923
    %10927 = vrot.lane.b32.xlu0 %v10925, 64
    %v10928 = vpop.permute.xlu0 %10927
    %v10930 = vadd.f32 %v10827, %v10928
    %v10931 = vtanh.pop %v10930
    %v10932 = vsub.f32 1.0, %v10920
    %10934 = vrot.lane.b32.xlu0 %v10931, 96
    %v10935 = vpop.permute.xlu0 %10934
    %v10937 = vmul.f32 %v10932, %v10935
    %10938 = vrot.lane.b32.xlu0 %v10744, 32
    %v10939 = vpop.permute.xlu0 %10938
    %v10941 = vmul.f32 %v10920, %v10939
    %v10942 = vadd.f32 %v10937, %v10941
    %v10943 = vld [vmem:[%s19] sm:$0xff]
    %v10944 = vld [vmem:[%s19 + $0x8] sm:$0xff]
    %v10945 = vld [vmem:[%s19 + $0x10] sm:$0xff]
    %v10946 = vld [vmem:[%s19 + $0x18] sm:$0xff]
    %v10947 = vld [vmem:[%s2] sm:$0x3]
    %v10948 = vld [vmem:[#allocation28] sm:$0xff]
    %v10950 = vsel %vm10525, %v10947, 0
    %10952 = vmatprep.subr.mxu0 0.0
    %10953 = vmatpush1.msra.mxu0 0.0
    %10954 = vmatprep.subr.mxu0 0.0
    %10955 = vmatpush1.msra.mxu0 0.0
    %10956 = vmatprep.subr.mxu0 0.0
    %10957 = vmatpush1.msra.mxu0 0.0
    %10958 = vmatprep.subr.mxu0 0.0
    %10959 = vmatpush1.msra.mxu0 0.0
    %10960 = vmatprep.subr.mxu0 0.0
    %10961 = vmatpush1.msra.mxu0 0.0
    %10962 = vmatprep.subr.mxu0 0.0
    %10963 = vmatpush1.msra.mxu0 0.0
    %10964 = vmatprep.subr.mxu0 0.0
    %10965 = vmatpush1.msra.mxu0 0.0
    %10966 = vmatprep.subr.mxu0 0.0
    %10967 = vmatpush1.msra.mxu0 0.0
    %10968 = vmatprep.subr.mxu0 0.0
    %10969 = vmatpush1.msra.mxu0 0.0
    %10970 = vmatprep.subr.mxu0 0.0
    %10971 = vmatpush1.msra.mxu0 0.0
    %10972 = vmatprep.subr.mxu0 0.0
    %10973 = vmatpush1.msra.mxu0 0.0
    %10974 = vmatprep.subr.mxu0 0.0
    %10975 = vmatpush1.msra.mxu0 0.0
    %10976 = vmatprep.subr.mxu0 0.0
    %10977 = vmatpush1.msra.mxu0 0.0
    %10978 = vmatprep.subr.mxu0 0.0
    %10979 = vmatpush1.msra.mxu0 0.0
    %10980 = vmatprep.subr.mxu0 0.0
    %10981 = vmatpush1.msra.mxu0 0.0
    %10982 = vmatprep.subr.mxu0 0.0
    %10983 = vmatpush1.msra.mxu0 %v10948
    %10984 = vmatprep.subr.mxu0 0.0
    %10985 = vmatpush2.msra.mxu0 0.0
    %10986 = vmatprep.subr.mxu0 0.0
    %10987 = vmatpush2.msra.mxu0 0.0
    %10988 = vmatprep.subr.mxu0 0.0
    %10989 = vmatpush2.msra.mxu0 0.0
    %10990 = vmatprep.subr.mxu0 0.0
    %10991 = vmatpush2.msra.mxu0 0.0
    %10992 = vmatprep.subr.mxu0 0.0
    %10993 = vmatpush2.msra.mxu0 0.0
    %10994 = vmatprep.subr.mxu0 0.0
    %10995 = vmatpush2.msra.mxu0 0.0
    %10996 = vmatprep.subr.mxu0 0.0
    %10997 = vmatpush2.msra.mxu0 0.0
    %10998 = vmatprep.subr.mxu0 0.0
    %10999 = vmatpush2.msra.mxu0 0.0
    %11000 = vmatprep.subr.mxu0 0.0
    %11001 = vmatpush2.msra.mxu0 0.0
    %11002 = vmatprep.subr.mxu0 0.0
    %11003 = vmatpush2.msra.mxu0 0.0
    %11004 = vmatprep.subr.mxu0 0.0
    %11005 = vmatpush2.msra.mxu0 0.0
    %11006 = vmatprep.subr.mxu0 0.0
    %11007 = vmatpush2.msra.mxu0 0.0
    %11008 = vmatprep.subr.mxu0 0.0
    %11009 = vmatpush2.msra.mxu0 0.0
    %11010 = vmatprep.subr.mxu0 0.0
    %11011 = vmatpush2.msra.mxu0 0.0
    %11012 = vmatprep.subr.mxu0 0.0
    %11013 = vmatpush2.msra.mxu0 0.0
    %11014 = vmatprep.subr.mxu0 0.0
    %11015 = vmatpush2.msra.mxu0 0.0
    %11016 = vmatprep.mubr.f32.mxu0 0.0
    %11017 = vmatmul.mubr.f32.gmra.mxu0 %v10950
    %v11018 = vpop.f32.mrf.mxu0
    %v11019 = vadd.f32 0.0, %v11018
    %v11020 = vpop.f32.mrf.mxu0
    %11021 = vdwg.mxu0
    %11023 = vrot.lane.b32.xlu0 %v10942, 96
    %v11024 = vpop.permute.xlu0 %11023
    %v11025 = vsel %vm10756, %v11024, 0
    %11027 = vmatprep.subr.mxu0 0.0
    %11028 = vmatpush1.msra.mxu0 0.0
    %11029 = vmatprep.subr.mxu0 0.0
    %11030 = vmatpush1.msra.mxu0 0.0
    %11031 = vmatprep.subr.mxu0 0.0
    %11032 = vmatpush1.msra.mxu0 0.0
    %11033 = vmatprep.subr.mxu0 0.0
    %11034 = vmatpush1.msra.mxu0 0.0
    %11035 = vmatprep.subr.mxu0 0.0
    %11036 = vmatpush1.msra.mxu0 0.0
    %11037 = vmatprep.subr.mxu0 0.0
    %11038 = vmatpush1.msra.mxu0 0.0
    %11039 = vmatprep.subr.mxu0 0.0
    %11040 = vmatpush1.msra.mxu0 0.0
    %11041 = vmatprep.subr.mxu0 0.0
    %11042 = vmatpush1.msra.mxu0 0.0
    %11043 = vmatprep.subr.mxu0 0.0
    %11044 = vmatpush1.msra.mxu0 0.0
    %11045 = vmatprep.subr.mxu0 0.0
    %11046 = vmatpush1.msra.mxu0 0.0
    %11047 = vmatprep.subr.mxu0 0.0
    %11048 = vmatpush1.msra.mxu0 0.0
    %11049 = vmatprep.subr.mxu0 0.0
    %11050 = vmatpush1.msra.mxu0 0.0
    %11051 = vmatprep.subr.mxu0 0.0
    %11052 = vmatpush1.msra.mxu0 %v10946
    %11053 = vmatprep.subr.mxu0 0.0
    %11054 = vmatpush1.msra.mxu0 %v10945
    %11055 = vmatprep.subr.mxu0 0.0
    %11056 = vmatpush1.msra.mxu0 %v10944
    %11057 = vmatprep.subr.mxu0 0.0
    %11058 = vmatpush1.msra.mxu0 %v10943
    %11059 = vmatprep.subr.mxu0 0.0
    %11060 = vmatpush2.msra.mxu0 0.0
    %11061 = vmatprep.subr.mxu0 0.0
    %11062 = vmatpush2.msra.mxu0 0.0
    %11063 = vmatprep.subr.mxu0 0.0
    %11064 = vmatpush2.msra.mxu0 0.0
    %11065 = vmatprep.subr.mxu0 0.0
    %11066 = vmatpush2.msra.mxu0 0.0
    %11067 = vmatprep.subr.mxu0 0.0
    %11068 = vmatpush2.msra.mxu0 0.0
    %11069 = vmatprep.subr.mxu0 0.0
    %11070 = vmatpush2.msra.mxu0 0.0
    %11071 = vmatprep.subr.mxu0 0.0
    %11072 = vmatpush2.msra.mxu0 0.0
    %11073 = vmatprep.subr.mxu0 0.0
    %11074 = vmatpush2.msra.mxu0 0.0
    %11075 = vmatprep.subr.mxu0 0.0
    %11076 = vmatpush2.msra.mxu0 0.0
    %11077 = vmatprep.subr.mxu0 0.0
    %11078 = vmatpush2.msra.mxu0 0.0
    %11079 = vmatprep.subr.mxu0 0.0
    %11080 = vmatpush2.msra.mxu0 0.0
    %11081 = vmatprep.subr.mxu0 0.0
    %11082 = vmatpush2.msra.mxu0 0.0
    %11083 = vmatprep.subr.mxu0 0.0
    %11084 = vmatpush2.msra.mxu0 0.0
    %11085 = vmatprep.subr.mxu0 0.0
    %11086 = vmatpush2.msra.mxu0 0.0
    %11087 = vmatprep.subr.mxu0 0.0
    %11088 = vmatpush2.msra.mxu0 0.0
    %11089 = vmatprep.subr.mxu0 0.0
    %11090 = vmatpush2.msra.mxu0 0.0
    %11091 = vmatprep.mubr.f32.mxu0 0.0
    %11092 = vmatmul.mubr.f32.gmra.mxu0 %v11025
    %v11093 = vpop.f32.mrf.mxu0
    %v11094 = vadd.f32 %v11019, %v11093
    %v11095 = vpop.f32.mrf.mxu0
    %11096 = vdwg.mxu0
    %v11097 = vld [vmem:[#allocation30] sm:$0x1]
    %v11099 = vlaneseq
    %v11100 = vshrl.u32 %v11099, 7
    %v11101 = vsub.s32 0, %v11100
    %v11102 = vrot.slane %v11097, %v11101
    %v11104 = vadd.f32 %v11094, %v11102
    %v11105 = vmax.f32 %v11104, 0.0
    %v11106 = vld [vmem:[#allocation31] sm:$0xff]
    %v11107 = vld [vmem:[#allocation31 + $0x8] sm:$0xff]
    %v11108 = vld [vmem:[#allocation33] sm:$0x1]
    %v11110 = vlaneseq
    %v11111 = vshrl.u32 %v11110, 7
    %v11112 = vsub.s32 0, %v11111
    %v11113 = vrot.slane %v11108, %v11112
    %vm11115 = vcmask 130048
    %v11117 = vsel %vm11115, %v11105, 0
    %11119 = vmatprep.subr.mxu0 0.0
    %11120 = vmatpush1.msra.mxu0 0.0
    %11121 = vmatprep.subr.mxu0 0.0
    %11122 = vmatpush1.msra.mxu0 0.0
    %11123 = vmatprep.subr.mxu0 0.0
    %11124 = vmatpush1.msra.mxu0 0.0
    %11125 = vmatprep.subr.mxu0 0.0
    %11126 = vmatpush1.msra.mxu0 0.0
    %11127 = vmatprep.subr.mxu0 0.0
    %11128 = vmatpush1.msra.mxu0 0.0
    %11129 = vmatprep.subr.mxu0 0.0
    %11130 = vmatpush1.msra.mxu0 0.0
    %11131 = vmatprep.subr.mxu0 0.0
    %11132 = vmatpush1.msra.mxu0 0.0
    %11133 = vmatprep.subr.mxu0 0.0
    %11134 = vmatpush1.msra.mxu0 0.0
    %11135 = vmatprep.subr.mxu0 0.0
    %11136 = vmatpush1.msra.mxu0 0.0
    %11137 = vmatprep.subr.mxu0 0.0
    %11138 = vmatpush1.msra.mxu0 0.0
    %11139 = vmatprep.subr.mxu0 0.0
    %11140 = vmatpush1.msra.mxu0 0.0
    %11141 = vmatprep.subr.mxu0 0.0
    %11142 = vmatpush1.msra.mxu0 0.0
    %11143 = vmatprep.subr.mxu0 0.0
    %11144 = vmatpush1.msra.mxu0 0.0
    %11145 = vmatprep.subr.mxu0 0.0
    %11146 = vmatpush1.msra.mxu0 0.0
    %11147 = vmatprep.subr.mxu0 0.0
    %11148 = vmatpush1.msra.mxu0 %v11107
    %11149 = vmatprep.subr.mxu0 0.0
    %11150 = vmatpush1.msra.mxu0 %v11106
    %11151 = vmatprep.subr.mxu0 0.0
    %11152 = vmatpush2.msra.mxu0 0.0
    %11153 = vmatprep.subr.mxu0 0.0
    %11154 = vmatpush2.msra.mxu0 0.0
    %11155 = vmatprep.subr.mxu0 0.0
    %11156 = vmatpush2.msra.mxu0 0.0
    %11157 = vmatprep.subr.mxu0 0.0
    %11158 = vmatpush2.msra.mxu0 0.0
    %11159 = vmatprep.subr.mxu0 0.0
    %11160 = vmatpush2.msra.mxu0 0.0
    %11161 = vmatprep.subr.mxu0 0.0
    %11162 = vmatpush2.msra.mxu0 0.0
    %11163 = vmatprep.subr.mxu0 0.0
    %11164 = vmatpush2.msra.mxu0 0.0
    %11165 = vmatprep.subr.mxu0 0.0
    %11166 = vmatpush2.msra.mxu0 0.0
    %11167 = vmatprep.subr.mxu0 0.0
    %11168 = vmatpush2.msra.mxu0 0.0
    %11169 = vmatprep.subr.mxu0 0.0
    %11170 = vmatpush2.msra.mxu0 0.0
    %11171 = vmatprep.subr.mxu0 0.0
    %11172 = vmatpush2.msra.mxu0 0.0
    %11173 = vmatprep.subr.mxu0 0.0
    %11174 = vmatpush2.msra.mxu0 0.0
    %11175 = vmatprep.subr.mxu0 0.0
    %11176 = vmatpush2.msra.mxu0 0.0
    %11177 = vmatprep.subr.mxu0 0.0
    %11178 = vmatpush2.msra.mxu0 0.0
    %11179 = vmatprep.subr.mxu0 0.0
    %11180 = vmatpush2.msra.mxu0 0.0
    %11181 = vmatprep.subr.mxu0 0.0
    %11182 = vmatpush2.msra.mxu0 0.0
    %11183 = vmatprep.mubr.f32.mxu0 0.0
    %11184 = vmatmul.mubr.f32.gmra.mxu0 %v11117
    %v11185 = vpop.f32.mrf.mxu0
    %v11186 = vadd.f32 %v11113, %v11185
    %v11187 = vpop.f32.mrf.mxu0
    %11188 = vdwg.mxu0
    %11189 = vrot.lane.b32.xlu0 %v10942, 64
    %v11190 = vpop.permute.xlu0 %11189
    %vm11192 = vcmask 785408
    %v11193 = vsel %vm11192, %v11186, %v11190
    %11194 = vst [vmem:[%s24] sm:$0x3] %v11193
    // Predicated region
    $region174: #{see_id_agent_forward.1} parent=1 // pred_check
      _
    $region175: #{see_id_agent_forward.1} parent=1 // pred_check_branch
      %11196 = sbr.rel (0) target = $region177
    $region176: #{see_id_agent_forward.1} parent=1 // pred_region
      _
    $region177: #{see_id_agent_forward.1} parent=1 // pred_fallthru
      _
    // Predicated region
    $region178: #{see_id_agent_forward.1} parent=1 // pred_check
      _
    $region179: #{see_id_agent_forward.1} parent=1 // pred_check_branch
      %11198 = sbr.rel (0) target = $region181
    $region180: #{see_id_agent_forward.1} parent=1 // pred_region
      _
    $region181: #{see_id_agent_forward.1} parent=1 // pred_fallthru
      _
    %11199 = vsyncpa [#allocation6], 1
    %11200 = vsyncpa [#allocation8], 1
    %11201 = vsyncpa [#allocation11], 1
    %11202 = vsyncpa [#allocation14], 1
    %11203 = vsyncpa [#allocation17], 1
    %11204 = vsyncpa [#allocation20], 1
    %11205 = vsyncpa [#allocation23], 1
    %11206 = vsyncpa [#allocation26], 1
    %11207 = vsyncpa [#allocation29], 1
    %11208 = vsyncpa [#allocation32], 1

</llo_original>
